<compile_context>
chip_gen: v6e
topology: v6e:2x2x1
jax: 0.10.0
libtpu: 0.0.40
codegen_flags: <defaults>
</compile_context>

<pallas_src>
import functools

import jax
import jax.numpy as jnp
from jax.experimental import pallas as pl
from jax.experimental.pallas import tpu as pltpu

LANES = 128          # padded channel width (TPU lane dim)
OUT_SUBLANES = 8     # sublane padding for the tiny per-image outputs


# ----------------------------------------------------------------------------
# Pallas kernel: full SimCLR forward for one image per grid step
# ----------------------------------------------------------------------------

def _simclr_kernel(x_ref, mask_ref, w1_ref, b1_ref, w2_ref, b2_ref,
                   w3_ref, b3_ref, pw_ref, pb_ref,
                   feat_ref, proj_ref, h1_ref, h2_ref,
                   *, H, W, pad_rows):
    Wp = W + 2
    L = (H + 2) * Wp                    # flattened spatially-padded length
    C = LANES
    # flat row offsets of the 9 taps of a 3x3 / stride 1 / pad 1 conv
    offs = [(kh - 1) * Wp + (kw - 1) for kh in range(3) for kw in range(3)]
    mask = mask_ref[...]                # (L, 1) f32, 1.0 at interior pixels

    def conv3x3(load, w_ref, b_ref, residual=None):
        # im2col fused in-kernel: 9 shifted-slice matmuls, f32 accumulation.
        acc = jnp.zeros((L, C), jnp.float32)
        for k, off in enumerate(offs):
            win = load(pad_rows + off).astype(jnp.bfloat16)       # (L, C)
            acc = acc + jnp.dot(win, w_ref[k],
                                preferred_element_type=jnp.float32)
        acc = acc + b_ref[...]          # folded BN bias (scale folded into w)
        if residual is not None:
            acc = acc + residual
        # ReLU, then zero the padded-border rows so the result can feed the
        # next conv as its zero padding (and the GAP sum).
        return jnp.maximum(acc, 0.0) * mask

    # whole per-image slab, bf16 in HBM -> f32 for unpacked row-shift slicing
    xv = x_ref[...].astype(jnp.float32)                           # (L_ext, C)

    # stem: conv1 (3x3, s1, p1, no conv bias) + BN + ReLU ; maxpool = Identity
    h1 = conv3x3(lambda s: xv[s:s + L, :], w1_ref, b1_ref)
    h1_ref[...] = jnp.zeros_like(h1_ref)
    h1_ref[pad_rows:pad_rows + L, :] = h1

    # BasicBlock: conv2 + BN + ReLU
    h2 = conv3x3(lambda s: h1_ref[s:s + L, :], w2_ref, b2_ref)
    h2_ref[...] = jnp.zeros_like(h2_ref)
    h2_ref[pad_rows:pad_rows + L, :] = h2

    # BasicBlock: conv3 + BN + residual(h1, f32) + ReLU
    h3 = conv3x3(lambda s: h2_ref[s:s + L, :], w3_ref, b3_ref, residual=h1)

    # global average pool over the H*W valid pixels -> feature (enc.fc = Identity)
    feat = jnp.sum(h3, axis=0, keepdims=True) * (1.0 / (H * W))   # (1, C)
    feat_ref[...] = jnp.broadcast_to(feat, feat_ref.shape)

    # projector: Linear(feature_dim, projection_dim) on the padded feature
    proj = jnp.dot(feat, pw_ref[...], preferred_element_type=jnp.float32)
    proj = proj + pb_ref[...]
    proj_ref[...] = jnp.broadcast_to(proj, proj_ref.shape)


# ----------------------------------------------------------------------------
# Wrapper
# ----------------------------------------------------------------------------

def simclr_forward(x_nchw, params, feature_dim=64, projection_dim=128):
    N, Cin, H, W = x_nchw.shape
    C = LANES
    assert Cin <= C and feature_dim <= C
    Wp = W + 2
    L = (H + 2) * Wp
    pad_rows = ((Wp + 1 + 7) // 8) * 8          # >= Wp + 1, sublane-aligned
    L_ext = L + 2 * pad_rows

    # NCHW -> NHWC, zero-pad halo + channels to 128 lanes, flatten the padded
    # spatial grid, and add `pad_rows` zero rows at both ends so every shifted
    # slice inside the kernel stays in range.  bf16 to halve HBM traffic.
    x = jnp.transpose(x_nchw, (0, 2, 3, 1)).astype(jnp.float32)
    x = jnp.pad(x, ((0, 0), (1, 1), (1, 1), (0, C - Cin)))
    x = x.reshape(N, L, C)
    x = jnp.pad(x, ((0, 0), (pad_rows, pad_rows), (0, 0))).astype(jnp.bfloat16)

    # interior-pixel mask over the flattened padded grid (constant under jit)
    p = jnp.arange(L, dtype=jnp.int32)
    a, b = p // Wp, p % Wp
    mask = (((a >= 1) & (a <= H) & (b >= 1) & (b <= W))
            .astype(jnp.float32).reshape(L, 1))

    kernel = functools.partial(_simclr_kernel, H=H, W=W, pad_rows=pad_rows)

    def full_spec(shape):
        return pl.BlockSpec(shape, lambda n: (0,) * len(shape))

    feat_full, proj_full = pl.pallas_call(
        kernel,
        out_shape=(jax.ShapeDtypeStruct((N, OUT_SUBLANES, C), jnp.float32),
                   jax.ShapeDtypeStruct((N, OUT_SUBLANES, projection_dim),
                                        jnp.float32)),
        grid=(N,),
        in_specs=[
            pl.BlockSpec((None, L_ext, C), lambda n: (n, 0, 0)),   # x (per image)
            full_spec((L, 1)),                   # interior mask
            full_spec((9, C, C)),                # conv1 taps (BN scale folded, bf16)
            full_spec((1, C)),                   # conv1 folded-BN bias
            full_spec((9, C, C)),                # conv2 taps
            full_spec((1, C)),                   # conv2 bias
            full_spec((9, C, C)),                # conv3 taps
            full_spec((1, C)),                   # conv3 bias
            full_spec((C, projection_dim)),      # projector weight (row-padded)
            full_spec((1, projection_dim)),      # projector bias
        ],
        out_specs=(
            pl.BlockSpec((None, OUT_SUBLANES, C), lambda n: (n, 0, 0)),
            pl.BlockSpec((None, OUT_SUBLANES, projection_dim),
                         lambda n: (n, 0, 0)),
        ),
        scratch_shapes=[pltpu.VMEM((L_ext, C), jnp.float32),   # h1 (padded, flat)
                        pltpu.VMEM((L_ext, C), jnp.float32)],  # h2 (padded, flat)
        compiler_params=pltpu.CompilerParams(
            dimension_semantics=("parallel",)),
    )(x, mask, params["w1"], params["b1"], params["w2"], params["b2"],
      params["w3"], params["b3"], params["pw"], params["pb"])

    feature = feat_full[:, 0, :feature_dim]
    projection = proj_full[:, 0, :]
    return feature, projection


# ----------------------------------------------------------------------------
# Parameter construction (done once: BN folding, padding, bf16 casts)
# ----------------------------------------------------------------------------

def init_params(key, feature_dim=64, projection_dim=128):
    C = LANES
    ks = jax.random.split(key, 8)

    def conv_w(k, cout, cin):
        fan_in = cin * 9
        return jax.random.normal(k, (cout, cin, 3, 3), jnp.float32) * jnp.sqrt(2.0 / fan_in)

    def bn(k, c, eps=1e-5):
        k1, k2, k3, k4 = jax.random.split(k, 4)
        gamma = 1.0 + 0.1 * jax.random.normal(k1, (c,), jnp.float32)
        beta = 0.1 * jax.random.normal(k2, (c,), jnp.float32)
        mean = 0.1 * jax.random.normal(k3, (c,), jnp.float32)
        var = 1.0 + 0.1 * jnp.abs(jax.random.normal(k4, (c,), jnp.float32))
        scale = gamma / jnp.sqrt(var + eps)
        bias = beta - mean * scale
        return scale, bias

    def pack_conv(w_oihw, scale, bias):
        cout, cin, kh, kw = w_oihw.shape
        w = jnp.transpose(w_oihw, (2, 3, 1, 0)).reshape(kh * kw, cin, cout)
        w = w * scale[None, None, :]                       # fold BN scale into weights
        w = jnp.pad(w, ((0, 0), (0, C - cin), (0, C - cout)))
        b = jnp.pad(bias, (0, C - cout)).reshape(1, C).astype(jnp.float32)
        return w.astype(jnp.bfloat16), b

    params = {}
    s1, b1 = bn(ks[1], feature_dim)
    params["w1"], params["b1"] = pack_conv(conv_w(ks[0], feature_dim, 3), s1, b1)
    s2, b2 = bn(ks[3], feature_dim)
    params["w2"], params["b2"] = pack_conv(conv_w(ks[2], feature_dim, feature_dim), s2, b2)
    s3, b3 = bn(ks[5], feature_dim)
    params["w3"], params["b3"] = pack_conv(conv_w(ks[4], feature_dim, feature_dim), s3, b3)

    # projector: Linear(feature_dim, projection_dim); PyTorch weight is [out, in],
    # stored here transposed [in, out] and row-padded to the 128-lane width.
    bound = float(1.0 / (feature_dim ** 0.5))
    pw = jax.random.uniform(ks[6], (feature_dim, projection_dim), jnp.float32, -bound, bound)
    pb = jax.random.uniform(ks[7], (projection_dim,), jnp.float32, -bound, bound)
    params["pw"] = jnp.pad(pw, ((0, C - feature_dim), (0, 0)))
    params["pb"] = pb.reshape(1, projection_dim)
    return params


# ----------------------------------------------------------------------------
# Pure-JAX reference (same packed params) for a numerical sanity check
# ----------------------------------------------------------------------------

def reference_forward(x_nchw, params, feature_dim=64):
    C = LANES
    x = jnp.transpose(x_nchw, (0, 2, 3, 1)).astype(jnp.float32)
    N, H, W, Cin = x.shape
    x = jnp.pad(x, ((0, 0), (0, 0), (0, 0), (0, C - Cin)))

    def conv(h, w9, b, residual=None):
        hp = jnp.pad(h, ((0, 0), (1, 1), (1, 1), (0, 0)))
        acc = jnp.zeros(h.shape[:3] + (C,), jnp.float32)
        k = 0
        for kh in range(3):
            for kw in range(3):
                acc = acc + jnp.einsum(
                    "nhwc,cd->nhwd", hp[:, kh:kh + H, kw:kw + W, :],
                    w9[k].astype(jnp.float32))
                k += 1
        acc = acc + b.reshape(1, 1, 1, C)
        if residual is not None:
            acc = acc + residual
        return jnp.maximum(acc, 0.0)

    h1 = conv(x, params["w1"], params["b1"])
    h2 = conv(h1, params["w2"], params["b2"])
    h3 = conv(h2, params["w3"], params["b3"], residual=h1)
    feat = jnp.mean(h3, axis=(1, 2))
    proj = feat @ params["pw"] + params["pb"].reshape(-1)
    return feat[:, :feature_dim], proj


# ----------------------------------------------------------------------------
# Main
# ----------------------------------------------------------------------------

if __name__ == "__main__":
    key = jax.random.PRNGKey(0)
    k_x, k_p = jax.random.split(key)

    # small example input, NCHW to match the PyTorch module's forward
    x = jax.random.normal(k_x, (2, 3, 16, 16), jnp.float32)
    params = init_params(k_p, feature_dim=64, projection_dim=128)

    feature, projection = jax.jit(simclr_forward)(x, params)
    jax.block_until_ready((feature, projection))

    assert feature.shape == (2, 64)
    assert projection.shape == (2, 128)

    ref_feat, ref_proj = reference_forward(x, params)
    err_f = float(jnp.max(jnp.abs(feature - ref_feat)))
    err_p = float(jnp.max(jnp.abs(projection - ref_proj)))
    assert err_f < 5e-2 and err_p < 5e-2, (err_f, err_p)

    print("KERNEL_OK")
</pallas_src>

<mosaic_0001>
module attributes {stable_mosaic.version = 11 : i64} {
  func.func @_simclr_kernel(%arg0: i32, %arg1: memref<1x372x128xbf16, #tpu.memory_space<vmem>>, %arg2: memref<324x1xf32, #tpu.memory_space<vmem>>, %arg3: memref<9x128x128xbf16, #tpu.memory_space<vmem>>, %arg4: memref<1x128xf32, #tpu.memory_space<vmem>>, %arg5: memref<9x128x128xbf16, #tpu.memory_space<vmem>>, %arg6: memref<1x128xf32, #tpu.memory_space<vmem>>, %arg7: memref<9x128x128xbf16, #tpu.memory_space<vmem>>, %arg8: memref<1x128xf32, #tpu.memory_space<vmem>>, %arg9: memref<128x128xf32, #tpu.memory_space<vmem>>, %arg10: memref<1x128xf32, #tpu.memory_space<vmem>>, %arg11: memref<1x8x128xf32, #tpu.memory_space<vmem>>, %arg12: memref<1x8x128xf32, #tpu.memory_space<vmem>>, %arg13: memref<372x128xf32, #tpu.memory_space<vmem>>, %arg14: memref<372x128xf32, #tpu.memory_space<vmem>>) attributes {dimension_semantics = [#tpu.dimension_semantics<parallel>], iteration_bounds = array<i64: 2>, scalar_prefetch = 0 : i64, scratch_operands = 2 : i64, tpu.core_type = #tpu.core_type<tc>, window_params = [{transform_indices = @transform_0, window_bounds = array<i64: 1, 372, 128>}, {pipeline_mode = #tpu.pipeline_mode<synchronous>, transform_indices = @transform_1, window_bounds = array<i64: 324, 1>}, {pipeline_mode = #tpu.pipeline_mode<synchronous>, transform_indices = @transform_2, window_bounds = array<i64: 9, 128, 128>}, {pipeline_mode = #tpu.pipeline_mode<synchronous>, transform_indices = @transform_3, window_bounds = array<i64: 1, 128>}, {pipeline_mode = #tpu.pipeline_mode<synchronous>, transform_indices = @transform_4, window_bounds = array<i64: 9, 128, 128>}, {pipeline_mode = #tpu.pipeline_mode<synchronous>, transform_indices = @transform_5, window_bounds = array<i64: 1, 128>}, {pipeline_mode = #tpu.pipeline_mode<synchronous>, transform_indices = @transform_6, window_bounds = array<i64: 9, 128, 128>}, {pipeline_mode = #tpu.pipeline_mode<synchronous>, transform_indices = @transform_7, window_bounds = array<i64: 1, 128>}, {pipeline_mode = #tpu.pipeline_mode<synchronous>, transform_indices = @transform_8, window_bounds = array<i64: 128, 128>}, {pipeline_mode = #tpu.pipeline_mode<synchronous>, transform_indices = @transform_9, window_bounds = array<i64: 1, 128>}, {transform_indices = @transform_10, window_bounds = array<i64: 1, 8, 128>}, {transform_indices = @transform_11, window_bounds = array<i64: 1, 8, 128>}]} {
    %c0 = arith.constant 0 : index
    %c0_0 = arith.constant 0 : index
    %0 = vector.load %arg2[%c0, %c0_0] : memref<324x1xf32, #tpu.memory_space<vmem>>, vector<324x1xf32>
    %c0_1 = arith.constant 0 : index
    %c0_2 = arith.constant 0 : index
    %c0_3 = arith.constant 0 : index
    %1 = vector.load %arg1[%c0_1, %c0_2, %c0_3] : memref<1x372x128xbf16, #tpu.memory_space<vmem>>, vector<1x372x128xbf16>
    %2 = vector.shape_cast %1 : vector<1x372x128xbf16> to vector<372x128xbf16>
    %3 = arith.extf %2 : vector<372x128xbf16> to vector<372x128xf32>
    %cst = arith.constant 0.000000e+00 : f32
    %4 = vector.broadcast %cst : f32 to vector<324x128xf32>
    %5 = vector.extract_strided_slice %3 {offsets = [5, 0], sizes = [324, 128], strides = [1, 1]} : vector<372x128xf32> to vector<324x128xf32>
    %6 = arith.truncf %5 : vector<324x128xf32> to vector<324x128xbf16>
    %c0_4 = arith.constant 0 : index
    %c0_5 = arith.constant 0 : index
    %c0_6 = arith.constant 0 : index
    %7 = vector.load %arg3[%c0_4, %c0_5, %c0_6] : memref<9x128x128xbf16, #tpu.memory_space<vmem>>, vector<1x128x128xbf16>
    %8 = vector.shape_cast %7 : vector<1x128x128xbf16> to vector<128x128xbf16>
    %cst_7 = arith.constant dense<0.000000e+00> : vector<324x128xf32>
    %9 = tpu.matmul %6, %8, %cst_7 {dimension_numbers = #tpu.dot_dimension_numbers<[1], [0], [0], [1], [0, 0, 1, 1], [], []>} : vector<324x128xbf16>, vector<128x128xbf16>, vector<324x128xf32> -> vector<324x128xf32>
    %10 = arith.addf %4, %9 : vector<324x128xf32>
    %11 = vector.extract_strided_slice %3 {offsets = [6, 0], sizes = [324, 128], strides = [1, 1]} : vector<372x128xf32> to vector<324x128xf32>
    %12 = arith.truncf %11 : vector<324x128xf32> to vector<324x128xbf16>
    %c1 = arith.constant 1 : index
    %c0_8 = arith.constant 0 : index
    %c0_9 = arith.constant 0 : index
    %13 = vector.load %arg3[%c1, %c0_8, %c0_9] : memref<9x128x128xbf16, #tpu.memory_space<vmem>>, vector<1x128x128xbf16>
    %14 = vector.shape_cast %13 : vector<1x128x128xbf16> to vector<128x128xbf16>
    %cst_10 = arith.constant dense<0.000000e+00> : vector<324x128xf32>
    %15 = tpu.matmul %12, %14, %cst_10 {dimension_numbers = #tpu.dot_dimension_numbers<[1], [0], [0], [1], [0, 0, 1, 1], [], []>} : vector<324x128xbf16>, vector<128x128xbf16>, vector<324x128xf32> -> vector<324x128xf32>
    %16 = arith.addf %10, %15 : vector<324x128xf32>
    %17 = vector.extract_strided_slice %3 {offsets = [7, 0], sizes = [324, 128], strides = [1, 1]} : vector<372x128xf32> to vector<324x128xf32>
    %18 = arith.truncf %17 : vector<324x128xf32> to vector<324x128xbf16>
    %c2 = arith.constant 2 : index
    %c0_11 = arith.constant 0 : index
    %c0_12 = arith.constant 0 : index
    %19 = vector.load %arg3[%c2, %c0_11, %c0_12] : memref<9x128x128xbf16, #tpu.memory_space<vmem>>, vector<1x128x128xbf16>
    %20 = vector.shape_cast %19 : vector<1x128x128xbf16> to vector<128x128xbf16>
    %cst_13 = arith.constant dense<0.000000e+00> : vector<324x128xf32>
    %21 = tpu.matmul %18, %20, %cst_13 {dimension_numbers = #tpu.dot_dimension_numbers<[1], [0], [0], [1], [0, 0, 1, 1], [], []>} : vector<324x128xbf16>, vector<128x128xbf16>, vector<324x128xf32> -> vector<324x128xf32>
    %22 = arith.addf %16, %21 : vector<324x128xf32>
    %23 = vector.extract_strided_slice %3 {offsets = [23, 0], sizes = [324, 128], strides = [1, 1]} : vector<372x128xf32> to vector<324x128xf32>
    %24 = arith.truncf %23 : vector<324x128xf32> to vector<324x128xbf16>
    %c3 = arith.constant 3 : index
    %c0_14 = arith.constant 0 : index
    %c0_15 = arith.constant 0 : index
    %25 = vector.load %arg3[%c3, %c0_14, %c0_15] : memref<9x128x128xbf16, #tpu.memory_space<vmem>>, vector<1x128x128xbf16>
    %26 = vector.shape_cast %25 : vector<1x128x128xbf16> to vector<128x128xbf16>
    %cst_16 = arith.constant dense<0.000000e+00> : vector<324x128xf32>
    %27 = tpu.matmul %24, %26, %cst_16 {dimension_numbers = #tpu.dot_dimension_numbers<[1], [0], [0], [1], [0, 0, 1, 1], [], []>} : vector<324x128xbf16>, vector<128x128xbf16>, vector<324x128xf32> -> vector<324x128xf32>
    %28 = arith.addf %22, %27 : vector<324x128xf32>
    %29 = vector.extract_strided_slice %3 {offsets = [24, 0], sizes = [324, 128], strides = [1, 1]} : vector<372x128xf32> to vector<324x128xf32>
    %30 = arith.truncf %29 : vector<324x128xf32> to vector<324x128xbf16>
    %c4 = arith.constant 4 : index
    %c0_17 = arith.constant 0 : index
    %c0_18 = arith.constant 0 : index
    %31 = vector.load %arg3[%c4, %c0_17, %c0_18] : memref<9x128x128xbf16, #tpu.memory_space<vmem>>, vector<1x128x128xbf16>
    %32 = vector.shape_cast %31 : vector<1x128x128xbf16> to vector<128x128xbf16>
    %cst_19 = arith.constant dense<0.000000e+00> : vector<324x128xf32>
    %33 = tpu.matmul %30, %32, %cst_19 {dimension_numbers = #tpu.dot_dimension_numbers<[1], [0], [0], [1], [0, 0, 1, 1], [], []>} : vector<324x128xbf16>, vector<128x128xbf16>, vector<324x128xf32> -> vector<324x128xf32>
    %34 = arith.addf %28, %33 : vector<324x128xf32>
    %35 = vector.extract_strided_slice %3 {offsets = [25, 0], sizes = [324, 128], strides = [1, 1]} : vector<372x128xf32> to vector<324x128xf32>
    %36 = arith.truncf %35 : vector<324x128xf32> to vector<324x128xbf16>
    %c5 = arith.constant 5 : index
    %c0_20 = arith.constant 0 : index
    %c0_21 = arith.constant 0 : index
    %37 = vector.load %arg3[%c5, %c0_20, %c0_21] : memref<9x128x128xbf16, #tpu.memory_space<vmem>>, vector<1x128x128xbf16>
    %38 = vector.shape_cast %37 : vector<1x128x128xbf16> to vector<128x128xbf16>
    %cst_22 = arith.constant dense<0.000000e+00> : vector<324x128xf32>
    %39 = tpu.matmul %36, %38, %cst_22 {dimension_numbers = #tpu.dot_dimension_numbers<[1], [0], [0], [1], [0, 0, 1, 1], [], []>} : vector<324x128xbf16>, vector<128x128xbf16>, vector<324x128xf32> -> vector<324x128xf32>
    %40 = arith.addf %34, %39 : vector<324x128xf32>
    %41 = vector.extract_strided_slice %3 {offsets = [41, 0], sizes = [324, 128], strides = [1, 1]} : vector<372x128xf32> to vector<324x128xf32>
    %42 = arith.truncf %41 : vector<324x128xf32> to vector<324x128xbf16>
    %c6 = arith.constant 6 : index
    %c0_23 = arith.constant 0 : index
    %c0_24 = arith.constant 0 : index
    %43 = vector.load %arg3[%c6, %c0_23, %c0_24] : memref<9x128x128xbf16, #tpu.memory_space<vmem>>, vector<1x128x128xbf16>
    %44 = vector.shape_cast %43 : vector<1x128x128xbf16> to vector<128x128xbf16>
    %cst_25 = arith.constant dense<0.000000e+00> : vector<324x128xf32>
    %45 = tpu.matmul %42, %44, %cst_25 {dimension_numbers = #tpu.dot_dimension_numbers<[1], [0], [0], [1], [0, 0, 1, 1], [], []>} : vector<324x128xbf16>, vector<128x128xbf16>, vector<324x128xf32> -> vector<324x128xf32>
    %46 = arith.addf %40, %45 : vector<324x128xf32>
    %47 = vector.extract_strided_slice %3 {offsets = [42, 0], sizes = [324, 128], strides = [1, 1]} : vector<372x128xf32> to vector<324x128xf32>
    %48 = arith.truncf %47 : vector<324x128xf32> to vector<324x128xbf16>
    %c7 = arith.constant 7 : index
    %c0_26 = arith.constant 0 : index
    %c0_27 = arith.constant 0 : index
    %49 = vector.load %arg3[%c7, %c0_26, %c0_27] : memref<9x128x128xbf16, #tpu.memory_space<vmem>>, vector<1x128x128xbf16>
    %50 = vector.shape_cast %49 : vector<1x128x128xbf16> to vector<128x128xbf16>
    %cst_28 = arith.constant dense<0.000000e+00> : vector<324x128xf32>
    %51 = tpu.matmul %48, %50, %cst_28 {dimension_numbers = #tpu.dot_dimension_numbers<[1], [0], [0], [1], [0, 0, 1, 1], [], []>} : vector<324x128xbf16>, vector<128x128xbf16>, vector<324x128xf32> -> vector<324x128xf32>
    %52 = arith.addf %46, %51 : vector<324x128xf32>
    %53 = vector.extract_strided_slice %3 {offsets = [43, 0], sizes = [324, 128], strides = [1, 1]} : vector<372x128xf32> to vector<324x128xf32>
    %54 = arith.truncf %53 : vector<324x128xf32> to vector<324x128xbf16>
    %c8 = arith.constant 8 : index
    %c0_29 = arith.constant 0 : index
    %c0_30 = arith.constant 0 : index
    %55 = vector.load %arg3[%c8, %c0_29, %c0_30] : memref<9x128x128xbf16, #tpu.memory_space<vmem>>, vector<1x128x128xbf16>
    %56 = vector.shape_cast %55 : vector<1x128x128xbf16> to vector<128x128xbf16>
    %cst_31 = arith.constant dense<0.000000e+00> : vector<324x128xf32>
    %57 = tpu.matmul %54, %56, %cst_31 {dimension_numbers = #tpu.dot_dimension_numbers<[1], [0], [0], [1], [0, 0, 1, 1], [], []>} : vector<324x128xbf16>, vector<128x128xbf16>, vector<324x128xf32> -> vector<324x128xf32>
    %58 = arith.addf %52, %57 : vector<324x128xf32>
    %c0_32 = arith.constant 0 : index
    %c0_33 = arith.constant 0 : index
    %59 = vector.load %arg4[%c0_32, %c0_33] : memref<1x128xf32, #tpu.memory_space<vmem>>, vector<1x128xf32>
    %60 = vector.broadcast %59 : vector<1x128xf32> to vector<324x128xf32>
    %61 = arith.addf %58, %60 : vector<324x128xf32>
    %cst_34 = arith.constant 0.000000e+00 : f32
    %62 = vector.broadcast %cst_34 : f32 to vector<324x128xf32>
    %63 = arith.maximumf %61, %62 : vector<324x128xf32>
    %64 = vector.broadcast %0 : vector<324x1xf32> to vector<324x128xf32>
    %65 = arith.mulf %63, %64 : vector<324x128xf32>
    %cst_35 = arith.constant 0.000000e+00 : f32
    %66 = vector.broadcast %cst_35 : f32 to vector<372x128xf32>
    %c0_36 = arith.constant 0 : index
    %c0_37 = arith.constant 0 : index
    %67 = vector.load %arg13[%c0_36, %c0_37] : memref<372x128xf32, #tpu.memory_space<vmem>>, vector<372x128xf32>
    tpu.vector_store %arg13[%c0_36, %c0_37], %66 {strides = array<i32>} : memref<372x128xf32, #tpu.memory_space<vmem>>, vector<372x128xf32>,
    %c24 = arith.constant 24 : index
    %c0_38 = arith.constant 0 : index
    %68 = vector.load %arg13[%c24, %c0_38] : memref<372x128xf32, #tpu.memory_space<vmem>>, vector<324x128xf32>
    tpu.vector_store %arg13[%c24, %c0_38], %65 {strides = array<i32>} : memref<372x128xf32, #tpu.memory_space<vmem>>, vector<324x128xf32>,
    %cst_39 = arith.constant 0.000000e+00 : f32
    %69 = vector.broadcast %cst_39 : f32 to vector<324x128xf32>
    %c5_40 = arith.constant 5 : index
    %c0_41 = arith.constant 0 : index
    %70 = vector.load %arg13[%c5_40, %c0_41] : memref<372x128xf32, #tpu.memory_space<vmem>>, vector<324x128xf32>
    %71 = arith.truncf %70 : vector<324x128xf32> to vector<324x128xbf16>
    %c0_42 = arith.constant 0 : index
    %c0_43 = arith.constant 0 : index
    %c0_44 = arith.constant 0 : index
    %72 = vector.load %arg5[%c0_42, %c0_43, %c0_44] : memref<9x128x128xbf16, #tpu.memory_space<vmem>>, vector<1x128x128xbf16>
    %73 = vector.shape_cast %72 : vector<1x128x128xbf16> to vector<128x128xbf16>
    %cst_45 = arith.constant dense<0.000000e+00> : vector<324x128xf32>
    %74 = tpu.matmul %71, %73, %cst_45 {dimension_numbers = #tpu.dot_dimension_numbers<[1], [0], [0], [1], [0, 0, 1, 1], [], []>} : vector<324x128xbf16>, vector<128x128xbf16>, vector<324x128xf32> -> vector<324x128xf32>
    %75 = arith.addf %69, %74 : vector<324x128xf32>
    %c6_46 = arith.constant 6 : index
    %c0_47 = arith.constant 0 : index
    %76 = vector.load %arg13[%c6_46, %c0_47] : memref<372x128xf32, #tpu.memory_space<vmem>>, vector<324x128xf32>
    %77 = arith.truncf %76 : vector<324x128xf32> to vector<324x128xbf16>
    %c1_48 = arith.constant 1 : index
    %c0_49 = arith.constant 0 : index
    %c0_50 = arith.constant 0 : index
    %78 = vector.load %arg5[%c1_48, %c0_49, %c0_50] : memref<9x128x128xbf16, #tpu.memory_space<vmem>>, vector<1x128x128xbf16>
    %79 = vector.shape_cast %78 : vector<1x128x128xbf16> to vector<128x128xbf16>
    %cst_51 = arith.constant dense<0.000000e+00> : vector<324x128xf32>
    %80 = tpu.matmul %77, %79, %cst_51 {dimension_numbers = #tpu.dot_dimension_numbers<[1], [0], [0], [1], [0, 0, 1, 1], [], []>} : vector<324x128xbf16>, vector<128x128xbf16>, vector<324x128xf32> -> vector<324x128xf32>
    %81 = arith.addf %75, %80 : vector<324x128xf32>
    %c7_52 = arith.constant 7 : index
    %c0_53 = arith.constant 0 : index
    %82 = vector.load %arg13[%c7_52, %c0_53] : memref<372x128xf32, #tpu.memory_space<vmem>>, vector<324x128xf32>
    %83 = arith.truncf %82 : vector<324x128xf32> to vector<324x128xbf16>
    %c2_54 = arith.constant 2 : index
    %c0_55 = arith.constant 0 : index
    %c0_56 = arith.constant 0 : index
    %84 = vector.load %arg5[%c2_54, %c0_55, %c0_56] : memref<9x128x128xbf16, #tpu.memory_space<vmem>>, vector<1x128x128xbf16>
    %85 = vector.shape_cast %84 : vector<1x128x128xbf16> to vector<128x128xbf16>
    %cst_57 = arith.constant dense<0.000000e+00> : vector<324x128xf32>
    %86 = tpu.matmul %83, %85, %cst_57 {dimension_numbers = #tpu.dot_dimension_numbers<[1], [0], [0], [1], [0, 0, 1, 1], [], []>} : vector<324x128xbf16>, vector<128x128xbf16>, vector<324x128xf32> -> vector<324x128xf32>
    %87 = arith.addf %81, %86 : vector<324x128xf32>
    %c23 = arith.constant 23 : index
    %c0_58 = arith.constant 0 : index
    %88 = vector.load %arg13[%c23, %c0_58] : memref<372x128xf32, #tpu.memory_space<vmem>>, vector<324x128xf32>
    %89 = arith.truncf %88 : vector<324x128xf32> to vector<324x128xbf16>
    %c3_59 = arith.constant 3 : index
    %c0_60 = arith.constant 0 : index
    %c0_61 = arith.constant 0 : index
    %90 = vector.load %arg5[%c3_59, %c0_60, %c0_61] : memref<9x128x128xbf16, #tpu.memory_space<vmem>>, vector<1x128x128xbf16>
    %91 = vector.shape_cast %90 : vector<1x128x128xbf16> to vector<128x128xbf16>
    %cst_62 = arith.constant dense<0.000000e+00> : vector<324x128xf32>
    %92 = tpu.matmul %89, %91, %cst_62 {dimension_numbers = #tpu.dot_dimension_numbers<[1], [0], [0], [1], [0, 0, 1, 1], [], []>} : vector<324x128xbf16>, vector<128x128xbf16>, vector<324x128xf32> -> vector<324x128xf32>
    %93 = arith.addf %87, %92 : vector<324x128xf32>
    %c24_63 = arith.constant 24 : index
    %c0_64 = arith.constant 0 : index
    %94 = vector.load %arg13[%c24_63, %c0_64] : memref<372x128xf32, #tpu.memory_space<vmem>>, vector<324x128xf32>
    %95 = arith.truncf %94 : vector<324x128xf32> to vector<324x128xbf16>
    %c4_65 = arith.constant 4 : index
    %c0_66 = arith.constant 0 : index
    %c0_67 = arith.constant 0 : index
    %96 = vector.load %arg5[%c4_65, %c0_66, %c0_67] : memref<9x128x128xbf16, #tpu.memory_space<vmem>>, vector<1x128x128xbf16>
    %97 = vector.shape_cast %96 : vector<1x128x128xbf16> to vector<128x128xbf16>
    %cst_68 = arith.constant dense<0.000000e+00> : vector<324x128xf32>
    %98 = tpu.matmul %95, %97, %cst_68 {dimension_numbers = #tpu.dot_dimension_numbers<[1], [0], [0], [1], [0, 0, 1, 1], [], []>} : vector<324x128xbf16>, vector<128x128xbf16>, vector<324x128xf32> -> vector<324x128xf32>
    %99 = arith.addf %93, %98 : vector<324x128xf32>
    %c25 = arith.constant 25 : index
    %c0_69 = arith.constant 0 : index
    %100 = vector.load %arg13[%c25, %c0_69] : memref<372x128xf32, #tpu.memory_space<vmem>>, vector<324x128xf32>
    %101 = arith.truncf %100 : vector<324x128xf32> to vector<324x128xbf16>
    %c5_70 = arith.constant 5 : index
    %c0_71 = arith.constant 0 : index
    %c0_72 = arith.constant 0 : index
    %102 = vector.load %arg5[%c5_70, %c0_71, %c0_72] : memref<9x128x128xbf16, #tpu.memory_space<vmem>>, vector<1x128x128xbf16>
    %103 = vector.shape_cast %102 : vector<1x128x128xbf16> to vector<128x128xbf16>
    %cst_73 = arith.constant dense<0.000000e+00> : vector<324x128xf32>
    %104 = tpu.matmul %101, %103, %cst_73 {dimension_numbers = #tpu.dot_dimension_numbers<[1], [0], [0], [1], [0, 0, 1, 1], [], []>} : vector<324x128xbf16>, vector<128x128xbf16>, vector<324x128xf32> -> vector<324x128xf32>
    %105 = arith.addf %99, %104 : vector<324x128xf32>
    %c41 = arith.constant 41 : index
    %c0_74 = arith.constant 0 : index
    %106 = vector.load %arg13[%c41, %c0_74] : memref<372x128xf32, #tpu.memory_space<vmem>>, vector<324x128xf32>
    %107 = arith.truncf %106 : vector<324x128xf32> to vector<324x128xbf16>
    %c6_75 = arith.constant 6 : index
    %c0_76 = arith.constant 0 : index
    %c0_77 = arith.constant 0 : index
    %108 = vector.load %arg5[%c6_75, %c0_76, %c0_77] : memref<9x128x128xbf16, #tpu.memory_space<vmem>>, vector<1x128x128xbf16>
    %109 = vector.shape_cast %108 : vector<1x128x128xbf16> to vector<128x128xbf16>
    %cst_78 = arith.constant dense<0.000000e+00> : vector<324x128xf32>
    %110 = tpu.matmul %107, %109, %cst_78 {dimension_numbers = #tpu.dot_dimension_numbers<[1], [0], [0], [1], [0, 0, 1, 1], [], []>} : vector<324x128xbf16>, vector<128x128xbf16>, vector<324x128xf32> -> vector<324x128xf32>
    %111 = arith.addf %105, %110 : vector<324x128xf32>
    %c42 = arith.constant 42 : index
    %c0_79 = arith.constant 0 : index
    %112 = vector.load %arg13[%c42, %c0_79] : memref<372x128xf32, #tpu.memory_space<vmem>>, vector<324x128xf32>
    %113 = arith.truncf %112 : vector<324x128xf32> to vector<324x128xbf16>
    %c7_80 = arith.constant 7 : index
    %c0_81 = arith.constant 0 : index
    %c0_82 = arith.constant 0 : index
    %114 = vector.load %arg5[%c7_80, %c0_81, %c0_82] : memref<9x128x128xbf16, #tpu.memory_space<vmem>>, vector<1x128x128xbf16>
    %115 = vector.shape_cast %114 : vector<1x128x128xbf16> to vector<128x128xbf16>
    %cst_83 = arith.constant dense<0.000000e+00> : vector<324x128xf32>
    %116 = tpu.matmul %113, %115, %cst_83 {dimension_numbers = #tpu.dot_dimension_numbers<[1], [0], [0], [1], [0, 0, 1, 1], [], []>} : vector<324x128xbf16>, vector<128x128xbf16>, vector<324x128xf32> -> vector<324x128xf32>
    %117 = arith.addf %111, %116 : vector<324x128xf32>
    %c43 = arith.constant 43 : index
    %c0_84 = arith.constant 0 : index
    %118 = vector.load %arg13[%c43, %c0_84] : memref<372x128xf32, #tpu.memory_space<vmem>>, vector<324x128xf32>
    %119 = arith.truncf %118 : vector<324x128xf32> to vector<324x128xbf16>
    %c8_85 = arith.constant 8 : index
    %c0_86 = arith.constant 0 : index
    %c0_87 = arith.constant 0 : index
    %120 = vector.load %arg5[%c8_85, %c0_86, %c0_87] : memref<9x128x128xbf16, #tpu.memory_space<vmem>>, vector<1x128x128xbf16>
    %121 = vector.shape_cast %120 : vector<1x128x128xbf16> to vector<128x128xbf16>
    %cst_88 = arith.constant dense<0.000000e+00> : vector<324x128xf32>
    %122 = tpu.matmul %119, %121, %cst_88 {dimension_numbers = #tpu.dot_dimension_numbers<[1], [0], [0], [1], [0, 0, 1, 1], [], []>} : vector<324x128xbf16>, vector<128x128xbf16>, vector<324x128xf32> -> vector<324x128xf32>
    %123 = arith.addf %117, %122 : vector<324x128xf32>
    %c0_89 = arith.constant 0 : index
    %c0_90 = arith.constant 0 : index
    %124 = vector.load %arg6[%c0_89, %c0_90] : memref<1x128xf32, #tpu.memory_space<vmem>>, vector<1x128xf32>
    %125 = vector.broadcast %124 : vector<1x128xf32> to vector<324x128xf32>
    %126 = arith.addf %123, %125 : vector<324x128xf32>
    %cst_91 = arith.constant 0.000000e+00 : f32
    %127 = vector.broadcast %cst_91 : f32 to vector<324x128xf32>
    %128 = arith.maximumf %126, %127 : vector<324x128xf32>
    %129 = vector.broadcast %0 : vector<324x1xf32> to vector<324x128xf32>
    %130 = arith.mulf %128, %129 : vector<324x128xf32>
    %cst_92 = arith.constant 0.000000e+00 : f32
    %131 = vector.broadcast %cst_92 : f32 to vector<372x128xf32>
    %c0_93 = arith.constant 0 : index
    %c0_94 = arith.constant 0 : index
    %132 = vector.load %arg14[%c0_93, %c0_94] : memref<372x128xf32, #tpu.memory_space<vmem>>, vector<372x128xf32>
    tpu.vector_store %arg14[%c0_93, %c0_94], %131 {strides = array<i32>} : memref<372x128xf32, #tpu.memory_space<vmem>>, vector<372x128xf32>,
    %c24_95 = arith.constant 24 : index
    %c0_96 = arith.constant 0 : index
    %133 = vector.load %arg14[%c24_95, %c0_96] : memref<372x128xf32, #tpu.memory_space<vmem>>, vector<324x128xf32>
    tpu.vector_store %arg14[%c24_95, %c0_96], %130 {strides = array<i32>} : memref<372x128xf32, #tpu.memory_space<vmem>>, vector<324x128xf32>,
    %cst_97 = arith.constant 0.000000e+00 : f32
    %134 = vector.broadcast %cst_97 : f32 to vector<324x128xf32>
    %c5_98 = arith.constant 5 : index
    %c0_99 = arith.constant 0 : index
    %135 = vector.load %arg14[%c5_98, %c0_99] : memref<372x128xf32, #tpu.memory_space<vmem>>, vector<324x128xf32>
    %136 = arith.truncf %135 : vector<324x128xf32> to vector<324x128xbf16>
    %c0_100 = arith.constant 0 : index
    %c0_101 = arith.constant 0 : index
    %c0_102 = arith.constant 0 : index
    %137 = vector.load %arg7[%c0_100, %c0_101, %c0_102] : memref<9x128x128xbf16, #tpu.memory_space<vmem>>, vector<1x128x128xbf16>
    %138 = vector.shape_cast %137 : vector<1x128x128xbf16> to vector<128x128xbf16>
    %cst_103 = arith.constant dense<0.000000e+00> : vector<324x128xf32>
    %139 = tpu.matmul %136, %138, %cst_103 {dimension_numbers = #tpu.dot_dimension_numbers<[1], [0], [0], [1], [0, 0, 1, 1], [], []>} : vector<324x128xbf16>, vector<128x128xbf16>, vector<324x128xf32> -> vector<324x128xf32>
    %140 = arith.addf %134, %139 : vector<324x128xf32>
    %c6_104 = arith.constant 6 : index
    %c0_105 = arith.constant 0 : index
    %141 = vector.load %arg14[%c6_104, %c0_105] : memref<372x128xf32, #tpu.memory_space<vmem>>, vector<324x128xf32>
    %142 = arith.truncf %141 : vector<324x128xf32> to vector<324x128xbf16>
    %c1_106 = arith.constant 1 : index
    %c0_107 = arith.constant 0 : index
    %c0_108 = arith.constant 0 : index
    %143 = vector.load %arg7[%c1_106, %c0_107, %c0_108] : memref<9x128x128xbf16, #tpu.memory_space<vmem>>, vector<1x128x128xbf16>
    %144 = vector.shape_cast %143 : vector<1x128x128xbf16> to vector<128x128xbf16>
    %cst_109 = arith.constant dense<0.000000e+00> : vector<324x128xf32>
    %145 = tpu.matmul %142, %144, %cst_109 {dimension_numbers = #tpu.dot_dimension_numbers<[1], [0], [0], [1], [0, 0, 1, 1], [], []>} : vector<324x128xbf16>, vector<128x128xbf16>, vector<324x128xf32> -> vector<324x128xf32>
    %146 = arith.addf %140, %145 : vector<324x128xf32>
    %c7_110 = arith.constant 7 : index
    %c0_111 = arith.constant 0 : index
    %147 = vector.load %arg14[%c7_110, %c0_111] : memref<372x128xf32, #tpu.memory_space<vmem>>, vector<324x128xf32>
    %148 = arith.truncf %147 : vector<324x128xf32> to vector<324x128xbf16>
    %c2_112 = arith.constant 2 : index
    %c0_113 = arith.constant 0 : index
    %c0_114 = arith.constant 0 : index
    %149 = vector.load %arg7[%c2_112, %c0_113, %c0_114] : memref<9x128x128xbf16, #tpu.memory_space<vmem>>, vector<1x128x128xbf16>
    %150 = vector.shape_cast %149 : vector<1x128x128xbf16> to vector<128x128xbf16>
    %cst_115 = arith.constant dense<0.000000e+00> : vector<324x128xf32>
    %151 = tpu.matmul %148, %150, %cst_115 {dimension_numbers = #tpu.dot_dimension_numbers<[1], [0], [0], [1], [0, 0, 1, 1], [], []>} : vector<324x128xbf16>, vector<128x128xbf16>, vector<324x128xf32> -> vector<324x128xf32>
    %152 = arith.addf %146, %151 : vector<324x128xf32>
    %c23_116 = arith.constant 23 : index
    %c0_117 = arith.constant 0 : index
    %153 = vector.load %arg14[%c23_116, %c0_117] : memref<372x128xf32, #tpu.memory_space<vmem>>, vector<324x128xf32>
    %154 = arith.truncf %153 : vector<324x128xf32> to vector<324x128xbf16>
    %c3_118 = arith.constant 3 : index
    %c0_119 = arith.constant 0 : index
    %c0_120 = arith.constant 0 : index
    %155 = vector.load %arg7[%c3_118, %c0_119, %c0_120] : memref<9x128x128xbf16, #tpu.memory_space<vmem>>, vector<1x128x128xbf16>
    %156 = vector.shape_cast %155 : vector<1x128x128xbf16> to vector<128x128xbf16>
    %cst_121 = arith.constant dense<0.000000e+00> : vector<324x128xf32>
    %157 = tpu.matmul %154, %156, %cst_121 {dimension_numbers = #tpu.dot_dimension_numbers<[1], [0], [0], [1], [0, 0, 1, 1], [], []>} : vector<324x128xbf16>, vector<128x128xbf16>, vector<324x128xf32> -> vector<324x128xf32>
    %158 = arith.addf %152, %157 : vector<324x128xf32>
    %c24_122 = arith.constant 24 : index
    %c0_123 = arith.constant 0 : index
    %159 = vector.load %arg14[%c24_122, %c0_123] : memref<372x128xf32, #tpu.memory_space<vmem>>, vector<324x128xf32>
    %160 = arith.truncf %159 : vector<324x128xf32> to vector<324x128xbf16>
    %c4_124 = arith.constant 4 : index
    %c0_125 = arith.constant 0 : index
    %c0_126 = arith.constant 0 : index
    %161 = vector.load %arg7[%c4_124, %c0_125, %c0_126] : memref<9x128x128xbf16, #tpu.memory_space<vmem>>, vector<1x128x128xbf16>
    %162 = vector.shape_cast %161 : vector<1x128x128xbf16> to vector<128x128xbf16>
    %cst_127 = arith.constant dense<0.000000e+00> : vector<324x128xf32>
    %163 = tpu.matmul %160, %162, %cst_127 {dimension_numbers = #tpu.dot_dimension_numbers<[1], [0], [0], [1], [0, 0, 1, 1], [], []>} : vector<324x128xbf16>, vector<128x128xbf16>, vector<324x128xf32> -> vector<324x128xf32>
    %164 = arith.addf %158, %163 : vector<324x128xf32>
    %c25_128 = arith.constant 25 : index
    %c0_129 = arith.constant 0 : index
    %165 = vector.load %arg14[%c25_128, %c0_129] : memref<372x128xf32, #tpu.memory_space<vmem>>, vector<324x128xf32>
    %166 = arith.truncf %165 : vector<324x128xf32> to vector<324x128xbf16>
    %c5_130 = arith.constant 5 : index
    %c0_131 = arith.constant 0 : index
    %c0_132 = arith.constant 0 : index
    %167 = vector.load %arg7[%c5_130, %c0_131, %c0_132] : memref<9x128x128xbf16, #tpu.memory_space<vmem>>, vector<1x128x128xbf16>
    %168 = vector.shape_cast %167 : vector<1x128x128xbf16> to vector<128x128xbf16>
    %cst_133 = arith.constant dense<0.000000e+00> : vector<324x128xf32>
    %169 = tpu.matmul %166, %168, %cst_133 {dimension_numbers = #tpu.dot_dimension_numbers<[1], [0], [0], [1], [0, 0, 1, 1], [], []>} : vector<324x128xbf16>, vector<128x128xbf16>, vector<324x128xf32> -> vector<324x128xf32>
    %170 = arith.addf %164, %169 : vector<324x128xf32>
    %c41_134 = arith.constant 41 : index
    %c0_135 = arith.constant 0 : index
    %171 = vector.load %arg14[%c41_134, %c0_135] : memref<372x128xf32, #tpu.memory_space<vmem>>, vector<324x128xf32>
    %172 = arith.truncf %171 : vector<324x128xf32> to vector<324x128xbf16>
    %c6_136 = arith.constant 6 : index
    %c0_137 = arith.constant 0 : index
    %c0_138 = arith.constant 0 : index
    %173 = vector.load %arg7[%c6_136, %c0_137, %c0_138] : memref<9x128x128xbf16, #tpu.memory_space<vmem>>, vector<1x128x128xbf16>
    %174 = vector.shape_cast %173 : vector<1x128x128xbf16> to vector<128x128xbf16>
    %cst_139 = arith.constant dense<0.000000e+00> : vector<324x128xf32>
    %175 = tpu.matmul %172, %174, %cst_139 {dimension_numbers = #tpu.dot_dimension_numbers<[1], [0], [0], [1], [0, 0, 1, 1], [], []>} : vector<324x128xbf16>, vector<128x128xbf16>, vector<324x128xf32> -> vector<324x128xf32>
    %176 = arith.addf %170, %175 : vector<324x128xf32>
    %c42_140 = arith.constant 42 : index
    %c0_141 = arith.constant 0 : index
    %177 = vector.load %arg14[%c42_140, %c0_141] : memref<372x128xf32, #tpu.memory_space<vmem>>, vector<324x128xf32>
    %178 = arith.truncf %177 : vector<324x128xf32> to vector<324x128xbf16>
    %c7_142 = arith.constant 7 : index
    %c0_143 = arith.constant 0 : index
    %c0_144 = arith.constant 0 : index
    %179 = vector.load %arg7[%c7_142, %c0_143, %c0_144] : memref<9x128x128xbf16, #tpu.memory_space<vmem>>, vector<1x128x128xbf16>
    %180 = vector.shape_cast %179 : vector<1x128x128xbf16> to vector<128x128xbf16>
    %cst_145 = arith.constant dense<0.000000e+00> : vector<324x128xf32>
    %181 = tpu.matmul %178, %180, %cst_145 {dimension_numbers = #tpu.dot_dimension_numbers<[1], [0], [0], [1], [0, 0, 1, 1], [], []>} : vector<324x128xbf16>, vector<128x128xbf16>, vector<324x128xf32> -> vector<324x128xf32>
    %182 = arith.addf %176, %181 : vector<324x128xf32>
    %c43_146 = arith.constant 43 : index
    %c0_147 = arith.constant 0 : index
    %183 = vector.load %arg14[%c43_146, %c0_147] : memref<372x128xf32, #tpu.memory_space<vmem>>, vector<324x128xf32>
    %184 = arith.truncf %183 : vector<324x128xf32> to vector<324x128xbf16>
    %c8_148 = arith.constant 8 : index
    %c0_149 = arith.constant 0 : index
    %c0_150 = arith.constant 0 : index
    %185 = vector.load %arg7[%c8_148, %c0_149, %c0_150] : memref<9x128x128xbf16, #tpu.memory_space<vmem>>, vector<1x128x128xbf16>
    %186 = vector.shape_cast %185 : vector<1x128x128xbf16> to vector<128x128xbf16>
    %cst_151 = arith.constant dense<0.000000e+00> : vector<324x128xf32>
    %187 = tpu.matmul %184, %186, %cst_151 {dimension_numbers = #tpu.dot_dimension_numbers<[1], [0], [0], [1], [0, 0, 1, 1], [], []>} : vector<324x128xbf16>, vector<128x128xbf16>, vector<324x128xf32> -> vector<324x128xf32>
    %188 = arith.addf %182, %187 : vector<324x128xf32>
    %c0_152 = arith.constant 0 : index
    %c0_153 = arith.constant 0 : index
    %189 = vector.load %arg8[%c0_152, %c0_153] : memref<1x128xf32, #tpu.memory_space<vmem>>, vector<1x128xf32>
    %190 = vector.broadcast %189 : vector<1x128xf32> to vector<324x128xf32>
    %191 = arith.addf %188, %190 : vector<324x128xf32>
    %192 = arith.addf %191, %65 : vector<324x128xf32>
    %cst_154 = arith.constant 0.000000e+00 : f32
    %193 = vector.broadcast %cst_154 : f32 to vector<324x128xf32>
    %194 = arith.maximumf %192, %193 : vector<324x128xf32>
    %195 = vector.broadcast %0 : vector<324x1xf32> to vector<324x128xf32>
    %196 = arith.mulf %194, %195 : vector<324x128xf32>
    %cst_155 = arith.constant dense<0.000000e+00> : vector<128xf32>
    %197 = vector.multi_reduction <add>, %196, %cst_155 [0] : vector<324x128xf32> to vector<128xf32>
    %198 = vector.shape_cast %197 : vector<128xf32> to vector<1x128xf32>
    %cst_156 = arith.constant 3.906250e-03 : f32
    %199 = vector.broadcast %cst_156 : f32 to vector<1x128xf32>
    %200 = arith.mulf %198, %199 : vector<1x128xf32>
    %201 = vector.shape_cast %200 : vector<1x128xf32> to vector<1x128xf32>
    %202 = vector.broadcast %201 : vector<1x128xf32> to vector<8x128xf32>
    %c0_157 = arith.constant 0 : index
    %c0_158 = arith.constant 0 : index
    %c0_159 = arith.constant 0 : index
    %203 = vector.load %arg11[%c0_157, %c0_158, %c0_159] : memref<1x8x128xf32, #tpu.memory_space<vmem>>, vector<1x8x128xf32>
    %204 = vector.shape_cast %203 : vector<1x8x128xf32> to vector<8x128xf32>
    %205 = vector.shape_cast %202 : vector<8x128xf32> to vector<1x8x128xf32>
    tpu.vector_store %arg11[%c0_157, %c0_158, %c0_159], %205 {strides = array<i32>} : memref<1x8x128xf32, #tpu.memory_space<vmem>>, vector<1x8x128xf32>,
    %c0_160 = arith.constant 0 : index
    %c0_161 = arith.constant 0 : index
    %206 = vector.load %arg9[%c0_160, %c0_161] : memref<128x128xf32, #tpu.memory_space<vmem>>, vector<128x128xf32>
    %cst_162 = arith.constant dense<0.000000e+00> : vector<1x128xf32>
    %207 = tpu.matmul %200, %206, %cst_162 {dimension_numbers = #tpu.dot_dimension_numbers<[1], [0], [0], [1], [0, 0, 1, 1], [], []>} : vector<1x128xf32>, vector<128x128xf32>, vector<1x128xf32> -> vector<1x128xf32>
    %c0_163 = arith.constant 0 : index
    %c0_164 = arith.constant 0 : index
    %208 = vector.load %arg10[%c0_163, %c0_164] : memref<1x128xf32, #tpu.memory_space<vmem>>, vector<1x128xf32>
    %209 = arith.addf %207, %208 : vector<1x128xf32>
    %210 = vector.shape_cast %209 : vector<1x128xf32> to vector<1x128xf32>
    %211 = vector.broadcast %210 : vector<1x128xf32> to vector<8x128xf32>
    %c0_165 = arith.constant 0 : index
    %c0_166 = arith.constant 0 : index
    %c0_167 = arith.constant 0 : index
    %212 = vector.load %arg12[%c0_165, %c0_166, %c0_167] : memref<1x8x128xf32, #tpu.memory_space<vmem>>, vector<1x8x128xf32>
    %213 = vector.shape_cast %212 : vector<1x8x128xf32> to vector<8x128xf32>
    %214 = vector.shape_cast %211 : vector<8x128xf32> to vector<1x8x128xf32>
    tpu.vector_store %arg12[%c0_165, %c0_166, %c0_167], %214 {strides = array<i32>} : memref<1x8x128xf32, #tpu.memory_space<vmem>>, vector<1x8x128xf32>,
    return
  }
  func.func @transform_0(%arg0: i32) -> (i32, i32, i32) {
    %c0_i32 = arith.constant 0 : i32
    %c0_i32_0 = arith.constant 0 : i32
    %c0_i32_1 = arith.constant 0 : i32
    return %arg0, %c0_i32, %c0_i32_0 : i32, i32, i32
  }
  func.func @transform_1(%arg0: i32) -> (i32, i32) {
    %c0_i32 = arith.constant 0 : i32
    %c0_i32_0 = arith.constant 0 : i32
    %c0_i32_1 = arith.constant 0 : i32
    return %c0_i32, %c0_i32_0 : i32, i32
  }
  func.func @transform_2(%arg0: i32) -> (i32, i32, i32) {
    %c0_i32 = arith.constant 0 : i32
    %c0_i32_0 = arith.constant 0 : i32
    %c0_i32_1 = arith.constant 0 : i32
    %c0_i32_2 = arith.constant 0 : i32
    return %c0_i32, %c0_i32_0, %c0_i32_1 : i32, i32, i32
  }
  func.func @transform_3(%arg0: i32) -> (i32, i32) {
    %c0_i32 = arith.constant 0 : i32
    %c0_i32_0 = arith.constant 0 : i32
    %c0_i32_1 = arith.constant 0 : i32
    return %c0_i32, %c0_i32_0 : i32, i32
  }
  func.func @transform_4(%arg0: i32) -> (i32, i32, i32) {
    %c0_i32 = arith.constant 0 : i32
    %c0_i32_0 = arith.constant 0 : i32
    %c0_i32_1 = arith.constant 0 : i32
    %c0_i32_2 = arith.constant 0 : i32
    return %c0_i32, %c0_i32_0, %c0_i32_1 : i32, i32, i32
  }
  func.func @transform_5(%arg0: i32) -> (i32, i32) {
    %c0_i32 = arith.constant 0 : i32
    %c0_i32_0 = arith.constant 0 : i32
    %c0_i32_1 = arith.constant 0 : i32
    return %c0_i32, %c0_i32_0 : i32, i32
  }
  func.func @transform_6(%arg0: i32) -> (i32, i32, i32) {
    %c0_i32 = arith.constant 0 : i32
    %c0_i32_0 = arith.constant 0 : i32
    %c0_i32_1 = arith.constant 0 : i32
    %c0_i32_2 = arith.constant 0 : i32
    return %c0_i32, %c0_i32_0, %c0_i32_1 : i32, i32, i32
  }
  func.func @transform_7(%arg0: i32) -> (i32, i32) {
    %c0_i32 = arith.constant 0 : i32
    %c0_i32_0 = arith.constant 0 : i32
    %c0_i32_1 = arith.constant 0 : i32
    return %c0_i32, %c0_i32_0 : i32, i32
  }
  func.func @transform_8(%arg0: i32) -> (i32, i32) {
    %c0_i32 = arith.constant 0 : i32
    %c0_i32_0 = arith.constant 0 : i32
    %c0_i32_1 = arith.constant 0 : i32
    return %c0_i32, %c0_i32_0 : i32, i32
  }
  func.func @transform_9(%arg0: i32) -> (i32, i32) {
    %c0_i32 = arith.constant 0 : i32
    %c0_i32_0 = arith.constant 0 : i32
    %c0_i32_1 = arith.constant 0 : i32
    return %c0_i32, %c0_i32_0 : i32, i32
  }
  func.func @transform_10(%arg0: i32) -> (i32, i32, i32) {
    %c0_i32 = arith.constant 0 : i32
    %c0_i32_0 = arith.constant 0 : i32
    %c0_i32_1 = arith.constant 0 : i32
    return %arg0, %c0_i32, %c0_i32_0 : i32, i32, i32
  }
  func.func @transform_11(%arg0: i32) -> (i32, i32, i32) {
    %c0_i32 = arith.constant 0 : i32
    %c0_i32_0 = arith.constant 0 : i32
    %c0_i32_1 = arith.constant 0 : i32
    return %arg0, %c0_i32, %c0_i32_0 : i32, i32, i32
  }
}

</mosaic_0001>

<llo_original>
// kernel: simclr_forward.1
$region0: #{simclr_forward.1}
  #allocation0 [shape = 'u32[]', space=smem, size = 0x4, offset = 0x4, fixed_abs, tag = 'smem constant byte address 0x4 - core index']
  #allocation1 [shape = 'u32[144,128]{1,0:T(1,128)}', space=vmem, size = 0x12000, scoped, tag = 'internal scratch']
  #allocation2 [shape = 'f32[372,128]{1,0:T(8,128)}', space=vmem, size = 0x2f000, scoped, tag = 'scratch operand']
  #allocation3 [shape = 'f32[372,128]{1,0:T(8,128)}', space=vmem, size = 0x2f000, scoped, tag = 'scratch operand']
  %s0 = inlined_call_operand.vmem [shape: bf16[2,372,128], index: 0, kind: input, shape index: {}]
  %s1 = inlined_call_operand.vmem [shape: f32[324,1], index: 1, kind: input, shape index: {}]
  %s2 = inlined_call_operand.vmem [shape: bf16[9,128,128], index: 2, kind: input, shape index: {}]
  %s3 = inlined_call_operand.vmem [shape: f32[1,128], index: 3, kind: input, shape index: {}]
  %s4 = inlined_call_operand.vmem [shape: bf16[9,128,128], index: 4, kind: input, shape index: {}]
  %s5 = inlined_call_operand.vmem [shape: f32[1,128], index: 5, kind: input, shape index: {}]
  %s6 = inlined_call_operand.vmem [shape: bf16[9,128,128], index: 6, kind: input, shape index: {}]
  %s7 = inlined_call_operand.vmem [shape: f32[1,128], index: 7, kind: input, shape index: {}]
  %s8 = inlined_call_operand.vmem [shape: f32[128,128], index: 8, kind: input, shape index: {}]
  %s9 = inlined_call_operand.vmem [shape: f32[1,128], index: 9, kind: input, shape index: {}]
  %s10 = inlined_call_operand.vmem [shape: f32[2,8,128], index: 10, kind: output, shape index: {0}]
  %s11 = inlined_call_operand.vmem [shape: f32[2,8,128], index: 11, kind: output, shape index: {1}]
  %12 = xla_tuple %s10, %s11
  %s13 = sld [smem:[#allocation0]]
  $region81: #{simclr_forward.1} parent=0
    _
  %s15 = ssub.s32 1, %s13
  %s16 = scalar_select 0, %s15, %s13
  loop: start=0, step=1, limit=4
  $region2: #{simclr_forward.1} parent=0 // loop_pre_header
    _
  $region3: #{simclr_forward.1} parent=0 // loop_header
    %s18 = sphi 0, %s22
    %p19 = scmp.ge.s32.totalorder %s18, 4
    %s28 = sphi 0, %s30
    %s31 = sphi 0, %s28
    %s32 = sphi 0, %s31
    %s48 = sphi 0, %s32
    %s52 = sphi 0, %s52
    %s54 = sphi 0, %s52
    %s55 = sphi 0, %s54
    %s69 = sphi 0, %s55
    %s73 = sphi 0, %s73
    %s75 = sphi 0, %s73
    %s76 = sphi 0, %s75
    %s90 = sphi 0, %s76
    %s94 = sphi 0, %s94
    %s96 = sphi 0, %s94
    %s97 = sphi 0, %s96
    %s111 = sphi 0, %s97
    %s115 = sphi 0, %s115
    %s117 = sphi 0, %s115
    %s118 = sphi 0, %s117
    %s132 = sphi 0, %s118
    %s136 = sphi 0, %s136
    %s138 = sphi 0, %s136
    %s139 = sphi 0, %s138
    %s153 = sphi 0, %s139
    %s157 = sphi 0, %s157
    %s159 = sphi 0, %s157
    %s160 = sphi 0, %s159
    %s174 = sphi 0, %s160
    %s178 = sphi 0, %s178
    %s180 = sphi 0, %s178
    %s181 = sphi 0, %s180
    %s195 = sphi 0, %s181
    %s199 = sphi 0, %s199
    %s201 = sphi 0, %s199
    %s202 = sphi 0, %s201
    %s216 = sphi 0, %s202
    %s220 = sphi 0, %s220
    %s222 = sphi 0, %s220
    %s223 = sphi 0, %s222
    %s237 = sphi 0, %s223
    %s243 = sphi 0, %s245
    %s246 = sphi 0, %s243
    %s247 = sphi 0, %s246
    %s263 = sphi 0, %s247
    %s269 = sphi 0, %s271
    %s272 = sphi 0, %s269
    %s273 = sphi 0, %s272
    %s289 = sphi 0, %s273
  $region4: #{simclr_forward.1} parent=0 // loop_header_branch
    %21 = sbr.rel (%p19) target = $region8
  $region5: #{simclr_forward.1} parent=0 // loop_body
    %s23 = ssub.s32 %s18, 1
    %s24 = ssub.s32 %s18, 2
    %s25 = sadd.s32 %s18, 1
    %s26 = ssub.s32 %s18, %s25
    %p27 = scmp.eq.s32.totalorder %s26, 0
    %s29 = sadd.s32 %s28, 1
    %s30 = scalar_select %p27, %s28, %s29
    %p33 = pneg %p27
    %p34 = scmp.eq.s32.totalorder %s18, 1
    %p35 = por %p33, %p34
    %p36 = scmp.ne.s32.totalorder %s28, %s31
    %p37 = scmp.eq.s32.totalorder %s18, 0
    %p38 = por %p36, %p37
    %p39 = scmp.ne.s32.totalorder %s28, %s31
    %p40 = scmp.eq.s32.totalorder %s23, 1
    %p41 = por %p39, %p40
    %p42 = scmp.ne.s32.totalorder %s31, %s32
    %p43 = scmp.eq.s32.totalorder %s23, 0
    %p44 = por %p42, %p43
    %p45 = scmp.ne.s32.totalorder %s31, %s32
    %p46 = scmp.eq.s32.totalorder %s24, 1
    %p47 = por %p45, %p46
    %p49 = scmp.ne.s32.totalorder %s32, %s48
    %p50 = scmp.eq.s32.totalorder %s24, 0
    %p51 = por %p49, %p50
    %s53 = sadd.s32 %s52, 1
    %p56 = scmp.eq.s32.totalorder %s18, 1
    %p57 = scmp.ne.s32.totalorder %s52, %s54
    %p58 = scmp.eq.s32.totalorder %s18, 0
    %p59 = por %p57, %p58
    %p60 = scmp.ne.s32.totalorder %s52, %s54
    %p61 = scmp.eq.s32.totalorder %s23, 1
    %p62 = por %p60, %p61
    %p63 = scmp.ne.s32.totalorder %s54, %s55
    %p64 = scmp.eq.s32.totalorder %s23, 0
    %p65 = por %p63, %p64
    %p66 = scmp.ne.s32.totalorder %s54, %s55
    %p67 = scmp.eq.s32.totalorder %s24, 1
    %p68 = por %p66, %p67
    %p70 = scmp.ne.s32.totalorder %s55, %s69
    %p71 = scmp.eq.s32.totalorder %s24, 0
    %p72 = por %p70, %p71
    %s74 = sadd.s32 %s73, 1
    %p77 = scmp.eq.s32.totalorder %s18, 1
    %p78 = scmp.ne.s32.totalorder %s73, %s75
    %p79 = scmp.eq.s32.totalorder %s18, 0
    %p80 = por %p78, %p79
    %p81 = scmp.ne.s32.totalorder %s73, %s75
    %p82 = scmp.eq.s32.totalorder %s23, 1
    %p83 = por %p81, %p82
    %p84 = scmp.ne.s32.totalorder %s75, %s76
    %p85 = scmp.eq.s32.totalorder %s23, 0
    %p86 = por %p84, %p85
    %p87 = scmp.ne.s32.totalorder %s75, %s76
    %p88 = scmp.eq.s32.totalorder %s24, 1
    %p89 = por %p87, %p88
    %p91 = scmp.ne.s32.totalorder %s76, %s90
    %p92 = scmp.eq.s32.totalorder %s24, 0
    %p93 = por %p91, %p92
    %s95 = sadd.s32 %s94, 1
    %p98 = scmp.eq.s32.totalorder %s18, 1
    %p99 = scmp.ne.s32.totalorder %s94, %s96
    %p100 = scmp.eq.s32.totalorder %s18, 0
    %p101 = por %p99, %p100
    %p102 = scmp.ne.s32.totalorder %s94, %s96
    %p103 = scmp.eq.s32.totalorder %s23, 1
    %p104 = por %p102, %p103
    %p105 = scmp.ne.s32.totalorder %s96, %s97
    %p106 = scmp.eq.s32.totalorder %s23, 0
    %p107 = por %p105, %p106
    %p108 = scmp.ne.s32.totalorder %s96, %s97
    %p109 = scmp.eq.s32.totalorder %s24, 1
    %p110 = por %p108, %p109
    %p112 = scmp.ne.s32.totalorder %s97, %s111
    %p113 = scmp.eq.s32.totalorder %s24, 0
    %p114 = por %p112, %p113
    %s116 = sadd.s32 %s115, 1
    %p119 = scmp.eq.s32.totalorder %s18, 1
    %p120 = scmp.ne.s32.totalorder %s115, %s117
    %p121 = scmp.eq.s32.totalorder %s18, 0
    %p122 = por %p120, %p121
    %p123 = scmp.ne.s32.totalorder %s115, %s117
    %p124 = scmp.eq.s32.totalorder %s23, 1
    %p125 = por %p123, %p124
    %p126 = scmp.ne.s32.totalorder %s117, %s118
    %p127 = scmp.eq.s32.totalorder %s23, 0
    %p128 = por %p126, %p127
    %p129 = scmp.ne.s32.totalorder %s117, %s118
    %p130 = scmp.eq.s32.totalorder %s24, 1
    %p131 = por %p129, %p130
    %p133 = scmp.ne.s32.totalorder %s118, %s132
    %p134 = scmp.eq.s32.totalorder %s24, 0
    %p135 = por %p133, %p134
    %s137 = sadd.s32 %s136, 1
    %p140 = scmp.eq.s32.totalorder %s18, 1
    %p141 = scmp.ne.s32.totalorder %s136, %s138
    %p142 = scmp.eq.s32.totalorder %s18, 0
    %p143 = por %p141, %p142
    %p144 = scmp.ne.s32.totalorder %s136, %s138
    %p145 = scmp.eq.s32.totalorder %s23, 1
    %p146 = por %p144, %p145
    %p147 = scmp.ne.s32.totalorder %s138, %s139
    %p148 = scmp.eq.s32.totalorder %s23, 0
    %p149 = por %p147, %p148
    %p150 = scmp.ne.s32.totalorder %s138, %s139
    %p151 = scmp.eq.s32.totalorder %s24, 1
    %p152 = por %p150, %p151
    %p154 = scmp.ne.s32.totalorder %s139, %s153
    %p155 = scmp.eq.s32.totalorder %s24, 0
    %p156 = por %p154, %p155
    %s158 = sadd.s32 %s157, 1
    %p161 = scmp.eq.s32.totalorder %s18, 1
    %p162 = scmp.ne.s32.totalorder %s157, %s159
    %p163 = scmp.eq.s32.totalorder %s18, 0
    %p164 = por %p162, %p163
    %p165 = scmp.ne.s32.totalorder %s157, %s159
    %p166 = scmp.eq.s32.totalorder %s23, 1
    %p167 = por %p165, %p166
    %p168 = scmp.ne.s32.totalorder %s159, %s160
    %p169 = scmp.eq.s32.totalorder %s23, 0
    %p170 = por %p168, %p169
    %p171 = scmp.ne.s32.totalorder %s159, %s160
    %p172 = scmp.eq.s32.totalorder %s24, 1
    %p173 = por %p171, %p172
    %p175 = scmp.ne.s32.totalorder %s160, %s174
    %p176 = scmp.eq.s32.totalorder %s24, 0
    %p177 = por %p175, %p176
    %s179 = sadd.s32 %s178, 1
    %p182 = scmp.eq.s32.totalorder %s18, 1
    %p183 = scmp.ne.s32.totalorder %s178, %s180
    %p184 = scmp.eq.s32.totalorder %s18, 0
    %p185 = por %p183, %p184
    %p186 = scmp.ne.s32.totalorder %s178, %s180
    %p187 = scmp.eq.s32.totalorder %s23, 1
    %p188 = por %p186, %p187
    %p189 = scmp.ne.s32.totalorder %s180, %s181
    %p190 = scmp.eq.s32.totalorder %s23, 0
    %p191 = por %p189, %p190
    %p192 = scmp.ne.s32.totalorder %s180, %s181
    %p193 = scmp.eq.s32.totalorder %s24, 1
    %p194 = por %p192, %p193
    %p196 = scmp.ne.s32.totalorder %s181, %s195
    %p197 = scmp.eq.s32.totalorder %s24, 0
    %p198 = por %p196, %p197
    %s200 = sadd.s32 %s199, 1
    %p203 = scmp.eq.s32.totalorder %s18, 1
    %p204 = scmp.ne.s32.totalorder %s199, %s201
    %p205 = scmp.eq.s32.totalorder %s18, 0
    %p206 = por %p204, %p205
    %p207 = scmp.ne.s32.totalorder %s199, %s201
    %p208 = scmp.eq.s32.totalorder %s23, 1
    %p209 = por %p207, %p208
    %p210 = scmp.ne.s32.totalorder %s201, %s202
    %p211 = scmp.eq.s32.totalorder %s23, 0
    %p212 = por %p210, %p211
    %p213 = scmp.ne.s32.totalorder %s201, %s202
    %p214 = scmp.eq.s32.totalorder %s24, 1
    %p215 = por %p213, %p214
    %p217 = scmp.ne.s32.totalorder %s202, %s216
    %p218 = scmp.eq.s32.totalorder %s24, 0
    %p219 = por %p217, %p218
    %s221 = sadd.s32 %s220, 1
    %p224 = scmp.eq.s32.totalorder %s18, 1
    %p225 = scmp.ne.s32.totalorder %s220, %s222
    %p226 = scmp.eq.s32.totalorder %s18, 0
    %p227 = por %p225, %p226
    %p228 = scmp.ne.s32.totalorder %s220, %s222
    %p229 = scmp.eq.s32.totalorder %s23, 1
    %p230 = por %p228, %p229
    %p231 = scmp.ne.s32.totalorder %s222, %s223
    %p232 = scmp.eq.s32.totalorder %s23, 0
    %p233 = por %p231, %p232
    %p234 = scmp.ne.s32.totalorder %s222, %s223
    %p235 = scmp.eq.s32.totalorder %s24, 1
    %p236 = por %p234, %p235
    %p238 = scmp.ne.s32.totalorder %s223, %s237
    %p239 = scmp.eq.s32.totalorder %s24, 0
    %p240 = por %p238, %p239
    %s241 = ssub.s32 %s18, %s25
    %p242 = scmp.eq.s32.totalorder %s241, 0
    %s244 = sadd.s32 %s243, 1
    %s245 = scalar_select %p242, %s243, %s244
    %p248 = pneg %p242
    %p249 = scmp.eq.s32.totalorder %s18, 1
    %p250 = por %p248, %p249
    %p251 = scmp.ne.s32.totalorder %s243, %s246
    %p252 = scmp.eq.s32.totalorder %s18, 0
    %p253 = por %p251, %p252
    %p254 = scmp.ne.s32.totalorder %s243, %s246
    %p255 = scmp.eq.s32.totalorder %s23, 1
    %p256 = por %p254, %p255
    %p257 = scmp.ne.s32.totalorder %s246, %s247
    %p258 = scmp.eq.s32.totalorder %s23, 0
    %p259 = por %p257, %p258
    %p260 = scmp.ne.s32.totalorder %s246, %s247
    %p261 = scmp.eq.s32.totalorder %s24, 1
    %p262 = por %p260, %p261
    %p264 = scmp.ne.s32.totalorder %s247, %s263
    %p265 = scmp.eq.s32.totalorder %s24, 0
    %p266 = por %p264, %p265
    %s267 = ssub.s32 %s18, %s25
    %p268 = scmp.eq.s32.totalorder %s267, 0
    %s270 = sadd.s32 %s269, 1
    %s271 = scalar_select %p268, %s269, %s270
    %p274 = pneg %p268
    %p275 = scmp.eq.s32.totalorder %s18, 1
    %p276 = por %p274, %p275
    %p277 = scmp.ne.s32.totalorder %s269, %s272
    %p278 = scmp.eq.s32.totalorder %s18, 0
    %p279 = por %p277, %p278
    %p280 = scmp.ne.s32.totalorder %s269, %s272
    %p281 = scmp.eq.s32.totalorder %s23, 1
    %p282 = por %p280, %p281
    %p283 = scmp.ne.s32.totalorder %s272, %s273
    %p284 = scmp.eq.s32.totalorder %s23, 0
    %p285 = por %p283, %p284
    %p286 = scmp.ne.s32.totalorder %s272, %s273
    %p287 = scmp.eq.s32.totalorder %s24, 1
    %p288 = por %p286, %p287
    %p290 = scmp.ne.s32.totalorder %s273, %s289
    %p291 = scmp.eq.s32.totalorder %s24, 0
    %p292 = por %p290, %p291
    %p293 = scmp.le.s32.totalorder 1, %s18
    %p294 = scmp.lt.s32.totalorder %s18, 3
    %p295 = pnand %p293, %p294
    %p296 = pneg %p295
    // Predicated region
    $region9: #{simclr_forward.1} parent=5 // pred_check
      _
    $region10: #{simclr_forward.1} parent=5 // pred_check_branch
      %298 = sbr.rel (%p295) target = $region12
    $region11: #{simclr_forward.1} parent=5 // pred_region
      %s299 = ssub.s32 %s18, 1
      // Predicated region
      $region13: #{simclr_forward.1} parent=11 // pred_check
        %p300 = pneg %p65
      $region14: #{simclr_forward.1} parent=11 // pred_check_branch
        %302 = sbr.rel (%p300) target = $region16
      $region15: #{simclr_forward.1} parent=11 // pred_region
        _
      $region16: #{simclr_forward.1} parent=11 // pred_fallthru
        _
      // Predicated region
      $region17: #{simclr_forward.1} parent=11 // pred_check
        %p303 = pneg %p86
      $region18: #{simclr_forward.1} parent=11 // pred_check_branch
        %305 = sbr.rel (%p303) target = $region20
      $region19: #{simclr_forward.1} parent=11 // pred_region
        _
      $region20: #{simclr_forward.1} parent=11 // pred_fallthru
        _
      // Predicated region
      $region21: #{simclr_forward.1} parent=11 // pred_check
        %p306 = pneg %p107
      $region22: #{simclr_forward.1} parent=11 // pred_check_branch
        %308 = sbr.rel (%p306) target = $region24
      $region23: #{simclr_forward.1} parent=11 // pred_region
        _
      $region24: #{simclr_forward.1} parent=11 // pred_fallthru
        _
      // Predicated region
      $region25: #{simclr_forward.1} parent=11 // pred_check
        %p309 = pneg %p128
      $region26: #{simclr_forward.1} parent=11 // pred_check_branch
        %311 = sbr.rel (%p309) target = $region28
      $region27: #{simclr_forward.1} parent=11 // pred_region
        _
      $region28: #{simclr_forward.1} parent=11 // pred_fallthru
        _
      // Predicated region
      $region29: #{simclr_forward.1} parent=11 // pred_check
        %p312 = pneg %p149
      $region30: #{simclr_forward.1} parent=11 // pred_check_branch
        %314 = sbr.rel (%p312) target = $region32
      $region31: #{simclr_forward.1} parent=11 // pred_region
        _
      $region32: #{simclr_forward.1} parent=11 // pred_fallthru
        _
      // Predicated region
      $region33: #{simclr_forward.1} parent=11 // pred_check
        %p315 = pneg %p170
      $region34: #{simclr_forward.1} parent=11 // pred_check_branch
        %317 = sbr.rel (%p315) target = $region36
      $region35: #{simclr_forward.1} parent=11 // pred_region
        _
      $region36: #{simclr_forward.1} parent=11 // pred_fallthru
        _
      // Predicated region
      $region37: #{simclr_forward.1} parent=11 // pred_check
        %p318 = pneg %p191
      $region38: #{simclr_forward.1} parent=11 // pred_check_branch
        %320 = sbr.rel (%p318) target = $region40
      $region39: #{simclr_forward.1} parent=11 // pred_region
        _
      $region40: #{simclr_forward.1} parent=11 // pred_fallthru
        _
      // Predicated region
      $region41: #{simclr_forward.1} parent=11 // pred_check
        %p321 = pneg %p212
      $region42: #{simclr_forward.1} parent=11 // pred_check_branch
        %323 = sbr.rel (%p321) target = $region44
      $region43: #{simclr_forward.1} parent=11 // pred_region
        _
      $region44: #{simclr_forward.1} parent=11 // pred_fallthru
        _
      // Predicated region
      $region45: #{simclr_forward.1} parent=11 // pred_check
        %p324 = pneg %p233
      $region46: #{simclr_forward.1} parent=11 // pred_check_branch
        %326 = sbr.rel (%p324) target = $region48
      $region47: #{simclr_forward.1} parent=11 // pred_region
        _
      $region48: #{simclr_forward.1} parent=11 // pred_fallthru
        _
    $region12: #{simclr_forward.1} parent=5 // pred_fallthru
      _
    %p327 = scmp.lt.s32.totalorder %s18, 2
    // Predicated region
    $region49: #{simclr_forward.1} parent=5 // pred_check
      %p328 = pneg %p327
    $region50: #{simclr_forward.1} parent=5 // pred_check_branch
      %330 = sbr.rel (%p328) target = $region52
    $region51: #{simclr_forward.1} parent=5 // pred_region
      // Predicated region
      $region53: #{simclr_forward.1} parent=51 // pred_check
        %p331 = pneg %p38
      $region54: #{simclr_forward.1} parent=51 // pred_check_branch
        %333 = sbr.rel (%p331) target = $region56
      $region55: #{simclr_forward.1} parent=51 // pred_region
        %p334 = scmp.lt.s32.totalorder %s18, 1
        %s335 = scalar_select %p334, %s18, 1
        %s336 = smul.addr %s335, 47
        %s337 = smul.addr %s336, 4
        %s338 = scalar_lea.vmem %s0, %s337
      $region56: #{simclr_forward.1} parent=51 // pred_fallthru
        _
    $region52: #{simclr_forward.1} parent=5 // pred_fallthru
      _
    %p339 = scmp.le.s32.totalorder 1, %s18
    %p340 = scmp.lt.s32.totalorder %s18, 3
    %p341 = pnand %p339, %p340
    %p342 = pneg %p341
    // Predicated region
    $region57: #{simclr_forward.1} parent=5 // pred_check
      _
    $region58: #{simclr_forward.1} parent=5 // pred_check_branch
      %344 = sbr.rel (%p341) target = $region60
    $region59: #{simclr_forward.1} parent=5 // pred_region
      %s345 = ssub.s32 %s18, 1
      %p346 = scmp.lt.s32.totalorder %s23, 1
      %s347 = scalar_select %p346, %s23, 1
      %s348 = smul.addr %s347, 47
      %s349 = smul.addr %s348, 4
      %s350 = scalar_lea.vmem %s0, %s349
      %p351 = pneg %p44
      %p352 = pneg %p41
      %p353 = pneg %p65
      %p354 = pneg %p62
      %p355 = pneg %p86
      %p356 = pneg %p83
      %p357 = pneg %p107
      %p358 = pneg %p104
      %p359 = pneg %p128
      %p360 = pneg %p125
      %p361 = pneg %p149
      %p362 = pneg %p146
      %p363 = pneg %p170
      %p364 = pneg %p167
      %p365 = pneg %p191
      %p366 = pneg %p188
      %p367 = pneg %p212
      %p368 = pneg %p209
      %p369 = pneg %p233
      %p370 = pneg %p230
      %p371 = pneg %p259
      %p372 = pneg %p256
      %p373 = scmp.lt.s32.totalorder %s23, 1
      %s374 = scalar_select %p373, %s23, 1
      %s375 = smul.addr %s374, 8
      %s376 = scalar_lea.vmem %s10, %s375
      %p377 = pneg %p285
      %p378 = pneg %p282
      %p379 = scmp.lt.s32.totalorder %s23, 1
      %s380 = scalar_select %p379, %s23, 1
      %s381 = smul.addr %s380, 8
      %s382 = scalar_lea.vmem %s11, %s381
      %p383 = scmp.lt.s32.totalorder %s23, 1
      %s384 = scalar_select %p383, %s23, 1
      %s385 = smul.addr %s384, 47
      %s386 = smul.addr %s385, 4
      %s387 = scalar_lea.vmem %s0, %s386
      %p388 = scmp.lt.s32.totalorder %s23, 1
      %s389 = scalar_select %p388, %s23, 1
      %s390 = smul.addr %s389, 8
      %s391 = scalar_lea.vmem %s10, %s390
      %p392 = scmp.lt.s32.totalorder %s23, 1
      %s393 = scalar_select %p392, %s23, 1
      %s394 = smul.addr %s393, 8
      %s395 = scalar_lea.vmem %s11, %s394
      %v397 = vld [vmem:[%s1] sm:$0xff]
      %v398 = vld [vmem:[%s1 + $0x8] sm:$0xff]
      %v399 = vld [vmem:[%s1 + $0x10] sm:$0xff]
      %v400 = vld [vmem:[%s1 + $0x18] sm:$0xff]
      %v401 = vld [vmem:[%s1 + $0x20] sm:$0xff]
      %v402 = vld [vmem:[%s1 + $0x28] sm:$0xff]
      %v403 = vld [vmem:[%s1 + $0x30] sm:$0xff]
      %v404 = vld [vmem:[%s1 + $0x38] sm:$0xff]
      %v405 = vld [vmem:[%s1 + $0x40] sm:$0xff]
      %v406 = vld [vmem:[%s1 + $0x48] sm:$0xff]
      %v407 = vld [vmem:[%s1 + $0x50] sm:$0xff]
      %v408 = vld [vmem:[%s1 + $0x58] sm:$0xff]
      %v409 = vld [vmem:[%s1 + $0x60] sm:$0xff]
      %v410 = vld [vmem:[%s1 + $0x68] sm:$0xff]
      %v411 = vld [vmem:[%s1 + $0x70] sm:$0xff]
      %v412 = vld [vmem:[%s1 + $0x78] sm:$0xff]
      %v413 = vld [vmem:[%s1 + $0x80] sm:$0xff]
      %v414 = vld [vmem:[%s1 + $0x88] sm:$0xff]
      %v415 = vld [vmem:[%s1 + $0x90] sm:$0xff]
      %v416 = vld [vmem:[%s1 + $0x98] sm:$0xff]
      %v417 = vld [vmem:[%s1 + $0xa0] sm:$0xff]
      %v418 = vld [vmem:[%s1 + $0xa8] sm:$0xff]
      %v419 = vld [vmem:[%s1 + $0xb0] sm:$0xff]
      %v420 = vld [vmem:[%s1 + $0xb8] sm:$0xff]
      %v421 = vld [vmem:[%s1 + $0xc0] sm:$0xff]
      %v422 = vld [vmem:[%s1 + $0xc8] sm:$0xff]
      %v423 = vld [vmem:[%s1 + $0xd0] sm:$0xff]
      %v424 = vld [vmem:[%s1 + $0xd8] sm:$0xff]
      %v425 = vld [vmem:[%s1 + $0xe0] sm:$0xff]
      %v426 = vld [vmem:[%s1 + $0xe8] sm:$0xff]
      %v427 = vld [vmem:[%s1 + $0xf0] sm:$0xff]
      %v428 = vld [vmem:[%s1 + $0xf8] sm:$0xff]
      %v429 = vld [vmem:[%s1 + $0x100] sm:$0xff]
      %v430 = vld [vmem:[%s1 + $0x108] sm:$0xff]
      %v431 = vld [vmem:[%s1 + $0x110] sm:$0xff]
      %v432 = vld [vmem:[%s1 + $0x118] sm:$0xff]
      %v433 = vld [vmem:[%s1 + $0x120] sm:$0xff]
      %v434 = vld [vmem:[%s1 + $0x128] sm:$0xff]
      %v435 = vld [vmem:[%s1 + $0x130] sm:$0xff]
      %v436 = vld [vmem:[%s1 + $0x138] sm:$0xff]
      %v437 = vld [vmem:[%s1 + $0x140] sm:$0xf]
      %v438 = vld [vmem:[%s387] sm:$0xf]
      %v439 = vld [vmem:[%s387 + $0x4] sm:$0xf]
      %v440 = vld [vmem:[%s387 + $0x8] sm:$0xf]
      %v441 = vld [vmem:[%s387 + $0xc] sm:$0xf]
      %v442 = vld [vmem:[%s387 + $0x10] sm:$0xf]
      %v443 = vld [vmem:[%s387 + $0x14] sm:$0xf]
      %v444 = vld [vmem:[%s387 + $0x18] sm:$0xf]
      %v445 = vld [vmem:[%s387 + $0x1c] sm:$0xf]
      %v446 = vld [vmem:[%s387 + $0x20] sm:$0xf]
      %v447 = vld [vmem:[%s387 + $0x24] sm:$0xf]
      %v448 = vld [vmem:[%s387 + $0x28] sm:$0xf]
      %v449 = vld [vmem:[%s387 + $0x2c] sm:$0xf]
      %v450 = vld [vmem:[%s387 + $0x30] sm:$0xf]
      %v451 = vld [vmem:[%s387 + $0x34] sm:$0xf]
      %v452 = vld [vmem:[%s387 + $0x38] sm:$0xf]
      %v453 = vld [vmem:[%s387 + $0x3c] sm:$0xf]
      %v454 = vld [vmem:[%s387 + $0x40] sm:$0xf]
      %v455 = vld [vmem:[%s387 + $0x44] sm:$0xf]
      %v456 = vld [vmem:[%s387 + $0x48] sm:$0xf]
      %v457 = vld [vmem:[%s387 + $0x4c] sm:$0xf]
      %v458 = vld [vmem:[%s387 + $0x50] sm:$0xf]
      %v459 = vld [vmem:[%s387 + $0x54] sm:$0xf]
      %v460 = vld [vmem:[%s387 + $0x58] sm:$0xf]
      %v461 = vld [vmem:[%s387 + $0x5c] sm:$0xf]
      %v462 = vld [vmem:[%s387 + $0x60] sm:$0xf]
      %v463 = vld [vmem:[%s387 + $0x64] sm:$0xf]
      %v464 = vld [vmem:[%s387 + $0x68] sm:$0xf]
      %v465 = vld [vmem:[%s387 + $0x6c] sm:$0xf]
      %v466 = vld [vmem:[%s387 + $0x70] sm:$0xf]
      %v467 = vld [vmem:[%s387 + $0x74] sm:$0xf]
      %v468 = vld [vmem:[%s387 + $0x78] sm:$0xf]
      %v469 = vld [vmem:[%s387 + $0x7c] sm:$0xf]
      %v470 = vld [vmem:[%s387 + $0x80] sm:$0xf]
      %v471 = vld [vmem:[%s387 + $0x84] sm:$0xf]
      %v472 = vld [vmem:[%s387 + $0x88] sm:$0xf]
      %v473 = vld [vmem:[%s387 + $0x8c] sm:$0xf]
      %v474 = vld [vmem:[%s387 + $0x90] sm:$0xf]
      %v475 = vld [vmem:[%s387 + $0x94] sm:$0xf]
      %v476 = vld [vmem:[%s387 + $0x98] sm:$0xf]
      %v477 = vld [vmem:[%s387 + $0x9c] sm:$0xf]
      %v478 = vld [vmem:[%s387 + $0xa0] sm:$0xf]
      %v479 = vld [vmem:[%s387 + $0xa4] sm:$0xf]
      %v480 = vld [vmem:[%s387 + $0xa8] sm:$0xf]
      %v481 = vld [vmem:[%s387 + $0xac] sm:$0xf]
      %v482 = vld [vmem:[%s387 + $0xb0] sm:$0xf]
      %v483 = vld [vmem:[%s387 + $0xb4] sm:$0xf]
      %v484 = vunpack.c.l.bf16 %v438
      %v485 = vunpack.c.l.bf16 %v439
      %v486 = vunpack.c.l.bf16 %v440
      %v487 = vunpack.c.l.bf16 %v441
      %v488 = vunpack.c.l.bf16 %v442
      %v489 = vunpack.c.l.bf16 %v443
      %v490 = vunpack.c.l.bf16 %v444
      %v491 = vunpack.c.l.bf16 %v445
      %v492 = vunpack.c.l.bf16 %v446
      %v493 = vunpack.c.l.bf16 %v447
      %v494 = vunpack.c.l.bf16 %v448
      %v495 = vunpack.c.l.bf16 %v449
      %v496 = vunpack.c.l.bf16 %v450
      %v497 = vunpack.c.l.bf16 %v451
      %v498 = vunpack.c.l.bf16 %v452
      %v499 = vunpack.c.l.bf16 %v453
      %v500 = vunpack.c.l.bf16 %v454
      %v501 = vunpack.c.l.bf16 %v455
      %v502 = vunpack.c.l.bf16 %v456
      %v503 = vunpack.c.l.bf16 %v457
      %v504 = vunpack.c.l.bf16 %v458
      %v505 = vunpack.c.l.bf16 %v459
      %v506 = vunpack.c.l.bf16 %v460
      %v507 = vunpack.c.l.bf16 %v461
      %v508 = vunpack.c.l.bf16 %v462
      %v509 = vunpack.c.l.bf16 %v463
      %v510 = vunpack.c.l.bf16 %v464
      %v511 = vunpack.c.l.bf16 %v465
      %v512 = vunpack.c.l.bf16 %v466
      %v513 = vunpack.c.l.bf16 %v467
      %v514 = vunpack.c.l.bf16 %v468
      %v515 = vunpack.c.l.bf16 %v469
      %v516 = vunpack.c.l.bf16 %v470
      %v517 = vunpack.c.l.bf16 %v471
      %v518 = vunpack.c.l.bf16 %v472
      %v519 = vunpack.c.l.bf16 %v473
      %v520 = vunpack.c.l.bf16 %v474
      %v521 = vunpack.c.l.bf16 %v475
      %v522 = vunpack.c.l.bf16 %v476
      %v523 = vunpack.c.l.bf16 %v477
      %v524 = vunpack.c.l.bf16 %v478
      %v525 = vunpack.c.l.bf16 %v479
      %v526 = vunpack.c.l.bf16 %v480
      %v527 = vunpack.c.l.bf16 %v481
      %v528 = vunpack.c.l.bf16 %v482
      %v529 = vunpack.c.l.bf16 %v483
      %v530 = vpack.c.bf16 %v485, %v484
      %v531 = vpack.c.bf16 %v487, %v486
      %v532 = vpack.c.bf16 %v489, %v488
      %v533 = vpack.c.bf16 %v491, %v490
      %v534 = vpack.c.bf16 %v493, %v492
      %v535 = vpack.c.bf16 %v495, %v494
      %v536 = vpack.c.bf16 %v497, %v496
      %v537 = vpack.c.bf16 %v499, %v498
      %v538 = vpack.c.bf16 %v501, %v500
      %v539 = vpack.c.bf16 %v503, %v502
      %v540 = vpack.c.bf16 %v505, %v504
      %v541 = vpack.c.bf16 %v507, %v506
      %v542 = vpack.c.bf16 %v509, %v508
      %v543 = vpack.c.bf16 %v511, %v510
      %v544 = vpack.c.bf16 %v513, %v512
      %v545 = vpack.c.bf16 %v515, %v514
      %v546 = vpack.c.bf16 %v517, %v516
      %v547 = vpack.c.bf16 %v519, %v518
      %v548 = vpack.c.bf16 %v521, %v520
      %v549 = vpack.c.bf16 %v523, %v522
      %v550 = vpack.c.bf16 %v525, %v524
      %v551 = vld [vmem:[%s2] sm:$0xf]
      %v552 = vld [vmem:[%s2 + $0x4] sm:$0xf]
      %v553 = vld [vmem:[%s2 + $0x8] sm:$0xf]
      %v554 = vld [vmem:[%s2 + $0xc] sm:$0xf]
      %v555 = vld [vmem:[%s2 + $0x10] sm:$0xf]
      %v556 = vld [vmem:[%s2 + $0x14] sm:$0xf]
      %v557 = vld [vmem:[%s2 + $0x18] sm:$0xf]
      %v558 = vld [vmem:[%s2 + $0x1c] sm:$0xf]
      %v559 = vld [vmem:[%s2 + $0x20] sm:$0xf]
      %v560 = vld [vmem:[%s2 + $0x24] sm:$0xf]
      %v561 = vld [vmem:[%s2 + $0x28] sm:$0xf]
      %v562 = vld [vmem:[%s2 + $0x2c] sm:$0xf]
      %v563 = vld [vmem:[%s2 + $0x30] sm:$0xf]
      %v564 = vld [vmem:[%s2 + $0x34] sm:$0xf]
      %v565 = vld [vmem:[%s2 + $0x38] sm:$0xf]
      %v566 = vld [vmem:[%s2 + $0x3c] sm:$0xf]
      %s567 = scalar_lea.vmem %s2, 64
      %v568 = vld [vmem:[%s567] sm:$0xf]
      %v569 = vld [vmem:[%s567 + $0x4] sm:$0xf]
      %v570 = vld [vmem:[%s567 + $0x8] sm:$0xf]
      %v571 = vld [vmem:[%s567 + $0xc] sm:$0xf]
      %v572 = vld [vmem:[%s567 + $0x10] sm:$0xf]
      %v573 = vld [vmem:[%s567 + $0x14] sm:$0xf]
      %v574 = vld [vmem:[%s567 + $0x18] sm:$0xf]
      %v575 = vld [vmem:[%s567 + $0x1c] sm:$0xf]
      %v576 = vld [vmem:[%s567 + $0x20] sm:$0xf]
      %v577 = vld [vmem:[%s567 + $0x24] sm:$0xf]
      %v578 = vld [vmem:[%s567 + $0x28] sm:$0xf]
      %v579 = vld [vmem:[%s567 + $0x2c] sm:$0xf]
      %v580 = vld [vmem:[%s567 + $0x30] sm:$0xf]
      %v581 = vld [vmem:[%s567 + $0x34] sm:$0xf]
      %v582 = vld [vmem:[%s567 + $0x38] sm:$0xf]
      %v583 = vld [vmem:[%s567 + $0x3c] sm:$0xf]
      %vm605 = vcmask 1044480
      %v606 = vrot.slane %v530, 3
      %v607 = vrot.slane %v531, 3
      %v608 = vsel %vm605, %v606, %v607
      %v609 = vrot.slane %v532, 3
      %v610 = vsel %vm605, %v607, %v609
      %v611 = vrot.slane %v533, 3
      %v612 = vsel %vm605, %v609, %v611
      %v613 = vrot.slane %v534, 3
      %v614 = vsel %vm605, %v611, %v613
      %v615 = vrot.slane %v535, 3
      %v616 = vsel %vm605, %v613, %v615
      %v617 = vrot.slane %v536, 3
      %v618 = vsel %vm605, %v615, %v617
      %v619 = vrot.slane %v537, 3
      %v620 = vsel %vm605, %v617, %v619
      %v621 = vrot.slane %v538, 3
      %v622 = vsel %vm605, %v619, %v621
      %v623 = vrot.slane %v539, 3
      %v624 = vsel %vm605, %v621, %v623
      %v625 = vrot.slane %v540, 3
      %v626 = vsel %vm605, %v623, %v625
      %v627 = vrot.slane %v541, 3
      %v628 = vsel %vm605, %v625, %v627
      %v629 = vrot.slane %v542, 3
      %v630 = vsel %vm605, %v627, %v629
      %v631 = vrot.slane %v543, 3
      %v632 = vsel %vm605, %v629, %v631
      %v633 = vrot.slane %v544, 3
      %v634 = vsel %vm605, %v631, %v633
      %v635 = vrot.slane %v545, 3
      %v636 = vsel %vm605, %v633, %v635
      %v637 = vrot.slane %v546, 3
      %v638 = vsel %vm605, %v635, %v637
      %v639 = vrot.slane %v547, 3
      %v640 = vsel %vm605, %v637, %v639
      %v641 = vrot.slane %v548, 3
      %v642 = vsel %vm605, %v639, %v641
      %v643 = vrot.slane %v549, 3
      %v644 = vsel %vm605, %v641, %v643
      %v645 = vrot.slane %v550, 3
      %v646 = vsel %vm605, %v643, %v645
      %v684 = vunpack.c.l.b16 %v568
      %v685 = vunpack.c.l.b16 %v569
      %v686 = vunpack.c.l.b16 %v570
      %v687 = vunpack.c.l.b16 %v571
      %v688 = vunpack.c.l.b16 %v572
      %v689 = vunpack.c.l.b16 %v573
      %v690 = vunpack.c.l.b16 %v574
      %v691 = vunpack.c.l.b16 %v575
      %v692 = vunpack.c.l.b16 %v576
      %v693 = vunpack.c.l.b16 %v577
      %v694 = vunpack.c.l.b16 %v578
      %v695 = vunpack.c.l.b16 %v579
      %v696 = vunpack.c.l.b16 %v580
      %v697 = vunpack.c.l.b16 %v581
      %v698 = vunpack.c.l.b16 %v582
      %v699 = vunpack.c.l.b16 %v583
      %v700 = vpack.c.b16 %v685, %v684
      %v701 = vpack.c.b16 %v687, %v686
      %v702 = vpack.c.b16 %v689, %v688
      %v703 = vpack.c.b16 %v691, %v690
      %v704 = vpack.c.b16 %v693, %v692
      %v705 = vpack.c.b16 %v695, %v694
      %v706 = vpack.c.b16 %v697, %v696
      %v707 = vpack.c.b16 %v699, %v698
      %716 = vmatprep.subr.bf16.mxu0 0
      %717 = vmatpush1.bf16.msra.mxu0 %v707
      %718 = vmatprep.subr.bf16.mxu0 0
      %719 = vmatpush1.bf16.msra.mxu0 %v706
      %720 = vmatprep.subr.bf16.mxu0 0
      %721 = vmatpush1.bf16.msra.mxu0 %v705
      %722 = vmatprep.subr.bf16.mxu0 0
      %723 = vmatpush1.bf16.msra.mxu0 %v704
      %724 = vmatprep.subr.bf16.mxu0 0
      %725 = vmatpush1.bf16.msra.mxu0 %v703
      %726 = vmatprep.subr.bf16.mxu0 0
      %727 = vmatpush1.bf16.msra.mxu0 %v702
      %728 = vmatprep.subr.bf16.mxu0 0
      %729 = vmatpush1.bf16.msra.mxu0 %v701
      %730 = vmatprep.subr.bf16.mxu0 0
      %731 = vmatpush1.bf16.msra.mxu0 %v700
      %732 = vmatprep.subr.bf16.mxu0 0
      %733 = vmatpush2.bf16.msra.mxu0 0
      %734 = vmatprep.subr.bf16.mxu0 0
      %735 = vmatpush2.bf16.msra.mxu0 0
      %736 = vmatprep.subr.bf16.mxu0 0
      %737 = vmatpush2.bf16.msra.mxu0 0
      %738 = vmatprep.subr.bf16.mxu0 0
      %739 = vmatpush2.bf16.msra.mxu0 0
      %740 = vmatprep.subr.bf16.mxu0 0
      %741 = vmatpush2.bf16.msra.mxu0 0
      %742 = vmatprep.subr.bf16.mxu0 0
      %743 = vmatpush2.bf16.msra.mxu0 0
      %744 = vmatprep.subr.bf16.mxu0 0
      %745 = vmatpush2.bf16.msra.mxu0 0
      %746 = vmatprep.subr.bf16.mxu0 0
      %747 = vmatpush2.bf16.msra.mxu0 0
      %748 = vmatprep.mubr.bf16.mxu0 0
      %749 = vmatmul.mubr.bf16.gmra.mxu0 %v608
      %v750 = vpop.f32.mrf.mxu0
      %v751 = vadd.f32 0.0, %v750
      %v752 = vpop.f32.mrf.mxu0
      %v753 = vpop.f32.mrf.mxu0
      %v754 = vadd.f32 0.0, %v753
      %v755 = vpop.f32.mrf.mxu0
      %756 = vmatprep.mubr.bf16.mxu0 0
      %757 = vmatmul.mubr.bf16.gmra.mxu0 %v610
      %v758 = vpop.f32.mrf.mxu0
      %v759 = vadd.f32 0.0, %v758
      %v760 = vpop.f32.mrf.mxu0
      %v761 = vpop.f32.mrf.mxu0
      %v762 = vadd.f32 0.0, %v761
      %v763 = vpop.f32.mrf.mxu0
      %764 = vmatprep.mubr.bf16.mxu0 0
      %765 = vmatmul.mubr.bf16.gmra.mxu0 %v612
      %v766 = vpop.f32.mrf.mxu0
      %v767 = vadd.f32 0.0, %v766
      %v768 = vpop.f32.mrf.mxu0
      %v769 = vpop.f32.mrf.mxu0
      %v770 = vadd.f32 0.0, %v769
      %v771 = vpop.f32.mrf.mxu0
      %772 = vmatprep.mubr.bf16.mxu0 0
      %773 = vmatmul.mubr.bf16.gmra.mxu0 %v614
      %v774 = vpop.f32.mrf.mxu0
      %v775 = vadd.f32 0.0, %v774
      %v776 = vpop.f32.mrf.mxu0
      %v777 = vpop.f32.mrf.mxu0
      %v778 = vadd.f32 0.0, %v777
      %v779 = vpop.f32.mrf.mxu0
      %780 = vmatprep.mubr.bf16.mxu0 0
      %781 = vmatmul.mubr.bf16.gmra.mxu0 %v616
      %v782 = vpop.f32.mrf.mxu0
      %v783 = vadd.f32 0.0, %v782
      %v784 = vpop.f32.mrf.mxu0
      %v785 = vpop.f32.mrf.mxu0
      %v786 = vadd.f32 0.0, %v785
      %v787 = vpop.f32.mrf.mxu0
      %788 = vmatprep.mubr.bf16.mxu0 0
      %789 = vmatmul.mubr.bf16.gmra.mxu0 %v618
      %v790 = vpop.f32.mrf.mxu0
      %v791 = vadd.f32 0.0, %v790
      %v792 = vpop.f32.mrf.mxu0
      %v793 = vpop.f32.mrf.mxu0
      %v794 = vadd.f32 0.0, %v793
      %v795 = vpop.f32.mrf.mxu0
      %796 = vmatprep.mubr.bf16.mxu0 0
      %797 = vmatmul.mubr.bf16.gmra.mxu0 %v620
      %v798 = vpop.f32.mrf.mxu0
      %v799 = vadd.f32 0.0, %v798
      %v800 = vpop.f32.mrf.mxu0
      %v801 = vpop.f32.mrf.mxu0
      %v802 = vadd.f32 0.0, %v801
      %v803 = vpop.f32.mrf.mxu0
      %804 = vmatprep.mubr.bf16.mxu0 0
      %805 = vmatmul.mubr.bf16.gmra.mxu0 %v622
      %v806 = vpop.f32.mrf.mxu0
      %v807 = vadd.f32 0.0, %v806
      %v808 = vpop.f32.mrf.mxu0
      %v809 = vpop.f32.mrf.mxu0
      %v810 = vadd.f32 0.0, %v809
      %v811 = vpop.f32.mrf.mxu0
      %812 = vmatprep.mubr.bf16.mxu0 0
      %813 = vmatmul.mubr.bf16.gmra.mxu0 %v624
      %v814 = vpop.f32.mrf.mxu0
      %v815 = vadd.f32 0.0, %v814
      %v816 = vpop.f32.mrf.mxu0
      %v817 = vpop.f32.mrf.mxu0
      %v818 = vadd.f32 0.0, %v817
      %v819 = vpop.f32.mrf.mxu0
      %820 = vmatprep.mubr.bf16.mxu0 0
      %821 = vmatmul.mubr.bf16.gmra.mxu0 %v626
      %v822 = vpop.f32.mrf.mxu0
      %v823 = vadd.f32 0.0, %v822
      %v824 = vpop.f32.mrf.mxu0
      %v825 = vpop.f32.mrf.mxu0
      %v826 = vadd.f32 0.0, %v825
      %v827 = vpop.f32.mrf.mxu0
      %828 = vmatprep.mubr.bf16.mxu0 0
      %829 = vmatmul.mubr.bf16.gmra.mxu0 %v628
      %v830 = vpop.f32.mrf.mxu0
      %v831 = vadd.f32 0.0, %v830
      %v832 = vpop.f32.mrf.mxu0
      %v833 = vpop.f32.mrf.mxu0
      %v834 = vadd.f32 0.0, %v833
      %v835 = vpop.f32.mrf.mxu0
      %836 = vmatprep.mubr.bf16.mxu0 0
      %837 = vmatmul.mubr.bf16.gmra.mxu0 %v630
      %v838 = vpop.f32.mrf.mxu0
      %v839 = vadd.f32 0.0, %v838
      %v840 = vpop.f32.mrf.mxu0
      %v841 = vpop.f32.mrf.mxu0
      %v842 = vadd.f32 0.0, %v841
      %v843 = vpop.f32.mrf.mxu0
      %844 = vmatprep.mubr.bf16.mxu0 0
      %845 = vmatmul.mubr.bf16.gmra.mxu0 %v632
      %v846 = vpop.f32.mrf.mxu0
      %v847 = vadd.f32 0.0, %v846
      %v848 = vpop.f32.mrf.mxu0
      %v849 = vpop.f32.mrf.mxu0
      %v850 = vadd.f32 0.0, %v849
      %v851 = vpop.f32.mrf.mxu0
      %852 = vmatprep.mubr.bf16.mxu0 0
      %853 = vmatmul.mubr.bf16.gmra.mxu0 %v634
      %v854 = vpop.f32.mrf.mxu0
      %v855 = vadd.f32 0.0, %v854
      %v856 = vpop.f32.mrf.mxu0
      %v857 = vpop.f32.mrf.mxu0
      %v858 = vadd.f32 0.0, %v857
      %v859 = vpop.f32.mrf.mxu0
      %860 = vmatprep.mubr.bf16.mxu0 0
      %861 = vmatmul.mubr.bf16.gmra.mxu0 %v636
      %v862 = vpop.f32.mrf.mxu0
      %v863 = vadd.f32 0.0, %v862
      %v864 = vpop.f32.mrf.mxu0
      %v865 = vpop.f32.mrf.mxu0
      %v866 = vadd.f32 0.0, %v865
      %v867 = vpop.f32.mrf.mxu0
      %868 = vmatprep.mubr.bf16.mxu0 0
      %869 = vmatmul.mubr.bf16.gmra.mxu0 %v638
      %v870 = vpop.f32.mrf.mxu0
      %v871 = vadd.f32 0.0, %v870
      %v872 = vpop.f32.mrf.mxu0
      %v873 = vpop.f32.mrf.mxu0
      %v874 = vadd.f32 0.0, %v873
      %v875 = vpop.f32.mrf.mxu0
      %876 = vmatprep.mubr.bf16.mxu0 0
      %877 = vmatmul.mubr.bf16.gmra.mxu0 %v640
      %v878 = vpop.f32.mrf.mxu0
      %v879 = vadd.f32 0.0, %v878
      %v880 = vpop.f32.mrf.mxu0
      %v881 = vpop.f32.mrf.mxu0
      %v882 = vadd.f32 0.0, %v881
      %v883 = vpop.f32.mrf.mxu0
      %884 = vmatprep.mubr.bf16.mxu0 0
      %885 = vmatmul.mubr.bf16.gmra.mxu0 %v642
      %v886 = vpop.f32.mrf.mxu0
      %v887 = vadd.f32 0.0, %v886
      %v888 = vpop.f32.mrf.mxu0
      %v889 = vpop.f32.mrf.mxu0
      %v890 = vadd.f32 0.0, %v889
      %v891 = vpop.f32.mrf.mxu0
      %892 = vmatprep.mubr.bf16.mxu0 0
      %893 = vmatmul.mubr.bf16.gmra.mxu0 %v644
      %v894 = vpop.f32.mrf.mxu0
      %v895 = vadd.f32 0.0, %v894
      %v896 = vpop.f32.mrf.mxu0
      %v897 = vpop.f32.mrf.mxu0
      %v898 = vadd.f32 0.0, %v897
      %v899 = vpop.f32.mrf.mxu0
      %900 = vmatprep.mubr.bf16.mxu0 0
      %901 = vmatmul.mubr.bf16.gmra.mxu0 %v646
      %v902 = vpop.f32.mrf.mxu0
      %v903 = vadd.f32 0.0, %v902
      %v904 = vpop.f32.mrf.mxu0
      %v905 = vpop.f32.mrf.mxu0
      %v906 = vadd.f32 0.0, %v905
      %v907 = vpop.f32.mrf.mxu0
      %908 = vmatprep.mubr.bf16.mxu0 0
      %909 = vmatmul.mubr.bf16.gmra.mxu0 %v645
      %v910 = vpop.f32.mrf.mxu0
      %v911 = vadd.f32 0.0, %v910
      %v912 = vpop.f32.mrf.mxu0
      %v913 = vpop.f32.mrf.mxu0
      %v914 = vpop.f32.mrf.mxu0
      %915 = vdwg.mxu0
      %vm916 = vsmask.f32 5376
      %v918 = vshrl.u32 %v530, 16
      %v920 = vrot.slane %v918, 2
      %v921 = vshll.u32 %v530, 16
      %v923 = vrot.slane %v921, 3
      %v924 = vor.u32 %v920, %v923
      %v926 = vshrl.u32 %v531, 16
      %v928 = vrot.slane %v926, 2
      %v929 = vshll.u32 %v531, 16
      %v931 = vrot.slane %v929, 3
      %v932 = vor.u32 %v928, %v931
      %v933 = vsel %vm916, %v924, %v932
      %v935 = vshrl.u32 %v532, 16
      %v937 = vrot.slane %v935, 2
      %v938 = vshll.u32 %v532, 16
      %v940 = vrot.slane %v938, 3
      %v941 = vor.u32 %v937, %v940
      %v942 = vsel %vm916, %v932, %v941
      %v944 = vshrl.u32 %v533, 16
      %v946 = vrot.slane %v944, 2
      %v947 = vshll.u32 %v533, 16
      %v949 = vrot.slane %v947, 3
      %v950 = vor.u32 %v946, %v949
      %v951 = vsel %vm916, %v941, %v950
      %v953 = vshrl.u32 %v534, 16
      %v955 = vrot.slane %v953, 2
      %v956 = vshll.u32 %v534, 16
      %v958 = vrot.slane %v956, 3
      %v959 = vor.u32 %v955, %v958
      %v960 = vsel %vm916, %v950, %v959
      %v962 = vshrl.u32 %v535, 16
      %v964 = vrot.slane %v962, 2
      %v965 = vshll.u32 %v535, 16
      %v967 = vrot.slane %v965, 3
      %v968 = vor.u32 %v964, %v967
      %v969 = vsel %vm916, %v959, %v968
      %v971 = vshrl.u32 %v536, 16
      %v973 = vrot.slane %v971, 2
      %v974 = vshll.u32 %v536, 16
      %v976 = vrot.slane %v974, 3
      %v977 = vor.u32 %v973, %v976
      %v978 = vsel %vm916, %v968, %v977
      %v980 = vshrl.u32 %v537, 16
      %v982 = vrot.slane %v980, 2
      %v983 = vshll.u32 %v537, 16
      %v985 = vrot.slane %v983, 3
      %v986 = vor.u32 %v982, %v985
      %v987 = vsel %vm916, %v977, %v986
      %v989 = vshrl.u32 %v538, 16
      %v991 = vrot.slane %v989, 2
      %v992 = vshll.u32 %v538, 16
      %v994 = vrot.slane %v992, 3
      %v995 = vor.u32 %v991, %v994
      %v996 = vsel %vm916, %v986, %v995
      %v998 = vshrl.u32 %v539, 16
      %v1000 = vrot.slane %v998, 2
      %v1001 = vshll.u32 %v539, 16
      %v1003 = vrot.slane %v1001, 3
      %v1004 = vor.u32 %v1000, %v1003
      %v1005 = vsel %vm916, %v995, %v1004
      %v1007 = vshrl.u32 %v540, 16
      %v1009 = vrot.slane %v1007, 2
      %v1010 = vshll.u32 %v540, 16
      %v1012 = vrot.slane %v1010, 3
      %v1013 = vor.u32 %v1009, %v1012
      %v1014 = vsel %vm916, %v1004, %v1013
      %v1016 = vshrl.u32 %v541, 16
      %v1018 = vrot.slane %v1016, 2
      %v1019 = vshll.u32 %v541, 16
      %v1021 = vrot.slane %v1019, 3
      %v1022 = vor.u32 %v1018, %v1021
      %v1023 = vsel %vm916, %v1013, %v1022
      %v1025 = vshrl.u32 %v542, 16
      %v1027 = vrot.slane %v1025, 2
      %v1028 = vshll.u32 %v542, 16
      %v1030 = vrot.slane %v1028, 3
      %v1031 = vor.u32 %v1027, %v1030
      %v1032 = vsel %vm916, %v1022, %v1031
      %v1034 = vshrl.u32 %v543, 16
      %v1036 = vrot.slane %v1034, 2
      %v1037 = vshll.u32 %v543, 16
      %v1039 = vrot.slane %v1037, 3
      %v1040 = vor.u32 %v1036, %v1039
      %v1041 = vsel %vm916, %v1031, %v1040
      %v1043 = vshrl.u32 %v544, 16
      %v1045 = vrot.slane %v1043, 2
      %v1046 = vshll.u32 %v544, 16
      %v1048 = vrot.slane %v1046, 3
      %v1049 = vor.u32 %v1045, %v1048
      %v1050 = vsel %vm916, %v1040, %v1049
      %v1052 = vshrl.u32 %v545, 16
      %v1054 = vrot.slane %v1052, 2
      %v1055 = vshll.u32 %v545, 16
      %v1057 = vrot.slane %v1055, 3
      %v1058 = vor.u32 %v1054, %v1057
      %v1059 = vsel %vm916, %v1049, %v1058
      %v1061 = vshrl.u32 %v546, 16
      %v1063 = vrot.slane %v1061, 2
      %v1064 = vshll.u32 %v546, 16
      %v1066 = vrot.slane %v1064, 3
      %v1067 = vor.u32 %v1063, %v1066
      %v1068 = vsel %vm916, %v1058, %v1067
      %v1070 = vshrl.u32 %v547, 16
      %v1072 = vrot.slane %v1070, 2
      %v1073 = vshll.u32 %v547, 16
      %v1075 = vrot.slane %v1073, 3
      %v1076 = vor.u32 %v1072, %v1075
      %v1077 = vsel %vm916, %v1067, %v1076
      %v1079 = vshrl.u32 %v548, 16
      %v1081 = vrot.slane %v1079, 2
      %v1082 = vshll.u32 %v548, 16
      %v1084 = vrot.slane %v1082, 3
      %v1085 = vor.u32 %v1081, %v1084
      %v1086 = vsel %vm916, %v1076, %v1085
      %v1088 = vshrl.u32 %v549, 16
      %v1090 = vrot.slane %v1088, 2
      %v1091 = vshll.u32 %v549, 16
      %v1093 = vrot.slane %v1091, 3
      %v1094 = vor.u32 %v1090, %v1093
      %v1095 = vsel %vm916, %v1085, %v1094
      %v1097 = vshrl.u32 %v550, 16
      %v1099 = vrot.slane %v1097, 2
      %v1100 = vshll.u32 %v550, 16
      %v1102 = vrot.slane %v1100, 3
      %v1103 = vor.u32 %v1099, %v1102
      %v1104 = vsel %vm916, %v1094, %v1103
      %v1142 = vunpack.c.l.b16 %v551
      %v1143 = vunpack.c.l.b16 %v552
      %v1144 = vunpack.c.l.b16 %v553
      %v1145 = vunpack.c.l.b16 %v554
      %v1146 = vunpack.c.l.b16 %v555
      %v1147 = vunpack.c.l.b16 %v556
      %v1148 = vunpack.c.l.b16 %v557
      %v1149 = vunpack.c.l.b16 %v558
      %v1150 = vunpack.c.l.b16 %v559
      %v1151 = vunpack.c.l.b16 %v560
      %v1152 = vunpack.c.l.b16 %v561
      %v1153 = vunpack.c.l.b16 %v562
      %v1154 = vunpack.c.l.b16 %v563
      %v1155 = vunpack.c.l.b16 %v564
      %v1156 = vunpack.c.l.b16 %v565
      %v1157 = vunpack.c.l.b16 %v566
      %v1158 = vpack.c.b16 %v1143, %v1142
      %v1159 = vpack.c.b16 %v1145, %v1144
      %v1160 = vpack.c.b16 %v1147, %v1146
      %v1161 = vpack.c.b16 %v1149, %v1148
      %v1162 = vpack.c.b16 %v1151, %v1150
      %v1163 = vpack.c.b16 %v1153, %v1152
      %v1164 = vpack.c.b16 %v1155, %v1154
      %v1165 = vpack.c.b16 %v1157, %v1156
      %1174 = vmatprep.subr.bf16.mxu0 0
      %1175 = vmatpush1.bf16.msra.mxu0 %v1165
      %1176 = vmatprep.subr.bf16.mxu0 0
      %1177 = vmatpush1.bf16.msra.mxu0 %v1164
      %1178 = vmatprep.subr.bf16.mxu0 0
      %1179 = vmatpush1.bf16.msra.mxu0 %v1163
      %1180 = vmatprep.subr.bf16.mxu0 0
      %1181 = vmatpush1.bf16.msra.mxu0 %v1162
      %1182 = vmatprep.subr.bf16.mxu0 0
      %1183 = vmatpush1.bf16.msra.mxu0 %v1161
      %1184 = vmatprep.subr.bf16.mxu0 0
      %1185 = vmatpush1.bf16.msra.mxu0 %v1160
      %1186 = vmatprep.subr.bf16.mxu0 0
      %1187 = vmatpush1.bf16.msra.mxu0 %v1159
      %1188 = vmatprep.subr.bf16.mxu0 0
      %1189 = vmatpush1.bf16.msra.mxu0 %v1158
      %1190 = vmatprep.subr.bf16.mxu0 0
      %1191 = vmatpush2.bf16.msra.mxu0 0
      %1192 = vmatprep.subr.bf16.mxu0 0
      %1193 = vmatpush2.bf16.msra.mxu0 0
      %1194 = vmatprep.subr.bf16.mxu0 0
      %1195 = vmatpush2.bf16.msra.mxu0 0
      %1196 = vmatprep.subr.bf16.mxu0 0
      %1197 = vmatpush2.bf16.msra.mxu0 0
      %1198 = vmatprep.subr.bf16.mxu0 0
      %1199 = vmatpush2.bf16.msra.mxu0 0
      %1200 = vmatprep.subr.bf16.mxu0 0
      %1201 = vmatpush2.bf16.msra.mxu0 0
      %1202 = vmatprep.subr.bf16.mxu0 0
      %1203 = vmatpush2.bf16.msra.mxu0 0
      %1204 = vmatprep.subr.bf16.mxu0 0
      %1205 = vmatpush2.bf16.msra.mxu0 0
      %1206 = vmatprep.mubr.bf16.mxu0 0
      %1207 = vmatmul.mubr.bf16.gmra.mxu0 %v933
      %v1208 = vpop.f32.mrf.mxu0
      %v1209 = vadd.f32 %v751, %v1208
      %v1210 = vpop.f32.mrf.mxu0
      %v1211 = vpop.f32.mrf.mxu0
      %v1212 = vadd.f32 %v754, %v1211
      %v1213 = vpop.f32.mrf.mxu0
      %1214 = vmatprep.mubr.bf16.mxu0 0
      %1215 = vmatmul.mubr.bf16.gmra.mxu0 %v942
      %v1216 = vpop.f32.mrf.mxu0
      %v1217 = vadd.f32 %v759, %v1216
      %v1218 = vpop.f32.mrf.mxu0
      %v1219 = vpop.f32.mrf.mxu0
      %v1220 = vadd.f32 %v762, %v1219
      %v1221 = vpop.f32.mrf.mxu0
      %1222 = vmatprep.mubr.bf16.mxu0 0
      %1223 = vmatmul.mubr.bf16.gmra.mxu0 %v951
      %v1224 = vpop.f32.mrf.mxu0
      %v1225 = vadd.f32 %v767, %v1224
      %v1226 = vpop.f32.mrf.mxu0
      %v1227 = vpop.f32.mrf.mxu0
      %v1228 = vadd.f32 %v770, %v1227
      %v1229 = vpop.f32.mrf.mxu0
      %1230 = vmatprep.mubr.bf16.mxu0 0
      %1231 = vmatmul.mubr.bf16.gmra.mxu0 %v960
      %v1232 = vpop.f32.mrf.mxu0
      %v1233 = vadd.f32 %v775, %v1232
      %v1234 = vpop.f32.mrf.mxu0
      %v1235 = vpop.f32.mrf.mxu0
      %v1236 = vadd.f32 %v778, %v1235
      %v1237 = vpop.f32.mrf.mxu0
      %1238 = vmatprep.mubr.bf16.mxu0 0
      %1239 = vmatmul.mubr.bf16.gmra.mxu0 %v969
      %v1240 = vpop.f32.mrf.mxu0
      %v1241 = vadd.f32 %v783, %v1240
      %v1242 = vpop.f32.mrf.mxu0
      %v1243 = vpop.f32.mrf.mxu0
      %v1244 = vadd.f32 %v786, %v1243
      %v1245 = vpop.f32.mrf.mxu0
      %1246 = vmatprep.mubr.bf16.mxu0 0
      %1247 = vmatmul.mubr.bf16.gmra.mxu0 %v978
      %v1248 = vpop.f32.mrf.mxu0
      %v1249 = vadd.f32 %v791, %v1248
      %v1250 = vpop.f32.mrf.mxu0
      %v1251 = vpop.f32.mrf.mxu0
      %v1252 = vadd.f32 %v794, %v1251
      %v1253 = vpop.f32.mrf.mxu0
      %1254 = vmatprep.mubr.bf16.mxu0 0
      %1255 = vmatmul.mubr.bf16.gmra.mxu0 %v987
      %v1256 = vpop.f32.mrf.mxu0
      %v1257 = vadd.f32 %v799, %v1256
      %v1258 = vpop.f32.mrf.mxu0
      %v1259 = vpop.f32.mrf.mxu0
      %v1260 = vadd.f32 %v802, %v1259
      %v1261 = vpop.f32.mrf.mxu0
      %1262 = vmatprep.mubr.bf16.mxu0 0
      %1263 = vmatmul.mubr.bf16.gmra.mxu0 %v996
      %v1264 = vpop.f32.mrf.mxu0
      %v1265 = vadd.f32 %v807, %v1264
      %v1266 = vpop.f32.mrf.mxu0
      %v1267 = vpop.f32.mrf.mxu0
      %v1268 = vadd.f32 %v810, %v1267
      %v1269 = vpop.f32.mrf.mxu0
      %1270 = vmatprep.mubr.bf16.mxu0 0
      %1271 = vmatmul.mubr.bf16.gmra.mxu0 %v1005
      %v1272 = vpop.f32.mrf.mxu0
      %v1273 = vadd.f32 %v815, %v1272
      %v1274 = vpop.f32.mrf.mxu0
      %v1275 = vpop.f32.mrf.mxu0
      %v1276 = vadd.f32 %v818, %v1275
      %v1277 = vpop.f32.mrf.mxu0
      %1278 = vmatprep.mubr.bf16.mxu0 0
      %1279 = vmatmul.mubr.bf16.gmra.mxu0 %v1014
      %v1280 = vpop.f32.mrf.mxu0
      %v1281 = vadd.f32 %v823, %v1280
      %v1282 = vpop.f32.mrf.mxu0
      %v1283 = vpop.f32.mrf.mxu0
      %v1284 = vadd.f32 %v826, %v1283
      %v1285 = vpop.f32.mrf.mxu0
      %1286 = vmatprep.mubr.bf16.mxu0 0
      %1287 = vmatmul.mubr.bf16.gmra.mxu0 %v1023
      %v1288 = vpop.f32.mrf.mxu0
      %v1289 = vadd.f32 %v831, %v1288
      %v1290 = vpop.f32.mrf.mxu0
      %v1291 = vpop.f32.mrf.mxu0
      %v1292 = vadd.f32 %v834, %v1291
      %v1293 = vpop.f32.mrf.mxu0
      %1294 = vmatprep.mubr.bf16.mxu0 0
      %1295 = vmatmul.mubr.bf16.gmra.mxu0 %v1032
      %v1296 = vpop.f32.mrf.mxu0
      %v1297 = vadd.f32 %v839, %v1296
      %v1298 = vpop.f32.mrf.mxu0
      %v1299 = vpop.f32.mrf.mxu0
      %v1300 = vadd.f32 %v842, %v1299
      %v1301 = vpop.f32.mrf.mxu0
      %1302 = vmatprep.mubr.bf16.mxu0 0
      %1303 = vmatmul.mubr.bf16.gmra.mxu0 %v1041
      %v1304 = vpop.f32.mrf.mxu0
      %v1305 = vadd.f32 %v847, %v1304
      %v1306 = vpop.f32.mrf.mxu0
      %v1307 = vpop.f32.mrf.mxu0
      %v1308 = vadd.f32 %v850, %v1307
      %v1309 = vpop.f32.mrf.mxu0
      %1310 = vmatprep.mubr.bf16.mxu0 0
      %1311 = vmatmul.mubr.bf16.gmra.mxu0 %v1050
      %v1312 = vpop.f32.mrf.mxu0
      %v1313 = vadd.f32 %v855, %v1312
      %v1314 = vpop.f32.mrf.mxu0
      %v1315 = vpop.f32.mrf.mxu0
      %v1316 = vadd.f32 %v858, %v1315
      %v1317 = vpop.f32.mrf.mxu0
      %1318 = vmatprep.mubr.bf16.mxu0 0
      %1319 = vmatmul.mubr.bf16.gmra.mxu0 %v1059
      %v1320 = vpop.f32.mrf.mxu0
      %v1321 = vadd.f32 %v863, %v1320
      %v1322 = vpop.f32.mrf.mxu0
      %v1323 = vpop.f32.mrf.mxu0
      %v1324 = vadd.f32 %v866, %v1323
      %v1325 = vpop.f32.mrf.mxu0
      %1326 = vmatprep.mubr.bf16.mxu0 0
      %1327 = vmatmul.mubr.bf16.gmra.mxu0 %v1068
      %v1328 = vpop.f32.mrf.mxu0
      %v1329 = vadd.f32 %v871, %v1328
      %v1330 = vpop.f32.mrf.mxu0
      %v1331 = vpop.f32.mrf.mxu0
      %v1332 = vadd.f32 %v874, %v1331
      %v1333 = vpop.f32.mrf.mxu0
      %1334 = vmatprep.mubr.bf16.mxu0 0
      %1335 = vmatmul.mubr.bf16.gmra.mxu0 %v1077
      %v1336 = vpop.f32.mrf.mxu0
      %v1337 = vadd.f32 %v879, %v1336
      %v1338 = vpop.f32.mrf.mxu0
      %v1339 = vpop.f32.mrf.mxu0
      %v1340 = vadd.f32 %v882, %v1339
      %v1341 = vpop.f32.mrf.mxu0
      %1342 = vmatprep.mubr.bf16.mxu0 0
      %1343 = vmatmul.mubr.bf16.gmra.mxu0 %v1086
      %v1344 = vpop.f32.mrf.mxu0
      %v1345 = vadd.f32 %v887, %v1344
      %v1346 = vpop.f32.mrf.mxu0
      %v1347 = vpop.f32.mrf.mxu0
      %v1348 = vadd.f32 %v890, %v1347
      %v1349 = vpop.f32.mrf.mxu0
      %1350 = vmatprep.mubr.bf16.mxu0 0
      %1351 = vmatmul.mubr.bf16.gmra.mxu0 %v1095
      %v1352 = vpop.f32.mrf.mxu0
      %v1353 = vadd.f32 %v895, %v1352
      %v1354 = vpop.f32.mrf.mxu0
      %v1355 = vpop.f32.mrf.mxu0
      %v1356 = vadd.f32 %v898, %v1355
      %v1357 = vpop.f32.mrf.mxu0
      %1358 = vmatprep.mubr.bf16.mxu0 0
      %1359 = vmatmul.mubr.bf16.gmra.mxu0 %v1104
      %v1360 = vpop.f32.mrf.mxu0
      %v1361 = vadd.f32 %v903, %v1360
      %v1362 = vpop.f32.mrf.mxu0
      %v1363 = vpop.f32.mrf.mxu0
      %v1364 = vadd.f32 %v906, %v1363
      %v1365 = vpop.f32.mrf.mxu0
      %1366 = vmatprep.mubr.bf16.mxu0 0
      %1367 = vmatmul.mubr.bf16.gmra.mxu0 %v1103
      %v1368 = vpop.f32.mrf.mxu0
      %v1369 = vadd.f32 %v911, %v1368
      %v1370 = vpop.f32.mrf.mxu0
      %v1371 = vpop.f32.mrf.mxu0
      %v1372 = vpop.f32.mrf.mxu0
      %1373 = vdwg.mxu0
      %s1374 = scalar_lea.vmem %s2, 128
      %v1375 = vld [vmem:[%s1374] sm:$0xf]
      %v1376 = vld [vmem:[%s1374 + $0x4] sm:$0xf]
      %v1377 = vld [vmem:[%s1374 + $0x8] sm:$0xf]
      %v1378 = vld [vmem:[%s1374 + $0xc] sm:$0xf]
      %v1379 = vld [vmem:[%s1374 + $0x10] sm:$0xf]
      %v1380 = vld [vmem:[%s1374 + $0x14] sm:$0xf]
      %v1381 = vld [vmem:[%s1374 + $0x18] sm:$0xf]
      %v1382 = vld [vmem:[%s1374 + $0x1c] sm:$0xf]
      %v1383 = vld [vmem:[%s1374 + $0x20] sm:$0xf]
      %v1384 = vld [vmem:[%s1374 + $0x24] sm:$0xf]
      %v1385 = vld [vmem:[%s1374 + $0x28] sm:$0xf]
      %v1386 = vld [vmem:[%s1374 + $0x2c] sm:$0xf]
      %v1387 = vld [vmem:[%s1374 + $0x30] sm:$0xf]
      %v1388 = vld [vmem:[%s1374 + $0x34] sm:$0xf]
      %v1389 = vld [vmem:[%s1374 + $0x38] sm:$0xf]
      %v1390 = vld [vmem:[%s1374 + $0x3c] sm:$0xf]
      %vm1391 = vsmask.f32 4352
      %v1392 = vrot.slane %v918, 3
      %v1393 = vrot.slane %v921, 4
      %v1394 = vor.u32 %v1392, %v1393
      %v1395 = vrot.slane %v926, 3
      %v1396 = vrot.slane %v929, 4
      %v1397 = vor.u32 %v1395, %v1396
      %v1398 = vsel %vm1391, %v1394, %v1397
      %v1399 = vrot.slane %v935, 3
      %v1400 = vrot.slane %v938, 4
      %v1401 = vor.u32 %v1399, %v1400
      %v1402 = vsel %vm1391, %v1397, %v1401
      %v1403 = vrot.slane %v944, 3
      %v1404 = vrot.slane %v947, 4
      %v1405 = vor.u32 %v1403, %v1404
      %v1406 = vsel %vm1391, %v1401, %v1405
      %v1407 = vrot.slane %v953, 3
      %v1408 = vrot.slane %v956, 4
      %v1409 = vor.u32 %v1407, %v1408
      %v1410 = vsel %vm1391, %v1405, %v1409
      %v1411 = vrot.slane %v962, 3
      %v1412 = vrot.slane %v965, 4
      %v1413 = vor.u32 %v1411, %v1412
      %v1414 = vsel %vm1391, %v1409, %v1413
      %v1415 = vrot.slane %v971, 3
      %v1416 = vrot.slane %v974, 4
      %v1417 = vor.u32 %v1415, %v1416
      %v1418 = vsel %vm1391, %v1413, %v1417
      %v1419 = vrot.slane %v980, 3
      %v1420 = vrot.slane %v983, 4
      %v1421 = vor.u32 %v1419, %v1420
      %v1422 = vsel %vm1391, %v1417, %v1421
      %v1423 = vrot.slane %v989, 3
      %v1424 = vrot.slane %v992, 4
      %v1425 = vor.u32 %v1423, %v1424
      %v1426 = vsel %vm1391, %v1421, %v1425
      %v1427 = vrot.slane %v998, 3
      %v1428 = vrot.slane %v1001, 4
      %v1429 = vor.u32 %v1427, %v1428
      %v1430 = vsel %vm1391, %v1425, %v1429
      %v1431 = vrot.slane %v1007, 3
      %v1432 = vrot.slane %v1010, 4
      %v1433 = vor.u32 %v1431, %v1432
      %v1434 = vsel %vm1391, %v1429, %v1433
      %v1435 = vrot.slane %v1016, 3
      %v1436 = vrot.slane %v1019, 4
      %v1437 = vor.u32 %v1435, %v1436
      %v1438 = vsel %vm1391, %v1433, %v1437
      %v1439 = vrot.slane %v1025, 3
      %v1440 = vrot.slane %v1028, 4
      %v1441 = vor.u32 %v1439, %v1440
      %v1442 = vsel %vm1391, %v1437, %v1441
      %v1443 = vrot.slane %v1034, 3
      %v1444 = vrot.slane %v1037, 4
      %v1445 = vor.u32 %v1443, %v1444
      %v1446 = vsel %vm1391, %v1441, %v1445
      %v1447 = vrot.slane %v1043, 3
      %v1448 = vrot.slane %v1046, 4
      %v1449 = vor.u32 %v1447, %v1448
      %v1450 = vsel %vm1391, %v1445, %v1449
      %v1451 = vrot.slane %v1052, 3
      %v1452 = vrot.slane %v1055, 4
      %v1453 = vor.u32 %v1451, %v1452
      %v1454 = vsel %vm1391, %v1449, %v1453
      %v1455 = vrot.slane %v1061, 3
      %v1456 = vrot.slane %v1064, 4
      %v1457 = vor.u32 %v1455, %v1456
      %v1458 = vsel %vm1391, %v1453, %v1457
      %v1459 = vrot.slane %v1070, 3
      %v1460 = vrot.slane %v1073, 4
      %v1461 = vor.u32 %v1459, %v1460
      %v1462 = vsel %vm1391, %v1457, %v1461
      %v1463 = vrot.slane %v1079, 3
      %v1464 = vrot.slane %v1082, 4
      %v1465 = vor.u32 %v1463, %v1464
      %v1466 = vsel %vm1391, %v1461, %v1465
      %v1467 = vrot.slane %v1088, 3
      %v1468 = vrot.slane %v1091, 4
      %v1469 = vor.u32 %v1467, %v1468
      %v1470 = vsel %vm1391, %v1465, %v1469
      %v1471 = vrot.slane %v1097, 3
      %v1472 = vrot.slane %v1100, 4
      %v1473 = vor.u32 %v1471, %v1472
      %v1474 = vsel %vm1391, %v1469, %v1473
      %v1512 = vunpack.c.l.b16 %v1375
      %v1513 = vunpack.c.l.b16 %v1376
      %v1514 = vunpack.c.l.b16 %v1377
      %v1515 = vunpack.c.l.b16 %v1378
      %v1516 = vunpack.c.l.b16 %v1379
      %v1517 = vunpack.c.l.b16 %v1380
      %v1518 = vunpack.c.l.b16 %v1381
      %v1519 = vunpack.c.l.b16 %v1382
      %v1520 = vunpack.c.l.b16 %v1383
      %v1521 = vunpack.c.l.b16 %v1384
      %v1522 = vunpack.c.l.b16 %v1385
      %v1523 = vunpack.c.l.b16 %v1386
      %v1524 = vunpack.c.l.b16 %v1387
      %v1525 = vunpack.c.l.b16 %v1388
      %v1526 = vunpack.c.l.b16 %v1389
      %v1527 = vunpack.c.l.b16 %v1390
      %v1528 = vpack.c.b16 %v1513, %v1512
      %v1529 = vpack.c.b16 %v1515, %v1514
      %v1530 = vpack.c.b16 %v1517, %v1516
      %v1531 = vpack.c.b16 %v1519, %v1518
      %v1532 = vpack.c.b16 %v1521, %v1520
      %v1533 = vpack.c.b16 %v1523, %v1522
      %v1534 = vpack.c.b16 %v1525, %v1524
      %v1535 = vpack.c.b16 %v1527, %v1526
      %1544 = vmatprep.subr.bf16.mxu0 0
      %1545 = vmatpush1.bf16.msra.mxu0 %v1535
      %1546 = vmatprep.subr.bf16.mxu0 0
      %1547 = vmatpush1.bf16.msra.mxu0 %v1534
      %1548 = vmatprep.subr.bf16.mxu0 0
      %1549 = vmatpush1.bf16.msra.mxu0 %v1533
      %1550 = vmatprep.subr.bf16.mxu0 0
      %1551 = vmatpush1.bf16.msra.mxu0 %v1532
      %1552 = vmatprep.subr.bf16.mxu0 0
      %1553 = vmatpush1.bf16.msra.mxu0 %v1531
      %1554 = vmatprep.subr.bf16.mxu0 0
      %1555 = vmatpush1.bf16.msra.mxu0 %v1530
      %1556 = vmatprep.subr.bf16.mxu0 0
      %1557 = vmatpush1.bf16.msra.mxu0 %v1529
      %1558 = vmatprep.subr.bf16.mxu0 0
      %1559 = vmatpush1.bf16.msra.mxu0 %v1528
      %1560 = vmatprep.subr.bf16.mxu0 0
      %1561 = vmatpush2.bf16.msra.mxu0 0
      %1562 = vmatprep.subr.bf16.mxu0 0
      %1563 = vmatpush2.bf16.msra.mxu0 0
      %1564 = vmatprep.subr.bf16.mxu0 0
      %1565 = vmatpush2.bf16.msra.mxu0 0
      %1566 = vmatprep.subr.bf16.mxu0 0
      %1567 = vmatpush2.bf16.msra.mxu0 0
      %1568 = vmatprep.subr.bf16.mxu0 0
      %1569 = vmatpush2.bf16.msra.mxu0 0
      %1570 = vmatprep.subr.bf16.mxu0 0
      %1571 = vmatpush2.bf16.msra.mxu0 0
      %1572 = vmatprep.subr.bf16.mxu0 0
      %1573 = vmatpush2.bf16.msra.mxu0 0
      %1574 = vmatprep.subr.bf16.mxu0 0
      %1575 = vmatpush2.bf16.msra.mxu0 0
      %1576 = vmatprep.mubr.bf16.mxu0 0
      %1577 = vmatmul.mubr.bf16.gmra.mxu0 %v1398
      %v1578 = vpop.f32.mrf.mxu0
      %v1579 = vadd.f32 0.0, %v1578
      %v1580 = vpop.f32.mrf.mxu0
      %v1581 = vpop.f32.mrf.mxu0
      %v1582 = vadd.f32 0.0, %v1581
      %v1583 = vpop.f32.mrf.mxu0
      %1584 = vmatprep.mubr.bf16.mxu0 0
      %1585 = vmatmul.mubr.bf16.gmra.mxu0 %v1402
      %v1586 = vpop.f32.mrf.mxu0
      %v1587 = vadd.f32 0.0, %v1586
      %v1588 = vpop.f32.mrf.mxu0
      %v1589 = vpop.f32.mrf.mxu0
      %v1590 = vadd.f32 0.0, %v1589
      %v1591 = vpop.f32.mrf.mxu0
      %1592 = vmatprep.mubr.bf16.mxu0 0
      %1593 = vmatmul.mubr.bf16.gmra.mxu0 %v1406
      %v1594 = vpop.f32.mrf.mxu0
      %v1595 = vadd.f32 0.0, %v1594
      %v1596 = vpop.f32.mrf.mxu0
      %v1597 = vpop.f32.mrf.mxu0
      %v1598 = vadd.f32 0.0, %v1597
      %v1599 = vpop.f32.mrf.mxu0
      %1600 = vmatprep.mubr.bf16.mxu0 0
      %1601 = vmatmul.mubr.bf16.gmra.mxu0 %v1410
      %v1602 = vpop.f32.mrf.mxu0
      %v1603 = vadd.f32 0.0, %v1602
      %v1604 = vpop.f32.mrf.mxu0
      %v1605 = vpop.f32.mrf.mxu0
      %v1606 = vadd.f32 0.0, %v1605
      %v1607 = vpop.f32.mrf.mxu0
      %1608 = vmatprep.mubr.bf16.mxu0 0
      %1609 = vmatmul.mubr.bf16.gmra.mxu0 %v1414
      %v1610 = vpop.f32.mrf.mxu0
      %v1611 = vadd.f32 0.0, %v1610
      %v1612 = vpop.f32.mrf.mxu0
      %v1613 = vpop.f32.mrf.mxu0
      %v1614 = vadd.f32 0.0, %v1613
      %v1615 = vpop.f32.mrf.mxu0
      %1616 = vmatprep.mubr.bf16.mxu0 0
      %1617 = vmatmul.mubr.bf16.gmra.mxu0 %v1418
      %v1618 = vpop.f32.mrf.mxu0
      %v1619 = vadd.f32 0.0, %v1618
      %v1620 = vpop.f32.mrf.mxu0
      %v1621 = vpop.f32.mrf.mxu0
      %v1622 = vadd.f32 0.0, %v1621
      %v1623 = vpop.f32.mrf.mxu0
      %1624 = vmatprep.mubr.bf16.mxu0 0
      %1625 = vmatmul.mubr.bf16.gmra.mxu0 %v1422
      %v1626 = vpop.f32.mrf.mxu0
      %v1627 = vadd.f32 0.0, %v1626
      %v1628 = vpop.f32.mrf.mxu0
      %v1629 = vpop.f32.mrf.mxu0
      %v1630 = vadd.f32 0.0, %v1629
      %v1631 = vpop.f32.mrf.mxu0
      %1632 = vmatprep.mubr.bf16.mxu0 0
      %1633 = vmatmul.mubr.bf16.gmra.mxu0 %v1426
      %v1634 = vpop.f32.mrf.mxu0
      %v1635 = vadd.f32 0.0, %v1634
      %v1636 = vpop.f32.mrf.mxu0
      %v1637 = vpop.f32.mrf.mxu0
      %v1638 = vadd.f32 0.0, %v1637
      %v1639 = vpop.f32.mrf.mxu0
      %1640 = vmatprep.mubr.bf16.mxu0 0
      %1641 = vmatmul.mubr.bf16.gmra.mxu0 %v1430
      %v1642 = vpop.f32.mrf.mxu0
      %v1643 = vadd.f32 0.0, %v1642
      %v1644 = vpop.f32.mrf.mxu0
      %v1645 = vpop.f32.mrf.mxu0
      %v1646 = vadd.f32 0.0, %v1645
      %v1647 = vpop.f32.mrf.mxu0
      %1648 = vmatprep.mubr.bf16.mxu0 0
      %1649 = vmatmul.mubr.bf16.gmra.mxu0 %v1434
      %v1650 = vpop.f32.mrf.mxu0
      %v1651 = vadd.f32 0.0, %v1650
      %v1652 = vpop.f32.mrf.mxu0
      %v1653 = vpop.f32.mrf.mxu0
      %v1654 = vadd.f32 0.0, %v1653
      %v1655 = vpop.f32.mrf.mxu0
      %1656 = vmatprep.mubr.bf16.mxu0 0
      %1657 = vmatmul.mubr.bf16.gmra.mxu0 %v1438
      %v1658 = vpop.f32.mrf.mxu0
      %v1659 = vadd.f32 0.0, %v1658
      %v1660 = vpop.f32.mrf.mxu0
      %v1661 = vpop.f32.mrf.mxu0
      %v1662 = vadd.f32 0.0, %v1661
      %v1663 = vpop.f32.mrf.mxu0
      %1664 = vmatprep.mubr.bf16.mxu0 0
      %1665 = vmatmul.mubr.bf16.gmra.mxu0 %v1442
      %v1666 = vpop.f32.mrf.mxu0
      %v1667 = vadd.f32 0.0, %v1666
      %v1668 = vpop.f32.mrf.mxu0
      %v1669 = vpop.f32.mrf.mxu0
      %v1670 = vadd.f32 0.0, %v1669
      %v1671 = vpop.f32.mrf.mxu0
      %1672 = vmatprep.mubr.bf16.mxu0 0
      %1673 = vmatmul.mubr.bf16.gmra.mxu0 %v1446
      %v1674 = vpop.f32.mrf.mxu0
      %v1675 = vadd.f32 0.0, %v1674
      %v1676 = vpop.f32.mrf.mxu0
      %v1677 = vpop.f32.mrf.mxu0
      %v1678 = vadd.f32 0.0, %v1677
      %v1679 = vpop.f32.mrf.mxu0
      %1680 = vmatprep.mubr.bf16.mxu0 0
      %1681 = vmatmul.mubr.bf16.gmra.mxu0 %v1450
      %v1682 = vpop.f32.mrf.mxu0
      %v1683 = vadd.f32 0.0, %v1682
      %v1684 = vpop.f32.mrf.mxu0
      %v1685 = vpop.f32.mrf.mxu0
      %v1686 = vadd.f32 0.0, %v1685
      %v1687 = vpop.f32.mrf.mxu0
      %1688 = vmatprep.mubr.bf16.mxu0 0
      %1689 = vmatmul.mubr.bf16.gmra.mxu0 %v1454
      %v1690 = vpop.f32.mrf.mxu0
      %v1691 = vadd.f32 0.0, %v1690
      %v1692 = vpop.f32.mrf.mxu0
      %v1693 = vpop.f32.mrf.mxu0
      %v1694 = vadd.f32 0.0, %v1693
      %v1695 = vpop.f32.mrf.mxu0
      %1696 = vmatprep.mubr.bf16.mxu0 0
      %1697 = vmatmul.mubr.bf16.gmra.mxu0 %v1458
      %v1698 = vpop.f32.mrf.mxu0
      %v1699 = vadd.f32 0.0, %v1698
      %v1700 = vpop.f32.mrf.mxu0
      %v1701 = vpop.f32.mrf.mxu0
      %v1702 = vadd.f32 0.0, %v1701
      %v1703 = vpop.f32.mrf.mxu0
      %1704 = vmatprep.mubr.bf16.mxu0 0
      %1705 = vmatmul.mubr.bf16.gmra.mxu0 %v1462
      %v1706 = vpop.f32.mrf.mxu0
      %v1707 = vadd.f32 0.0, %v1706
      %v1708 = vpop.f32.mrf.mxu0
      %v1709 = vpop.f32.mrf.mxu0
      %v1710 = vadd.f32 0.0, %v1709
      %v1711 = vpop.f32.mrf.mxu0
      %1712 = vmatprep.mubr.bf16.mxu0 0
      %1713 = vmatmul.mubr.bf16.gmra.mxu0 %v1466
      %v1714 = vpop.f32.mrf.mxu0
      %v1715 = vadd.f32 0.0, %v1714
      %v1716 = vpop.f32.mrf.mxu0
      %v1717 = vpop.f32.mrf.mxu0
      %v1718 = vadd.f32 0.0, %v1717
      %v1719 = vpop.f32.mrf.mxu0
      %1720 = vmatprep.mubr.bf16.mxu0 0
      %1721 = vmatmul.mubr.bf16.gmra.mxu0 %v1470
      %v1722 = vpop.f32.mrf.mxu0
      %v1723 = vadd.f32 0.0, %v1722
      %v1724 = vpop.f32.mrf.mxu0
      %v1725 = vpop.f32.mrf.mxu0
      %v1726 = vadd.f32 0.0, %v1725
      %v1727 = vpop.f32.mrf.mxu0
      %1728 = vmatprep.mubr.bf16.mxu0 0
      %1729 = vmatmul.mubr.bf16.gmra.mxu0 %v1474
      %v1730 = vpop.f32.mrf.mxu0
      %v1731 = vadd.f32 0.0, %v1730
      %v1732 = vpop.f32.mrf.mxu0
      %v1733 = vpop.f32.mrf.mxu0
      %v1734 = vadd.f32 0.0, %v1733
      %v1735 = vpop.f32.mrf.mxu0
      %1736 = vmatprep.mubr.bf16.mxu0 0
      %1737 = vmatmul.mubr.bf16.gmra.mxu0 %v1473
      %v1738 = vpop.f32.mrf.mxu0
      %v1739 = vadd.f32 0.0, %v1738
      %v1740 = vpop.f32.mrf.mxu0
      %v1741 = vpop.f32.mrf.mxu0
      %v1742 = vpop.f32.mrf.mxu0
      %1743 = vdwg.mxu0
      %v1744 = vadd.f32 %v1209, %v1579
      %v1745 = vadd.f32 %v1212, %v1582
      %v1746 = vadd.f32 %v1217, %v1587
      %v1747 = vadd.f32 %v1220, %v1590
      %v1748 = vadd.f32 %v1225, %v1595
      %v1749 = vadd.f32 %v1228, %v1598
      %v1750 = vadd.f32 %v1233, %v1603
      %v1751 = vadd.f32 %v1236, %v1606
      %v1752 = vadd.f32 %v1241, %v1611
      %v1753 = vadd.f32 %v1244, %v1614
      %v1754 = vadd.f32 %v1249, %v1619
      %v1755 = vadd.f32 %v1252, %v1622
      %v1756 = vadd.f32 %v1257, %v1627
      %v1757 = vadd.f32 %v1260, %v1630
      %v1758 = vadd.f32 %v1265, %v1635
      %v1759 = vadd.f32 %v1268, %v1638
      %v1760 = vadd.f32 %v1273, %v1643
      %v1761 = vadd.f32 %v1276, %v1646
      %v1762 = vadd.f32 %v1281, %v1651
      %v1763 = vadd.f32 %v1284, %v1654
      %v1764 = vadd.f32 %v1289, %v1659
      %v1765 = vadd.f32 %v1292, %v1662
      %v1766 = vadd.f32 %v1297, %v1667
      %v1767 = vadd.f32 %v1300, %v1670
      %v1768 = vadd.f32 %v1305, %v1675
      %v1769 = vadd.f32 %v1308, %v1678
      %v1770 = vadd.f32 %v1313, %v1683
      %v1771 = vadd.f32 %v1316, %v1686
      %v1772 = vadd.f32 %v1321, %v1691
      %v1773 = vadd.f32 %v1324, %v1694
      %v1774 = vadd.f32 %v1329, %v1699
      %v1775 = vadd.f32 %v1332, %v1702
      %v1776 = vadd.f32 %v1337, %v1707
      %v1777 = vadd.f32 %v1340, %v1710
      %v1778 = vadd.f32 %v1345, %v1715
      %v1779 = vadd.f32 %v1348, %v1718
      %v1780 = vadd.f32 %v1353, %v1723
      %v1781 = vadd.f32 %v1356, %v1726
      %v1782 = vadd.f32 %v1361, %v1731
      %v1783 = vadd.f32 %v1364, %v1734
      %v1784 = vadd.f32 %v1369, %v1739
      %v1785 = vpack.c.bf16 %v527, %v526
      %s1786 = scalar_lea.vmem %s2, 192
      %v1787 = vld [vmem:[%s1786] sm:$0xf]
      %v1788 = vld [vmem:[%s1786 + $0x4] sm:$0xf]
      %v1789 = vld [vmem:[%s1786 + $0x8] sm:$0xf]
      %v1790 = vld [vmem:[%s1786 + $0xc] sm:$0xf]
      %v1791 = vld [vmem:[%s1786 + $0x10] sm:$0xf]
      %v1792 = vld [vmem:[%s1786 + $0x14] sm:$0xf]
      %v1793 = vld [vmem:[%s1786 + $0x18] sm:$0xf]
      %v1794 = vld [vmem:[%s1786 + $0x1c] sm:$0xf]
      %v1795 = vld [vmem:[%s1786 + $0x20] sm:$0xf]
      %v1796 = vld [vmem:[%s1786 + $0x24] sm:$0xf]
      %v1797 = vld [vmem:[%s1786 + $0x28] sm:$0xf]
      %v1798 = vld [vmem:[%s1786 + $0x2c] sm:$0xf]
      %v1799 = vld [vmem:[%s1786 + $0x30] sm:$0xf]
      %v1800 = vld [vmem:[%s1786 + $0x34] sm:$0xf]
      %v1801 = vld [vmem:[%s1786 + $0x38] sm:$0xf]
      %v1802 = vld [vmem:[%s1786 + $0x3c] sm:$0xf]
      %v1804 = vshrl.u32 %v1785, 16
      %v1806 = vrot.slane %v1804, 3
      %v1807 = vshll.u32 %v1785, 16
      %v1809 = vrot.slane %v1807, 4
      %v1810 = vor.u32 %v1806, %v1809
      %v1811 = vsel %vm1391, %v1473, %v1810
      %v1830 = vunpack.c.l.b16 %v1787
      %v1831 = vunpack.c.l.b16 %v1788
      %v1832 = vunpack.c.l.b16 %v1789
      %v1833 = vunpack.c.l.b16 %v1790
      %v1834 = vunpack.c.l.b16 %v1791
      %v1835 = vunpack.c.l.b16 %v1792
      %v1836 = vunpack.c.l.b16 %v1793
      %v1837 = vunpack.c.l.b16 %v1794
      %v1838 = vunpack.c.l.b16 %v1795
      %v1839 = vunpack.c.l.b16 %v1796
      %v1840 = vunpack.c.l.b16 %v1797
      %v1841 = vunpack.c.l.b16 %v1798
      %v1842 = vunpack.c.l.b16 %v1799
      %v1843 = vunpack.c.l.b16 %v1800
      %v1844 = vunpack.c.l.b16 %v1801
      %v1845 = vunpack.c.l.b16 %v1802
      %v1846 = vpack.c.b16 %v1831, %v1830
      %v1847 = vpack.c.b16 %v1833, %v1832
      %v1848 = vpack.c.b16 %v1835, %v1834
      %v1849 = vpack.c.b16 %v1837, %v1836
      %v1850 = vpack.c.b16 %v1839, %v1838
      %v1851 = vpack.c.b16 %v1841, %v1840
      %v1852 = vpack.c.b16 %v1843, %v1842
      %v1853 = vpack.c.b16 %v1845, %v1844
      %1862 = vmatprep.subr.bf16.mxu0 0
      %1863 = vmatpush1.bf16.msra.mxu0 %v1853
      %1864 = vmatprep.subr.bf16.mxu0 0
      %1865 = vmatpush1.bf16.msra.mxu0 %v1852
      %1866 = vmatprep.subr.bf16.mxu0 0
      %1867 = vmatpush1.bf16.msra.mxu0 %v1851
      %1868 = vmatprep.subr.bf16.mxu0 0
      %1869 = vmatpush1.bf16.msra.mxu0 %v1850
      %1870 = vmatprep.subr.bf16.mxu0 0
      %1871 = vmatpush1.bf16.msra.mxu0 %v1849
      %1872 = vmatprep.subr.bf16.mxu0 0
      %1873 = vmatpush1.bf16.msra.mxu0 %v1848
      %1874 = vmatprep.subr.bf16.mxu0 0
      %1875 = vmatpush1.bf16.msra.mxu0 %v1847
      %1876 = vmatprep.subr.bf16.mxu0 0
      %1877 = vmatpush1.bf16.msra.mxu0 %v1846
      %1878 = vmatprep.subr.bf16.mxu0 0
      %1879 = vmatpush2.bf16.msra.mxu0 0
      %1880 = vmatprep.subr.bf16.mxu0 0
      %1881 = vmatpush2.bf16.msra.mxu0 0
      %1882 = vmatprep.subr.bf16.mxu0 0
      %1883 = vmatpush2.bf16.msra.mxu0 0
      %1884 = vmatprep.subr.bf16.mxu0 0
      %1885 = vmatpush2.bf16.msra.mxu0 0
      %1886 = vmatprep.subr.bf16.mxu0 0
      %1887 = vmatpush2.bf16.msra.mxu0 0
      %1888 = vmatprep.subr.bf16.mxu0 0
      %1889 = vmatpush2.bf16.msra.mxu0 0
      %1890 = vmatprep.subr.bf16.mxu0 0
      %1891 = vmatpush2.bf16.msra.mxu0 0
      %1892 = vmatprep.subr.bf16.mxu0 0
      %1893 = vmatpush2.bf16.msra.mxu0 0
      %1894 = vmatprep.mubr.bf16.mxu0 0
      %1895 = vmatmul.mubr.bf16.gmra.mxu0 %v1402
      %v1896 = vpop.f32.mrf.mxu0
      %v1897 = vadd.f32 0.0, %v1896
      %v1898 = vpop.f32.mrf.mxu0
      %v1899 = vpop.f32.mrf.mxu0
      %v1900 = vadd.f32 0.0, %v1899
      %v1901 = vpop.f32.mrf.mxu0
      %1902 = vmatprep.mubr.bf16.mxu0 0
      %1903 = vmatmul.mubr.bf16.gmra.mxu0 %v1406
      %v1904 = vpop.f32.mrf.mxu0
      %v1905 = vadd.f32 0.0, %v1904
      %v1906 = vpop.f32.mrf.mxu0
      %v1907 = vpop.f32.mrf.mxu0
      %v1908 = vadd.f32 0.0, %v1907
      %v1909 = vpop.f32.mrf.mxu0
      %1910 = vmatprep.mubr.bf16.mxu0 0
      %1911 = vmatmul.mubr.bf16.gmra.mxu0 %v1410
      %v1912 = vpop.f32.mrf.mxu0
      %v1913 = vadd.f32 0.0, %v1912
      %v1914 = vpop.f32.mrf.mxu0
      %v1915 = vpop.f32.mrf.mxu0
      %v1916 = vadd.f32 0.0, %v1915
      %v1917 = vpop.f32.mrf.mxu0
      %1918 = vmatprep.mubr.bf16.mxu0 0
      %1919 = vmatmul.mubr.bf16.gmra.mxu0 %v1414
      %v1920 = vpop.f32.mrf.mxu0
      %v1921 = vadd.f32 0.0, %v1920
      %v1922 = vpop.f32.mrf.mxu0
      %v1923 = vpop.f32.mrf.mxu0
      %v1924 = vadd.f32 0.0, %v1923
      %v1925 = vpop.f32.mrf.mxu0
      %1926 = vmatprep.mubr.bf16.mxu0 0
      %1927 = vmatmul.mubr.bf16.gmra.mxu0 %v1418
      %v1928 = vpop.f32.mrf.mxu0
      %v1929 = vadd.f32 0.0, %v1928
      %v1930 = vpop.f32.mrf.mxu0
      %v1931 = vpop.f32.mrf.mxu0
      %v1932 = vadd.f32 0.0, %v1931
      %v1933 = vpop.f32.mrf.mxu0
      %1934 = vmatprep.mubr.bf16.mxu0 0
      %1935 = vmatmul.mubr.bf16.gmra.mxu0 %v1422
      %v1936 = vpop.f32.mrf.mxu0
      %v1937 = vadd.f32 0.0, %v1936
      %v1938 = vpop.f32.mrf.mxu0
      %v1939 = vpop.f32.mrf.mxu0
      %v1940 = vadd.f32 0.0, %v1939
      %v1941 = vpop.f32.mrf.mxu0
      %1942 = vmatprep.mubr.bf16.mxu0 0
      %1943 = vmatmul.mubr.bf16.gmra.mxu0 %v1426
      %v1944 = vpop.f32.mrf.mxu0
      %v1945 = vadd.f32 0.0, %v1944
      %v1946 = vpop.f32.mrf.mxu0
      %v1947 = vpop.f32.mrf.mxu0
      %v1948 = vadd.f32 0.0, %v1947
      %v1949 = vpop.f32.mrf.mxu0
      %1950 = vmatprep.mubr.bf16.mxu0 0
      %1951 = vmatmul.mubr.bf16.gmra.mxu0 %v1430
      %v1952 = vpop.f32.mrf.mxu0
      %v1953 = vadd.f32 0.0, %v1952
      %v1954 = vpop.f32.mrf.mxu0
      %v1955 = vpop.f32.mrf.mxu0
      %v1956 = vadd.f32 0.0, %v1955
      %v1957 = vpop.f32.mrf.mxu0
      %1958 = vmatprep.mubr.bf16.mxu0 0
      %1959 = vmatmul.mubr.bf16.gmra.mxu0 %v1434
      %v1960 = vpop.f32.mrf.mxu0
      %v1961 = vadd.f32 0.0, %v1960
      %v1962 = vpop.f32.mrf.mxu0
      %v1963 = vpop.f32.mrf.mxu0
      %v1964 = vadd.f32 0.0, %v1963
      %v1965 = vpop.f32.mrf.mxu0
      %1966 = vmatprep.mubr.bf16.mxu0 0
      %1967 = vmatmul.mubr.bf16.gmra.mxu0 %v1438
      %v1968 = vpop.f32.mrf.mxu0
      %v1969 = vadd.f32 0.0, %v1968
      %v1970 = vpop.f32.mrf.mxu0
      %v1971 = vpop.f32.mrf.mxu0
      %v1972 = vadd.f32 0.0, %v1971
      %v1973 = vpop.f32.mrf.mxu0
      %1974 = vmatprep.mubr.bf16.mxu0 0
      %1975 = vmatmul.mubr.bf16.gmra.mxu0 %v1442
      %v1976 = vpop.f32.mrf.mxu0
      %v1977 = vadd.f32 0.0, %v1976
      %v1978 = vpop.f32.mrf.mxu0
      %v1979 = vpop.f32.mrf.mxu0
      %v1980 = vadd.f32 0.0, %v1979
      %v1981 = vpop.f32.mrf.mxu0
      %1982 = vmatprep.mubr.bf16.mxu0 0
      %1983 = vmatmul.mubr.bf16.gmra.mxu0 %v1446
      %v1984 = vpop.f32.mrf.mxu0
      %v1985 = vadd.f32 0.0, %v1984
      %v1986 = vpop.f32.mrf.mxu0
      %v1987 = vpop.f32.mrf.mxu0
      %v1988 = vadd.f32 0.0, %v1987
      %v1989 = vpop.f32.mrf.mxu0
      %1990 = vmatprep.mubr.bf16.mxu0 0
      %1991 = vmatmul.mubr.bf16.gmra.mxu0 %v1450
      %v1992 = vpop.f32.mrf.mxu0
      %v1993 = vadd.f32 0.0, %v1992
      %v1994 = vpop.f32.mrf.mxu0
      %v1995 = vpop.f32.mrf.mxu0
      %v1996 = vadd.f32 0.0, %v1995
      %v1997 = vpop.f32.mrf.mxu0
      %1998 = vmatprep.mubr.bf16.mxu0 0
      %1999 = vmatmul.mubr.bf16.gmra.mxu0 %v1454
      %v2000 = vpop.f32.mrf.mxu0
      %v2001 = vadd.f32 0.0, %v2000
      %v2002 = vpop.f32.mrf.mxu0
      %v2003 = vpop.f32.mrf.mxu0
      %v2004 = vadd.f32 0.0, %v2003
      %v2005 = vpop.f32.mrf.mxu0
      %2006 = vmatprep.mubr.bf16.mxu0 0
      %2007 = vmatmul.mubr.bf16.gmra.mxu0 %v1458
      %v2008 = vpop.f32.mrf.mxu0
      %v2009 = vadd.f32 0.0, %v2008
      %v2010 = vpop.f32.mrf.mxu0
      %v2011 = vpop.f32.mrf.mxu0
      %v2012 = vadd.f32 0.0, %v2011
      %v2013 = vpop.f32.mrf.mxu0
      %2014 = vmatprep.mubr.bf16.mxu0 0
      %2015 = vmatmul.mubr.bf16.gmra.mxu0 %v1462
      %v2016 = vpop.f32.mrf.mxu0
      %v2017 = vadd.f32 0.0, %v2016
      %v2018 = vpop.f32.mrf.mxu0
      %v2019 = vpop.f32.mrf.mxu0
      %v2020 = vadd.f32 0.0, %v2019
      %v2021 = vpop.f32.mrf.mxu0
      %2022 = vmatprep.mubr.bf16.mxu0 0
      %2023 = vmatmul.mubr.bf16.gmra.mxu0 %v1466
      %v2024 = vpop.f32.mrf.mxu0
      %v2025 = vadd.f32 0.0, %v2024
      %v2026 = vpop.f32.mrf.mxu0
      %v2027 = vpop.f32.mrf.mxu0
      %v2028 = vadd.f32 0.0, %v2027
      %v2029 = vpop.f32.mrf.mxu0
      %2030 = vmatprep.mubr.bf16.mxu0 0
      %2031 = vmatmul.mubr.bf16.gmra.mxu0 %v1470
      %v2032 = vpop.f32.mrf.mxu0
      %v2033 = vadd.f32 0.0, %v2032
      %v2034 = vpop.f32.mrf.mxu0
      %v2035 = vpop.f32.mrf.mxu0
      %v2036 = vadd.f32 0.0, %v2035
      %v2037 = vpop.f32.mrf.mxu0
      %2038 = vmatprep.mubr.bf16.mxu0 0
      %2039 = vmatmul.mubr.bf16.gmra.mxu0 %v1474
      %v2040 = vpop.f32.mrf.mxu0
      %v2041 = vadd.f32 0.0, %v2040
      %v2042 = vpop.f32.mrf.mxu0
      %v2043 = vpop.f32.mrf.mxu0
      %v2044 = vadd.f32 0.0, %v2043
      %v2045 = vpop.f32.mrf.mxu0
      %2046 = vmatprep.mubr.bf16.mxu0 0
      %2047 = vmatmul.mubr.bf16.gmra.mxu0 %v1811
      %v2048 = vpop.f32.mrf.mxu0
      %v2049 = vadd.f32 0.0, %v2048
      %v2050 = vpop.f32.mrf.mxu0
      %v2051 = vpop.f32.mrf.mxu0
      %v2052 = vadd.f32 0.0, %v2051
      %v2053 = vpop.f32.mrf.mxu0
      %2054 = vmatprep.mubr.bf16.mxu0 0
      %2055 = vmatmul.mubr.bf16.gmra.mxu0 %v1810
      %v2056 = vpop.f32.mrf.mxu0
      %v2057 = vadd.f32 0.0, %v2056
      %v2058 = vpop.f32.mrf.mxu0
      %v2059 = vpop.f32.mrf.mxu0
      %v2060 = vpop.f32.mrf.mxu0
      %2061 = vdwg.mxu0
      %v2062 = vadd.f32 %v1744, %v1897
      %v2063 = vadd.f32 %v1745, %v1900
      %v2064 = vadd.f32 %v1746, %v1905
      %v2065 = vadd.f32 %v1747, %v1908
      %v2066 = vadd.f32 %v1748, %v1913
      %v2067 = vadd.f32 %v1749, %v1916
      %v2068 = vadd.f32 %v1750, %v1921
      %v2069 = vadd.f32 %v1751, %v1924
      %v2070 = vadd.f32 %v1752, %v1929
      %v2071 = vadd.f32 %v1753, %v1932
      %v2072 = vadd.f32 %v1754, %v1937
      %v2073 = vadd.f32 %v1755, %v1940
      %v2074 = vadd.f32 %v1756, %v1945
      %v2075 = vadd.f32 %v1757, %v1948
      %v2076 = vadd.f32 %v1758, %v1953
      %v2077 = vadd.f32 %v1759, %v1956
      %v2078 = vadd.f32 %v1760, %v1961
      %v2079 = vadd.f32 %v1761, %v1964
      %v2080 = vadd.f32 %v1762, %v1969
      %v2081 = vadd.f32 %v1763, %v1972
      %v2082 = vadd.f32 %v1764, %v1977
      %v2083 = vadd.f32 %v1765, %v1980
      %v2084 = vadd.f32 %v1766, %v1985
      %v2085 = vadd.f32 %v1767, %v1988
      %v2086 = vadd.f32 %v1768, %v1993
      %v2087 = vadd.f32 %v1769, %v1996
      %v2088 = vadd.f32 %v1770, %v2001
      %v2089 = vadd.f32 %v1771, %v2004
      %v2090 = vadd.f32 %v1772, %v2009
      %v2091 = vadd.f32 %v1773, %v2012
      %v2092 = vadd.f32 %v1774, %v2017
      %v2093 = vadd.f32 %v1775, %v2020
      %v2094 = vadd.f32 %v1776, %v2025
      %v2095 = vadd.f32 %v1777, %v2028
      %v2096 = vadd.f32 %v1778, %v2033
      %v2097 = vadd.f32 %v1779, %v2036
      %v2098 = vadd.f32 %v1780, %v2041
      %v2099 = vadd.f32 %v1781, %v2044
      %v2100 = vadd.f32 %v1782, %v2049
      %v2101 = vadd.f32 %v1783, %v2052
      %v2102 = vadd.f32 %v1784, %v2057
      %v2103 = vpack.c.bf16 %v488, %v487
      %v2104 = vpack.c.bf16 %v490, %v489
      %v2105 = vpack.c.bf16 %v492, %v491
      %v2106 = vpack.c.bf16 %v494, %v493
      %v2107 = vpack.c.bf16 %v496, %v495
      %v2108 = vpack.c.bf16 %v498, %v497
      %v2109 = vpack.c.bf16 %v500, %v499
      %v2110 = vpack.c.bf16 %v502, %v501
      %v2111 = vpack.c.bf16 %v504, %v503
      %v2112 = vpack.c.bf16 %v506, %v505
      %v2113 = vpack.c.bf16 %v508, %v507
      %v2114 = vpack.c.bf16 %v510, %v509
      %v2115 = vpack.c.bf16 %v512, %v511
      %v2116 = vpack.c.bf16 %v514, %v513
      %v2117 = vpack.c.bf16 %v516, %v515
      %v2118 = vpack.c.bf16 %v518, %v517
      %v2119 = vpack.c.bf16 %v520, %v519
      %v2120 = vpack.c.bf16 %v522, %v521
      %v2121 = vpack.c.bf16 %v524, %v523
      %v2122 = vpack.c.bf16 %v526, %v525
      %v2123 = vpack.c.bf16 %v527, %v527
      %s2124 = scalar_lea.vmem %s2, 256
      %v2125 = vld [vmem:[%s2124] sm:$0xf]
      %v2126 = vld [vmem:[%s2124 + $0x4] sm:$0xf]
      %v2127 = vld [vmem:[%s2124 + $0x8] sm:$0xf]
      %v2128 = vld [vmem:[%s2124 + $0xc] sm:$0xf]
      %v2129 = vld [vmem:[%s2124 + $0x10] sm:$0xf]
      %v2130 = vld [vmem:[%s2124 + $0x14] sm:$0xf]
      %v2131 = vld [vmem:[%s2124 + $0x18] sm:$0xf]
      %v2132 = vld [vmem:[%s2124 + $0x1c] sm:$0xf]
      %v2133 = vld [vmem:[%s2124 + $0x20] sm:$0xf]
      %v2134 = vld [vmem:[%s2124 + $0x24] sm:$0xf]
      %v2135 = vld [vmem:[%s2124 + $0x28] sm:$0xf]
      %v2136 = vld [vmem:[%s2124 + $0x2c] sm:$0xf]
      %v2137 = vld [vmem:[%s2124 + $0x30] sm:$0xf]
      %v2138 = vld [vmem:[%s2124 + $0x34] sm:$0xf]
      %v2139 = vld [vmem:[%s2124 + $0x38] sm:$0xf]
      %v2140 = vld [vmem:[%s2124 + $0x3c] sm:$0xf]
      %v2157 = vunpack.c.l.b16 %v2125
      %v2158 = vunpack.c.l.b16 %v2126
      %v2159 = vunpack.c.l.b16 %v2127
      %v2160 = vunpack.c.l.b16 %v2128
      %v2161 = vunpack.c.l.b16 %v2129
      %v2162 = vunpack.c.l.b16 %v2130
      %v2163 = vunpack.c.l.b16 %v2131
      %v2164 = vunpack.c.l.b16 %v2132
      %v2165 = vunpack.c.l.b16 %v2133
      %v2166 = vunpack.c.l.b16 %v2134
      %v2167 = vunpack.c.l.b16 %v2135
      %v2168 = vunpack.c.l.b16 %v2136
      %v2169 = vunpack.c.l.b16 %v2137
      %v2170 = vunpack.c.l.b16 %v2138
      %v2171 = vunpack.c.l.b16 %v2139
      %v2172 = vunpack.c.l.b16 %v2140
      %v2173 = vpack.c.b16 %v2158, %v2157
      %v2174 = vpack.c.b16 %v2160, %v2159
      %v2175 = vpack.c.b16 %v2162, %v2161
      %v2176 = vpack.c.b16 %v2164, %v2163
      %v2177 = vpack.c.b16 %v2166, %v2165
      %v2178 = vpack.c.b16 %v2168, %v2167
      %v2179 = vpack.c.b16 %v2170, %v2169
      %v2180 = vpack.c.b16 %v2172, %v2171
      %2189 = vmatprep.subr.bf16.mxu0 0
      %2190 = vmatpush1.bf16.msra.mxu0 %v2180
      %2191 = vmatprep.subr.bf16.mxu0 0
      %2192 = vmatpush1.bf16.msra.mxu0 %v2179
      %2193 = vmatprep.subr.bf16.mxu0 0
      %2194 = vmatpush1.bf16.msra.mxu0 %v2178
      %2195 = vmatprep.subr.bf16.mxu0 0
      %2196 = vmatpush1.bf16.msra.mxu0 %v2177
      %2197 = vmatprep.subr.bf16.mxu0 0
      %2198 = vmatpush1.bf16.msra.mxu0 %v2176
      %2199 = vmatprep.subr.bf16.mxu0 0
      %2200 = vmatpush1.bf16.msra.mxu0 %v2175
      %2201 = vmatprep.subr.bf16.mxu0 0
      %2202 = vmatpush1.bf16.msra.mxu0 %v2174
      %2203 = vmatprep.subr.bf16.mxu0 0
      %2204 = vmatpush1.bf16.msra.mxu0 %v2173
      %2205 = vmatprep.subr.bf16.mxu0 0
      %2206 = vmatpush2.bf16.msra.mxu0 0
      %2207 = vmatprep.subr.bf16.mxu0 0
      %2208 = vmatpush2.bf16.msra.mxu0 0
      %2209 = vmatprep.subr.bf16.mxu0 0
      %2210 = vmatpush2.bf16.msra.mxu0 0
      %2211 = vmatprep.subr.bf16.mxu0 0
      %2212 = vmatpush2.bf16.msra.mxu0 0
      %2213 = vmatprep.subr.bf16.mxu0 0
      %2214 = vmatpush2.bf16.msra.mxu0 0
      %2215 = vmatprep.subr.bf16.mxu0 0
      %2216 = vmatpush2.bf16.msra.mxu0 0
      %2217 = vmatprep.subr.bf16.mxu0 0
      %2218 = vmatpush2.bf16.msra.mxu0 0
      %2219 = vmatprep.subr.bf16.mxu0 0
      %2220 = vmatpush2.bf16.msra.mxu0 0
      %2221 = vmatprep.mubr.bf16.mxu0 0
      %2222 = vmatmul.mubr.bf16.gmra.mxu0 %v2103
      %v2223 = vpop.f32.mrf.mxu0
      %v2224 = vadd.f32 0.0, %v2223
      %v2225 = vpop.f32.mrf.mxu0
      %v2226 = vpop.f32.mrf.mxu0
      %v2227 = vadd.f32 0.0, %v2226
      %v2228 = vpop.f32.mrf.mxu0
      %2229 = vmatprep.mubr.bf16.mxu0 0
      %2230 = vmatmul.mubr.bf16.gmra.mxu0 %v2104
      %v2231 = vpop.f32.mrf.mxu0
      %v2232 = vadd.f32 0.0, %v2231
      %v2233 = vpop.f32.mrf.mxu0
      %v2234 = vpop.f32.mrf.mxu0
      %v2235 = vadd.f32 0.0, %v2234
      %v2236 = vpop.f32.mrf.mxu0
      %2237 = vmatprep.mubr.bf16.mxu0 0
      %2238 = vmatmul.mubr.bf16.gmra.mxu0 %v2105
      %v2239 = vpop.f32.mrf.mxu0
      %v2240 = vadd.f32 0.0, %v2239
      %v2241 = vpop.f32.mrf.mxu0
      %v2242 = vpop.f32.mrf.mxu0
      %v2243 = vadd.f32 0.0, %v2242
      %v2244 = vpop.f32.mrf.mxu0
      %2245 = vmatprep.mubr.bf16.mxu0 0
      %2246 = vmatmul.mubr.bf16.gmra.mxu0 %v2106
      %v2247 = vpop.f32.mrf.mxu0
      %v2248 = vadd.f32 0.0, %v2247
      %v2249 = vpop.f32.mrf.mxu0
      %v2250 = vpop.f32.mrf.mxu0
      %v2251 = vadd.f32 0.0, %v2250
      %v2252 = vpop.f32.mrf.mxu0
      %2253 = vmatprep.mubr.bf16.mxu0 0
      %2254 = vmatmul.mubr.bf16.gmra.mxu0 %v2107
      %v2255 = vpop.f32.mrf.mxu0
      %v2256 = vadd.f32 0.0, %v2255
      %v2257 = vpop.f32.mrf.mxu0
      %v2258 = vpop.f32.mrf.mxu0
      %v2259 = vadd.f32 0.0, %v2258
      %v2260 = vpop.f32.mrf.mxu0
      %2261 = vmatprep.mubr.bf16.mxu0 0
      %2262 = vmatmul.mubr.bf16.gmra.mxu0 %v2108
      %v2263 = vpop.f32.mrf.mxu0
      %v2264 = vadd.f32 0.0, %v2263
      %v2265 = vpop.f32.mrf.mxu0
      %v2266 = vpop.f32.mrf.mxu0
      %v2267 = vadd.f32 0.0, %v2266
      %v2268 = vpop.f32.mrf.mxu0
      %2269 = vmatprep.mubr.bf16.mxu0 0
      %2270 = vmatmul.mubr.bf16.gmra.mxu0 %v2109
      %v2271 = vpop.f32.mrf.mxu0
      %v2272 = vadd.f32 0.0, %v2271
      %v2273 = vpop.f32.mrf.mxu0
      %v2274 = vpop.f32.mrf.mxu0
      %v2275 = vadd.f32 0.0, %v2274
      %v2276 = vpop.f32.mrf.mxu0
      %2277 = vmatprep.mubr.bf16.mxu0 0
      %2278 = vmatmul.mubr.bf16.gmra.mxu0 %v2110
      %v2279 = vpop.f32.mrf.mxu0
      %v2280 = vadd.f32 0.0, %v2279
      %v2281 = vpop.f32.mrf.mxu0
      %v2282 = vpop.f32.mrf.mxu0
      %v2283 = vadd.f32 0.0, %v2282
      %v2284 = vpop.f32.mrf.mxu0
      %2285 = vmatprep.mubr.bf16.mxu0 0
      %2286 = vmatmul.mubr.bf16.gmra.mxu0 %v2111
      %v2287 = vpop.f32.mrf.mxu0
      %v2288 = vadd.f32 0.0, %v2287
      %v2289 = vpop.f32.mrf.mxu0
      %v2290 = vpop.f32.mrf.mxu0
      %v2291 = vadd.f32 0.0, %v2290
      %v2292 = vpop.f32.mrf.mxu0
      %2293 = vmatprep.mubr.bf16.mxu0 0
      %2294 = vmatmul.mubr.bf16.gmra.mxu0 %v2112
      %v2295 = vpop.f32.mrf.mxu0
      %v2296 = vadd.f32 0.0, %v2295
      %v2297 = vpop.f32.mrf.mxu0
      %v2298 = vpop.f32.mrf.mxu0
      %v2299 = vadd.f32 0.0, %v2298
      %v2300 = vpop.f32.mrf.mxu0
      %2301 = vmatprep.mubr.bf16.mxu0 0
      %2302 = vmatmul.mubr.bf16.gmra.mxu0 %v2113
      %v2303 = vpop.f32.mrf.mxu0
      %v2304 = vadd.f32 0.0, %v2303
      %v2305 = vpop.f32.mrf.mxu0
      %v2306 = vpop.f32.mrf.mxu0
      %v2307 = vadd.f32 0.0, %v2306
      %v2308 = vpop.f32.mrf.mxu0
      %2309 = vmatprep.mubr.bf16.mxu0 0
      %2310 = vmatmul.mubr.bf16.gmra.mxu0 %v2114
      %v2311 = vpop.f32.mrf.mxu0
      %v2312 = vadd.f32 0.0, %v2311
      %v2313 = vpop.f32.mrf.mxu0
      %v2314 = vpop.f32.mrf.mxu0
      %v2315 = vadd.f32 0.0, %v2314
      %v2316 = vpop.f32.mrf.mxu0
      %2317 = vmatprep.mubr.bf16.mxu0 0
      %2318 = vmatmul.mubr.bf16.gmra.mxu0 %v2115
      %v2319 = vpop.f32.mrf.mxu0
      %v2320 = vadd.f32 0.0, %v2319
      %v2321 = vpop.f32.mrf.mxu0
      %v2322 = vpop.f32.mrf.mxu0
      %v2323 = vadd.f32 0.0, %v2322
      %v2324 = vpop.f32.mrf.mxu0
      %2325 = vmatprep.mubr.bf16.mxu0 0
      %2326 = vmatmul.mubr.bf16.gmra.mxu0 %v2116
      %v2327 = vpop.f32.mrf.mxu0
      %v2328 = vadd.f32 0.0, %v2327
      %v2329 = vpop.f32.mrf.mxu0
      %v2330 = vpop.f32.mrf.mxu0
      %v2331 = vadd.f32 0.0, %v2330
      %v2332 = vpop.f32.mrf.mxu0
      %2333 = vmatprep.mubr.bf16.mxu0 0
      %2334 = vmatmul.mubr.bf16.gmra.mxu0 %v2117
      %v2335 = vpop.f32.mrf.mxu0
      %v2336 = vadd.f32 0.0, %v2335
      %v2337 = vpop.f32.mrf.mxu0
      %v2338 = vpop.f32.mrf.mxu0
      %v2339 = vadd.f32 0.0, %v2338
      %v2340 = vpop.f32.mrf.mxu0
      %2341 = vmatprep.mubr.bf16.mxu0 0
      %2342 = vmatmul.mubr.bf16.gmra.mxu0 %v2118
      %v2343 = vpop.f32.mrf.mxu0
      %v2344 = vadd.f32 0.0, %v2343
      %v2345 = vpop.f32.mrf.mxu0
      %v2346 = vpop.f32.mrf.mxu0
      %v2347 = vadd.f32 0.0, %v2346
      %v2348 = vpop.f32.mrf.mxu0
      %2349 = vmatprep.mubr.bf16.mxu0 0
      %2350 = vmatmul.mubr.bf16.gmra.mxu0 %v2119
      %v2351 = vpop.f32.mrf.mxu0
      %v2352 = vadd.f32 0.0, %v2351
      %v2353 = vpop.f32.mrf.mxu0
      %v2354 = vpop.f32.mrf.mxu0
      %v2355 = vadd.f32 0.0, %v2354
      %v2356 = vpop.f32.mrf.mxu0
      %2357 = vmatprep.mubr.bf16.mxu0 0
      %2358 = vmatmul.mubr.bf16.gmra.mxu0 %v2120
      %v2359 = vpop.f32.mrf.mxu0
      %v2360 = vadd.f32 0.0, %v2359
      %v2361 = vpop.f32.mrf.mxu0
      %v2362 = vpop.f32.mrf.mxu0
      %v2363 = vadd.f32 0.0, %v2362
      %v2364 = vpop.f32.mrf.mxu0
      %2365 = vmatprep.mubr.bf16.mxu0 0
      %2366 = vmatmul.mubr.bf16.gmra.mxu0 %v2121
      %v2367 = vpop.f32.mrf.mxu0
      %v2368 = vadd.f32 0.0, %v2367
      %v2369 = vpop.f32.mrf.mxu0
      %v2370 = vpop.f32.mrf.mxu0
      %v2371 = vadd.f32 0.0, %v2370
      %v2372 = vpop.f32.mrf.mxu0
      %2373 = vmatprep.mubr.bf16.mxu0 0
      %2374 = vmatmul.mubr.bf16.gmra.mxu0 %v2122
      %v2375 = vpop.f32.mrf.mxu0
      %v2376 = vadd.f32 0.0, %v2375
      %v2377 = vpop.f32.mrf.mxu0
      %v2378 = vpop.f32.mrf.mxu0
      %v2379 = vadd.f32 0.0, %v2378
      %v2380 = vpop.f32.mrf.mxu0
      %2381 = vmatprep.mubr.bf16.mxu0 0
      %2382 = vmatmul.mubr.bf16.gmra.mxu0 %v2123
      %v2383 = vpop.f32.mrf.mxu0
      %v2384 = vadd.f32 0.0, %v2383
      %v2385 = vpop.f32.mrf.mxu0
      %v2386 = vpop.f32.mrf.mxu0
      %v2387 = vpop.f32.mrf.mxu0
      %2388 = vdwg.mxu0
      %v2389 = vadd.f32 %v2062, %v2224
      %v2390 = vadd.f32 %v2063, %v2227
      %v2391 = vadd.f32 %v2064, %v2232
      %v2392 = vadd.f32 %v2065, %v2235
      %v2393 = vadd.f32 %v2066, %v2240
      %v2394 = vadd.f32 %v2067, %v2243
      %v2395 = vadd.f32 %v2068, %v2248
      %v2396 = vadd.f32 %v2069, %v2251
      %v2397 = vadd.f32 %v2070, %v2256
      %v2398 = vadd.f32 %v2071, %v2259
      %v2399 = vadd.f32 %v2072, %v2264
      %v2400 = vadd.f32 %v2073, %v2267
      %v2401 = vadd.f32 %v2074, %v2272
      %v2402 = vadd.f32 %v2075, %v2275
      %v2403 = vadd.f32 %v2076, %v2280
      %v2404 = vadd.f32 %v2077, %v2283
      %v2405 = vadd.f32 %v2078, %v2288
      %v2406 = vadd.f32 %v2079, %v2291
      %v2407 = vadd.f32 %v2080, %v2296
      %v2408 = vadd.f32 %v2081, %v2299
      %v2409 = vadd.f32 %v2082, %v2304
      %v2410 = vadd.f32 %v2083, %v2307
      %v2411 = vadd.f32 %v2084, %v2312
      %v2412 = vadd.f32 %v2085, %v2315
      %v2413 = vadd.f32 %v2086, %v2320
      %v2414 = vadd.f32 %v2087, %v2323
      %v2415 = vadd.f32 %v2088, %v2328
      %v2416 = vadd.f32 %v2089, %v2331
      %v2417 = vadd.f32 %v2090, %v2336
      %v2418 = vadd.f32 %v2091, %v2339
      %v2419 = vadd.f32 %v2092, %v2344
      %v2420 = vadd.f32 %v2093, %v2347
      %v2421 = vadd.f32 %v2094, %v2352
      %v2422 = vadd.f32 %v2095, %v2355
      %v2423 = vadd.f32 %v2096, %v2360
      %v2424 = vadd.f32 %v2097, %v2363
      %v2425 = vadd.f32 %v2098, %v2368
      %v2426 = vadd.f32 %v2099, %v2371
      %v2427 = vadd.f32 %v2100, %v2376
      %v2428 = vadd.f32 %v2101, %v2379
      %v2429 = vadd.f32 %v2102, %v2384
      %s2430 = scalar_lea.vmem %s2, 320
      %v2431 = vld [vmem:[%s2430] sm:$0xf]
      %v2432 = vld [vmem:[%s2430 + $0x4] sm:$0xf]
      %v2433 = vld [vmem:[%s2430 + $0x8] sm:$0xf]
      %v2434 = vld [vmem:[%s2430 + $0xc] sm:$0xf]
      %v2435 = vld [vmem:[%s2430 + $0x10] sm:$0xf]
      %v2436 = vld [vmem:[%s2430 + $0x14] sm:$0xf]
      %v2437 = vld [vmem:[%s2430 + $0x18] sm:$0xf]
      %v2438 = vld [vmem:[%s2430 + $0x1c] sm:$0xf]
      %v2439 = vld [vmem:[%s2430 + $0x20] sm:$0xf]
      %v2440 = vld [vmem:[%s2430 + $0x24] sm:$0xf]
      %v2441 = vld [vmem:[%s2430 + $0x28] sm:$0xf]
      %v2442 = vld [vmem:[%s2430 + $0x2c] sm:$0xf]
      %v2443 = vld [vmem:[%s2430 + $0x30] sm:$0xf]
      %v2444 = vld [vmem:[%s2430 + $0x34] sm:$0xf]
      %v2445 = vld [vmem:[%s2430 + $0x38] sm:$0xf]
      %v2446 = vld [vmem:[%s2430 + $0x3c] sm:$0xf]
      %vm2447 = vsmask.f32 7424
      %v2449 = vshrl.u32 %v2103, 16
      %v2451 = vshll.u32 %v2103, 16
      %v2453 = vrot.slane %v2451, 1
      %v2454 = vor.u32 %v2449, %v2453
      %v2456 = vshll.u32 %v2104, 16
      %v2458 = vrot.slane %v2456, 1
      %v2459 = vsel %vm2447, %v2454, %v2458
      %v2460 = vshrl.u32 %v2104, 16
      %v2462 = vor.u32 %v2460, %v2458
      %v2464 = vshll.u32 %v2105, 16
      %v2466 = vrot.slane %v2464, 1
      %v2467 = vsel %vm2447, %v2462, %v2466
      %v2468 = vshrl.u32 %v2105, 16
      %v2470 = vor.u32 %v2468, %v2466
      %v2472 = vshll.u32 %v2106, 16
      %v2474 = vrot.slane %v2472, 1
      %v2475 = vsel %vm2447, %v2470, %v2474
      %v2476 = vshrl.u32 %v2106, 16
      %v2478 = vor.u32 %v2476, %v2474
      %v2480 = vshll.u32 %v2107, 16
      %v2482 = vrot.slane %v2480, 1
      %v2483 = vsel %vm2447, %v2478, %v2482
      %v2484 = vshrl.u32 %v2107, 16
      %v2486 = vor.u32 %v2484, %v2482
      %v2488 = vshll.u32 %v2108, 16
      %v2490 = vrot.slane %v2488, 1
      %v2491 = vsel %vm2447, %v2486, %v2490
      %v2492 = vshrl.u32 %v2108, 16
      %v2494 = vor.u32 %v2492, %v2490
      %v2496 = vshll.u32 %v2109, 16
      %v2498 = vrot.slane %v2496, 1
      %v2499 = vsel %vm2447, %v2494, %v2498
      %v2500 = vshrl.u32 %v2109, 16
      %v2502 = vor.u32 %v2500, %v2498
      %v2504 = vshll.u32 %v2110, 16
      %v2506 = vrot.slane %v2504, 1
      %v2507 = vsel %vm2447, %v2502, %v2506
      %v2508 = vshrl.u32 %v2110, 16
      %v2510 = vor.u32 %v2508, %v2506
      %v2512 = vshll.u32 %v2111, 16
      %v2514 = vrot.slane %v2512, 1
      %v2515 = vsel %vm2447, %v2510, %v2514
      %v2516 = vshrl.u32 %v2111, 16
      %v2518 = vor.u32 %v2516, %v2514
      %v2520 = vshll.u32 %v2112, 16
      %v2522 = vrot.slane %v2520, 1
      %v2523 = vsel %vm2447, %v2518, %v2522
      %v2524 = vshrl.u32 %v2112, 16
      %v2526 = vor.u32 %v2524, %v2522
      %v2528 = vshll.u32 %v2113, 16
      %v2530 = vrot.slane %v2528, 1
      %v2531 = vsel %vm2447, %v2526, %v2530
      %v2532 = vshrl.u32 %v2113, 16
      %v2534 = vor.u32 %v2532, %v2530
      %v2536 = vshll.u32 %v2114, 16
      %v2538 = vrot.slane %v2536, 1
      %v2539 = vsel %vm2447, %v2534, %v2538
      %v2540 = vshrl.u32 %v2114, 16
      %v2542 = vor.u32 %v2540, %v2538
      %v2544 = vshll.u32 %v2115, 16
      %v2546 = vrot.slane %v2544, 1
      %v2547 = vsel %vm2447, %v2542, %v2546
      %v2548 = vshrl.u32 %v2115, 16
      %v2550 = vor.u32 %v2548, %v2546
      %v2552 = vshll.u32 %v2116, 16
      %v2554 = vrot.slane %v2552, 1
      %v2555 = vsel %vm2447, %v2550, %v2554
      %v2556 = vshrl.u32 %v2116, 16
      %v2558 = vor.u32 %v2556, %v2554
      %v2560 = vshll.u32 %v2117, 16
      %v2562 = vrot.slane %v2560, 1
      %v2563 = vsel %vm2447, %v2558, %v2562
      %v2564 = vshrl.u32 %v2117, 16
      %v2566 = vor.u32 %v2564, %v2562
      %v2568 = vshll.u32 %v2118, 16
      %v2570 = vrot.slane %v2568, 1
      %v2571 = vsel %vm2447, %v2566, %v2570
      %v2572 = vshrl.u32 %v2118, 16
      %v2574 = vor.u32 %v2572, %v2570
      %v2576 = vshll.u32 %v2119, 16
      %v2578 = vrot.slane %v2576, 1
      %v2579 = vsel %vm2447, %v2574, %v2578
      %v2580 = vshrl.u32 %v2119, 16
      %v2582 = vor.u32 %v2580, %v2578
      %v2584 = vshll.u32 %v2120, 16
      %v2586 = vrot.slane %v2584, 1
      %v2587 = vsel %vm2447, %v2582, %v2586
      %v2588 = vshrl.u32 %v2120, 16
      %v2590 = vor.u32 %v2588, %v2586
      %v2592 = vshll.u32 %v2121, 16
      %v2594 = vrot.slane %v2592, 1
      %v2595 = vsel %vm2447, %v2590, %v2594
      %v2596 = vshrl.u32 %v2121, 16
      %v2598 = vor.u32 %v2596, %v2594
      %v2600 = vshll.u32 %v2122, 16
      %v2602 = vrot.slane %v2600, 1
      %v2603 = vsel %vm2447, %v2598, %v2602
      %v2604 = vshrl.u32 %v2122, 16
      %v2606 = vor.u32 %v2604, %v2602
      %v2608 = vshll.u32 %v2123, 16
      %v2610 = vrot.slane %v2608, 1
      %v2611 = vsel %vm2447, %v2606, %v2610
      %v2612 = vshrl.u32 %v2123, 16
      %v2614 = vor.u32 %v2612, %v2610
      %v2652 = vunpack.c.l.b16 %v2431
      %v2653 = vunpack.c.l.b16 %v2432
      %v2654 = vunpack.c.l.b16 %v2433
      %v2655 = vunpack.c.l.b16 %v2434
      %v2656 = vunpack.c.l.b16 %v2435
      %v2657 = vunpack.c.l.b16 %v2436
      %v2658 = vunpack.c.l.b16 %v2437
      %v2659 = vunpack.c.l.b16 %v2438
      %v2660 = vunpack.c.l.b16 %v2439
      %v2661 = vunpack.c.l.b16 %v2440
      %v2662 = vunpack.c.l.b16 %v2441
      %v2663 = vunpack.c.l.b16 %v2442
      %v2664 = vunpack.c.l.b16 %v2443
      %v2665 = vunpack.c.l.b16 %v2444
      %v2666 = vunpack.c.l.b16 %v2445
      %v2667 = vunpack.c.l.b16 %v2446
      %v2668 = vpack.c.b16 %v2653, %v2652
      %v2669 = vpack.c.b16 %v2655, %v2654
      %v2670 = vpack.c.b16 %v2657, %v2656
      %v2671 = vpack.c.b16 %v2659, %v2658
      %v2672 = vpack.c.b16 %v2661, %v2660
      %v2673 = vpack.c.b16 %v2663, %v2662
      %v2674 = vpack.c.b16 %v2665, %v2664
      %v2675 = vpack.c.b16 %v2667, %v2666
      %2684 = vmatprep.subr.bf16.mxu0 0
      %2685 = vmatpush1.bf16.msra.mxu0 %v2675
      %2686 = vmatprep.subr.bf16.mxu0 0
      %2687 = vmatpush1.bf16.msra.mxu0 %v2674
      %2688 = vmatprep.subr.bf16.mxu0 0
      %2689 = vmatpush1.bf16.msra.mxu0 %v2673
      %2690 = vmatprep.subr.bf16.mxu0 0
      %2691 = vmatpush1.bf16.msra.mxu0 %v2672
      %2692 = vmatprep.subr.bf16.mxu0 0
      %2693 = vmatpush1.bf16.msra.mxu0 %v2671
      %2694 = vmatprep.subr.bf16.mxu0 0
      %2695 = vmatpush1.bf16.msra.mxu0 %v2670
      %2696 = vmatprep.subr.bf16.mxu0 0
      %2697 = vmatpush1.bf16.msra.mxu0 %v2669
      %2698 = vmatprep.subr.bf16.mxu0 0
      %2699 = vmatpush1.bf16.msra.mxu0 %v2668
      %2700 = vmatprep.subr.bf16.mxu0 0
      %2701 = vmatpush2.bf16.msra.mxu0 0
      %2702 = vmatprep.subr.bf16.mxu0 0
      %2703 = vmatpush2.bf16.msra.mxu0 0
      %2704 = vmatprep.subr.bf16.mxu0 0
      %2705 = vmatpush2.bf16.msra.mxu0 0
      %2706 = vmatprep.subr.bf16.mxu0 0
      %2707 = vmatpush2.bf16.msra.mxu0 0
      %2708 = vmatprep.subr.bf16.mxu0 0
      %2709 = vmatpush2.bf16.msra.mxu0 0
      %2710 = vmatprep.subr.bf16.mxu0 0
      %2711 = vmatpush2.bf16.msra.mxu0 0
      %2712 = vmatprep.subr.bf16.mxu0 0
      %2713 = vmatpush2.bf16.msra.mxu0 0
      %2714 = vmatprep.subr.bf16.mxu0 0
      %2715 = vmatpush2.bf16.msra.mxu0 0
      %2716 = vmatprep.mubr.bf16.mxu0 0
      %2717 = vmatmul.mubr.bf16.gmra.mxu0 %v2459
      %v2718 = vpop.f32.mrf.mxu0
      %v2719 = vadd.f32 0.0, %v2718
      %v2720 = vpop.f32.mrf.mxu0
      %v2721 = vpop.f32.mrf.mxu0
      %v2722 = vadd.f32 0.0, %v2721
      %v2723 = vpop.f32.mrf.mxu0
      %2724 = vmatprep.mubr.bf16.mxu0 0
      %2725 = vmatmul.mubr.bf16.gmra.mxu0 %v2467
      %v2726 = vpop.f32.mrf.mxu0
      %v2727 = vadd.f32 0.0, %v2726
      %v2728 = vpop.f32.mrf.mxu0
      %v2729 = vpop.f32.mrf.mxu0
      %v2730 = vadd.f32 0.0, %v2729
      %v2731 = vpop.f32.mrf.mxu0
      %2732 = vmatprep.mubr.bf16.mxu0 0
      %2733 = vmatmul.mubr.bf16.gmra.mxu0 %v2475
      %v2734 = vpop.f32.mrf.mxu0
      %v2735 = vadd.f32 0.0, %v2734
      %v2736 = vpop.f32.mrf.mxu0
      %v2737 = vpop.f32.mrf.mxu0
      %v2738 = vadd.f32 0.0, %v2737
      %v2739 = vpop.f32.mrf.mxu0
      %2740 = vmatprep.mubr.bf16.mxu0 0
      %2741 = vmatmul.mubr.bf16.gmra.mxu0 %v2483
      %v2742 = vpop.f32.mrf.mxu0
      %v2743 = vadd.f32 0.0, %v2742
      %v2744 = vpop.f32.mrf.mxu0
      %v2745 = vpop.f32.mrf.mxu0
      %v2746 = vadd.f32 0.0, %v2745
      %v2747 = vpop.f32.mrf.mxu0
      %2748 = vmatprep.mubr.bf16.mxu0 0
      %2749 = vmatmul.mubr.bf16.gmra.mxu0 %v2491
      %v2750 = vpop.f32.mrf.mxu0
      %v2751 = vadd.f32 0.0, %v2750
      %v2752 = vpop.f32.mrf.mxu0
      %v2753 = vpop.f32.mrf.mxu0
      %v2754 = vadd.f32 0.0, %v2753
      %v2755 = vpop.f32.mrf.mxu0
      %2756 = vmatprep.mubr.bf16.mxu0 0
      %2757 = vmatmul.mubr.bf16.gmra.mxu0 %v2499
      %v2758 = vpop.f32.mrf.mxu0
      %v2759 = vadd.f32 0.0, %v2758
      %v2760 = vpop.f32.mrf.mxu0
      %v2761 = vpop.f32.mrf.mxu0
      %v2762 = vadd.f32 0.0, %v2761
      %v2763 = vpop.f32.mrf.mxu0
      %2764 = vmatprep.mubr.bf16.mxu0 0
      %2765 = vmatmul.mubr.bf16.gmra.mxu0 %v2507
      %v2766 = vpop.f32.mrf.mxu0
      %v2767 = vadd.f32 0.0, %v2766
      %v2768 = vpop.f32.mrf.mxu0
      %v2769 = vpop.f32.mrf.mxu0
      %v2770 = vadd.f32 0.0, %v2769
      %v2771 = vpop.f32.mrf.mxu0
      %2772 = vmatprep.mubr.bf16.mxu0 0
      %2773 = vmatmul.mubr.bf16.gmra.mxu0 %v2515
      %v2774 = vpop.f32.mrf.mxu0
      %v2775 = vadd.f32 0.0, %v2774
      %v2776 = vpop.f32.mrf.mxu0
      %v2777 = vpop.f32.mrf.mxu0
      %v2778 = vadd.f32 0.0, %v2777
      %v2779 = vpop.f32.mrf.mxu0
      %2780 = vmatprep.mubr.bf16.mxu0 0
      %2781 = vmatmul.mubr.bf16.gmra.mxu0 %v2523
      %v2782 = vpop.f32.mrf.mxu0
      %v2783 = vadd.f32 0.0, %v2782
      %v2784 = vpop.f32.mrf.mxu0
      %v2785 = vpop.f32.mrf.mxu0
      %v2786 = vadd.f32 0.0, %v2785
      %v2787 = vpop.f32.mrf.mxu0
      %2788 = vmatprep.mubr.bf16.mxu0 0
      %2789 = vmatmul.mubr.bf16.gmra.mxu0 %v2531
      %v2790 = vpop.f32.mrf.mxu0
      %v2791 = vadd.f32 0.0, %v2790
      %v2792 = vpop.f32.mrf.mxu0
      %v2793 = vpop.f32.mrf.mxu0
      %v2794 = vadd.f32 0.0, %v2793
      %v2795 = vpop.f32.mrf.mxu0
      %2796 = vmatprep.mubr.bf16.mxu0 0
      %2797 = vmatmul.mubr.bf16.gmra.mxu0 %v2539
      %v2798 = vpop.f32.mrf.mxu0
      %v2799 = vadd.f32 0.0, %v2798
      %v2800 = vpop.f32.mrf.mxu0
      %v2801 = vpop.f32.mrf.mxu0
      %v2802 = vadd.f32 0.0, %v2801
      %v2803 = vpop.f32.mrf.mxu0
      %2804 = vmatprep.mubr.bf16.mxu0 0
      %2805 = vmatmul.mubr.bf16.gmra.mxu0 %v2547
      %v2806 = vpop.f32.mrf.mxu0
      %v2807 = vadd.f32 0.0, %v2806
      %v2808 = vpop.f32.mrf.mxu0
      %v2809 = vpop.f32.mrf.mxu0
      %v2810 = vadd.f32 0.0, %v2809
      %v2811 = vpop.f32.mrf.mxu0
      %2812 = vmatprep.mubr.bf16.mxu0 0
      %2813 = vmatmul.mubr.bf16.gmra.mxu0 %v2555
      %v2814 = vpop.f32.mrf.mxu0
      %v2815 = vadd.f32 0.0, %v2814
      %v2816 = vpop.f32.mrf.mxu0
      %v2817 = vpop.f32.mrf.mxu0
      %v2818 = vadd.f32 0.0, %v2817
      %v2819 = vpop.f32.mrf.mxu0
      %2820 = vmatprep.mubr.bf16.mxu0 0
      %2821 = vmatmul.mubr.bf16.gmra.mxu0 %v2563
      %v2822 = vpop.f32.mrf.mxu0
      %v2823 = vadd.f32 0.0, %v2822
      %v2824 = vpop.f32.mrf.mxu0
      %v2825 = vpop.f32.mrf.mxu0
      %v2826 = vadd.f32 0.0, %v2825
      %v2827 = vpop.f32.mrf.mxu0
      %2828 = vmatprep.mubr.bf16.mxu0 0
      %2829 = vmatmul.mubr.bf16.gmra.mxu0 %v2571
      %v2830 = vpop.f32.mrf.mxu0
      %v2831 = vadd.f32 0.0, %v2830
      %v2832 = vpop.f32.mrf.mxu0
      %v2833 = vpop.f32.mrf.mxu0
      %v2834 = vadd.f32 0.0, %v2833
      %v2835 = vpop.f32.mrf.mxu0
      %2836 = vmatprep.mubr.bf16.mxu0 0
      %2837 = vmatmul.mubr.bf16.gmra.mxu0 %v2579
      %v2838 = vpop.f32.mrf.mxu0
      %v2839 = vadd.f32 0.0, %v2838
      %v2840 = vpop.f32.mrf.mxu0
      %v2841 = vpop.f32.mrf.mxu0
      %v2842 = vadd.f32 0.0, %v2841
      %v2843 = vpop.f32.mrf.mxu0
      %2844 = vmatprep.mubr.bf16.mxu0 0
      %2845 = vmatmul.mubr.bf16.gmra.mxu0 %v2587
      %v2846 = vpop.f32.mrf.mxu0
      %v2847 = vadd.f32 0.0, %v2846
      %v2848 = vpop.f32.mrf.mxu0
      %v2849 = vpop.f32.mrf.mxu0
      %v2850 = vadd.f32 0.0, %v2849
      %v2851 = vpop.f32.mrf.mxu0
      %2852 = vmatprep.mubr.bf16.mxu0 0
      %2853 = vmatmul.mubr.bf16.gmra.mxu0 %v2595
      %v2854 = vpop.f32.mrf.mxu0
      %v2855 = vadd.f32 0.0, %v2854
      %v2856 = vpop.f32.mrf.mxu0
      %v2857 = vpop.f32.mrf.mxu0
      %v2858 = vadd.f32 0.0, %v2857
      %v2859 = vpop.f32.mrf.mxu0
      %2860 = vmatprep.mubr.bf16.mxu0 0
      %2861 = vmatmul.mubr.bf16.gmra.mxu0 %v2603
      %v2862 = vpop.f32.mrf.mxu0
      %v2863 = vadd.f32 0.0, %v2862
      %v2864 = vpop.f32.mrf.mxu0
      %v2865 = vpop.f32.mrf.mxu0
      %v2866 = vadd.f32 0.0, %v2865
      %v2867 = vpop.f32.mrf.mxu0
      %2868 = vmatprep.mubr.bf16.mxu0 0
      %2869 = vmatmul.mubr.bf16.gmra.mxu0 %v2611
      %v2870 = vpop.f32.mrf.mxu0
      %v2871 = vadd.f32 0.0, %v2870
      %v2872 = vpop.f32.mrf.mxu0
      %v2873 = vpop.f32.mrf.mxu0
      %v2874 = vadd.f32 0.0, %v2873
      %v2875 = vpop.f32.mrf.mxu0
      %2876 = vmatprep.mubr.bf16.mxu0 0
      %2877 = vmatmul.mubr.bf16.gmra.mxu0 %v2614
      %v2878 = vpop.f32.mrf.mxu0
      %v2879 = vadd.f32 0.0, %v2878
      %v2880 = vpop.f32.mrf.mxu0
      %v2881 = vpop.f32.mrf.mxu0
      %v2882 = vpop.f32.mrf.mxu0
      %2883 = vdwg.mxu0
      %v2884 = vadd.f32 %v2389, %v2719
      %v2885 = vadd.f32 %v2390, %v2722
      %v2886 = vadd.f32 %v2391, %v2727
      %v2887 = vadd.f32 %v2392, %v2730
      %v2888 = vadd.f32 %v2393, %v2735
      %v2889 = vadd.f32 %v2394, %v2738
      %v2890 = vadd.f32 %v2395, %v2743
      %v2891 = vadd.f32 %v2396, %v2746
      %v2892 = vadd.f32 %v2397, %v2751
      %v2893 = vadd.f32 %v2398, %v2754
      %v2894 = vadd.f32 %v2399, %v2759
      %v2895 = vadd.f32 %v2400, %v2762
      %v2896 = vadd.f32 %v2401, %v2767
      %v2897 = vadd.f32 %v2402, %v2770
      %v2898 = vadd.f32 %v2403, %v2775
      %v2899 = vadd.f32 %v2404, %v2778
      %v2900 = vadd.f32 %v2405, %v2783
      %v2901 = vadd.f32 %v2406, %v2786
      %v2902 = vadd.f32 %v2407, %v2791
      %v2903 = vadd.f32 %v2408, %v2794
      %v2904 = vadd.f32 %v2409, %v2799
      %v2905 = vadd.f32 %v2410, %v2802
      %v2906 = vadd.f32 %v2411, %v2807
      %v2907 = vadd.f32 %v2412, %v2810
      %v2908 = vadd.f32 %v2413, %v2815
      %v2909 = vadd.f32 %v2414, %v2818
      %v2910 = vadd.f32 %v2415, %v2823
      %v2911 = vadd.f32 %v2416, %v2826
      %v2912 = vadd.f32 %v2417, %v2831
      %v2913 = vadd.f32 %v2418, %v2834
      %v2914 = vadd.f32 %v2419, %v2839
      %v2915 = vadd.f32 %v2420, %v2842
      %v2916 = vadd.f32 %v2421, %v2847
      %v2917 = vadd.f32 %v2422, %v2850
      %v2918 = vadd.f32 %v2423, %v2855
      %v2919 = vadd.f32 %v2424, %v2858
      %v2920 = vadd.f32 %v2425, %v2863
      %v2921 = vadd.f32 %v2426, %v2866
      %v2922 = vadd.f32 %v2427, %v2871
      %v2923 = vadd.f32 %v2428, %v2874
      %v2924 = vadd.f32 %v2429, %v2879
      %v2925 = vpack.c.bf16 %v528, %v527
      %v2926 = vpack.c.bf16 %v529, %v529
      %s2927 = scalar_lea.vmem %s2, 384
      %v2928 = vld [vmem:[%s2927] sm:$0xf]
      %v2929 = vld [vmem:[%s2927 + $0x4] sm:$0xf]
      %v2930 = vld [vmem:[%s2927 + $0x8] sm:$0xf]
      %v2931 = vld [vmem:[%s2927 + $0xc] sm:$0xf]
      %v2932 = vld [vmem:[%s2927 + $0x10] sm:$0xf]
      %v2933 = vld [vmem:[%s2927 + $0x14] sm:$0xf]
      %v2934 = vld [vmem:[%s2927 + $0x18] sm:$0xf]
      %v2935 = vld [vmem:[%s2927 + $0x1c] sm:$0xf]
      %v2936 = vld [vmem:[%s2927 + $0x20] sm:$0xf]
      %v2937 = vld [vmem:[%s2927 + $0x24] sm:$0xf]
      %v2938 = vld [vmem:[%s2927 + $0x28] sm:$0xf]
      %v2939 = vld [vmem:[%s2927 + $0x2c] sm:$0xf]
      %v2940 = vld [vmem:[%s2927 + $0x30] sm:$0xf]
      %v2941 = vld [vmem:[%s2927 + $0x34] sm:$0xf]
      %v2942 = vld [vmem:[%s2927 + $0x38] sm:$0xf]
      %v2943 = vld [vmem:[%s2927 + $0x3c] sm:$0xf]
      %v2945 = vshll.u32 %v2925, 16
      %v2947 = vrot.slane %v2945, 1
      %v2948 = vsel %vm2447, %v2606, %v2947
      %v2949 = vshrl.u32 %v2925, 16
      %v2951 = vor.u32 %v2949, %v2947
      %v2953 = vshll.u32 %v2926, 16
      %v2955 = vrot.slane %v2953, 1
      %v2956 = vsel %vm2447, %v2951, %v2955
      %v2957 = vshrl.u32 %v2926, 16
      %v2959 = vor.u32 %v2957, %v2955
      %v2979 = vunpack.c.l.b16 %v2928
      %v2980 = vunpack.c.l.b16 %v2929
      %v2981 = vunpack.c.l.b16 %v2930
      %v2982 = vunpack.c.l.b16 %v2931
      %v2983 = vunpack.c.l.b16 %v2932
      %v2984 = vunpack.c.l.b16 %v2933
      %v2985 = vunpack.c.l.b16 %v2934
      %v2986 = vunpack.c.l.b16 %v2935
      %v2987 = vunpack.c.l.b16 %v2936
      %v2988 = vunpack.c.l.b16 %v2937
      %v2989 = vunpack.c.l.b16 %v2938
      %v2990 = vunpack.c.l.b16 %v2939
      %v2991 = vunpack.c.l.b16 %v2940
      %v2992 = vunpack.c.l.b16 %v2941
      %v2993 = vunpack.c.l.b16 %v2942
      %v2994 = vunpack.c.l.b16 %v2943
      %v2995 = vpack.c.b16 %v2980, %v2979
      %v2996 = vpack.c.b16 %v2982, %v2981
      %v2997 = vpack.c.b16 %v2984, %v2983
      %v2998 = vpack.c.b16 %v2986, %v2985
      %v2999 = vpack.c.b16 %v2988, %v2987
      %v3000 = vpack.c.b16 %v2990, %v2989
      %v3001 = vpack.c.b16 %v2992, %v2991
      %v3002 = vpack.c.b16 %v2994, %v2993
      %3011 = vmatprep.subr.bf16.mxu0 0
      %3012 = vmatpush1.bf16.msra.mxu0 %v3002
      %3013 = vmatprep.subr.bf16.mxu0 0
      %3014 = vmatpush1.bf16.msra.mxu0 %v3001
      %3015 = vmatprep.subr.bf16.mxu0 0
      %3016 = vmatpush1.bf16.msra.mxu0 %v3000
      %3017 = vmatprep.subr.bf16.mxu0 0
      %3018 = vmatpush1.bf16.msra.mxu0 %v2999
      %3019 = vmatprep.subr.bf16.mxu0 0
      %3020 = vmatpush1.bf16.msra.mxu0 %v2998
      %3021 = vmatprep.subr.bf16.mxu0 0
      %3022 = vmatpush1.bf16.msra.mxu0 %v2997
      %3023 = vmatprep.subr.bf16.mxu0 0
      %3024 = vmatpush1.bf16.msra.mxu0 %v2996
      %3025 = vmatprep.subr.bf16.mxu0 0
      %3026 = vmatpush1.bf16.msra.mxu0 %v2995
      %3027 = vmatprep.subr.bf16.mxu0 0
      %3028 = vmatpush2.bf16.msra.mxu0 0
      %3029 = vmatprep.subr.bf16.mxu0 0
      %3030 = vmatpush2.bf16.msra.mxu0 0
      %3031 = vmatprep.subr.bf16.mxu0 0
      %3032 = vmatpush2.bf16.msra.mxu0 0
      %3033 = vmatprep.subr.bf16.mxu0 0
      %3034 = vmatpush2.bf16.msra.mxu0 0
      %3035 = vmatprep.subr.bf16.mxu0 0
      %3036 = vmatpush2.bf16.msra.mxu0 0
      %3037 = vmatprep.subr.bf16.mxu0 0
      %3038 = vmatpush2.bf16.msra.mxu0 0
      %3039 = vmatprep.subr.bf16.mxu0 0
      %3040 = vmatpush2.bf16.msra.mxu0 0
      %3041 = vmatprep.subr.bf16.mxu0 0
      %3042 = vmatpush2.bf16.msra.mxu0 0
      %3043 = vmatprep.mubr.bf16.mxu0 0
      %3044 = vmatmul.mubr.bf16.gmra.mxu0 %v2467
      %v3045 = vpop.f32.mrf.mxu0
      %v3046 = vadd.f32 0.0, %v3045
      %v3047 = vpop.f32.mrf.mxu0
      %v3048 = vpop.f32.mrf.mxu0
      %v3049 = vadd.f32 0.0, %v3048
      %v3050 = vpop.f32.mrf.mxu0
      %3051 = vmatprep.mubr.bf16.mxu0 0
      %3052 = vmatmul.mubr.bf16.gmra.mxu0 %v2475
      %v3053 = vpop.f32.mrf.mxu0
      %v3054 = vadd.f32 0.0, %v3053
      %v3055 = vpop.f32.mrf.mxu0
      %v3056 = vpop.f32.mrf.mxu0
      %v3057 = vadd.f32 0.0, %v3056
      %v3058 = vpop.f32.mrf.mxu0
      %3059 = vmatprep.mubr.bf16.mxu0 0
      %3060 = vmatmul.mubr.bf16.gmra.mxu0 %v2483
      %v3061 = vpop.f32.mrf.mxu0
      %v3062 = vadd.f32 0.0, %v3061
      %v3063 = vpop.f32.mrf.mxu0
      %v3064 = vpop.f32.mrf.mxu0
      %v3065 = vadd.f32 0.0, %v3064
      %v3066 = vpop.f32.mrf.mxu0
      %3067 = vmatprep.mubr.bf16.mxu0 0
      %3068 = vmatmul.mubr.bf16.gmra.mxu0 %v2491
      %v3069 = vpop.f32.mrf.mxu0
      %v3070 = vadd.f32 0.0, %v3069
      %v3071 = vpop.f32.mrf.mxu0
      %v3072 = vpop.f32.mrf.mxu0
      %v3073 = vadd.f32 0.0, %v3072
      %v3074 = vpop.f32.mrf.mxu0
      %3075 = vmatprep.mubr.bf16.mxu0 0
      %3076 = vmatmul.mubr.bf16.gmra.mxu0 %v2499
      %v3077 = vpop.f32.mrf.mxu0
      %v3078 = vadd.f32 0.0, %v3077
      %v3079 = vpop.f32.mrf.mxu0
      %v3080 = vpop.f32.mrf.mxu0
      %v3081 = vadd.f32 0.0, %v3080
      %v3082 = vpop.f32.mrf.mxu0
      %3083 = vmatprep.mubr.bf16.mxu0 0
      %3084 = vmatmul.mubr.bf16.gmra.mxu0 %v2507
      %v3085 = vpop.f32.mrf.mxu0
      %v3086 = vadd.f32 0.0, %v3085
      %v3087 = vpop.f32.mrf.mxu0
      %v3088 = vpop.f32.mrf.mxu0
      %v3089 = vadd.f32 0.0, %v3088
      %v3090 = vpop.f32.mrf.mxu0
      %3091 = vmatprep.mubr.bf16.mxu0 0
      %3092 = vmatmul.mubr.bf16.gmra.mxu0 %v2515
      %v3093 = vpop.f32.mrf.mxu0
      %v3094 = vadd.f32 0.0, %v3093
      %v3095 = vpop.f32.mrf.mxu0
      %v3096 = vpop.f32.mrf.mxu0
      %v3097 = vadd.f32 0.0, %v3096
      %v3098 = vpop.f32.mrf.mxu0
      %3099 = vmatprep.mubr.bf16.mxu0 0
      %3100 = vmatmul.mubr.bf16.gmra.mxu0 %v2523
      %v3101 = vpop.f32.mrf.mxu0
      %v3102 = vadd.f32 0.0, %v3101
      %v3103 = vpop.f32.mrf.mxu0
      %v3104 = vpop.f32.mrf.mxu0
      %v3105 = vadd.f32 0.0, %v3104
      %v3106 = vpop.f32.mrf.mxu0
      %3107 = vmatprep.mubr.bf16.mxu0 0
      %3108 = vmatmul.mubr.bf16.gmra.mxu0 %v2531
      %v3109 = vpop.f32.mrf.mxu0
      %v3110 = vadd.f32 0.0, %v3109
      %v3111 = vpop.f32.mrf.mxu0
      %v3112 = vpop.f32.mrf.mxu0
      %v3113 = vadd.f32 0.0, %v3112
      %v3114 = vpop.f32.mrf.mxu0
      %3115 = vmatprep.mubr.bf16.mxu0 0
      %3116 = vmatmul.mubr.bf16.gmra.mxu0 %v2539
      %v3117 = vpop.f32.mrf.mxu0
      %v3118 = vadd.f32 0.0, %v3117
      %v3119 = vpop.f32.mrf.mxu0
      %v3120 = vpop.f32.mrf.mxu0
      %v3121 = vadd.f32 0.0, %v3120
      %v3122 = vpop.f32.mrf.mxu0
      %3123 = vmatprep.mubr.bf16.mxu0 0
      %3124 = vmatmul.mubr.bf16.gmra.mxu0 %v2547
      %v3125 = vpop.f32.mrf.mxu0
      %v3126 = vadd.f32 0.0, %v3125
      %v3127 = vpop.f32.mrf.mxu0
      %v3128 = vpop.f32.mrf.mxu0
      %v3129 = vadd.f32 0.0, %v3128
      %v3130 = vpop.f32.mrf.mxu0
      %3131 = vmatprep.mubr.bf16.mxu0 0
      %3132 = vmatmul.mubr.bf16.gmra.mxu0 %v2555
      %v3133 = vpop.f32.mrf.mxu0
      %v3134 = vadd.f32 0.0, %v3133
      %v3135 = vpop.f32.mrf.mxu0
      %v3136 = vpop.f32.mrf.mxu0
      %v3137 = vadd.f32 0.0, %v3136
      %v3138 = vpop.f32.mrf.mxu0
      %3139 = vmatprep.mubr.bf16.mxu0 0
      %3140 = vmatmul.mubr.bf16.gmra.mxu0 %v2563
      %v3141 = vpop.f32.mrf.mxu0
      %v3142 = vadd.f32 0.0, %v3141
      %v3143 = vpop.f32.mrf.mxu0
      %v3144 = vpop.f32.mrf.mxu0
      %v3145 = vadd.f32 0.0, %v3144
      %v3146 = vpop.f32.mrf.mxu0
      %3147 = vmatprep.mubr.bf16.mxu0 0
      %3148 = vmatmul.mubr.bf16.gmra.mxu0 %v2571
      %v3149 = vpop.f32.mrf.mxu0
      %v3150 = vadd.f32 0.0, %v3149
      %v3151 = vpop.f32.mrf.mxu0
      %v3152 = vpop.f32.mrf.mxu0
      %v3153 = vadd.f32 0.0, %v3152
      %v3154 = vpop.f32.mrf.mxu0
      %3155 = vmatprep.mubr.bf16.mxu0 0
      %3156 = vmatmul.mubr.bf16.gmra.mxu0 %v2579
      %v3157 = vpop.f32.mrf.mxu0
      %v3158 = vadd.f32 0.0, %v3157
      %v3159 = vpop.f32.mrf.mxu0
      %v3160 = vpop.f32.mrf.mxu0
      %v3161 = vadd.f32 0.0, %v3160
      %v3162 = vpop.f32.mrf.mxu0
      %3163 = vmatprep.mubr.bf16.mxu0 0
      %3164 = vmatmul.mubr.bf16.gmra.mxu0 %v2587
      %v3165 = vpop.f32.mrf.mxu0
      %v3166 = vadd.f32 0.0, %v3165
      %v3167 = vpop.f32.mrf.mxu0
      %v3168 = vpop.f32.mrf.mxu0
      %v3169 = vadd.f32 0.0, %v3168
      %v3170 = vpop.f32.mrf.mxu0
      %3171 = vmatprep.mubr.bf16.mxu0 0
      %3172 = vmatmul.mubr.bf16.gmra.mxu0 %v2595
      %v3173 = vpop.f32.mrf.mxu0
      %v3174 = vadd.f32 0.0, %v3173
      %v3175 = vpop.f32.mrf.mxu0
      %v3176 = vpop.f32.mrf.mxu0
      %v3177 = vadd.f32 0.0, %v3176
      %v3178 = vpop.f32.mrf.mxu0
      %3179 = vmatprep.mubr.bf16.mxu0 0
      %3180 = vmatmul.mubr.bf16.gmra.mxu0 %v2603
      %v3181 = vpop.f32.mrf.mxu0
      %v3182 = vadd.f32 0.0, %v3181
      %v3183 = vpop.f32.mrf.mxu0
      %v3184 = vpop.f32.mrf.mxu0
      %v3185 = vadd.f32 0.0, %v3184
      %v3186 = vpop.f32.mrf.mxu0
      %3187 = vmatprep.mubr.bf16.mxu0 0
      %3188 = vmatmul.mubr.bf16.gmra.mxu0 %v2948
      %v3189 = vpop.f32.mrf.mxu0
      %v3190 = vadd.f32 0.0, %v3189
      %v3191 = vpop.f32.mrf.mxu0
      %v3192 = vpop.f32.mrf.mxu0
      %v3193 = vadd.f32 0.0, %v3192
      %v3194 = vpop.f32.mrf.mxu0
      %3195 = vmatprep.mubr.bf16.mxu0 0
      %3196 = vmatmul.mubr.bf16.gmra.mxu0 %v2956
      %v3197 = vpop.f32.mrf.mxu0
      %v3198 = vadd.f32 0.0, %v3197
      %v3199 = vpop.f32.mrf.mxu0
      %v3200 = vpop.f32.mrf.mxu0
      %v3201 = vadd.f32 0.0, %v3200
      %v3202 = vpop.f32.mrf.mxu0
      %3203 = vmatprep.mubr.bf16.mxu0 0
      %3204 = vmatmul.mubr.bf16.gmra.mxu0 %v2959
      %v3205 = vpop.f32.mrf.mxu0
      %v3206 = vadd.f32 0.0, %v3205
      %v3207 = vpop.f32.mrf.mxu0
      %v3208 = vpop.f32.mrf.mxu0
      %v3209 = vpop.f32.mrf.mxu0
      %3210 = vdwg.mxu0
      %v3211 = vadd.f32 %v2884, %v3046
      %v3212 = vadd.f32 %v2885, %v3049
      %v3213 = vadd.f32 %v2886, %v3054
      %v3214 = vadd.f32 %v2887, %v3057
      %v3215 = vadd.f32 %v2888, %v3062
      %v3216 = vadd.f32 %v2889, %v3065
      %v3217 = vadd.f32 %v2890, %v3070
      %v3218 = vadd.f32 %v2891, %v3073
      %v3219 = vadd.f32 %v2892, %v3078
      %v3220 = vadd.f32 %v2893, %v3081
      %v3221 = vadd.f32 %v2894, %v3086
      %v3222 = vadd.f32 %v2895, %v3089
      %v3223 = vadd.f32 %v2896, %v3094
      %v3224 = vadd.f32 %v2897, %v3097
      %v3225 = vadd.f32 %v2898, %v3102
      %v3226 = vadd.f32 %v2899, %v3105
      %v3227 = vadd.f32 %v2900, %v3110
      %v3228 = vadd.f32 %v2901, %v3113
      %v3229 = vadd.f32 %v2902, %v3118
      %v3230 = vadd.f32 %v2903, %v3121
      %v3231 = vadd.f32 %v2904, %v3126
      %v3232 = vadd.f32 %v2905, %v3129
      %v3233 = vadd.f32 %v2906, %v3134
      %v3234 = vadd.f32 %v2907, %v3137
      %v3235 = vadd.f32 %v2908, %v3142
      %v3236 = vadd.f32 %v2909, %v3145
      %v3237 = vadd.f32 %v2910, %v3150
      %v3238 = vadd.f32 %v2911, %v3153
      %v3239 = vadd.f32 %v2912, %v3158
      %v3240 = vadd.f32 %v2913, %v3161
      %v3241 = vadd.f32 %v2914, %v3166
      %v3242 = vadd.f32 %v2915, %v3169
      %v3243 = vadd.f32 %v2916, %v3174
      %v3244 = vadd.f32 %v2917, %v3177
      %v3245 = vadd.f32 %v2918, %v3182
      %v3246 = vadd.f32 %v2919, %v3185
      %v3247 = vadd.f32 %v2920, %v3190
      %v3248 = vadd.f32 %v2921, %v3193
      %v3249 = vadd.f32 %v2922, %v3198
      %v3250 = vadd.f32 %v2923, %v3201
      %v3251 = vadd.f32 %v2924, %v3206
      %s3252 = scalar_lea.vmem %s2, 448
      %v3253 = vld [vmem:[%s3252] sm:$0xf]
      %v3254 = vld [vmem:[%s3252 + $0x4] sm:$0xf]
      %v3255 = vld [vmem:[%s3252 + $0x8] sm:$0xf]
      %v3256 = vld [vmem:[%s3252 + $0xc] sm:$0xf]
      %v3257 = vld [vmem:[%s3252 + $0x10] sm:$0xf]
      %v3258 = vld [vmem:[%s3252 + $0x14] sm:$0xf]
      %v3259 = vld [vmem:[%s3252 + $0x18] sm:$0xf]
      %v3260 = vld [vmem:[%s3252 + $0x1c] sm:$0xf]
      %v3261 = vld [vmem:[%s3252 + $0x20] sm:$0xf]
      %v3262 = vld [vmem:[%s3252 + $0x24] sm:$0xf]
      %v3263 = vld [vmem:[%s3252 + $0x28] sm:$0xf]
      %v3264 = vld [vmem:[%s3252 + $0x2c] sm:$0xf]
      %v3265 = vld [vmem:[%s3252 + $0x30] sm:$0xf]
      %v3266 = vld [vmem:[%s3252 + $0x34] sm:$0xf]
      %v3267 = vld [vmem:[%s3252 + $0x38] sm:$0xf]
      %v3268 = vld [vmem:[%s3252 + $0x3c] sm:$0xf]
      %vm3290 = vcmask 1046528
      %v3291 = vrot.slane %v2104, 1
      %v3292 = vrot.slane %v2105, 1
      %v3293 = vsel %vm3290, %v3291, %v3292
      %v3294 = vrot.slane %v2106, 1
      %v3295 = vsel %vm3290, %v3292, %v3294
      %v3296 = vrot.slane %v2107, 1
      %v3297 = vsel %vm3290, %v3294, %v3296
      %v3298 = vrot.slane %v2108, 1
      %v3299 = vsel %vm3290, %v3296, %v3298
      %v3300 = vrot.slane %v2109, 1
      %v3301 = vsel %vm3290, %v3298, %v3300
      %v3302 = vrot.slane %v2110, 1
      %v3303 = vsel %vm3290, %v3300, %v3302
      %v3304 = vrot.slane %v2111, 1
      %v3305 = vsel %vm3290, %v3302, %v3304
      %v3306 = vrot.slane %v2112, 1
      %v3307 = vsel %vm3290, %v3304, %v3306
      %v3308 = vrot.slane %v2113, 1
      %v3309 = vsel %vm3290, %v3306, %v3308
      %v3310 = vrot.slane %v2114, 1
      %v3311 = vsel %vm3290, %v3308, %v3310
      %v3312 = vrot.slane %v2115, 1
      %v3313 = vsel %vm3290, %v3310, %v3312
      %v3314 = vrot.slane %v2116, 1
      %v3315 = vsel %vm3290, %v3312, %v3314
      %v3316 = vrot.slane %v2117, 1
      %v3317 = vsel %vm3290, %v3314, %v3316
      %v3318 = vrot.slane %v2118, 1
      %v3319 = vsel %vm3290, %v3316, %v3318
      %v3320 = vrot.slane %v2119, 1
      %v3321 = vsel %vm3290, %v3318, %v3320
      %v3322 = vrot.slane %v2120, 1
      %v3323 = vsel %vm3290, %v3320, %v3322
      %v3324 = vrot.slane %v2121, 1
      %v3325 = vsel %vm3290, %v3322, %v3324
      %v3326 = vrot.slane %v2122, 1
      %v3327 = vsel %vm3290, %v3324, %v3326
      %v3328 = vrot.slane %v2925, 1
      %v3329 = vsel %vm3290, %v3326, %v3328
      %v3330 = vrot.slane %v2926, 1
      %v3331 = vsel %vm3290, %v3328, %v3330
      %v3369 = vunpack.c.l.b16 %v3253
      %v3370 = vunpack.c.l.b16 %v3254
      %v3371 = vunpack.c.l.b16 %v3255
      %v3372 = vunpack.c.l.b16 %v3256
      %v3373 = vunpack.c.l.b16 %v3257
      %v3374 = vunpack.c.l.b16 %v3258
      %v3375 = vunpack.c.l.b16 %v3259
      %v3376 = vunpack.c.l.b16 %v3260
      %v3377 = vunpack.c.l.b16 %v3261
      %v3378 = vunpack.c.l.b16 %v3262
      %v3379 = vunpack.c.l.b16 %v3263
      %v3380 = vunpack.c.l.b16 %v3264
      %v3381 = vunpack.c.l.b16 %v3265
      %v3382 = vunpack.c.l.b16 %v3266
      %v3383 = vunpack.c.l.b16 %v3267
      %v3384 = vunpack.c.l.b16 %v3268
      %v3385 = vpack.c.b16 %v3370, %v3369
      %v3386 = vpack.c.b16 %v3372, %v3371
      %v3387 = vpack.c.b16 %v3374, %v3373
      %v3388 = vpack.c.b16 %v3376, %v3375
      %v3389 = vpack.c.b16 %v3378, %v3377
      %v3390 = vpack.c.b16 %v3380, %v3379
      %v3391 = vpack.c.b16 %v3382, %v3381
      %v3392 = vpack.c.b16 %v3384, %v3383
      %3401 = vmatprep.subr.bf16.mxu0 0
      %3402 = vmatpush1.bf16.msra.mxu0 %v3392
      %3403 = vmatprep.subr.bf16.mxu0 0
      %3404 = vmatpush1.bf16.msra.mxu0 %v3391
      %3405 = vmatprep.subr.bf16.mxu0 0
      %3406 = vmatpush1.bf16.msra.mxu0 %v3390
      %3407 = vmatprep.subr.bf16.mxu0 0
      %3408 = vmatpush1.bf16.msra.mxu0 %v3389
      %3409 = vmatprep.subr.bf16.mxu0 0
      %3410 = vmatpush1.bf16.msra.mxu0 %v3388
      %3411 = vmatprep.subr.bf16.mxu0 0
      %3412 = vmatpush1.bf16.msra.mxu0 %v3387
      %3413 = vmatprep.subr.bf16.mxu0 0
      %3414 = vmatpush1.bf16.msra.mxu0 %v3386
      %3415 = vmatprep.subr.bf16.mxu0 0
      %3416 = vmatpush1.bf16.msra.mxu0 %v3385
      %3417 = vmatprep.subr.bf16.mxu0 0
      %3418 = vmatpush2.bf16.msra.mxu0 0
      %3419 = vmatprep.subr.bf16.mxu0 0
      %3420 = vmatpush2.bf16.msra.mxu0 0
      %3421 = vmatprep.subr.bf16.mxu0 0
      %3422 = vmatpush2.bf16.msra.mxu0 0
      %3423 = vmatprep.subr.bf16.mxu0 0
      %3424 = vmatpush2.bf16.msra.mxu0 0
      %3425 = vmatprep.subr.bf16.mxu0 0
      %3426 = vmatpush2.bf16.msra.mxu0 0
      %3427 = vmatprep.subr.bf16.mxu0 0
      %3428 = vmatpush2.bf16.msra.mxu0 0
      %3429 = vmatprep.subr.bf16.mxu0 0
      %3430 = vmatpush2.bf16.msra.mxu0 0
      %3431 = vmatprep.subr.bf16.mxu0 0
      %3432 = vmatpush2.bf16.msra.mxu0 0
      %3433 = vmatprep.mubr.bf16.mxu0 0
      %3434 = vmatmul.mubr.bf16.gmra.mxu0 %v3293
      %v3435 = vpop.f32.mrf.mxu0
      %v3436 = vadd.f32 0.0, %v3435
      %v3437 = vpop.f32.mrf.mxu0
      %v3438 = vpop.f32.mrf.mxu0
      %v3439 = vadd.f32 0.0, %v3438
      %v3440 = vpop.f32.mrf.mxu0
      %3441 = vmatprep.mubr.bf16.mxu0 0
      %3442 = vmatmul.mubr.bf16.gmra.mxu0 %v3295
      %v3443 = vpop.f32.mrf.mxu0
      %v3444 = vadd.f32 0.0, %v3443
      %v3445 = vpop.f32.mrf.mxu0
      %v3446 = vpop.f32.mrf.mxu0
      %v3447 = vadd.f32 0.0, %v3446
      %v3448 = vpop.f32.mrf.mxu0
      %3449 = vmatprep.mubr.bf16.mxu0 0
      %3450 = vmatmul.mubr.bf16.gmra.mxu0 %v3297
      %v3451 = vpop.f32.mrf.mxu0
      %v3452 = vadd.f32 0.0, %v3451
      %v3453 = vpop.f32.mrf.mxu0
      %v3454 = vpop.f32.mrf.mxu0
      %v3455 = vadd.f32 0.0, %v3454
      %v3456 = vpop.f32.mrf.mxu0
      %3457 = vmatprep.mubr.bf16.mxu0 0
      %3458 = vmatmul.mubr.bf16.gmra.mxu0 %v3299
      %v3459 = vpop.f32.mrf.mxu0
      %v3460 = vadd.f32 0.0, %v3459
      %v3461 = vpop.f32.mrf.mxu0
      %v3462 = vpop.f32.mrf.mxu0
      %v3463 = vadd.f32 0.0, %v3462
      %v3464 = vpop.f32.mrf.mxu0
      %3465 = vmatprep.mubr.bf16.mxu0 0
      %3466 = vmatmul.mubr.bf16.gmra.mxu0 %v3301
      %v3467 = vpop.f32.mrf.mxu0
      %v3468 = vadd.f32 0.0, %v3467
      %v3469 = vpop.f32.mrf.mxu0
      %v3470 = vpop.f32.mrf.mxu0
      %v3471 = vadd.f32 0.0, %v3470
      %v3472 = vpop.f32.mrf.mxu0
      %3473 = vmatprep.mubr.bf16.mxu0 0
      %3474 = vmatmul.mubr.bf16.gmra.mxu0 %v3303
      %v3475 = vpop.f32.mrf.mxu0
      %v3476 = vadd.f32 0.0, %v3475
      %v3477 = vpop.f32.mrf.mxu0
      %v3478 = vpop.f32.mrf.mxu0
      %v3479 = vadd.f32 0.0, %v3478
      %v3480 = vpop.f32.mrf.mxu0
      %3481 = vmatprep.mubr.bf16.mxu0 0
      %3482 = vmatmul.mubr.bf16.gmra.mxu0 %v3305
      %v3483 = vpop.f32.mrf.mxu0
      %v3484 = vadd.f32 0.0, %v3483
      %v3485 = vpop.f32.mrf.mxu0
      %v3486 = vpop.f32.mrf.mxu0
      %v3487 = vadd.f32 0.0, %v3486
      %v3488 = vpop.f32.mrf.mxu0
      %3489 = vmatprep.mubr.bf16.mxu0 0
      %3490 = vmatmul.mubr.bf16.gmra.mxu0 %v3307
      %v3491 = vpop.f32.mrf.mxu0
      %v3492 = vadd.f32 0.0, %v3491
      %v3493 = vpop.f32.mrf.mxu0
      %v3494 = vpop.f32.mrf.mxu0
      %v3495 = vadd.f32 0.0, %v3494
      %v3496 = vpop.f32.mrf.mxu0
      %3497 = vmatprep.mubr.bf16.mxu0 0
      %3498 = vmatmul.mubr.bf16.gmra.mxu0 %v3309
      %v3499 = vpop.f32.mrf.mxu0
      %v3500 = vadd.f32 0.0, %v3499
      %v3501 = vpop.f32.mrf.mxu0
      %v3502 = vpop.f32.mrf.mxu0
      %v3503 = vadd.f32 0.0, %v3502
      %v3504 = vpop.f32.mrf.mxu0
      %3505 = vmatprep.mubr.bf16.mxu0 0
      %3506 = vmatmul.mubr.bf16.gmra.mxu0 %v3311
      %v3507 = vpop.f32.mrf.mxu0
      %v3508 = vadd.f32 0.0, %v3507
      %v3509 = vpop.f32.mrf.mxu0
      %v3510 = vpop.f32.mrf.mxu0
      %v3511 = vadd.f32 0.0, %v3510
      %v3512 = vpop.f32.mrf.mxu0
      %3513 = vmatprep.mubr.bf16.mxu0 0
      %3514 = vmatmul.mubr.bf16.gmra.mxu0 %v3313
      %v3515 = vpop.f32.mrf.mxu0
      %v3516 = vadd.f32 0.0, %v3515
      %v3517 = vpop.f32.mrf.mxu0
      %v3518 = vpop.f32.mrf.mxu0
      %v3519 = vadd.f32 0.0, %v3518
      %v3520 = vpop.f32.mrf.mxu0
      %3521 = vmatprep.mubr.bf16.mxu0 0
      %3522 = vmatmul.mubr.bf16.gmra.mxu0 %v3315
      %v3523 = vpop.f32.mrf.mxu0
      %v3524 = vadd.f32 0.0, %v3523
      %v3525 = vpop.f32.mrf.mxu0
      %v3526 = vpop.f32.mrf.mxu0
      %v3527 = vadd.f32 0.0, %v3526
      %v3528 = vpop.f32.mrf.mxu0
      %3529 = vmatprep.mubr.bf16.mxu0 0
      %3530 = vmatmul.mubr.bf16.gmra.mxu0 %v3317
      %v3531 = vpop.f32.mrf.mxu0
      %v3532 = vadd.f32 0.0, %v3531
      %v3533 = vpop.f32.mrf.mxu0
      %v3534 = vpop.f32.mrf.mxu0
      %v3535 = vadd.f32 0.0, %v3534
      %v3536 = vpop.f32.mrf.mxu0
      %3537 = vmatprep.mubr.bf16.mxu0 0
      %3538 = vmatmul.mubr.bf16.gmra.mxu0 %v3319
      %v3539 = vpop.f32.mrf.mxu0
      %v3540 = vadd.f32 0.0, %v3539
      %v3541 = vpop.f32.mrf.mxu0
      %v3542 = vpop.f32.mrf.mxu0
      %v3543 = vadd.f32 0.0, %v3542
      %v3544 = vpop.f32.mrf.mxu0
      %3545 = vmatprep.mubr.bf16.mxu0 0
      %3546 = vmatmul.mubr.bf16.gmra.mxu0 %v3321
      %v3547 = vpop.f32.mrf.mxu0
      %v3548 = vadd.f32 0.0, %v3547
      %v3549 = vpop.f32.mrf.mxu0
      %v3550 = vpop.f32.mrf.mxu0
      %v3551 = vadd.f32 0.0, %v3550
      %v3552 = vpop.f32.mrf.mxu0
      %3553 = vmatprep.mubr.bf16.mxu0 0
      %3554 = vmatmul.mubr.bf16.gmra.mxu0 %v3323
      %v3555 = vpop.f32.mrf.mxu0
      %v3556 = vadd.f32 0.0, %v3555
      %v3557 = vpop.f32.mrf.mxu0
      %v3558 = vpop.f32.mrf.mxu0
      %v3559 = vadd.f32 0.0, %v3558
      %v3560 = vpop.f32.mrf.mxu0
      %3561 = vmatprep.mubr.bf16.mxu0 0
      %3562 = vmatmul.mubr.bf16.gmra.mxu0 %v3325
      %v3563 = vpop.f32.mrf.mxu0
      %v3564 = vadd.f32 0.0, %v3563
      %v3565 = vpop.f32.mrf.mxu0
      %v3566 = vpop.f32.mrf.mxu0
      %v3567 = vadd.f32 0.0, %v3566
      %v3568 = vpop.f32.mrf.mxu0
      %3569 = vmatprep.mubr.bf16.mxu0 0
      %3570 = vmatmul.mubr.bf16.gmra.mxu0 %v3327
      %v3571 = vpop.f32.mrf.mxu0
      %v3572 = vadd.f32 0.0, %v3571
      %v3573 = vpop.f32.mrf.mxu0
      %v3574 = vpop.f32.mrf.mxu0
      %v3575 = vadd.f32 0.0, %v3574
      %v3576 = vpop.f32.mrf.mxu0
      %3577 = vmatprep.mubr.bf16.mxu0 0
      %3578 = vmatmul.mubr.bf16.gmra.mxu0 %v3329
      %v3579 = vpop.f32.mrf.mxu0
      %v3580 = vadd.f32 0.0, %v3579
      %v3581 = vpop.f32.mrf.mxu0
      %v3582 = vpop.f32.mrf.mxu0
      %v3583 = vadd.f32 0.0, %v3582
      %v3584 = vpop.f32.mrf.mxu0
      %3585 = vmatprep.mubr.bf16.mxu0 0
      %3586 = vmatmul.mubr.bf16.gmra.mxu0 %v3331
      %v3587 = vpop.f32.mrf.mxu0
      %v3588 = vadd.f32 0.0, %v3587
      %v3589 = vpop.f32.mrf.mxu0
      %v3590 = vpop.f32.mrf.mxu0
      %v3591 = vadd.f32 0.0, %v3590
      %v3592 = vpop.f32.mrf.mxu0
      %3593 = vmatprep.mubr.bf16.mxu0 0
      %3594 = vmatmul.mubr.bf16.gmra.mxu0 %v3330
      %v3595 = vpop.f32.mrf.mxu0
      %v3596 = vadd.f32 0.0, %v3595
      %v3597 = vpop.f32.mrf.mxu0
      %v3598 = vpop.f32.mrf.mxu0
      %v3599 = vpop.f32.mrf.mxu0
      %3600 = vdwg.mxu0
      %v3601 = vadd.f32 %v3211, %v3436
      %v3602 = vadd.f32 %v3212, %v3439
      %v3603 = vadd.f32 %v3213, %v3444
      %v3604 = vadd.f32 %v3214, %v3447
      %v3605 = vadd.f32 %v3215, %v3452
      %v3606 = vadd.f32 %v3216, %v3455
      %v3607 = vadd.f32 %v3217, %v3460
      %v3608 = vadd.f32 %v3218, %v3463
      %v3609 = vadd.f32 %v3219, %v3468
      %v3610 = vadd.f32 %v3220, %v3471
      %v3611 = vadd.f32 %v3221, %v3476
      %v3612 = vadd.f32 %v3222, %v3479
      %v3613 = vadd.f32 %v3223, %v3484
      %v3614 = vadd.f32 %v3224, %v3487
      %v3615 = vadd.f32 %v3225, %v3492
      %v3616 = vadd.f32 %v3226, %v3495
      %v3617 = vadd.f32 %v3227, %v3500
      %v3618 = vadd.f32 %v3228, %v3503
      %v3619 = vadd.f32 %v3229, %v3508
      %v3620 = vadd.f32 %v3230, %v3511
      %v3621 = vadd.f32 %v3231, %v3516
      %v3622 = vadd.f32 %v3232, %v3519
      %v3623 = vadd.f32 %v3233, %v3524
      %v3624 = vadd.f32 %v3234, %v3527
      %v3625 = vadd.f32 %v3235, %v3532
      %v3626 = vadd.f32 %v3236, %v3535
      %v3627 = vadd.f32 %v3237, %v3540
      %v3628 = vadd.f32 %v3238, %v3543
      %v3629 = vadd.f32 %v3239, %v3548
      %v3630 = vadd.f32 %v3240, %v3551
      %v3631 = vadd.f32 %v3241, %v3556
      %v3632 = vadd.f32 %v3242, %v3559
      %v3633 = vadd.f32 %v3243, %v3564
      %v3634 = vadd.f32 %v3244, %v3567
      %v3635 = vadd.f32 %v3245, %v3572
      %v3636 = vadd.f32 %v3246, %v3575
      %v3637 = vadd.f32 %v3247, %v3580
      %v3638 = vadd.f32 %v3248, %v3583
      %v3639 = vadd.f32 %v3249, %v3588
      %v3640 = vadd.f32 %v3250, %v3591
      %v3641 = vadd.f32 %v3251, %v3596
      %s3642 = scalar_lea.vmem %s2, 512
      %v3643 = vld [vmem:[%s3642] sm:$0xf]
      %v3644 = vld [vmem:[%s3642 + $0x4] sm:$0xf]
      %v3645 = vld [vmem:[%s3642 + $0x8] sm:$0xf]
      %v3646 = vld [vmem:[%s3642 + $0xc] sm:$0xf]
      %v3647 = vld [vmem:[%s3642 + $0x10] sm:$0xf]
      %v3648 = vld [vmem:[%s3642 + $0x14] sm:$0xf]
      %v3649 = vld [vmem:[%s3642 + $0x18] sm:$0xf]
      %v3650 = vld [vmem:[%s3642 + $0x1c] sm:$0xf]
      %v3651 = vld [vmem:[%s3642 + $0x20] sm:$0xf]
      %v3652 = vld [vmem:[%s3642 + $0x24] sm:$0xf]
      %v3653 = vld [vmem:[%s3642 + $0x28] sm:$0xf]
      %v3654 = vld [vmem:[%s3642 + $0x2c] sm:$0xf]
      %v3655 = vld [vmem:[%s3642 + $0x30] sm:$0xf]
      %v3656 = vld [vmem:[%s3642 + $0x34] sm:$0xf]
      %v3657 = vld [vmem:[%s3642 + $0x38] sm:$0xf]
      %v3658 = vld [vmem:[%s3642 + $0x3c] sm:$0xf]
      %vm3659 = vsmask.f32 6400
      %v3660 = vrot.slane %v2460, 1
      %v3661 = vrot.slane %v2456, 2
      %v3662 = vor.u32 %v3660, %v3661
      %v3663 = vrot.slane %v2468, 1
      %v3664 = vrot.slane %v2464, 2
      %v3665 = vor.u32 %v3663, %v3664
      %v3666 = vsel %vm3659, %v3662, %v3665
      %v3667 = vrot.slane %v2476, 1
      %v3668 = vrot.slane %v2472, 2
      %v3669 = vor.u32 %v3667, %v3668
      %v3670 = vsel %vm3659, %v3665, %v3669
      %v3671 = vrot.slane %v2484, 1
      %v3672 = vrot.slane %v2480, 2
      %v3673 = vor.u32 %v3671, %v3672
      %v3674 = vsel %vm3659, %v3669, %v3673
      %v3675 = vrot.slane %v2492, 1
      %v3676 = vrot.slane %v2488, 2
      %v3677 = vor.u32 %v3675, %v3676
      %v3678 = vsel %vm3659, %v3673, %v3677
      %v3679 = vrot.slane %v2500, 1
      %v3680 = vrot.slane %v2496, 2
      %v3681 = vor.u32 %v3679, %v3680
      %v3682 = vsel %vm3659, %v3677, %v3681
      %v3683 = vrot.slane %v2508, 1
      %v3684 = vrot.slane %v2504, 2
      %v3685 = vor.u32 %v3683, %v3684
      %v3686 = vsel %vm3659, %v3681, %v3685
      %v3687 = vrot.slane %v2516, 1
      %v3688 = vrot.slane %v2512, 2
      %v3689 = vor.u32 %v3687, %v3688
      %v3690 = vsel %vm3659, %v3685, %v3689
      %v3691 = vrot.slane %v2524, 1
      %v3692 = vrot.slane %v2520, 2
      %v3693 = vor.u32 %v3691, %v3692
      %v3694 = vsel %vm3659, %v3689, %v3693
      %v3695 = vrot.slane %v2532, 1
      %v3696 = vrot.slane %v2528, 2
      %v3697 = vor.u32 %v3695, %v3696
      %v3698 = vsel %vm3659, %v3693, %v3697
      %v3699 = vrot.slane %v2540, 1
      %v3700 = vrot.slane %v2536, 2
      %v3701 = vor.u32 %v3699, %v3700
      %v3702 = vsel %vm3659, %v3697, %v3701
      %v3703 = vrot.slane %v2548, 1
      %v3704 = vrot.slane %v2544, 2
      %v3705 = vor.u32 %v3703, %v3704
      %v3706 = vsel %vm3659, %v3701, %v3705
      %v3707 = vrot.slane %v2556, 1
      %v3708 = vrot.slane %v2552, 2
      %v3709 = vor.u32 %v3707, %v3708
      %v3710 = vsel %vm3659, %v3705, %v3709
      %v3711 = vrot.slane %v2564, 1
      %v3712 = vrot.slane %v2560, 2
      %v3713 = vor.u32 %v3711, %v3712
      %v3714 = vsel %vm3659, %v3709, %v3713
      %v3715 = vrot.slane %v2572, 1
      %v3716 = vrot.slane %v2568, 2
      %v3717 = vor.u32 %v3715, %v3716
      %v3718 = vsel %vm3659, %v3713, %v3717
      %v3719 = vrot.slane %v2580, 1
      %v3720 = vrot.slane %v2576, 2
      %v3721 = vor.u32 %v3719, %v3720
      %v3722 = vsel %vm3659, %v3717, %v3721
      %v3723 = vrot.slane %v2588, 1
      %v3724 = vrot.slane %v2584, 2
      %v3725 = vor.u32 %v3723, %v3724
      %v3726 = vsel %vm3659, %v3721, %v3725
      %v3727 = vrot.slane %v2596, 1
      %v3728 = vrot.slane %v2592, 2
      %v3729 = vor.u32 %v3727, %v3728
      %v3730 = vsel %vm3659, %v3725, %v3729
      %v3731 = vrot.slane %v2604, 1
      %v3732 = vrot.slane %v2600, 2
      %v3733 = vor.u32 %v3731, %v3732
      %v3734 = vsel %vm3659, %v3729, %v3733
      %v3735 = vrot.slane %v2949, 1
      %v3736 = vrot.slane %v2945, 2
      %v3737 = vor.u32 %v3735, %v3736
      %v3738 = vsel %vm3659, %v3733, %v3737
      %v3739 = vrot.slane %v2957, 1
      %v3740 = vrot.slane %v2953, 2
      %v3741 = vor.u32 %v3739, %v3740
      %v3742 = vsel %vm3659, %v3737, %v3741
      %v3780 = vunpack.c.l.b16 %v3643
      %v3781 = vunpack.c.l.b16 %v3644
      %v3782 = vunpack.c.l.b16 %v3645
      %v3783 = vunpack.c.l.b16 %v3646
      %v3784 = vunpack.c.l.b16 %v3647
      %v3785 = vunpack.c.l.b16 %v3648
      %v3786 = vunpack.c.l.b16 %v3649
      %v3787 = vunpack.c.l.b16 %v3650
      %v3788 = vunpack.c.l.b16 %v3651
      %v3789 = vunpack.c.l.b16 %v3652
      %v3790 = vunpack.c.l.b16 %v3653
      %v3791 = vunpack.c.l.b16 %v3654
      %v3792 = vunpack.c.l.b16 %v3655
      %v3793 = vunpack.c.l.b16 %v3656
      %v3794 = vunpack.c.l.b16 %v3657
      %v3795 = vunpack.c.l.b16 %v3658
      %v3796 = vpack.c.b16 %v3781, %v3780
      %v3797 = vpack.c.b16 %v3783, %v3782
      %v3798 = vpack.c.b16 %v3785, %v3784
      %v3799 = vpack.c.b16 %v3787, %v3786
      %v3800 = vpack.c.b16 %v3789, %v3788
      %v3801 = vpack.c.b16 %v3791, %v3790
      %v3802 = vpack.c.b16 %v3793, %v3792
      %v3803 = vpack.c.b16 %v3795, %v3794
      %3812 = vmatprep.subr.bf16.mxu0 0
      %3813 = vmatpush1.bf16.msra.mxu0 %v3803
      %3814 = vmatprep.subr.bf16.mxu0 0
      %3815 = vmatpush1.bf16.msra.mxu0 %v3802
      %3816 = vmatprep.subr.bf16.mxu0 0
      %3817 = vmatpush1.bf16.msra.mxu0 %v3801
      %3818 = vmatprep.subr.bf16.mxu0 0
      %3819 = vmatpush1.bf16.msra.mxu0 %v3800
      %3820 = vmatprep.subr.bf16.mxu0 0
      %3821 = vmatpush1.bf16.msra.mxu0 %v3799
      %3822 = vmatprep.subr.bf16.mxu0 0
      %3823 = vmatpush1.bf16.msra.mxu0 %v3798
      %3824 = vmatprep.subr.bf16.mxu0 0
      %3825 = vmatpush1.bf16.msra.mxu0 %v3797
      %3826 = vmatprep.subr.bf16.mxu0 0
      %3827 = vmatpush1.bf16.msra.mxu0 %v3796
      %3828 = vmatprep.subr.bf16.mxu0 0
      %3829 = vmatpush2.bf16.msra.mxu0 0
      %3830 = vmatprep.subr.bf16.mxu0 0
      %3831 = vmatpush2.bf16.msra.mxu0 0
      %3832 = vmatprep.subr.bf16.mxu0 0
      %3833 = vmatpush2.bf16.msra.mxu0 0
      %3834 = vmatprep.subr.bf16.mxu0 0
      %3835 = vmatpush2.bf16.msra.mxu0 0
      %3836 = vmatprep.subr.bf16.mxu0 0
      %3837 = vmatpush2.bf16.msra.mxu0 0
      %3838 = vmatprep.subr.bf16.mxu0 0
      %3839 = vmatpush2.bf16.msra.mxu0 0
      %3840 = vmatprep.subr.bf16.mxu0 0
      %3841 = vmatpush2.bf16.msra.mxu0 0
      %3842 = vmatprep.subr.bf16.mxu0 0
      %3843 = vmatpush2.bf16.msra.mxu0 0
      %3844 = vmatprep.mubr.bf16.mxu0 0
      %3845 = vmatmul.mubr.bf16.gmra.mxu0 %v3666
      %v3846 = vpop.f32.mrf.mxu0
      %v3847 = vadd.f32 0.0, %v3846
      %v3848 = vpop.f32.mrf.mxu0
      %v3849 = vpop.f32.mrf.mxu0
      %v3850 = vadd.f32 0.0, %v3849
      %v3851 = vpop.f32.mrf.mxu0
      %3852 = vmatprep.mubr.bf16.mxu0 0
      %3853 = vmatmul.mubr.bf16.gmra.mxu0 %v3670
      %v3854 = vpop.f32.mrf.mxu0
      %v3855 = vadd.f32 0.0, %v3854
      %v3856 = vpop.f32.mrf.mxu0
      %v3857 = vpop.f32.mrf.mxu0
      %v3858 = vadd.f32 0.0, %v3857
      %v3859 = vpop.f32.mrf.mxu0
      %3860 = vmatprep.mubr.bf16.mxu0 0
      %3861 = vmatmul.mubr.bf16.gmra.mxu0 %v3674
      %v3862 = vpop.f32.mrf.mxu0
      %v3863 = vadd.f32 0.0, %v3862
      %v3864 = vpop.f32.mrf.mxu0
      %v3865 = vpop.f32.mrf.mxu0
      %v3866 = vadd.f32 0.0, %v3865
      %v3867 = vpop.f32.mrf.mxu0
      %3868 = vmatprep.mubr.bf16.mxu0 0
      %3869 = vmatmul.mubr.bf16.gmra.mxu0 %v3678
      %v3870 = vpop.f32.mrf.mxu0
      %v3871 = vadd.f32 0.0, %v3870
      %v3872 = vpop.f32.mrf.mxu0
      %v3873 = vpop.f32.mrf.mxu0
      %v3874 = vadd.f32 0.0, %v3873
      %v3875 = vpop.f32.mrf.mxu0
      %3876 = vmatprep.mubr.bf16.mxu0 0
      %3877 = vmatmul.mubr.bf16.gmra.mxu0 %v3682
      %v3878 = vpop.f32.mrf.mxu0
      %v3879 = vadd.f32 0.0, %v3878
      %v3880 = vpop.f32.mrf.mxu0
      %v3881 = vpop.f32.mrf.mxu0
      %v3882 = vadd.f32 0.0, %v3881
      %v3883 = vpop.f32.mrf.mxu0
      %3884 = vmatprep.mubr.bf16.mxu0 0
      %3885 = vmatmul.mubr.bf16.gmra.mxu0 %v3686
      %v3886 = vpop.f32.mrf.mxu0
      %v3887 = vadd.f32 0.0, %v3886
      %v3888 = vpop.f32.mrf.mxu0
      %v3889 = vpop.f32.mrf.mxu0
      %v3890 = vadd.f32 0.0, %v3889
      %v3891 = vpop.f32.mrf.mxu0
      %3892 = vmatprep.mubr.bf16.mxu0 0
      %3893 = vmatmul.mubr.bf16.gmra.mxu0 %v3690
      %v3894 = vpop.f32.mrf.mxu0
      %v3895 = vadd.f32 0.0, %v3894
      %v3896 = vpop.f32.mrf.mxu0
      %v3897 = vpop.f32.mrf.mxu0
      %v3898 = vadd.f32 0.0, %v3897
      %v3899 = vpop.f32.mrf.mxu0
      %3900 = vmatprep.mubr.bf16.mxu0 0
      %3901 = vmatmul.mubr.bf16.gmra.mxu0 %v3694
      %v3902 = vpop.f32.mrf.mxu0
      %v3903 = vadd.f32 0.0, %v3902
      %v3904 = vpop.f32.mrf.mxu0
      %v3905 = vpop.f32.mrf.mxu0
      %v3906 = vadd.f32 0.0, %v3905
      %v3907 = vpop.f32.mrf.mxu0
      %3908 = vmatprep.mubr.bf16.mxu0 0
      %3909 = vmatmul.mubr.bf16.gmra.mxu0 %v3698
      %v3910 = vpop.f32.mrf.mxu0
      %v3911 = vadd.f32 0.0, %v3910
      %v3912 = vpop.f32.mrf.mxu0
      %v3913 = vpop.f32.mrf.mxu0
      %v3914 = vadd.f32 0.0, %v3913
      %v3915 = vpop.f32.mrf.mxu0
      %3916 = vmatprep.mubr.bf16.mxu0 0
      %3917 = vmatmul.mubr.bf16.gmra.mxu0 %v3702
      %v3918 = vpop.f32.mrf.mxu0
      %v3919 = vadd.f32 0.0, %v3918
      %v3920 = vpop.f32.mrf.mxu0
      %v3921 = vpop.f32.mrf.mxu0
      %v3922 = vadd.f32 0.0, %v3921
      %v3923 = vpop.f32.mrf.mxu0
      %3924 = vmatprep.mubr.bf16.mxu0 0
      %3925 = vmatmul.mubr.bf16.gmra.mxu0 %v3706
      %v3926 = vpop.f32.mrf.mxu0
      %v3927 = vadd.f32 0.0, %v3926
      %v3928 = vpop.f32.mrf.mxu0
      %v3929 = vpop.f32.mrf.mxu0
      %v3930 = vadd.f32 0.0, %v3929
      %v3931 = vpop.f32.mrf.mxu0
      %3932 = vmatprep.mubr.bf16.mxu0 0
      %3933 = vmatmul.mubr.bf16.gmra.mxu0 %v3710
      %v3934 = vpop.f32.mrf.mxu0
      %v3935 = vadd.f32 0.0, %v3934
      %v3936 = vpop.f32.mrf.mxu0
      %v3937 = vpop.f32.mrf.mxu0
      %v3938 = vadd.f32 0.0, %v3937
      %v3939 = vpop.f32.mrf.mxu0
      %3940 = vmatprep.mubr.bf16.mxu0 0
      %3941 = vmatmul.mubr.bf16.gmra.mxu0 %v3714
      %v3942 = vpop.f32.mrf.mxu0
      %v3943 = vadd.f32 0.0, %v3942
      %v3944 = vpop.f32.mrf.mxu0
      %v3945 = vpop.f32.mrf.mxu0
      %v3946 = vadd.f32 0.0, %v3945
      %v3947 = vpop.f32.mrf.mxu0
      %3948 = vmatprep.mubr.bf16.mxu0 0
      %3949 = vmatmul.mubr.bf16.gmra.mxu0 %v3718
      %v3950 = vpop.f32.mrf.mxu0
      %v3951 = vadd.f32 0.0, %v3950
      %v3952 = vpop.f32.mrf.mxu0
      %v3953 = vpop.f32.mrf.mxu0
      %v3954 = vadd.f32 0.0, %v3953
      %v3955 = vpop.f32.mrf.mxu0
      %3956 = vmatprep.mubr.bf16.mxu0 0
      %3957 = vmatmul.mubr.bf16.gmra.mxu0 %v3722
      %v3958 = vpop.f32.mrf.mxu0
      %v3959 = vadd.f32 0.0, %v3958
      %v3960 = vpop.f32.mrf.mxu0
      %v3961 = vpop.f32.mrf.mxu0
      %v3962 = vadd.f32 0.0, %v3961
      %v3963 = vpop.f32.mrf.mxu0
      %3964 = vmatprep.mubr.bf16.mxu0 0
      %3965 = vmatmul.mubr.bf16.gmra.mxu0 %v3726
      %v3966 = vpop.f32.mrf.mxu0
      %v3967 = vadd.f32 0.0, %v3966
      %v3968 = vpop.f32.mrf.mxu0
      %v3969 = vpop.f32.mrf.mxu0
      %v3970 = vadd.f32 0.0, %v3969
      %v3971 = vpop.f32.mrf.mxu0
      %3972 = vmatprep.mubr.bf16.mxu0 0
      %3973 = vmatmul.mubr.bf16.gmra.mxu0 %v3730
      %v3974 = vpop.f32.mrf.mxu0
      %v3975 = vadd.f32 0.0, %v3974
      %v3976 = vpop.f32.mrf.mxu0
      %v3977 = vpop.f32.mrf.mxu0
      %v3978 = vadd.f32 0.0, %v3977
      %v3979 = vpop.f32.mrf.mxu0
      %3980 = vmatprep.mubr.bf16.mxu0 0
      %3981 = vmatmul.mubr.bf16.gmra.mxu0 %v3734
      %v3982 = vpop.f32.mrf.mxu0
      %v3983 = vadd.f32 0.0, %v3982
      %v3984 = vpop.f32.mrf.mxu0
      %v3985 = vpop.f32.mrf.mxu0
      %v3986 = vadd.f32 0.0, %v3985
      %v3987 = vpop.f32.mrf.mxu0
      %3988 = vmatprep.mubr.bf16.mxu0 0
      %3989 = vmatmul.mubr.bf16.gmra.mxu0 %v3738
      %v3990 = vpop.f32.mrf.mxu0
      %v3991 = vadd.f32 0.0, %v3990
      %v3992 = vpop.f32.mrf.mxu0
      %v3993 = vpop.f32.mrf.mxu0
      %v3994 = vadd.f32 0.0, %v3993
      %v3995 = vpop.f32.mrf.mxu0
      %3996 = vmatprep.mubr.bf16.mxu0 0
      %3997 = vmatmul.mubr.bf16.gmra.mxu0 %v3742
      %v3998 = vpop.f32.mrf.mxu0
      %v3999 = vadd.f32 0.0, %v3998
      %v4000 = vpop.f32.mrf.mxu0
      %v4001 = vpop.f32.mrf.mxu0
      %v4002 = vadd.f32 0.0, %v4001
      %v4003 = vpop.f32.mrf.mxu0
      %4004 = vmatprep.mubr.bf16.mxu0 0
      %4005 = vmatmul.mubr.bf16.gmra.mxu0 %v3741
      %v4006 = vpop.f32.mrf.mxu0
      %v4007 = vadd.f32 0.0, %v4006
      %v4008 = vpop.f32.mrf.mxu0
      %v4009 = vpop.f32.mrf.mxu0
      %v4010 = vpop.f32.mrf.mxu0
      %4011 = vdwg.mxu0
      %v4012 = vadd.f32 %v3601, %v3847
      %v4013 = vadd.f32 %v3602, %v3850
      %v4014 = vadd.f32 %v3603, %v3855
      %v4015 = vadd.f32 %v3604, %v3858
      %v4016 = vadd.f32 %v3605, %v3863
      %v4017 = vadd.f32 %v3606, %v3866
      %v4018 = vadd.f32 %v3607, %v3871
      %v4019 = vadd.f32 %v3608, %v3874
      %v4020 = vadd.f32 %v3609, %v3879
      %v4021 = vadd.f32 %v3610, %v3882
      %v4022 = vadd.f32 %v3611, %v3887
      %v4023 = vadd.f32 %v3612, %v3890
      %v4024 = vadd.f32 %v3613, %v3895
      %v4025 = vadd.f32 %v3614, %v3898
      %v4026 = vadd.f32 %v3615, %v3903
      %v4027 = vadd.f32 %v3616, %v3906
      %v4028 = vadd.f32 %v3617, %v3911
      %v4029 = vadd.f32 %v3618, %v3914
      %v4030 = vadd.f32 %v3619, %v3919
      %v4031 = vadd.f32 %v3620, %v3922
      %v4032 = vadd.f32 %v3621, %v3927
      %v4033 = vadd.f32 %v3622, %v3930
      %v4034 = vadd.f32 %v3623, %v3935
      %v4035 = vadd.f32 %v3624, %v3938
      %v4036 = vadd.f32 %v3625, %v3943
      %v4037 = vadd.f32 %v3626, %v3946
      %v4038 = vadd.f32 %v3627, %v3951
      %v4039 = vadd.f32 %v3628, %v3954
      %v4040 = vadd.f32 %v3629, %v3959
      %v4041 = vadd.f32 %v3630, %v3962
      %v4042 = vadd.f32 %v3631, %v3967
      %v4043 = vadd.f32 %v3632, %v3970
      %v4044 = vadd.f32 %v3633, %v3975
      %v4045 = vadd.f32 %v3634, %v3978
      %v4046 = vadd.f32 %v3635, %v3983
      %v4047 = vadd.f32 %v3636, %v3986
      %v4048 = vadd.f32 %v3637, %v3991
      %v4049 = vadd.f32 %v3638, %v3994
      %v4050 = vadd.f32 %v3639, %v3999
      %v4051 = vadd.f32 %v3640, %v4002
      %v4052 = vadd.f32 %v3641, %v4007
      %v4053 = vld [vmem:[%s3] sm:$0x1]
      %v4055 = vlaneseq
      %v4056 = vshrl.u32 %v4055, 7
      %v4057 = vsub.s32 0, %v4056
      %v4058 = vrot.slane %v4053, %v4057
      %v4060 = vadd.f32 %v4012, %v4058
      %v4061 = vadd.f32 %v4013, %v4058
      %v4062 = vadd.f32 %v4014, %v4058
      %v4063 = vadd.f32 %v4015, %v4058
      %v4064 = vadd.f32 %v4016, %v4058
      %v4065 = vadd.f32 %v4017, %v4058
      %v4066 = vadd.f32 %v4018, %v4058
      %v4067 = vadd.f32 %v4019, %v4058
      %v4068 = vadd.f32 %v4020, %v4058
      %v4069 = vadd.f32 %v4021, %v4058
      %v4070 = vadd.f32 %v4022, %v4058
      %v4071 = vadd.f32 %v4023, %v4058
      %v4072 = vadd.f32 %v4024, %v4058
      %v4073 = vadd.f32 %v4025, %v4058
      %v4074 = vadd.f32 %v4026, %v4058
      %v4075 = vadd.f32 %v4027, %v4058
      %v4076 = vadd.f32 %v4028, %v4058
      %v4077 = vadd.f32 %v4029, %v4058
      %v4078 = vadd.f32 %v4030, %v4058
      %v4079 = vadd.f32 %v4031, %v4058
      %v4080 = vadd.f32 %v4032, %v4058
      %v4081 = vadd.f32 %v4033, %v4058
      %v4082 = vadd.f32 %v4034, %v4058
      %v4083 = vadd.f32 %v4035, %v4058
      %v4084 = vadd.f32 %v4036, %v4058
      %v4085 = vadd.f32 %v4037, %v4058
      %v4086 = vadd.f32 %v4038, %v4058
      %v4087 = vadd.f32 %v4039, %v4058
      %v4088 = vadd.f32 %v4040, %v4058
      %v4089 = vadd.f32 %v4041, %v4058
      %v4090 = vadd.f32 %v4042, %v4058
      %v4091 = vadd.f32 %v4043, %v4058
      %v4092 = vadd.f32 %v4044, %v4058
      %v4093 = vadd.f32 %v4045, %v4058
      %v4094 = vadd.f32 %v4046, %v4058
      %v4095 = vadd.f32 %v4047, %v4058
      %v4096 = vadd.f32 %v4048, %v4058
      %v4097 = vadd.f32 %v4049, %v4058
      %v4098 = vadd.f32 %v4050, %v4058
      %v4099 = vadd.f32 %v4051, %v4058
      %v4100 = vadd.f32 %v4052, %v4058
      %v4101 = vmax.f32 %v4060, 0.0
      %v4102 = vmax.f32 %v4061, 0.0
      %v4103 = vmax.f32 %v4062, 0.0
      %v4104 = vmax.f32 %v4063, 0.0
      %v4105 = vmax.f32 %v4064, 0.0
      %v4106 = vmax.f32 %v4065, 0.0
      %v4107 = vmax.f32 %v4066, 0.0
      %v4108 = vmax.f32 %v4067, 0.0
      %v4109 = vmax.f32 %v4068, 0.0
      %v4110 = vmax.f32 %v4069, 0.0
      %v4111 = vmax.f32 %v4070, 0.0
      %v4112 = vmax.f32 %v4071, 0.0
      %v4113 = vmax.f32 %v4072, 0.0
      %v4114 = vmax.f32 %v4073, 0.0
      %v4115 = vmax.f32 %v4074, 0.0
      %v4116 = vmax.f32 %v4075, 0.0
      %v4117 = vmax.f32 %v4076, 0.0
      %v4118 = vmax.f32 %v4077, 0.0
      %v4119 = vmax.f32 %v4078, 0.0
      %v4120 = vmax.f32 %v4079, 0.0
      %v4121 = vmax.f32 %v4080, 0.0
      %v4122 = vmax.f32 %v4081, 0.0
      %v4123 = vmax.f32 %v4082, 0.0
      %v4124 = vmax.f32 %v4083, 0.0
      %v4125 = vmax.f32 %v4084, 0.0
      %v4126 = vmax.f32 %v4085, 0.0
      %v4127 = vmax.f32 %v4086, 0.0
      %v4128 = vmax.f32 %v4087, 0.0
      %v4129 = vmax.f32 %v4088, 0.0
      %v4130 = vmax.f32 %v4089, 0.0
      %v4131 = vmax.f32 %v4090, 0.0
      %v4132 = vmax.f32 %v4091, 0.0
      %v4133 = vmax.f32 %v4092, 0.0
      %v4134 = vmax.f32 %v4093, 0.0
      %v4135 = vmax.f32 %v4094, 0.0
      %v4136 = vmax.f32 %v4095, 0.0
      %v4137 = vmax.f32 %v4096, 0.0
      %v4138 = vmax.f32 %v4097, 0.0
      %v4139 = vmax.f32 %v4098, 0.0
      %v4140 = vmax.f32 %v4099, 0.0
      %v4141 = vmax.f32 %v4100, 0.0
      %4143 = vset.pattern.permute.xlu0 0
      %4144 = vperm.xlu0 %4143, %v397
      %v4145 = vpop.permute.xlu0 %4144
      %4148 = vset.pattern.permute.xlu0 0
      %4149 = vperm.xlu0 %4148, %v398
      %v4150 = vpop.permute.xlu0 %4149
      %4153 = vset.pattern.permute.xlu0 0
      %4154 = vperm.xlu0 %4153, %v399
      %v4155 = vpop.permute.xlu0 %4154
      %4158 = vset.pattern.permute.xlu0 0
      %4159 = vperm.xlu0 %4158, %v400
      %v4160 = vpop.permute.xlu0 %4159
      %4163 = vset.pattern.permute.xlu0 0
      %4164 = vperm.xlu0 %4163, %v401
      %v4165 = vpop.permute.xlu0 %4164
      %4168 = vset.pattern.permute.xlu0 0
      %4169 = vperm.xlu0 %4168, %v402
      %v4170 = vpop.permute.xlu0 %4169
      %4173 = vset.pattern.permute.xlu0 0
      %4174 = vperm.xlu0 %4173, %v403
      %v4175 = vpop.permute.xlu0 %4174
      %4178 = vset.pattern.permute.xlu0 0
      %4179 = vperm.xlu0 %4178, %v404
      %v4180 = vpop.permute.xlu0 %4179
      %4183 = vset.pattern.permute.xlu0 0
      %4184 = vperm.xlu0 %4183, %v405
      %v4185 = vpop.permute.xlu0 %4184
      %4188 = vset.pattern.permute.xlu0 0
      %4189 = vperm.xlu0 %4188, %v406
      %v4190 = vpop.permute.xlu0 %4189
      %4193 = vset.pattern.permute.xlu0 0
      %4194 = vperm.xlu0 %4193, %v407
      %v4195 = vpop.permute.xlu0 %4194
      %4198 = vset.pattern.permute.xlu0 0
      %4199 = vperm.xlu0 %4198, %v408
      %v4200 = vpop.permute.xlu0 %4199
      %4203 = vset.pattern.permute.xlu0 0
      %4204 = vperm.xlu0 %4203, %v409
      %v4205 = vpop.permute.xlu0 %4204
      %4208 = vset.pattern.permute.xlu0 0
      %4209 = vperm.xlu0 %4208, %v410
      %v4210 = vpop.permute.xlu0 %4209
      %4213 = vset.pattern.permute.xlu0 0
      %4214 = vperm.xlu0 %4213, %v411
      %v4215 = vpop.permute.xlu0 %4214
      %4218 = vset.pattern.permute.xlu0 0
      %4219 = vperm.xlu0 %4218, %v412
      %v4220 = vpop.permute.xlu0 %4219
      %4223 = vset.pattern.permute.xlu0 0
      %4224 = vperm.xlu0 %4223, %v413
      %v4225 = vpop.permute.xlu0 %4224
      %4228 = vset.pattern.permute.xlu0 0
      %4229 = vperm.xlu0 %4228, %v414
      %v4230 = vpop.permute.xlu0 %4229
      %4233 = vset.pattern.permute.xlu0 0
      %4234 = vperm.xlu0 %4233, %v415
      %v4235 = vpop.permute.xlu0 %4234
      %4238 = vset.pattern.permute.xlu0 0
      %4239 = vperm.xlu0 %4238, %v416
      %v4240 = vpop.permute.xlu0 %4239
      %4243 = vset.pattern.permute.xlu0 0
      %4244 = vperm.xlu0 %4243, %v417
      %v4245 = vpop.permute.xlu0 %4244
      %4248 = vset.pattern.permute.xlu0 0
      %4249 = vperm.xlu0 %4248, %v418
      %v4250 = vpop.permute.xlu0 %4249
      %4253 = vset.pattern.permute.xlu0 0
      %4254 = vperm.xlu0 %4253, %v419
      %v4255 = vpop.permute.xlu0 %4254
      %4258 = vset.pattern.permute.xlu0 0
      %4259 = vperm.xlu0 %4258, %v420
      %v4260 = vpop.permute.xlu0 %4259
      %4263 = vset.pattern.permute.xlu0 0
      %4264 = vperm.xlu0 %4263, %v421
      %v4265 = vpop.permute.xlu0 %4264
      %4268 = vset.pattern.permute.xlu0 0
      %4269 = vperm.xlu0 %4268, %v422
      %v4270 = vpop.permute.xlu0 %4269
      %4273 = vset.pattern.permute.xlu0 0
      %4274 = vperm.xlu0 %4273, %v423
      %v4275 = vpop.permute.xlu0 %4274
      %4278 = vset.pattern.permute.xlu0 0
      %4279 = vperm.xlu0 %4278, %v424
      %v4280 = vpop.permute.xlu0 %4279
      %4283 = vset.pattern.permute.xlu0 0
      %4284 = vperm.xlu0 %4283, %v425
      %v4285 = vpop.permute.xlu0 %4284
      %4288 = vset.pattern.permute.xlu0 0
      %4289 = vperm.xlu0 %4288, %v426
      %v4290 = vpop.permute.xlu0 %4289
      %4293 = vset.pattern.permute.xlu0 0
      %4294 = vperm.xlu0 %4293, %v427
      %v4295 = vpop.permute.xlu0 %4294
      %4298 = vset.pattern.permute.xlu0 0
      %4299 = vperm.xlu0 %4298, %v428
      %v4300 = vpop.permute.xlu0 %4299
      %4303 = vset.pattern.permute.xlu0 0
      %4304 = vperm.xlu0 %4303, %v429
      %v4305 = vpop.permute.xlu0 %4304
      %4308 = vset.pattern.permute.xlu0 0
      %4309 = vperm.xlu0 %4308, %v430
      %v4310 = vpop.permute.xlu0 %4309
      %4313 = vset.pattern.permute.xlu0 0
      %4314 = vperm.xlu0 %4313, %v431
      %v4315 = vpop.permute.xlu0 %4314
      %4318 = vset.pattern.permute.xlu0 0
      %4319 = vperm.xlu0 %4318, %v432
      %v4320 = vpop.permute.xlu0 %4319
      %4323 = vset.pattern.permute.xlu0 0
      %4324 = vperm.xlu0 %4323, %v433
      %v4325 = vpop.permute.xlu0 %4324
      %4328 = vset.pattern.permute.xlu0 0
      %4329 = vperm.xlu0 %4328, %v434
      %v4330 = vpop.permute.xlu0 %4329
      %4333 = vset.pattern.permute.xlu0 0
      %4334 = vperm.xlu0 %4333, %v435
      %v4335 = vpop.permute.xlu0 %4334
      %4338 = vset.pattern.permute.xlu0 0
      %4339 = vperm.xlu0 %4338, %v436
      %v4340 = vpop.permute.xlu0 %4339
      %4343 = vset.pattern.permute.xlu0 0
      %4344 = vperm.xlu0 %4343, %v437
      %v4345 = vpop.permute.xlu0 %4344
      %v4347 = vmul.f32 %v4101, %v4145
      %v4348 = vmul.f32 %v4102, %v4150
      %v4349 = vmul.f32 %v4103, %v4155
      %v4350 = vmul.f32 %v4104, %v4160
      %v4351 = vmul.f32 %v4105, %v4165
      %v4352 = vmul.f32 %v4106, %v4170
      %v4353 = vmul.f32 %v4107, %v4175
      %v4354 = vmul.f32 %v4108, %v4180
      %v4355 = vmul.f32 %v4109, %v4185
      %v4356 = vmul.f32 %v4110, %v4190
      %v4357 = vmul.f32 %v4111, %v4195
      %v4358 = vmul.f32 %v4112, %v4200
      %v4359 = vmul.f32 %v4113, %v4205
      %v4360 = vmul.f32 %v4114, %v4210
      %v4361 = vmul.f32 %v4115, %v4215
      %v4362 = vmul.f32 %v4116, %v4220
      %v4363 = vmul.f32 %v4117, %v4225
      %v4364 = vmul.f32 %v4118, %v4230
      %v4365 = vmul.f32 %v4119, %v4235
      %v4366 = vmul.f32 %v4120, %v4240
      %v4367 = vmul.f32 %v4121, %v4245
      %v4368 = vmul.f32 %v4122, %v4250
      %v4369 = vmul.f32 %v4123, %v4255
      %v4370 = vmul.f32 %v4124, %v4260
      %v4371 = vmul.f32 %v4125, %v4265
      %v4372 = vmul.f32 %v4126, %v4270
      %v4373 = vmul.f32 %v4127, %v4275
      %v4374 = vmul.f32 %v4128, %v4280
      %v4375 = vmul.f32 %v4129, %v4285
      %v4376 = vmul.f32 %v4130, %v4290
      %v4377 = vmul.f32 %v4131, %v4295
      %v4378 = vmul.f32 %v4132, %v4300
      %v4379 = vmul.f32 %v4133, %v4305
      %v4380 = vmul.f32 %v4134, %v4310
      %v4381 = vmul.f32 %v4135, %v4315
      %v4382 = vmul.f32 %v4136, %v4320
      %v4383 = vmul.f32 %v4137, %v4325
      %v4384 = vmul.f32 %v4138, %v4330
      %v4385 = vmul.f32 %v4139, %v4335
      %v4386 = vmul.f32 %v4140, %v4340
      %v4387 = vmul.f32 %v4141, %v4345
      %4388 = vst [vmem:[#allocation2] sm:$0xff] 0.0
      %4389 = vst [vmem:[#allocation2 + $0x8] sm:$0xff] 0.0
      %4390 = vst [vmem:[#allocation2 + $0x10] sm:$0xff] 0.0
      %4391 = vst [vmem:[#allocation2 + $0x18] sm:$0xff] 0.0
      %4392 = vst [vmem:[#allocation2 + $0x20] sm:$0xff] 0.0
      %4393 = vst [vmem:[#allocation2 + $0x28] sm:$0xff] 0.0
      %4394 = vst [vmem:[#allocation2 + $0x30] sm:$0xff] 0.0
      %4395 = vst [vmem:[#allocation2 + $0x38] sm:$0xff] 0.0
      %4396 = vst [vmem:[#allocation2 + $0x40] sm:$0xff] 0.0
      %4397 = vst [vmem:[#allocation2 + $0x48] sm:$0xff] 0.0
      %4398 = vst [vmem:[#allocation2 + $0x50] sm:$0xff] 0.0
      %4399 = vst [vmem:[#allocation2 + $0x58] sm:$0xff] 0.0
      %4400 = vst [vmem:[#allocation2 + $0x60] sm:$0xff] 0.0
      %4401 = vst [vmem:[#allocation2 + $0x68] sm:$0xff] 0.0
      %4402 = vst [vmem:[#allocation2 + $0x70] sm:$0xff] 0.0
      %4403 = vst [vmem:[#allocation2 + $0x78] sm:$0xff] 0.0
      %4404 = vst [vmem:[#allocation2 + $0x80] sm:$0xff] 0.0
      %4405 = vst [vmem:[#allocation2 + $0x88] sm:$0xff] 0.0
      %4406 = vst [vmem:[#allocation2 + $0x90] sm:$0xff] 0.0
      %4407 = vst [vmem:[#allocation2 + $0x98] sm:$0xff] 0.0
      %4408 = vst [vmem:[#allocation2 + $0xa0] sm:$0xff] 0.0
      %4409 = vst [vmem:[#allocation2 + $0xa8] sm:$0xff] 0.0
      %4410 = vst [vmem:[#allocation2 + $0xb0] sm:$0xff] 0.0
      %4411 = vst [vmem:[#allocation2 + $0xb8] sm:$0xff] 0.0
      %4412 = vst [vmem:[#allocation2 + $0xc0] sm:$0xff] 0.0
      %4413 = vst [vmem:[#allocation2 + $0xc8] sm:$0xff] 0.0
      %4414 = vst [vmem:[#allocation2 + $0xd0] sm:$0xff] 0.0
      %4415 = vst [vmem:[#allocation2 + $0xd8] sm:$0xff] 0.0
      %4416 = vst [vmem:[#allocation2 + $0xe0] sm:$0xff] 0.0
      %4417 = vst [vmem:[#allocation2 + $0xe8] sm:$0xff] 0.0
      %4418 = vst [vmem:[#allocation2 + $0xf0] sm:$0xff] 0.0
      %4419 = vst [vmem:[#allocation2 + $0xf8] sm:$0xff] 0.0
      %4420 = vst [vmem:[#allocation2 + $0x100] sm:$0xff] 0.0
      %4421 = vst [vmem:[#allocation2 + $0x108] sm:$0xff] 0.0
      %4422 = vst [vmem:[#allocation2 + $0x110] sm:$0xff] 0.0
      %4423 = vst [vmem:[#allocation2 + $0x118] sm:$0xff] 0.0
      %4424 = vst [vmem:[#allocation2 + $0x120] sm:$0xff] 0.0
      %4425 = vst [vmem:[#allocation2 + $0x128] sm:$0xff] 0.0
      %4426 = vst [vmem:[#allocation2 + $0x130] sm:$0xff] 0.0
      %4427 = vst [vmem:[#allocation2 + $0x138] sm:$0xff] 0.0
      %4428 = vst [vmem:[#allocation2 + $0x140] sm:$0xff] 0.0
      %4429 = vst [vmem:[#allocation2 + $0x148] sm:$0xff] 0.0
      %4430 = vst [vmem:[#allocation2 + $0x150] sm:$0xff] 0.0
      %4431 = vst [vmem:[#allocation2 + $0x158] sm:$0xff] 0.0
      %4432 = vst [vmem:[#allocation2 + $0x160] sm:$0xff] 0.0
      %4433 = vst [vmem:[#allocation2 + $0x168] sm:$0xff] 0.0
      %4434 = vst [vmem:[#allocation2 + $0x170] sm:$0xf] 0.0
      %4435 = vst [vmem:[#allocation2 + $0x18] sm:$0xff] %v4347
      %4436 = vst [vmem:[#allocation2 + $0x20] sm:$0xff] %v4348
      %4437 = vst [vmem:[#allocation2 + $0x28] sm:$0xff] %v4349
      %4438 = vst [vmem:[#allocation2 + $0x30] sm:$0xff] %v4350
      %4439 = vst [vmem:[#allocation2 + $0x38] sm:$0xff] %v4351
      %4440 = vst [vmem:[#allocation2 + $0x40] sm:$0xff] %v4352
      %4441 = vst [vmem:[#allocation2 + $0x48] sm:$0xff] %v4353
      %4442 = vst [vmem:[#allocation2 + $0x50] sm:$0xff] %v4354
      %4443 = vst [vmem:[#allocation2 + $0x58] sm:$0xff] %v4355
      %4444 = vst [vmem:[#allocation2 + $0x60] sm:$0xff] %v4356
      %4445 = vst [vmem:[#allocation2 + $0x68] sm:$0xff] %v4357
      %4446 = vst [vmem:[#allocation2 + $0x70] sm:$0xff] %v4358
      %4447 = vst [vmem:[#allocation2 + $0x78] sm:$0xff] %v4359
      %4448 = vst [vmem:[#allocation2 + $0x80] sm:$0xff] %v4360
      %4449 = vst [vmem:[#allocation2 + $0x88] sm:$0xff] %v4361
      %4450 = vst [vmem:[#allocation2 + $0x90] sm:$0xff] %v4362
      %4451 = vst [vmem:[#allocation2 + $0x98] sm:$0xff] %v4363
      %4452 = vst [vmem:[#allocation2 + $0xa0] sm:$0xff] %v4364
      %4453 = vst [vmem:[#allocation2 + $0xa8] sm:$0xff] %v4365
      %4454 = vst [vmem:[#allocation2 + $0xb0] sm:$0xff] %v4366
      %4455 = vst [vmem:[#allocation2 + $0xb8] sm:$0xff] %v4367
      %4456 = vst [vmem:[#allocation2 + $0xc0] sm:$0xff] %v4368
      %4457 = vst [vmem:[#allocation2 + $0xc8] sm:$0xff] %v4369
      %4458 = vst [vmem:[#allocation2 + $0xd0] sm:$0xff] %v4370
      %4459 = vst [vmem:[#allocation2 + $0xd8] sm:$0xff] %v4371
      %4460 = vst [vmem:[#allocation2 + $0xe0] sm:$0xff] %v4372
      %4461 = vst [vmem:[#allocation2 + $0xe8] sm:$0xff] %v4373
      %4462 = vst [vmem:[#allocation2 + $0xf0] sm:$0xff] %v4374
      %4463 = vst [vmem:[#allocation2 + $0xf8] sm:$0xff] %v4375
      %4464 = vst [vmem:[#allocation2 + $0x100] sm:$0xff] %v4376
      %4465 = vst [vmem:[#allocation2 + $0x108] sm:$0xff] %v4377
      %4466 = vst [vmem:[#allocation2 + $0x110] sm:$0xff] %v4378
      %4467 = vst [vmem:[#allocation2 + $0x118] sm:$0xff] %v4379
      %4468 = vst [vmem:[#allocation2 + $0x120] sm:$0xff] %v4380
      %4469 = vst [vmem:[#allocation2 + $0x128] sm:$0xff] %v4381
      %4470 = vst [vmem:[#allocation2 + $0x130] sm:$0xff] %v4382
      %4471 = vst [vmem:[#allocation2 + $0x138] sm:$0xff] %v4383
      %4472 = vst [vmem:[#allocation2 + $0x140] sm:$0xff] %v4384
      %4473 = vst [vmem:[#allocation2 + $0x148] sm:$0xff] %v4385
      %4474 = vst [vmem:[#allocation2 + $0x150] sm:$0xff] %v4386
      %4475 = vst [vmem:[#allocation2 + $0x158] sm:$0xf] %v4387
      %v4476 = vld [vmem:[#allocation2 + $0x5] sm:$0xff]
      %v4477 = vld [vmem:[#allocation2 + $0xd] sm:$0xff]
      %v4478 = vld [vmem:[#allocation2 + $0x15] sm:$0xff]
      %v4479 = vld [vmem:[#allocation2 + $0x1d] sm:$0xff]
      %v4480 = vld [vmem:[#allocation2 + $0x25] sm:$0xff]
      %v4481 = vld [vmem:[#allocation2 + $0x2d] sm:$0xff]
      %v4482 = vld [vmem:[#allocation2 + $0x35] sm:$0xff]
      %v4483 = vld [vmem:[#allocation2 + $0x3d] sm:$0xff]
      %v4484 = vld [vmem:[#allocation2 + $0x45] sm:$0xff]
      %v4485 = vld [vmem:[#allocation2 + $0x4d] sm:$0xff]
      %v4486 = vld [vmem:[#allocation2 + $0x55] sm:$0xff]
      %v4487 = vld [vmem:[#allocation2 + $0x5d] sm:$0xff]
      %v4488 = vld [vmem:[#allocation2 + $0x65] sm:$0xff]
      %v4489 = vld [vmem:[#allocation2 + $0x6d] sm:$0xff]
      %v4490 = vld [vmem:[#allocation2 + $0x75] sm:$0xff]
      %v4491 = vld [vmem:[#allocation2 + $0x7d] sm:$0xff]
      %v4492 = vld [vmem:[#allocation2 + $0x85] sm:$0xff]
      %v4493 = vld [vmem:[#allocation2 + $0x8d] sm:$0xff]
      %v4494 = vld [vmem:[#allocation2 + $0x95] sm:$0xff]
      %v4495 = vld [vmem:[#allocation2 + $0x9d] sm:$0xff]
      %v4496 = vld [vmem:[#allocation2 + $0xa5] sm:$0xff]
      %v4497 = vld [vmem:[#allocation2 + $0xad] sm:$0xff]
      %v4498 = vld [vmem:[#allocation2 + $0xb5] sm:$0xff]
      %v4499 = vld [vmem:[#allocation2 + $0xbd] sm:$0xff]
      %v4500 = vld [vmem:[#allocation2 + $0xc5] sm:$0xff]
      %v4501 = vld [vmem:[#allocation2 + $0xcd] sm:$0xff]
      %v4502 = vld [vmem:[#allocation2 + $0xd5] sm:$0xff]
      %v4503 = vld [vmem:[#allocation2 + $0xdd] sm:$0xff]
      %v4504 = vld [vmem:[#allocation2 + $0xe5] sm:$0xff]
      %v4505 = vld [vmem:[#allocation2 + $0xed] sm:$0xff]
      %v4506 = vld [vmem:[#allocation2 + $0xf5] sm:$0xff]
      %v4507 = vld [vmem:[#allocation2 + $0xfd] sm:$0xff]
      %v4508 = vld [vmem:[#allocation2 + $0x105] sm:$0xff]
      %v4509 = vld [vmem:[#allocation2 + $0x10d] sm:$0xff]
      %v4510 = vld [vmem:[#allocation2 + $0x115] sm:$0xff]
      %v4511 = vld [vmem:[#allocation2 + $0x11d] sm:$0xff]
      %v4512 = vld [vmem:[#allocation2 + $0x125] sm:$0xff]
      %v4513 = vld [vmem:[#allocation2 + $0x12d] sm:$0xff]
      %v4514 = vld [vmem:[#allocation2 + $0x135] sm:$0xff]
      %v4515 = vld [vmem:[#allocation2 + $0x13d] sm:$0xff]
      %v4516 = vld [vmem:[#allocation2 + $0x145] sm:$0xf]
      %v4517 = vpack.c.bf16 %v4477, %v4476
      %v4518 = vpack.c.bf16 %v4479, %v4478
      %v4519 = vpack.c.bf16 %v4481, %v4480
      %v4520 = vpack.c.bf16 %v4483, %v4482
      %v4521 = vpack.c.bf16 %v4485, %v4484
      %v4522 = vpack.c.bf16 %v4487, %v4486
      %v4523 = vpack.c.bf16 %v4489, %v4488
      %v4524 = vpack.c.bf16 %v4491, %v4490
      %v4525 = vpack.c.bf16 %v4493, %v4492
      %v4526 = vpack.c.bf16 %v4495, %v4494
      %v4527 = vpack.c.bf16 %v4497, %v4496
      %v4528 = vpack.c.bf16 %v4499, %v4498
      %v4529 = vpack.c.bf16 %v4501, %v4500
      %v4530 = vpack.c.bf16 %v4503, %v4502
      %v4531 = vpack.c.bf16 %v4505, %v4504
      %v4532 = vpack.c.bf16 %v4507, %v4506
      %v4533 = vpack.c.bf16 %v4509, %v4508
      %v4534 = vpack.c.bf16 %v4511, %v4510
      %v4535 = vpack.c.bf16 %v4513, %v4512
      %v4536 = vpack.c.bf16 %v4515, %v4514
      %v4537 = vpack.c.bf16 %v4516, %v4516
      %v4538 = vld [vmem:[%s4] sm:$0xf]
      %v4539 = vld [vmem:[%s4 + $0x4] sm:$0xf]
      %v4540 = vld [vmem:[%s4 + $0x8] sm:$0xf]
      %v4541 = vld [vmem:[%s4 + $0xc] sm:$0xf]
      %v4542 = vld [vmem:[%s4 + $0x10] sm:$0xf]
      %v4543 = vld [vmem:[%s4 + $0x14] sm:$0xf]
      %v4544 = vld [vmem:[%s4 + $0x18] sm:$0xf]
      %v4545 = vld [vmem:[%s4 + $0x1c] sm:$0xf]
      %v4546 = vld [vmem:[%s4 + $0x20] sm:$0xf]
      %v4547 = vld [vmem:[%s4 + $0x24] sm:$0xf]
      %v4548 = vld [vmem:[%s4 + $0x28] sm:$0xf]
      %v4549 = vld [vmem:[%s4 + $0x2c] sm:$0xf]
      %v4550 = vld [vmem:[%s4 + $0x30] sm:$0xf]
      %v4551 = vld [vmem:[%s4 + $0x34] sm:$0xf]
      %v4552 = vld [vmem:[%s4 + $0x38] sm:$0xf]
      %v4553 = vld [vmem:[%s4 + $0x3c] sm:$0xf]
      %v4554 = vld [vmem:[#allocation2 + $0x6] sm:$0xff]
      %v4555 = vld [vmem:[#allocation2 + $0xe] sm:$0xff]
      %v4556 = vld [vmem:[#allocation2 + $0x16] sm:$0xff]
      %v4557 = vld [vmem:[#allocation2 + $0x1e] sm:$0xff]
      %v4558 = vld [vmem:[#allocation2 + $0x26] sm:$0xff]
      %v4559 = vld [vmem:[#allocation2 + $0x2e] sm:$0xff]
      %v4560 = vld [vmem:[#allocation2 + $0x36] sm:$0xff]
      %v4561 = vld [vmem:[#allocation2 + $0x3e] sm:$0xff]
      %v4562 = vld [vmem:[#allocation2 + $0x46] sm:$0xff]
      %v4563 = vld [vmem:[#allocation2 + $0x4e] sm:$0xff]
      %v4564 = vld [vmem:[#allocation2 + $0x56] sm:$0xff]
      %v4565 = vld [vmem:[#allocation2 + $0x5e] sm:$0xff]
      %v4566 = vld [vmem:[#allocation2 + $0x66] sm:$0xff]
      %v4567 = vld [vmem:[#allocation2 + $0x6e] sm:$0xff]
      %v4568 = vld [vmem:[#allocation2 + $0x76] sm:$0xff]
      %v4569 = vld [vmem:[#allocation2 + $0x7e] sm:$0xff]
      %v4570 = vld [vmem:[#allocation2 + $0x86] sm:$0xff]
      %v4571 = vld [vmem:[#allocation2 + $0x8e] sm:$0xff]
      %v4572 = vld [vmem:[#allocation2 + $0x96] sm:$0xff]
      %v4573 = vld [vmem:[#allocation2 + $0x9e] sm:$0xff]
      %v4574 = vld [vmem:[#allocation2 + $0xa6] sm:$0xff]
      %v4575 = vld [vmem:[#allocation2 + $0xae] sm:$0xff]
      %v4576 = vld [vmem:[#allocation2 + $0xb6] sm:$0xff]
      %v4577 = vld [vmem:[#allocation2 + $0xbe] sm:$0xff]
      %v4578 = vld [vmem:[#allocation2 + $0xc6] sm:$0xff]
      %v4579 = vld [vmem:[#allocation2 + $0xce] sm:$0xff]
      %v4580 = vld [vmem:[#allocation2 + $0xd6] sm:$0xff]
      %v4581 = vld [vmem:[#allocation2 + $0xde] sm:$0xff]
      %v4582 = vld [vmem:[#allocation2 + $0xe6] sm:$0xff]
      %v4583 = vld [vmem:[#allocation2 + $0xee] sm:$0xff]
      %v4584 = vld [vmem:[#allocation2 + $0xf6] sm:$0xff]
      %v4585 = vld [vmem:[#allocation2 + $0xfe] sm:$0xff]
      %v4586 = vld [vmem:[#allocation2 + $0x106] sm:$0xff]
      %v4587 = vld [vmem:[#allocation2 + $0x10e] sm:$0xff]
      %v4588 = vld [vmem:[#allocation2 + $0x116] sm:$0xff]
      %v4589 = vld [vmem:[#allocation2 + $0x11e] sm:$0xff]
      %v4590 = vld [vmem:[#allocation2 + $0x126] sm:$0xff]
      %v4591 = vld [vmem:[#allocation2 + $0x12e] sm:$0xff]
      %v4592 = vld [vmem:[#allocation2 + $0x136] sm:$0xff]
      %v4593 = vld [vmem:[#allocation2 + $0x13e] sm:$0xff]
      %v4594 = vld [vmem:[#allocation2 + $0x146] sm:$0xf]
      %v4595 = vpack.c.bf16 %v4555, %v4554
      %v4596 = vpack.c.bf16 %v4557, %v4556
      %v4597 = vpack.c.bf16 %v4559, %v4558
      %v4598 = vpack.c.bf16 %v4561, %v4560
      %v4599 = vpack.c.bf16 %v4563, %v4562
      %v4600 = vpack.c.bf16 %v4565, %v4564
      %v4601 = vpack.c.bf16 %v4567, %v4566
      %v4602 = vpack.c.bf16 %v4569, %v4568
      %v4603 = vpack.c.bf16 %v4571, %v4570
      %v4604 = vpack.c.bf16 %v4573, %v4572
      %v4605 = vpack.c.bf16 %v4575, %v4574
      %v4606 = vpack.c.bf16 %v4577, %v4576
      %v4607 = vpack.c.bf16 %v4579, %v4578
      %v4608 = vpack.c.bf16 %v4581, %v4580
      %v4609 = vpack.c.bf16 %v4583, %v4582
      %v4610 = vpack.c.bf16 %v4585, %v4584
      %v4611 = vpack.c.bf16 %v4587, %v4586
      %v4612 = vpack.c.bf16 %v4589, %v4588
      %v4613 = vpack.c.bf16 %v4591, %v4590
      %v4614 = vpack.c.bf16 %v4593, %v4592
      %v4615 = vpack.c.bf16 %v4594, %v4594
      %s4616 = scalar_lea.vmem %s4, 64
      %v4617 = vld [vmem:[%s4616] sm:$0xf]
      %v4618 = vld [vmem:[%s4616 + $0x4] sm:$0xf]
      %v4619 = vld [vmem:[%s4616 + $0x8] sm:$0xf]
      %v4620 = vld [vmem:[%s4616 + $0xc] sm:$0xf]
      %v4621 = vld [vmem:[%s4616 + $0x10] sm:$0xf]
      %v4622 = vld [vmem:[%s4616 + $0x14] sm:$0xf]
      %v4623 = vld [vmem:[%s4616 + $0x18] sm:$0xf]
      %v4624 = vld [vmem:[%s4616 + $0x1c] sm:$0xf]
      %v4625 = vld [vmem:[%s4616 + $0x20] sm:$0xf]
      %v4626 = vld [vmem:[%s4616 + $0x24] sm:$0xf]
      %v4627 = vld [vmem:[%s4616 + $0x28] sm:$0xf]
      %v4628 = vld [vmem:[%s4616 + $0x2c] sm:$0xf]
      %v4629 = vld [vmem:[%s4616 + $0x30] sm:$0xf]
      %v4630 = vld [vmem:[%s4616 + $0x34] sm:$0xf]
      %v4631 = vld [vmem:[%s4616 + $0x38] sm:$0xf]
      %v4632 = vld [vmem:[%s4616 + $0x3c] sm:$0xf]
      %v4649 = vunpack.c.l.b16 %v4617
      %v4650 = vunpack.c.l.b16 %v4618
      %v4651 = vunpack.c.l.b16 %v4619
      %v4652 = vunpack.c.l.b16 %v4620
      %v4653 = vunpack.c.l.b16 %v4621
      %v4654 = vunpack.c.l.b16 %v4622
      %v4655 = vunpack.c.l.b16 %v4623
      %v4656 = vunpack.c.l.b16 %v4624
      %v4657 = vunpack.c.l.b16 %v4625
      %v4658 = vunpack.c.l.b16 %v4626
      %v4659 = vunpack.c.l.b16 %v4627
      %v4660 = vunpack.c.l.b16 %v4628
      %v4661 = vunpack.c.l.b16 %v4629
      %v4662 = vunpack.c.l.b16 %v4630
      %v4663 = vunpack.c.l.b16 %v4631
      %v4664 = vunpack.c.l.b16 %v4632
      %v4665 = vpack.c.b16 %v4650, %v4649
      %v4666 = vpack.c.b16 %v4652, %v4651
      %v4667 = vpack.c.b16 %v4654, %v4653
      %v4668 = vpack.c.b16 %v4656, %v4655
      %v4669 = vpack.c.b16 %v4658, %v4657
      %v4670 = vpack.c.b16 %v4660, %v4659
      %v4671 = vpack.c.b16 %v4662, %v4661
      %v4672 = vpack.c.b16 %v4664, %v4663
      %4681 = vmatprep.subr.bf16.mxu0 0
      %4682 = vmatpush1.bf16.msra.mxu0 %v4672
      %4683 = vmatprep.subr.bf16.mxu0 0
      %4684 = vmatpush1.bf16.msra.mxu0 %v4671
      %4685 = vmatprep.subr.bf16.mxu0 0
      %4686 = vmatpush1.bf16.msra.mxu0 %v4670
      %4687 = vmatprep.subr.bf16.mxu0 0
      %4688 = vmatpush1.bf16.msra.mxu0 %v4669
      %4689 = vmatprep.subr.bf16.mxu0 0
      %4690 = vmatpush1.bf16.msra.mxu0 %v4668
      %4691 = vmatprep.subr.bf16.mxu0 0
      %4692 = vmatpush1.bf16.msra.mxu0 %v4667
      %4693 = vmatprep.subr.bf16.mxu0 0
      %4694 = vmatpush1.bf16.msra.mxu0 %v4666
      %4695 = vmatprep.subr.bf16.mxu0 0
      %4696 = vmatpush1.bf16.msra.mxu0 %v4665
      %4697 = vmatprep.subr.bf16.mxu0 0
      %4698 = vmatpush2.bf16.msra.mxu0 0
      %4699 = vmatprep.subr.bf16.mxu0 0
      %4700 = vmatpush2.bf16.msra.mxu0 0
      %4701 = vmatprep.subr.bf16.mxu0 0
      %4702 = vmatpush2.bf16.msra.mxu0 0
      %4703 = vmatprep.subr.bf16.mxu0 0
      %4704 = vmatpush2.bf16.msra.mxu0 0
      %4705 = vmatprep.subr.bf16.mxu0 0
      %4706 = vmatpush2.bf16.msra.mxu0 0
      %4707 = vmatprep.subr.bf16.mxu0 0
      %4708 = vmatpush2.bf16.msra.mxu0 0
      %4709 = vmatprep.subr.bf16.mxu0 0
      %4710 = vmatpush2.bf16.msra.mxu0 0
      %4711 = vmatprep.subr.bf16.mxu0 0
      %4712 = vmatpush2.bf16.msra.mxu0 0
      %4713 = vmatprep.mubr.bf16.mxu0 0
      %4714 = vmatmul.mubr.bf16.gmra.mxu0 %v4595
      %v4715 = vpop.f32.mrf.mxu0
      %v4716 = vadd.f32 0.0, %v4715
      %v4717 = vpop.f32.mrf.mxu0
      %v4718 = vpop.f32.mrf.mxu0
      %v4719 = vadd.f32 0.0, %v4718
      %v4720 = vpop.f32.mrf.mxu0
      %4721 = vmatprep.mubr.bf16.mxu0 0
      %4722 = vmatmul.mubr.bf16.gmra.mxu0 %v4596
      %v4723 = vpop.f32.mrf.mxu0
      %v4724 = vadd.f32 0.0, %v4723
      %v4725 = vpop.f32.mrf.mxu0
      %v4726 = vpop.f32.mrf.mxu0
      %v4727 = vadd.f32 0.0, %v4726
      %v4728 = vpop.f32.mrf.mxu0
      %4729 = vmatprep.mubr.bf16.mxu0 0
      %4730 = vmatmul.mubr.bf16.gmra.mxu0 %v4597
      %v4731 = vpop.f32.mrf.mxu0
      %v4732 = vadd.f32 0.0, %v4731
      %v4733 = vpop.f32.mrf.mxu0
      %v4734 = vpop.f32.mrf.mxu0
      %v4735 = vadd.f32 0.0, %v4734
      %v4736 = vpop.f32.mrf.mxu0
      %4737 = vmatprep.mubr.bf16.mxu0 0
      %4738 = vmatmul.mubr.bf16.gmra.mxu0 %v4598
      %v4739 = vpop.f32.mrf.mxu0
      %v4740 = vadd.f32 0.0, %v4739
      %v4741 = vpop.f32.mrf.mxu0
      %v4742 = vpop.f32.mrf.mxu0
      %v4743 = vadd.f32 0.0, %v4742
      %v4744 = vpop.f32.mrf.mxu0
      %4745 = vmatprep.mubr.bf16.mxu0 0
      %4746 = vmatmul.mubr.bf16.gmra.mxu0 %v4599
      %v4747 = vpop.f32.mrf.mxu0
      %v4748 = vadd.f32 0.0, %v4747
      %v4749 = vpop.f32.mrf.mxu0
      %v4750 = vpop.f32.mrf.mxu0
      %v4751 = vadd.f32 0.0, %v4750
      %v4752 = vpop.f32.mrf.mxu0
      %4753 = vmatprep.mubr.bf16.mxu0 0
      %4754 = vmatmul.mubr.bf16.gmra.mxu0 %v4600
      %v4755 = vpop.f32.mrf.mxu0
      %v4756 = vadd.f32 0.0, %v4755
      %v4757 = vpop.f32.mrf.mxu0
      %v4758 = vpop.f32.mrf.mxu0
      %v4759 = vadd.f32 0.0, %v4758
      %v4760 = vpop.f32.mrf.mxu0
      %4761 = vmatprep.mubr.bf16.mxu0 0
      %4762 = vmatmul.mubr.bf16.gmra.mxu0 %v4601
      %v4763 = vpop.f32.mrf.mxu0
      %v4764 = vadd.f32 0.0, %v4763
      %v4765 = vpop.f32.mrf.mxu0
      %v4766 = vpop.f32.mrf.mxu0
      %v4767 = vadd.f32 0.0, %v4766
      %v4768 = vpop.f32.mrf.mxu0
      %4769 = vmatprep.mubr.bf16.mxu0 0
      %4770 = vmatmul.mubr.bf16.gmra.mxu0 %v4602
      %v4771 = vpop.f32.mrf.mxu0
      %v4772 = vadd.f32 0.0, %v4771
      %v4773 = vpop.f32.mrf.mxu0
      %v4774 = vpop.f32.mrf.mxu0
      %v4775 = vadd.f32 0.0, %v4774
      %v4776 = vpop.f32.mrf.mxu0
      %4777 = vmatprep.mubr.bf16.mxu0 0
      %4778 = vmatmul.mubr.bf16.gmra.mxu0 %v4603
      %v4779 = vpop.f32.mrf.mxu0
      %v4780 = vadd.f32 0.0, %v4779
      %v4781 = vpop.f32.mrf.mxu0
      %v4782 = vpop.f32.mrf.mxu0
      %v4783 = vadd.f32 0.0, %v4782
      %v4784 = vpop.f32.mrf.mxu0
      %4785 = vmatprep.mubr.bf16.mxu0 0
      %4786 = vmatmul.mubr.bf16.gmra.mxu0 %v4604
      %v4787 = vpop.f32.mrf.mxu0
      %v4788 = vadd.f32 0.0, %v4787
      %v4789 = vpop.f32.mrf.mxu0
      %v4790 = vpop.f32.mrf.mxu0
      %v4791 = vadd.f32 0.0, %v4790
      %v4792 = vpop.f32.mrf.mxu0
      %4793 = vmatprep.mubr.bf16.mxu0 0
      %4794 = vmatmul.mubr.bf16.gmra.mxu0 %v4605
      %v4795 = vpop.f32.mrf.mxu0
      %v4796 = vadd.f32 0.0, %v4795
      %v4797 = vpop.f32.mrf.mxu0
      %v4798 = vpop.f32.mrf.mxu0
      %v4799 = vadd.f32 0.0, %v4798
      %v4800 = vpop.f32.mrf.mxu0
      %4801 = vmatprep.mubr.bf16.mxu0 0
      %4802 = vmatmul.mubr.bf16.gmra.mxu0 %v4606
      %v4803 = vpop.f32.mrf.mxu0
      %v4804 = vadd.f32 0.0, %v4803
      %v4805 = vpop.f32.mrf.mxu0
      %v4806 = vpop.f32.mrf.mxu0
      %v4807 = vadd.f32 0.0, %v4806
      %v4808 = vpop.f32.mrf.mxu0
      %4809 = vmatprep.mubr.bf16.mxu0 0
      %4810 = vmatmul.mubr.bf16.gmra.mxu0 %v4607
      %v4811 = vpop.f32.mrf.mxu0
      %v4812 = vadd.f32 0.0, %v4811
      %v4813 = vpop.f32.mrf.mxu0
      %v4814 = vpop.f32.mrf.mxu0
      %v4815 = vadd.f32 0.0, %v4814
      %v4816 = vpop.f32.mrf.mxu0
      %4817 = vmatprep.mubr.bf16.mxu0 0
      %4818 = vmatmul.mubr.bf16.gmra.mxu0 %v4608
      %v4819 = vpop.f32.mrf.mxu0
      %v4820 = vadd.f32 0.0, %v4819
      %v4821 = vpop.f32.mrf.mxu0
      %v4822 = vpop.f32.mrf.mxu0
      %v4823 = vadd.f32 0.0, %v4822
      %v4824 = vpop.f32.mrf.mxu0
      %4825 = vmatprep.mubr.bf16.mxu0 0
      %4826 = vmatmul.mubr.bf16.gmra.mxu0 %v4609
      %v4827 = vpop.f32.mrf.mxu0
      %v4828 = vadd.f32 0.0, %v4827
      %v4829 = vpop.f32.mrf.mxu0
      %v4830 = vpop.f32.mrf.mxu0
      %v4831 = vadd.f32 0.0, %v4830
      %v4832 = vpop.f32.mrf.mxu0
      %4833 = vmatprep.mubr.bf16.mxu0 0
      %4834 = vmatmul.mubr.bf16.gmra.mxu0 %v4610
      %v4835 = vpop.f32.mrf.mxu0
      %v4836 = vadd.f32 0.0, %v4835
      %v4837 = vpop.f32.mrf.mxu0
      %v4838 = vpop.f32.mrf.mxu0
      %v4839 = vadd.f32 0.0, %v4838
      %v4840 = vpop.f32.mrf.mxu0
      %4841 = vmatprep.mubr.bf16.mxu0 0
      %4842 = vmatmul.mubr.bf16.gmra.mxu0 %v4611
      %v4843 = vpop.f32.mrf.mxu0
      %v4844 = vadd.f32 0.0, %v4843
      %v4845 = vpop.f32.mrf.mxu0
      %v4846 = vpop.f32.mrf.mxu0
      %v4847 = vadd.f32 0.0, %v4846
      %v4848 = vpop.f32.mrf.mxu0
      %4849 = vmatprep.mubr.bf16.mxu0 0
      %4850 = vmatmul.mubr.bf16.gmra.mxu0 %v4612
      %v4851 = vpop.f32.mrf.mxu0
      %v4852 = vadd.f32 0.0, %v4851
      %v4853 = vpop.f32.mrf.mxu0
      %v4854 = vpop.f32.mrf.mxu0
      %v4855 = vadd.f32 0.0, %v4854
      %v4856 = vpop.f32.mrf.mxu0
      %4857 = vmatprep.mubr.bf16.mxu0 0
      %4858 = vmatmul.mubr.bf16.gmra.mxu0 %v4613
      %v4859 = vpop.f32.mrf.mxu0
      %v4860 = vadd.f32 0.0, %v4859
      %v4861 = vpop.f32.mrf.mxu0
      %v4862 = vpop.f32.mrf.mxu0
      %v4863 = vadd.f32 0.0, %v4862
      %v4864 = vpop.f32.mrf.mxu0
      %4865 = vmatprep.mubr.bf16.mxu0 0
      %4866 = vmatmul.mubr.bf16.gmra.mxu0 %v4614
      %v4867 = vpop.f32.mrf.mxu0
      %v4868 = vadd.f32 0.0, %v4867
      %v4869 = vpop.f32.mrf.mxu0
      %v4870 = vpop.f32.mrf.mxu0
      %v4871 = vadd.f32 0.0, %v4870
      %v4872 = vpop.f32.mrf.mxu0
      %4873 = vmatprep.mubr.bf16.mxu0 0
      %4874 = vmatmul.mubr.bf16.gmra.mxu0 %v4615
      %v4875 = vpop.f32.mrf.mxu0
      %v4876 = vadd.f32 0.0, %v4875
      %v4877 = vpop.f32.mrf.mxu0
      %v4878 = vpop.f32.mrf.mxu0
      %v4879 = vpop.f32.mrf.mxu0
      %4880 = vdwg.mxu0
      %v4897 = vunpack.c.l.b16 %v4538
      %v4898 = vunpack.c.l.b16 %v4539
      %v4899 = vunpack.c.l.b16 %v4540
      %v4900 = vunpack.c.l.b16 %v4541
      %v4901 = vunpack.c.l.b16 %v4542
      %v4902 = vunpack.c.l.b16 %v4543
      %v4903 = vunpack.c.l.b16 %v4544
      %v4904 = vunpack.c.l.b16 %v4545
      %v4905 = vunpack.c.l.b16 %v4546
      %v4906 = vunpack.c.l.b16 %v4547
      %v4907 = vunpack.c.l.b16 %v4548
      %v4908 = vunpack.c.l.b16 %v4549
      %v4909 = vunpack.c.l.b16 %v4550
      %v4910 = vunpack.c.l.b16 %v4551
      %v4911 = vunpack.c.l.b16 %v4552
      %v4912 = vunpack.c.l.b16 %v4553
      %v4913 = vpack.c.b16 %v4898, %v4897
      %v4914 = vpack.c.b16 %v4900, %v4899
      %v4915 = vpack.c.b16 %v4902, %v4901
      %v4916 = vpack.c.b16 %v4904, %v4903
      %v4917 = vpack.c.b16 %v4906, %v4905
      %v4918 = vpack.c.b16 %v4908, %v4907
      %v4919 = vpack.c.b16 %v4910, %v4909
      %v4920 = vpack.c.b16 %v4912, %v4911
      %4929 = vmatprep.subr.bf16.mxu0 0
      %4930 = vmatpush1.bf16.msra.mxu0 %v4920
      %4931 = vmatprep.subr.bf16.mxu0 0
      %4932 = vmatpush1.bf16.msra.mxu0 %v4919
      %4933 = vmatprep.subr.bf16.mxu0 0
      %4934 = vmatpush1.bf16.msra.mxu0 %v4918
      %4935 = vmatprep.subr.bf16.mxu0 0
      %4936 = vmatpush1.bf16.msra.mxu0 %v4917
      %4937 = vmatprep.subr.bf16.mxu0 0
      %4938 = vmatpush1.bf16.msra.mxu0 %v4916
      %4939 = vmatprep.subr.bf16.mxu0 0
      %4940 = vmatpush1.bf16.msra.mxu0 %v4915
      %4941 = vmatprep.subr.bf16.mxu0 0
      %4942 = vmatpush1.bf16.msra.mxu0 %v4914
      %4943 = vmatprep.subr.bf16.mxu0 0
      %4944 = vmatpush1.bf16.msra.mxu0 %v4913
      %4945 = vmatprep.subr.bf16.mxu0 0
      %4946 = vmatpush2.bf16.msra.mxu0 0
      %4947 = vmatprep.subr.bf16.mxu0 0
      %4948 = vmatpush2.bf16.msra.mxu0 0
      %4949 = vmatprep.subr.bf16.mxu0 0
      %4950 = vmatpush2.bf16.msra.mxu0 0
      %4951 = vmatprep.subr.bf16.mxu0 0
      %4952 = vmatpush2.bf16.msra.mxu0 0
      %4953 = vmatprep.subr.bf16.mxu0 0
      %4954 = vmatpush2.bf16.msra.mxu0 0
      %4955 = vmatprep.subr.bf16.mxu0 0
      %4956 = vmatpush2.bf16.msra.mxu0 0
      %4957 = vmatprep.subr.bf16.mxu0 0
      %4958 = vmatpush2.bf16.msra.mxu0 0
      %4959 = vmatprep.subr.bf16.mxu0 0
      %4960 = vmatpush2.bf16.msra.mxu0 0
      %4961 = vmatprep.mubr.bf16.mxu0 0
      %4962 = vmatmul.mubr.bf16.gmra.mxu0 %v4517
      %v4963 = vpop.f32.mrf.mxu0
      %v4964 = vadd.f32 %v4716, %v4963
      %v4965 = vpop.f32.mrf.mxu0
      %v4966 = vpop.f32.mrf.mxu0
      %v4967 = vadd.f32 %v4719, %v4966
      %v4968 = vpop.f32.mrf.mxu0
      %4969 = vmatprep.mubr.bf16.mxu0 0
      %4970 = vmatmul.mubr.bf16.gmra.mxu0 %v4518
      %v4971 = vpop.f32.mrf.mxu0
      %v4972 = vadd.f32 %v4724, %v4971
      %v4973 = vpop.f32.mrf.mxu0
      %v4974 = vpop.f32.mrf.mxu0
      %v4975 = vadd.f32 %v4727, %v4974
      %v4976 = vpop.f32.mrf.mxu0
      %4977 = vmatprep.mubr.bf16.mxu0 0
      %4978 = vmatmul.mubr.bf16.gmra.mxu0 %v4519
      %v4979 = vpop.f32.mrf.mxu0
      %v4980 = vadd.f32 %v4732, %v4979
      %v4981 = vpop.f32.mrf.mxu0
      %v4982 = vpop.f32.mrf.mxu0
      %v4983 = vadd.f32 %v4735, %v4982
      %v4984 = vpop.f32.mrf.mxu0
      %4985 = vmatprep.mubr.bf16.mxu0 0
      %4986 = vmatmul.mubr.bf16.gmra.mxu0 %v4520
      %v4987 = vpop.f32.mrf.mxu0
      %v4988 = vadd.f32 %v4740, %v4987
      %v4989 = vpop.f32.mrf.mxu0
      %v4990 = vpop.f32.mrf.mxu0
      %v4991 = vadd.f32 %v4743, %v4990
      %v4992 = vpop.f32.mrf.mxu0
      %4993 = vmatprep.mubr.bf16.mxu0 0
      %4994 = vmatmul.mubr.bf16.gmra.mxu0 %v4521
      %v4995 = vpop.f32.mrf.mxu0
      %v4996 = vadd.f32 %v4748, %v4995
      %v4997 = vpop.f32.mrf.mxu0
      %v4998 = vpop.f32.mrf.mxu0
      %v4999 = vadd.f32 %v4751, %v4998
      %v5000 = vpop.f32.mrf.mxu0
      %5001 = vmatprep.mubr.bf16.mxu0 0
      %5002 = vmatmul.mubr.bf16.gmra.mxu0 %v4522
      %v5003 = vpop.f32.mrf.mxu0
      %v5004 = vadd.f32 %v4756, %v5003
      %v5005 = vpop.f32.mrf.mxu0
      %v5006 = vpop.f32.mrf.mxu0
      %v5007 = vadd.f32 %v4759, %v5006
      %v5008 = vpop.f32.mrf.mxu0
      %5009 = vmatprep.mubr.bf16.mxu0 0
      %5010 = vmatmul.mubr.bf16.gmra.mxu0 %v4523
      %v5011 = vpop.f32.mrf.mxu0
      %v5012 = vadd.f32 %v4764, %v5011
      %v5013 = vpop.f32.mrf.mxu0
      %v5014 = vpop.f32.mrf.mxu0
      %v5015 = vadd.f32 %v4767, %v5014
      %v5016 = vpop.f32.mrf.mxu0
      %5017 = vmatprep.mubr.bf16.mxu0 0
      %5018 = vmatmul.mubr.bf16.gmra.mxu0 %v4524
      %v5019 = vpop.f32.mrf.mxu0
      %v5020 = vadd.f32 %v4772, %v5019
      %v5021 = vpop.f32.mrf.mxu0
      %v5022 = vpop.f32.mrf.mxu0
      %v5023 = vadd.f32 %v4775, %v5022
      %v5024 = vpop.f32.mrf.mxu0
      %5025 = vmatprep.mubr.bf16.mxu0 0
      %5026 = vmatmul.mubr.bf16.gmra.mxu0 %v4525
      %v5027 = vpop.f32.mrf.mxu0
      %v5028 = vadd.f32 %v4780, %v5027
      %v5029 = vpop.f32.mrf.mxu0
      %v5030 = vpop.f32.mrf.mxu0
      %v5031 = vadd.f32 %v4783, %v5030
      %v5032 = vpop.f32.mrf.mxu0
      %5033 = vmatprep.mubr.bf16.mxu0 0
      %5034 = vmatmul.mubr.bf16.gmra.mxu0 %v4526
      %v5035 = vpop.f32.mrf.mxu0
      %v5036 = vadd.f32 %v4788, %v5035
      %v5037 = vpop.f32.mrf.mxu0
      %v5038 = vpop.f32.mrf.mxu0
      %v5039 = vadd.f32 %v4791, %v5038
      %v5040 = vpop.f32.mrf.mxu0
      %5041 = vmatprep.mubr.bf16.mxu0 0
      %5042 = vmatmul.mubr.bf16.gmra.mxu0 %v4527
      %v5043 = vpop.f32.mrf.mxu0
      %v5044 = vadd.f32 %v4796, %v5043
      %v5045 = vpop.f32.mrf.mxu0
      %v5046 = vpop.f32.mrf.mxu0
      %v5047 = vadd.f32 %v4799, %v5046
      %v5048 = vpop.f32.mrf.mxu0
      %5049 = vmatprep.mubr.bf16.mxu0 0
      %5050 = vmatmul.mubr.bf16.gmra.mxu0 %v4528
      %v5051 = vpop.f32.mrf.mxu0
      %v5052 = vadd.f32 %v4804, %v5051
      %v5053 = vpop.f32.mrf.mxu0
      %v5054 = vpop.f32.mrf.mxu0
      %v5055 = vadd.f32 %v4807, %v5054
      %v5056 = vpop.f32.mrf.mxu0
      %5057 = vmatprep.mubr.bf16.mxu0 0
      %5058 = vmatmul.mubr.bf16.gmra.mxu0 %v4529
      %v5059 = vpop.f32.mrf.mxu0
      %v5060 = vadd.f32 %v4812, %v5059
      %v5061 = vpop.f32.mrf.mxu0
      %v5062 = vpop.f32.mrf.mxu0
      %v5063 = vadd.f32 %v4815, %v5062
      %v5064 = vpop.f32.mrf.mxu0
      %5065 = vmatprep.mubr.bf16.mxu0 0
      %5066 = vmatmul.mubr.bf16.gmra.mxu0 %v4530
      %v5067 = vpop.f32.mrf.mxu0
      %v5068 = vadd.f32 %v4820, %v5067
      %v5069 = vpop.f32.mrf.mxu0
      %v5070 = vpop.f32.mrf.mxu0
      %v5071 = vadd.f32 %v4823, %v5070
      %v5072 = vpop.f32.mrf.mxu0
      %5073 = vmatprep.mubr.bf16.mxu0 0
      %5074 = vmatmul.mubr.bf16.gmra.mxu0 %v4531
      %v5075 = vpop.f32.mrf.mxu0
      %v5076 = vadd.f32 %v4828, %v5075
      %v5077 = vpop.f32.mrf.mxu0
      %v5078 = vpop.f32.mrf.mxu0
      %v5079 = vadd.f32 %v4831, %v5078
      %v5080 = vpop.f32.mrf.mxu0
      %5081 = vmatprep.mubr.bf16.mxu0 0
      %5082 = vmatmul.mubr.bf16.gmra.mxu0 %v4532
      %v5083 = vpop.f32.mrf.mxu0
      %v5084 = vadd.f32 %v4836, %v5083
      %v5085 = vpop.f32.mrf.mxu0
      %v5086 = vpop.f32.mrf.mxu0
      %v5087 = vadd.f32 %v4839, %v5086
      %v5088 = vpop.f32.mrf.mxu0
      %5089 = vmatprep.mubr.bf16.mxu0 0
      %5090 = vmatmul.mubr.bf16.gmra.mxu0 %v4533
      %v5091 = vpop.f32.mrf.mxu0
      %v5092 = vadd.f32 %v4844, %v5091
      %v5093 = vpop.f32.mrf.mxu0
      %v5094 = vpop.f32.mrf.mxu0
      %v5095 = vadd.f32 %v4847, %v5094
      %v5096 = vpop.f32.mrf.mxu0
      %5097 = vmatprep.mubr.bf16.mxu0 0
      %5098 = vmatmul.mubr.bf16.gmra.mxu0 %v4534
      %v5099 = vpop.f32.mrf.mxu0
      %v5100 = vadd.f32 %v4852, %v5099
      %v5101 = vpop.f32.mrf.mxu0
      %v5102 = vpop.f32.mrf.mxu0
      %v5103 = vadd.f32 %v4855, %v5102
      %v5104 = vpop.f32.mrf.mxu0
      %5105 = vmatprep.mubr.bf16.mxu0 0
      %5106 = vmatmul.mubr.bf16.gmra.mxu0 %v4535
      %v5107 = vpop.f32.mrf.mxu0
      %v5108 = vadd.f32 %v4860, %v5107
      %v5109 = vpop.f32.mrf.mxu0
      %v5110 = vpop.f32.mrf.mxu0
      %v5111 = vadd.f32 %v4863, %v5110
      %v5112 = vpop.f32.mrf.mxu0
      %5113 = vmatprep.mubr.bf16.mxu0 0
      %5114 = vmatmul.mubr.bf16.gmra.mxu0 %v4536
      %v5115 = vpop.f32.mrf.mxu0
      %v5116 = vadd.f32 %v4868, %v5115
      %v5117 = vpop.f32.mrf.mxu0
      %v5118 = vpop.f32.mrf.mxu0
      %v5119 = vadd.f32 %v4871, %v5118
      %v5120 = vpop.f32.mrf.mxu0
      %5121 = vmatprep.mubr.bf16.mxu0 0
      %5122 = vmatmul.mubr.bf16.gmra.mxu0 %v4537
      %v5123 = vpop.f32.mrf.mxu0
      %v5124 = vadd.f32 %v4876, %v5123
      %v5125 = vpop.f32.mrf.mxu0
      %v5126 = vpop.f32.mrf.mxu0
      %v5127 = vpop.f32.mrf.mxu0
      %5128 = vdwg.mxu0
      %v5129 = vld [vmem:[#allocation2 + $0x7] sm:$0xff]
      %v5130 = vld [vmem:[#allocation2 + $0xf] sm:$0xff]
      %v5131 = vld [vmem:[#allocation2 + $0x17] sm:$0xff]
      %v5132 = vld [vmem:[#allocation2 + $0x1f] sm:$0xff]
      %v5133 = vld [vmem:[#allocation2 + $0x27] sm:$0xff]
      %v5134 = vld [vmem:[#allocation2 + $0x2f] sm:$0xff]
      %v5135 = vld [vmem:[#allocation2 + $0x37] sm:$0xff]
      %v5136 = vld [vmem:[#allocation2 + $0x3f] sm:$0xff]
      %v5137 = vld [vmem:[#allocation2 + $0x47] sm:$0xff]
      %v5138 = vld [vmem:[#allocation2 + $0x4f] sm:$0xff]
      %v5139 = vld [vmem:[#allocation2 + $0x57] sm:$0xff]
      %v5140 = vld [vmem:[#allocation2 + $0x5f] sm:$0xff]
      %v5141 = vld [vmem:[#allocation2 + $0x67] sm:$0xff]
      %v5142 = vld [vmem:[#allocation2 + $0x6f] sm:$0xff]
      %v5143 = vld [vmem:[#allocation2 + $0x77] sm:$0xff]
      %v5144 = vld [vmem:[#allocation2 + $0x7f] sm:$0xff]
      %v5145 = vld [vmem:[#allocation2 + $0x87] sm:$0xff]
      %v5146 = vld [vmem:[#allocation2 + $0x8f] sm:$0xff]
      %v5147 = vld [vmem:[#allocation2 + $0x97] sm:$0xff]
      %v5148 = vld [vmem:[#allocation2 + $0x9f] sm:$0xff]
      %v5149 = vld [vmem:[#allocation2 + $0xa7] sm:$0xff]
      %v5150 = vld [vmem:[#allocation2 + $0xaf] sm:$0xff]
      %v5151 = vld [vmem:[#allocation2 + $0xb7] sm:$0xff]
      %v5152 = vld [vmem:[#allocation2 + $0xbf] sm:$0xff]
      %v5153 = vld [vmem:[#allocation2 + $0xc7] sm:$0xff]
      %v5154 = vld [vmem:[#allocation2 + $0xcf] sm:$0xff]
      %v5155 = vld [vmem:[#allocation2 + $0xd7] sm:$0xff]
      %v5156 = vld [vmem:[#allocation2 + $0xdf] sm:$0xff]
      %v5157 = vld [vmem:[#allocation2 + $0xe7] sm:$0xff]
      %v5158 = vld [vmem:[#allocation2 + $0xef] sm:$0xff]
      %v5159 = vld [vmem:[#allocation2 + $0xf7] sm:$0xff]
      %v5160 = vld [vmem:[#allocation2 + $0xff] sm:$0xff]
      %v5161 = vld [vmem:[#allocation2 + $0x107] sm:$0xff]
      %v5162 = vld [vmem:[#allocation2 + $0x10f] sm:$0xff]
      %v5163 = vld [vmem:[#allocation2 + $0x117] sm:$0xff]
      %v5164 = vld [vmem:[#allocation2 + $0x11f] sm:$0xff]
      %v5165 = vld [vmem:[#allocation2 + $0x127] sm:$0xff]
      %v5166 = vld [vmem:[#allocation2 + $0x12f] sm:$0xff]
      %v5167 = vld [vmem:[#allocation2 + $0x137] sm:$0xff]
      %v5168 = vld [vmem:[#allocation2 + $0x13f] sm:$0xff]
      %v5169 = vld [vmem:[#allocation2 + $0x147] sm:$0xf]
      %v5170 = vpack.c.bf16 %v5130, %v5129
      %v5171 = vpack.c.bf16 %v5132, %v5131
      %v5172 = vpack.c.bf16 %v5134, %v5133
      %v5173 = vpack.c.bf16 %v5136, %v5135
      %v5174 = vpack.c.bf16 %v5138, %v5137
      %v5175 = vpack.c.bf16 %v5140, %v5139
      %v5176 = vpack.c.bf16 %v5142, %v5141
      %v5177 = vpack.c.bf16 %v5144, %v5143
      %v5178 = vpack.c.bf16 %v5146, %v5145
      %v5179 = vpack.c.bf16 %v5148, %v5147
      %v5180 = vpack.c.bf16 %v5150, %v5149
      %v5181 = vpack.c.bf16 %v5152, %v5151
      %v5182 = vpack.c.bf16 %v5154, %v5153
      %v5183 = vpack.c.bf16 %v5156, %v5155
      %v5184 = vpack.c.bf16 %v5158, %v5157
      %v5185 = vpack.c.bf16 %v5160, %v5159
      %v5186 = vpack.c.bf16 %v5162, %v5161
      %v5187 = vpack.c.bf16 %v5164, %v5163
      %v5188 = vpack.c.bf16 %v5166, %v5165
      %v5189 = vpack.c.bf16 %v5168, %v5167
      %v5190 = vpack.c.bf16 %v5169, %v5169
      %s5191 = scalar_lea.vmem %s4, 128
      %v5192 = vld [vmem:[%s5191] sm:$0xf]
      %v5193 = vld [vmem:[%s5191 + $0x4] sm:$0xf]
      %v5194 = vld [vmem:[%s5191 + $0x8] sm:$0xf]
      %v5195 = vld [vmem:[%s5191 + $0xc] sm:$0xf]
      %v5196 = vld [vmem:[%s5191 + $0x10] sm:$0xf]
      %v5197 = vld [vmem:[%s5191 + $0x14] sm:$0xf]
      %v5198 = vld [vmem:[%s5191 + $0x18] sm:$0xf]
      %v5199 = vld [vmem:[%s5191 + $0x1c] sm:$0xf]
      %v5200 = vld [vmem:[%s5191 + $0x20] sm:$0xf]
      %v5201 = vld [vmem:[%s5191 + $0x24] sm:$0xf]
      %v5202 = vld [vmem:[%s5191 + $0x28] sm:$0xf]
      %v5203 = vld [vmem:[%s5191 + $0x2c] sm:$0xf]
      %v5204 = vld [vmem:[%s5191 + $0x30] sm:$0xf]
      %v5205 = vld [vmem:[%s5191 + $0x34] sm:$0xf]
      %v5206 = vld [vmem:[%s5191 + $0x38] sm:$0xf]
      %v5207 = vld [vmem:[%s5191 + $0x3c] sm:$0xf]
      %v5224 = vunpack.c.l.b16 %v5192
      %v5225 = vunpack.c.l.b16 %v5193
      %v5226 = vunpack.c.l.b16 %v5194
      %v5227 = vunpack.c.l.b16 %v5195
      %v5228 = vunpack.c.l.b16 %v5196
      %v5229 = vunpack.c.l.b16 %v5197
      %v5230 = vunpack.c.l.b16 %v5198
      %v5231 = vunpack.c.l.b16 %v5199
      %v5232 = vunpack.c.l.b16 %v5200
      %v5233 = vunpack.c.l.b16 %v5201
      %v5234 = vunpack.c.l.b16 %v5202
      %v5235 = vunpack.c.l.b16 %v5203
      %v5236 = vunpack.c.l.b16 %v5204
      %v5237 = vunpack.c.l.b16 %v5205
      %v5238 = vunpack.c.l.b16 %v5206
      %v5239 = vunpack.c.l.b16 %v5207
      %v5240 = vpack.c.b16 %v5225, %v5224
      %v5241 = vpack.c.b16 %v5227, %v5226
      %v5242 = vpack.c.b16 %v5229, %v5228
      %v5243 = vpack.c.b16 %v5231, %v5230
      %v5244 = vpack.c.b16 %v5233, %v5232
      %v5245 = vpack.c.b16 %v5235, %v5234
      %v5246 = vpack.c.b16 %v5237, %v5236
      %v5247 = vpack.c.b16 %v5239, %v5238
      %5256 = vmatprep.subr.bf16.mxu0 0
      %5257 = vmatpush1.bf16.msra.mxu0 %v5247
      %5258 = vmatprep.subr.bf16.mxu0 0
      %5259 = vmatpush1.bf16.msra.mxu0 %v5246
      %5260 = vmatprep.subr.bf16.mxu0 0
      %5261 = vmatpush1.bf16.msra.mxu0 %v5245
      %5262 = vmatprep.subr.bf16.mxu0 0
      %5263 = vmatpush1.bf16.msra.mxu0 %v5244
      %5264 = vmatprep.subr.bf16.mxu0 0
      %5265 = vmatpush1.bf16.msra.mxu0 %v5243
      %5266 = vmatprep.subr.bf16.mxu0 0
      %5267 = vmatpush1.bf16.msra.mxu0 %v5242
      %5268 = vmatprep.subr.bf16.mxu0 0
      %5269 = vmatpush1.bf16.msra.mxu0 %v5241
      %5270 = vmatprep.subr.bf16.mxu0 0
      %5271 = vmatpush1.bf16.msra.mxu0 %v5240
      %5272 = vmatprep.subr.bf16.mxu0 0
      %5273 = vmatpush2.bf16.msra.mxu0 0
      %5274 = vmatprep.subr.bf16.mxu0 0
      %5275 = vmatpush2.bf16.msra.mxu0 0
      %5276 = vmatprep.subr.bf16.mxu0 0
      %5277 = vmatpush2.bf16.msra.mxu0 0
      %5278 = vmatprep.subr.bf16.mxu0 0
      %5279 = vmatpush2.bf16.msra.mxu0 0
      %5280 = vmatprep.subr.bf16.mxu0 0
      %5281 = vmatpush2.bf16.msra.mxu0 0
      %5282 = vmatprep.subr.bf16.mxu0 0
      %5283 = vmatpush2.bf16.msra.mxu0 0
      %5284 = vmatprep.subr.bf16.mxu0 0
      %5285 = vmatpush2.bf16.msra.mxu0 0
      %5286 = vmatprep.subr.bf16.mxu0 0
      %5287 = vmatpush2.bf16.msra.mxu0 0
      %5288 = vmatprep.mubr.bf16.mxu0 0
      %5289 = vmatmul.mubr.bf16.gmra.mxu0 %v5170
      %v5290 = vpop.f32.mrf.mxu0
      %v5291 = vadd.f32 0.0, %v5290
      %v5292 = vpop.f32.mrf.mxu0
      %v5293 = vpop.f32.mrf.mxu0
      %v5294 = vadd.f32 0.0, %v5293
      %v5295 = vpop.f32.mrf.mxu0
      %5296 = vmatprep.mubr.bf16.mxu0 0
      %5297 = vmatmul.mubr.bf16.gmra.mxu0 %v5171
      %v5298 = vpop.f32.mrf.mxu0
      %v5299 = vadd.f32 0.0, %v5298
      %v5300 = vpop.f32.mrf.mxu0
      %v5301 = vpop.f32.mrf.mxu0
      %v5302 = vadd.f32 0.0, %v5301
      %v5303 = vpop.f32.mrf.mxu0
      %5304 = vmatprep.mubr.bf16.mxu0 0
      %5305 = vmatmul.mubr.bf16.gmra.mxu0 %v5172
      %v5306 = vpop.f32.mrf.mxu0
      %v5307 = vadd.f32 0.0, %v5306
      %v5308 = vpop.f32.mrf.mxu0
      %v5309 = vpop.f32.mrf.mxu0
      %v5310 = vadd.f32 0.0, %v5309
      %v5311 = vpop.f32.mrf.mxu0
      %5312 = vmatprep.mubr.bf16.mxu0 0
      %5313 = vmatmul.mubr.bf16.gmra.mxu0 %v5173
      %v5314 = vpop.f32.mrf.mxu0
      %v5315 = vadd.f32 0.0, %v5314
      %v5316 = vpop.f32.mrf.mxu0
      %v5317 = vpop.f32.mrf.mxu0
      %v5318 = vadd.f32 0.0, %v5317
      %v5319 = vpop.f32.mrf.mxu0
      %5320 = vmatprep.mubr.bf16.mxu0 0
      %5321 = vmatmul.mubr.bf16.gmra.mxu0 %v5174
      %v5322 = vpop.f32.mrf.mxu0
      %v5323 = vadd.f32 0.0, %v5322
      %v5324 = vpop.f32.mrf.mxu0
      %v5325 = vpop.f32.mrf.mxu0
      %v5326 = vadd.f32 0.0, %v5325
      %v5327 = vpop.f32.mrf.mxu0
      %5328 = vmatprep.mubr.bf16.mxu0 0
      %5329 = vmatmul.mubr.bf16.gmra.mxu0 %v5175
      %v5330 = vpop.f32.mrf.mxu0
      %v5331 = vadd.f32 0.0, %v5330
      %v5332 = vpop.f32.mrf.mxu0
      %v5333 = vpop.f32.mrf.mxu0
      %v5334 = vadd.f32 0.0, %v5333
      %v5335 = vpop.f32.mrf.mxu0
      %5336 = vmatprep.mubr.bf16.mxu0 0
      %5337 = vmatmul.mubr.bf16.gmra.mxu0 %v5176
      %v5338 = vpop.f32.mrf.mxu0
      %v5339 = vadd.f32 0.0, %v5338
      %v5340 = vpop.f32.mrf.mxu0
      %v5341 = vpop.f32.mrf.mxu0
      %v5342 = vadd.f32 0.0, %v5341
      %v5343 = vpop.f32.mrf.mxu0
      %5344 = vmatprep.mubr.bf16.mxu0 0
      %5345 = vmatmul.mubr.bf16.gmra.mxu0 %v5177
      %v5346 = vpop.f32.mrf.mxu0
      %v5347 = vadd.f32 0.0, %v5346
      %v5348 = vpop.f32.mrf.mxu0
      %v5349 = vpop.f32.mrf.mxu0
      %v5350 = vadd.f32 0.0, %v5349
      %v5351 = vpop.f32.mrf.mxu0
      %5352 = vmatprep.mubr.bf16.mxu0 0
      %5353 = vmatmul.mubr.bf16.gmra.mxu0 %v5178
      %v5354 = vpop.f32.mrf.mxu0
      %v5355 = vadd.f32 0.0, %v5354
      %v5356 = vpop.f32.mrf.mxu0
      %v5357 = vpop.f32.mrf.mxu0
      %v5358 = vadd.f32 0.0, %v5357
      %v5359 = vpop.f32.mrf.mxu0
      %5360 = vmatprep.mubr.bf16.mxu0 0
      %5361 = vmatmul.mubr.bf16.gmra.mxu0 %v5179
      %v5362 = vpop.f32.mrf.mxu0
      %v5363 = vadd.f32 0.0, %v5362
      %v5364 = vpop.f32.mrf.mxu0
      %v5365 = vpop.f32.mrf.mxu0
      %v5366 = vadd.f32 0.0, %v5365
      %v5367 = vpop.f32.mrf.mxu0
      %5368 = vmatprep.mubr.bf16.mxu0 0
      %5369 = vmatmul.mubr.bf16.gmra.mxu0 %v5180
      %v5370 = vpop.f32.mrf.mxu0
      %v5371 = vadd.f32 0.0, %v5370
      %v5372 = vpop.f32.mrf.mxu0
      %v5373 = vpop.f32.mrf.mxu0
      %v5374 = vadd.f32 0.0, %v5373
      %v5375 = vpop.f32.mrf.mxu0
      %5376 = vmatprep.mubr.bf16.mxu0 0
      %5377 = vmatmul.mubr.bf16.gmra.mxu0 %v5181
      %v5378 = vpop.f32.mrf.mxu0
      %v5379 = vadd.f32 0.0, %v5378
      %v5380 = vpop.f32.mrf.mxu0
      %v5381 = vpop.f32.mrf.mxu0
      %v5382 = vadd.f32 0.0, %v5381
      %v5383 = vpop.f32.mrf.mxu0
      %5384 = vmatprep.mubr.bf16.mxu0 0
      %5385 = vmatmul.mubr.bf16.gmra.mxu0 %v5182
      %v5386 = vpop.f32.mrf.mxu0
      %v5387 = vadd.f32 0.0, %v5386
      %v5388 = vpop.f32.mrf.mxu0
      %v5389 = vpop.f32.mrf.mxu0
      %v5390 = vadd.f32 0.0, %v5389
      %v5391 = vpop.f32.mrf.mxu0
      %5392 = vmatprep.mubr.bf16.mxu0 0
      %5393 = vmatmul.mubr.bf16.gmra.mxu0 %v5183
      %v5394 = vpop.f32.mrf.mxu0
      %v5395 = vadd.f32 0.0, %v5394
      %v5396 = vpop.f32.mrf.mxu0
      %v5397 = vpop.f32.mrf.mxu0
      %v5398 = vadd.f32 0.0, %v5397
      %v5399 = vpop.f32.mrf.mxu0
      %5400 = vmatprep.mubr.bf16.mxu0 0
      %5401 = vmatmul.mubr.bf16.gmra.mxu0 %v5184
      %v5402 = vpop.f32.mrf.mxu0
      %v5403 = vadd.f32 0.0, %v5402
      %v5404 = vpop.f32.mrf.mxu0
      %v5405 = vpop.f32.mrf.mxu0
      %v5406 = vadd.f32 0.0, %v5405
      %v5407 = vpop.f32.mrf.mxu0
      %5408 = vmatprep.mubr.bf16.mxu0 0
      %5409 = vmatmul.mubr.bf16.gmra.mxu0 %v5185
      %v5410 = vpop.f32.mrf.mxu0
      %v5411 = vadd.f32 0.0, %v5410
      %v5412 = vpop.f32.mrf.mxu0
      %v5413 = vpop.f32.mrf.mxu0
      %v5414 = vadd.f32 0.0, %v5413
      %v5415 = vpop.f32.mrf.mxu0
      %5416 = vmatprep.mubr.bf16.mxu0 0
      %5417 = vmatmul.mubr.bf16.gmra.mxu0 %v5186
      %v5418 = vpop.f32.mrf.mxu0
      %v5419 = vadd.f32 0.0, %v5418
      %v5420 = vpop.f32.mrf.mxu0
      %v5421 = vpop.f32.mrf.mxu0
      %v5422 = vadd.f32 0.0, %v5421
      %v5423 = vpop.f32.mrf.mxu0
      %5424 = vmatprep.mubr.bf16.mxu0 0
      %5425 = vmatmul.mubr.bf16.gmra.mxu0 %v5187
      %v5426 = vpop.f32.mrf.mxu0
      %v5427 = vadd.f32 0.0, %v5426
      %v5428 = vpop.f32.mrf.mxu0
      %v5429 = vpop.f32.mrf.mxu0
      %v5430 = vadd.f32 0.0, %v5429
      %v5431 = vpop.f32.mrf.mxu0
      %5432 = vmatprep.mubr.bf16.mxu0 0
      %5433 = vmatmul.mubr.bf16.gmra.mxu0 %v5188
      %v5434 = vpop.f32.mrf.mxu0
      %v5435 = vadd.f32 0.0, %v5434
      %v5436 = vpop.f32.mrf.mxu0
      %v5437 = vpop.f32.mrf.mxu0
      %v5438 = vadd.f32 0.0, %v5437
      %v5439 = vpop.f32.mrf.mxu0
      %5440 = vmatprep.mubr.bf16.mxu0 0
      %5441 = vmatmul.mubr.bf16.gmra.mxu0 %v5189
      %v5442 = vpop.f32.mrf.mxu0
      %v5443 = vadd.f32 0.0, %v5442
      %v5444 = vpop.f32.mrf.mxu0
      %v5445 = vpop.f32.mrf.mxu0
      %v5446 = vadd.f32 0.0, %v5445
      %v5447 = vpop.f32.mrf.mxu0
      %5448 = vmatprep.mubr.bf16.mxu0 0
      %5449 = vmatmul.mubr.bf16.gmra.mxu0 %v5190
      %v5450 = vpop.f32.mrf.mxu0
      %v5451 = vadd.f32 0.0, %v5450
      %v5452 = vpop.f32.mrf.mxu0
      %v5453 = vpop.f32.mrf.mxu0
      %v5454 = vpop.f32.mrf.mxu0
      %5455 = vdwg.mxu0
      %v5456 = vadd.f32 %v4964, %v5291
      %v5457 = vadd.f32 %v4967, %v5294
      %v5458 = vadd.f32 %v4972, %v5299
      %v5459 = vadd.f32 %v4975, %v5302
      %v5460 = vadd.f32 %v4980, %v5307
      %v5461 = vadd.f32 %v4983, %v5310
      %v5462 = vadd.f32 %v4988, %v5315
      %v5463 = vadd.f32 %v4991, %v5318
      %v5464 = vadd.f32 %v4996, %v5323
      %v5465 = vadd.f32 %v4999, %v5326
      %v5466 = vadd.f32 %v5004, %v5331
      %v5467 = vadd.f32 %v5007, %v5334
      %v5468 = vadd.f32 %v5012, %v5339
      %v5469 = vadd.f32 %v5015, %v5342
      %v5470 = vadd.f32 %v5020, %v5347
      %v5471 = vadd.f32 %v5023, %v5350
      %v5472 = vadd.f32 %v5028, %v5355
      %v5473 = vadd.f32 %v5031, %v5358
      %v5474 = vadd.f32 %v5036, %v5363
      %v5475 = vadd.f32 %v5039, %v5366
      %v5476 = vadd.f32 %v5044, %v5371
      %v5477 = vadd.f32 %v5047, %v5374
      %v5478 = vadd.f32 %v5052, %v5379
      %v5479 = vadd.f32 %v5055, %v5382
      %v5480 = vadd.f32 %v5060, %v5387
      %v5481 = vadd.f32 %v5063, %v5390
      %v5482 = vadd.f32 %v5068, %v5395
      %v5483 = vadd.f32 %v5071, %v5398
      %v5484 = vadd.f32 %v5076, %v5403
      %v5485 = vadd.f32 %v5079, %v5406
      %v5486 = vadd.f32 %v5084, %v5411
      %v5487 = vadd.f32 %v5087, %v5414
      %v5488 = vadd.f32 %v5092, %v5419
      %v5489 = vadd.f32 %v5095, %v5422
      %v5490 = vadd.f32 %v5100, %v5427
      %v5491 = vadd.f32 %v5103, %v5430
      %v5492 = vadd.f32 %v5108, %v5435
      %v5493 = vadd.f32 %v5111, %v5438
      %v5494 = vadd.f32 %v5116, %v5443
      %v5495 = vadd.f32 %v5119, %v5446
      %v5496 = vadd.f32 %v5124, %v5451
      %v5497 = vld [vmem:[#allocation2 + $0x17] sm:$0xff]
      %v5498 = vld [vmem:[#allocation2 + $0x1f] sm:$0xff]
      %v5499 = vld [vmem:[#allocation2 + $0x27] sm:$0xff]
      %v5500 = vld [vmem:[#allocation2 + $0x2f] sm:$0xff]
      %v5501 = vld [vmem:[#allocation2 + $0x37] sm:$0xff]
      %v5502 = vld [vmem:[#allocation2 + $0x3f] sm:$0xff]
      %v5503 = vld [vmem:[#allocation2 + $0x47] sm:$0xff]
      %v5504 = vld [vmem:[#allocation2 + $0x4f] sm:$0xff]
      %v5505 = vld [vmem:[#allocation2 + $0x57] sm:$0xff]
      %v5506 = vld [vmem:[#allocation2 + $0x5f] sm:$0xff]
      %v5507 = vld [vmem:[#allocation2 + $0x67] sm:$0xff]
      %v5508 = vld [vmem:[#allocation2 + $0x6f] sm:$0xff]
      %v5509 = vld [vmem:[#allocation2 + $0x77] sm:$0xff]
      %v5510 = vld [vmem:[#allocation2 + $0x7f] sm:$0xff]
      %v5511 = vld [vmem:[#allocation2 + $0x87] sm:$0xff]
      %v5512 = vld [vmem:[#allocation2 + $0x8f] sm:$0xff]
      %v5513 = vld [vmem:[#allocation2 + $0x97] sm:$0xff]
      %v5514 = vld [vmem:[#allocation2 + $0x9f] sm:$0xff]
      %v5515 = vld [vmem:[#allocation2 + $0xa7] sm:$0xff]
      %v5516 = vld [vmem:[#allocation2 + $0xaf] sm:$0xff]
      %v5517 = vld [vmem:[#allocation2 + $0xb7] sm:$0xff]
      %v5518 = vld [vmem:[#allocation2 + $0xbf] sm:$0xff]
      %v5519 = vld [vmem:[#allocation2 + $0xc7] sm:$0xff]
      %v5520 = vld [vmem:[#allocation2 + $0xcf] sm:$0xff]
      %v5521 = vld [vmem:[#allocation2 + $0xd7] sm:$0xff]
      %v5522 = vld [vmem:[#allocation2 + $0xdf] sm:$0xff]
      %v5523 = vld [vmem:[#allocation2 + $0xe7] sm:$0xff]
      %v5524 = vld [vmem:[#allocation2 + $0xef] sm:$0xff]
      %v5525 = vld [vmem:[#allocation2 + $0xf7] sm:$0xff]
      %v5526 = vld [vmem:[#allocation2 + $0xff] sm:$0xff]
      %v5527 = vld [vmem:[#allocation2 + $0x107] sm:$0xff]
      %v5528 = vld [vmem:[#allocation2 + $0x10f] sm:$0xff]
      %v5529 = vld [vmem:[#allocation2 + $0x117] sm:$0xff]
      %v5530 = vld [vmem:[#allocation2 + $0x11f] sm:$0xff]
      %v5531 = vld [vmem:[#allocation2 + $0x127] sm:$0xff]
      %v5532 = vld [vmem:[#allocation2 + $0x12f] sm:$0xff]
      %v5533 = vld [vmem:[#allocation2 + $0x137] sm:$0xff]
      %v5534 = vld [vmem:[#allocation2 + $0x13f] sm:$0xff]
      %v5535 = vld [vmem:[#allocation2 + $0x147] sm:$0xff]
      %v5536 = vld [vmem:[#allocation2 + $0x14f] sm:$0xff]
      %v5537 = vld [vmem:[#allocation2 + $0x157] sm:$0xf]
      %v5538 = vpack.c.bf16 %v5498, %v5497
      %v5539 = vpack.c.bf16 %v5500, %v5499
      %v5540 = vpack.c.bf16 %v5502, %v5501
      %v5541 = vpack.c.bf16 %v5504, %v5503
      %v5542 = vpack.c.bf16 %v5506, %v5505
      %v5543 = vpack.c.bf16 %v5508, %v5507
      %v5544 = vpack.c.bf16 %v5510, %v5509
      %v5545 = vpack.c.bf16 %v5512, %v5511
      %v5546 = vpack.c.bf16 %v5514, %v5513
      %v5547 = vpack.c.bf16 %v5516, %v5515
      %v5548 = vpack.c.bf16 %v5518, %v5517
      %v5549 = vpack.c.bf16 %v5520, %v5519
      %v5550 = vpack.c.bf16 %v5522, %v5521
      %v5551 = vpack.c.bf16 %v5524, %v5523
      %v5552 = vpack.c.bf16 %v5526, %v5525
      %v5553 = vpack.c.bf16 %v5528, %v5527
      %v5554 = vpack.c.bf16 %v5530, %v5529
      %v5555 = vpack.c.bf16 %v5532, %v5531
      %v5556 = vpack.c.bf16 %v5534, %v5533
      %v5557 = vpack.c.bf16 %v5536, %v5535
      %v5558 = vpack.c.bf16 %v5537, %v5537
      %s5559 = scalar_lea.vmem %s4, 192
      %v5560 = vld [vmem:[%s5559] sm:$0xf]
      %v5561 = vld [vmem:[%s5559 + $0x4] sm:$0xf]
      %v5562 = vld [vmem:[%s5559 + $0x8] sm:$0xf]
      %v5563 = vld [vmem:[%s5559 + $0xc] sm:$0xf]
      %v5564 = vld [vmem:[%s5559 + $0x10] sm:$0xf]
      %v5565 = vld [vmem:[%s5559 + $0x14] sm:$0xf]
      %v5566 = vld [vmem:[%s5559 + $0x18] sm:$0xf]
      %v5567 = vld [vmem:[%s5559 + $0x1c] sm:$0xf]
      %v5568 = vld [vmem:[%s5559 + $0x20] sm:$0xf]
      %v5569 = vld [vmem:[%s5559 + $0x24] sm:$0xf]
      %v5570 = vld [vmem:[%s5559 + $0x28] sm:$0xf]
      %v5571 = vld [vmem:[%s5559 + $0x2c] sm:$0xf]
      %v5572 = vld [vmem:[%s5559 + $0x30] sm:$0xf]
      %v5573 = vld [vmem:[%s5559 + $0x34] sm:$0xf]
      %v5574 = vld [vmem:[%s5559 + $0x38] sm:$0xf]
      %v5575 = vld [vmem:[%s5559 + $0x3c] sm:$0xf]
      %v5592 = vunpack.c.l.b16 %v5560
      %v5593 = vunpack.c.l.b16 %v5561
      %v5594 = vunpack.c.l.b16 %v5562
      %v5595 = vunpack.c.l.b16 %v5563
      %v5596 = vunpack.c.l.b16 %v5564
      %v5597 = vunpack.c.l.b16 %v5565
      %v5598 = vunpack.c.l.b16 %v5566
      %v5599 = vunpack.c.l.b16 %v5567
      %v5600 = vunpack.c.l.b16 %v5568
      %v5601 = vunpack.c.l.b16 %v5569
      %v5602 = vunpack.c.l.b16 %v5570
      %v5603 = vunpack.c.l.b16 %v5571
      %v5604 = vunpack.c.l.b16 %v5572
      %v5605 = vunpack.c.l.b16 %v5573
      %v5606 = vunpack.c.l.b16 %v5574
      %v5607 = vunpack.c.l.b16 %v5575
      %v5608 = vpack.c.b16 %v5593, %v5592
      %v5609 = vpack.c.b16 %v5595, %v5594
      %v5610 = vpack.c.b16 %v5597, %v5596
      %v5611 = vpack.c.b16 %v5599, %v5598
      %v5612 = vpack.c.b16 %v5601, %v5600
      %v5613 = vpack.c.b16 %v5603, %v5602
      %v5614 = vpack.c.b16 %v5605, %v5604
      %v5615 = vpack.c.b16 %v5607, %v5606
      %5624 = vmatprep.subr.bf16.mxu0 0
      %5625 = vmatpush1.bf16.msra.mxu0 %v5615
      %5626 = vmatprep.subr.bf16.mxu0 0
      %5627 = vmatpush1.bf16.msra.mxu0 %v5614
      %5628 = vmatprep.subr.bf16.mxu0 0
      %5629 = vmatpush1.bf16.msra.mxu0 %v5613
      %5630 = vmatprep.subr.bf16.mxu0 0
      %5631 = vmatpush1.bf16.msra.mxu0 %v5612
      %5632 = vmatprep.subr.bf16.mxu0 0
      %5633 = vmatpush1.bf16.msra.mxu0 %v5611
      %5634 = vmatprep.subr.bf16.mxu0 0
      %5635 = vmatpush1.bf16.msra.mxu0 %v5610
      %5636 = vmatprep.subr.bf16.mxu0 0
      %5637 = vmatpush1.bf16.msra.mxu0 %v5609
      %5638 = vmatprep.subr.bf16.mxu0 0
      %5639 = vmatpush1.bf16.msra.mxu0 %v5608
      %5640 = vmatprep.subr.bf16.mxu0 0
      %5641 = vmatpush2.bf16.msra.mxu0 0
      %5642 = vmatprep.subr.bf16.mxu0 0
      %5643 = vmatpush2.bf16.msra.mxu0 0
      %5644 = vmatprep.subr.bf16.mxu0 0
      %5645 = vmatpush2.bf16.msra.mxu0 0
      %5646 = vmatprep.subr.bf16.mxu0 0
      %5647 = vmatpush2.bf16.msra.mxu0 0
      %5648 = vmatprep.subr.bf16.mxu0 0
      %5649 = vmatpush2.bf16.msra.mxu0 0
      %5650 = vmatprep.subr.bf16.mxu0 0
      %5651 = vmatpush2.bf16.msra.mxu0 0
      %5652 = vmatprep.subr.bf16.mxu0 0
      %5653 = vmatpush2.bf16.msra.mxu0 0
      %5654 = vmatprep.subr.bf16.mxu0 0
      %5655 = vmatpush2.bf16.msra.mxu0 0
      %5656 = vmatprep.mubr.bf16.mxu0 0
      %5657 = vmatmul.mubr.bf16.gmra.mxu0 %v5538
      %v5658 = vpop.f32.mrf.mxu0
      %v5659 = vadd.f32 0.0, %v5658
      %v5660 = vpop.f32.mrf.mxu0
      %v5661 = vpop.f32.mrf.mxu0
      %v5662 = vadd.f32 0.0, %v5661
      %v5663 = vpop.f32.mrf.mxu0
      %5664 = vmatprep.mubr.bf16.mxu0 0
      %5665 = vmatmul.mubr.bf16.gmra.mxu0 %v5539
      %v5666 = vpop.f32.mrf.mxu0
      %v5667 = vadd.f32 0.0, %v5666
      %v5668 = vpop.f32.mrf.mxu0
      %v5669 = vpop.f32.mrf.mxu0
      %v5670 = vadd.f32 0.0, %v5669
      %v5671 = vpop.f32.mrf.mxu0
      %5672 = vmatprep.mubr.bf16.mxu0 0
      %5673 = vmatmul.mubr.bf16.gmra.mxu0 %v5540
      %v5674 = vpop.f32.mrf.mxu0
      %v5675 = vadd.f32 0.0, %v5674
      %v5676 = vpop.f32.mrf.mxu0
      %v5677 = vpop.f32.mrf.mxu0
      %v5678 = vadd.f32 0.0, %v5677
      %v5679 = vpop.f32.mrf.mxu0
      %5680 = vmatprep.mubr.bf16.mxu0 0
      %5681 = vmatmul.mubr.bf16.gmra.mxu0 %v5541
      %v5682 = vpop.f32.mrf.mxu0
      %v5683 = vadd.f32 0.0, %v5682
      %v5684 = vpop.f32.mrf.mxu0
      %v5685 = vpop.f32.mrf.mxu0
      %v5686 = vadd.f32 0.0, %v5685
      %v5687 = vpop.f32.mrf.mxu0
      %5688 = vmatprep.mubr.bf16.mxu0 0
      %5689 = vmatmul.mubr.bf16.gmra.mxu0 %v5542
      %v5690 = vpop.f32.mrf.mxu0
      %v5691 = vadd.f32 0.0, %v5690
      %v5692 = vpop.f32.mrf.mxu0
      %v5693 = vpop.f32.mrf.mxu0
      %v5694 = vadd.f32 0.0, %v5693
      %v5695 = vpop.f32.mrf.mxu0
      %5696 = vmatprep.mubr.bf16.mxu0 0
      %5697 = vmatmul.mubr.bf16.gmra.mxu0 %v5543
      %v5698 = vpop.f32.mrf.mxu0
      %v5699 = vadd.f32 0.0, %v5698
      %v5700 = vpop.f32.mrf.mxu0
      %v5701 = vpop.f32.mrf.mxu0
      %v5702 = vadd.f32 0.0, %v5701
      %v5703 = vpop.f32.mrf.mxu0
      %5704 = vmatprep.mubr.bf16.mxu0 0
      %5705 = vmatmul.mubr.bf16.gmra.mxu0 %v5544
      %v5706 = vpop.f32.mrf.mxu0
      %v5707 = vadd.f32 0.0, %v5706
      %v5708 = vpop.f32.mrf.mxu0
      %v5709 = vpop.f32.mrf.mxu0
      %v5710 = vadd.f32 0.0, %v5709
      %v5711 = vpop.f32.mrf.mxu0
      %5712 = vmatprep.mubr.bf16.mxu0 0
      %5713 = vmatmul.mubr.bf16.gmra.mxu0 %v5545
      %v5714 = vpop.f32.mrf.mxu0
      %v5715 = vadd.f32 0.0, %v5714
      %v5716 = vpop.f32.mrf.mxu0
      %v5717 = vpop.f32.mrf.mxu0
      %v5718 = vadd.f32 0.0, %v5717
      %v5719 = vpop.f32.mrf.mxu0
      %5720 = vmatprep.mubr.bf16.mxu0 0
      %5721 = vmatmul.mubr.bf16.gmra.mxu0 %v5546
      %v5722 = vpop.f32.mrf.mxu0
      %v5723 = vadd.f32 0.0, %v5722
      %v5724 = vpop.f32.mrf.mxu0
      %v5725 = vpop.f32.mrf.mxu0
      %v5726 = vadd.f32 0.0, %v5725
      %v5727 = vpop.f32.mrf.mxu0
      %5728 = vmatprep.mubr.bf16.mxu0 0
      %5729 = vmatmul.mubr.bf16.gmra.mxu0 %v5547
      %v5730 = vpop.f32.mrf.mxu0
      %v5731 = vadd.f32 0.0, %v5730
      %v5732 = vpop.f32.mrf.mxu0
      %v5733 = vpop.f32.mrf.mxu0
      %v5734 = vadd.f32 0.0, %v5733
      %v5735 = vpop.f32.mrf.mxu0
      %5736 = vmatprep.mubr.bf16.mxu0 0
      %5737 = vmatmul.mubr.bf16.gmra.mxu0 %v5548
      %v5738 = vpop.f32.mrf.mxu0
      %v5739 = vadd.f32 0.0, %v5738
      %v5740 = vpop.f32.mrf.mxu0
      %v5741 = vpop.f32.mrf.mxu0
      %v5742 = vadd.f32 0.0, %v5741
      %v5743 = vpop.f32.mrf.mxu0
      %5744 = vmatprep.mubr.bf16.mxu0 0
      %5745 = vmatmul.mubr.bf16.gmra.mxu0 %v5549
      %v5746 = vpop.f32.mrf.mxu0
      %v5747 = vadd.f32 0.0, %v5746
      %v5748 = vpop.f32.mrf.mxu0
      %v5749 = vpop.f32.mrf.mxu0
      %v5750 = vadd.f32 0.0, %v5749
      %v5751 = vpop.f32.mrf.mxu0
      %5752 = vmatprep.mubr.bf16.mxu0 0
      %5753 = vmatmul.mubr.bf16.gmra.mxu0 %v5550
      %v5754 = vpop.f32.mrf.mxu0
      %v5755 = vadd.f32 0.0, %v5754
      %v5756 = vpop.f32.mrf.mxu0
      %v5757 = vpop.f32.mrf.mxu0
      %v5758 = vadd.f32 0.0, %v5757
      %v5759 = vpop.f32.mrf.mxu0
      %5760 = vmatprep.mubr.bf16.mxu0 0
      %5761 = vmatmul.mubr.bf16.gmra.mxu0 %v5551
      %v5762 = vpop.f32.mrf.mxu0
      %v5763 = vadd.f32 0.0, %v5762
      %v5764 = vpop.f32.mrf.mxu0
      %v5765 = vpop.f32.mrf.mxu0
      %v5766 = vadd.f32 0.0, %v5765
      %v5767 = vpop.f32.mrf.mxu0
      %5768 = vmatprep.mubr.bf16.mxu0 0
      %5769 = vmatmul.mubr.bf16.gmra.mxu0 %v5552
      %v5770 = vpop.f32.mrf.mxu0
      %v5771 = vadd.f32 0.0, %v5770
      %v5772 = vpop.f32.mrf.mxu0
      %v5773 = vpop.f32.mrf.mxu0
      %v5774 = vadd.f32 0.0, %v5773
      %v5775 = vpop.f32.mrf.mxu0
      %5776 = vmatprep.mubr.bf16.mxu0 0
      %5777 = vmatmul.mubr.bf16.gmra.mxu0 %v5553
      %v5778 = vpop.f32.mrf.mxu0
      %v5779 = vadd.f32 0.0, %v5778
      %v5780 = vpop.f32.mrf.mxu0
      %v5781 = vpop.f32.mrf.mxu0
      %v5782 = vadd.f32 0.0, %v5781
      %v5783 = vpop.f32.mrf.mxu0
      %5784 = vmatprep.mubr.bf16.mxu0 0
      %5785 = vmatmul.mubr.bf16.gmra.mxu0 %v5554
      %v5786 = vpop.f32.mrf.mxu0
      %v5787 = vadd.f32 0.0, %v5786
      %v5788 = vpop.f32.mrf.mxu0
      %v5789 = vpop.f32.mrf.mxu0
      %v5790 = vadd.f32 0.0, %v5789
      %v5791 = vpop.f32.mrf.mxu0
      %5792 = vmatprep.mubr.bf16.mxu0 0
      %5793 = vmatmul.mubr.bf16.gmra.mxu0 %v5555
      %v5794 = vpop.f32.mrf.mxu0
      %v5795 = vadd.f32 0.0, %v5794
      %v5796 = vpop.f32.mrf.mxu0
      %v5797 = vpop.f32.mrf.mxu0
      %v5798 = vadd.f32 0.0, %v5797
      %v5799 = vpop.f32.mrf.mxu0
      %5800 = vmatprep.mubr.bf16.mxu0 0
      %5801 = vmatmul.mubr.bf16.gmra.mxu0 %v5556
      %v5802 = vpop.f32.mrf.mxu0
      %v5803 = vadd.f32 0.0, %v5802
      %v5804 = vpop.f32.mrf.mxu0
      %v5805 = vpop.f32.mrf.mxu0
      %v5806 = vadd.f32 0.0, %v5805
      %v5807 = vpop.f32.mrf.mxu0
      %5808 = vmatprep.mubr.bf16.mxu0 0
      %5809 = vmatmul.mubr.bf16.gmra.mxu0 %v5557
      %v5810 = vpop.f32.mrf.mxu0
      %v5811 = vadd.f32 0.0, %v5810
      %v5812 = vpop.f32.mrf.mxu0
      %v5813 = vpop.f32.mrf.mxu0
      %v5814 = vadd.f32 0.0, %v5813
      %v5815 = vpop.f32.mrf.mxu0
      %5816 = vmatprep.mubr.bf16.mxu0 0
      %5817 = vmatmul.mubr.bf16.gmra.mxu0 %v5558
      %v5818 = vpop.f32.mrf.mxu0
      %v5819 = vadd.f32 0.0, %v5818
      %v5820 = vpop.f32.mrf.mxu0
      %v5821 = vpop.f32.mrf.mxu0
      %v5822 = vpop.f32.mrf.mxu0
      %5823 = vdwg.mxu0
      %v5824 = vadd.f32 %v5456, %v5659
      %v5825 = vadd.f32 %v5457, %v5662
      %v5826 = vadd.f32 %v5458, %v5667
      %v5827 = vadd.f32 %v5459, %v5670
      %v5828 = vadd.f32 %v5460, %v5675
      %v5829 = vadd.f32 %v5461, %v5678
      %v5830 = vadd.f32 %v5462, %v5683
      %v5831 = vadd.f32 %v5463, %v5686
      %v5832 = vadd.f32 %v5464, %v5691
      %v5833 = vadd.f32 %v5465, %v5694
      %v5834 = vadd.f32 %v5466, %v5699
      %v5835 = vadd.f32 %v5467, %v5702
      %v5836 = vadd.f32 %v5468, %v5707
      %v5837 = vadd.f32 %v5469, %v5710
      %v5838 = vadd.f32 %v5470, %v5715
      %v5839 = vadd.f32 %v5471, %v5718
      %v5840 = vadd.f32 %v5472, %v5723
      %v5841 = vadd.f32 %v5473, %v5726
      %v5842 = vadd.f32 %v5474, %v5731
      %v5843 = vadd.f32 %v5475, %v5734
      %v5844 = vadd.f32 %v5476, %v5739
      %v5845 = vadd.f32 %v5477, %v5742
      %v5846 = vadd.f32 %v5478, %v5747
      %v5847 = vadd.f32 %v5479, %v5750
      %v5848 = vadd.f32 %v5480, %v5755
      %v5849 = vadd.f32 %v5481, %v5758
      %v5850 = vadd.f32 %v5482, %v5763
      %v5851 = vadd.f32 %v5483, %v5766
      %v5852 = vadd.f32 %v5484, %v5771
      %v5853 = vadd.f32 %v5485, %v5774
      %v5854 = vadd.f32 %v5486, %v5779
      %v5855 = vadd.f32 %v5487, %v5782
      %v5856 = vadd.f32 %v5488, %v5787
      %v5857 = vadd.f32 %v5489, %v5790
      %v5858 = vadd.f32 %v5490, %v5795
      %v5859 = vadd.f32 %v5491, %v5798
      %v5860 = vadd.f32 %v5492, %v5803
      %v5861 = vadd.f32 %v5493, %v5806
      %v5862 = vadd.f32 %v5494, %v5811
      %v5863 = vadd.f32 %v5495, %v5814
      %v5864 = vadd.f32 %v5496, %v5819
      %v5865 = vld [vmem:[#allocation2 + $0x18] sm:$0xff]
      %v5866 = vld [vmem:[#allocation2 + $0x20] sm:$0xff]
      %v5867 = vld [vmem:[#allocation2 + $0x28] sm:$0xff]
      %v5868 = vld [vmem:[#allocation2 + $0x30] sm:$0xff]
      %v5869 = vld [vmem:[#allocation2 + $0x38] sm:$0xff]
      %v5870 = vld [vmem:[#allocation2 + $0x40] sm:$0xff]
      %v5871 = vld [vmem:[#allocation2 + $0x48] sm:$0xff]
      %v5872 = vld [vmem:[#allocation2 + $0x50] sm:$0xff]
      %v5873 = vld [vmem:[#allocation2 + $0x58] sm:$0xff]
      %v5874 = vld [vmem:[#allocation2 + $0x60] sm:$0xff]
      %v5875 = vld [vmem:[#allocation2 + $0x68] sm:$0xff]
      %v5876 = vld [vmem:[#allocation2 + $0x70] sm:$0xff]
      %v5877 = vld [vmem:[#allocation2 + $0x78] sm:$0xff]
      %v5878 = vld [vmem:[#allocation2 + $0x80] sm:$0xff]
      %v5879 = vld [vmem:[#allocation2 + $0x88] sm:$0xff]
      %v5880 = vld [vmem:[#allocation2 + $0x90] sm:$0xff]
      %v5881 = vld [vmem:[#allocation2 + $0x98] sm:$0xff]
      %v5882 = vld [vmem:[#allocation2 + $0xa0] sm:$0xff]
      %v5883 = vld [vmem:[#allocation2 + $0xa8] sm:$0xff]
      %v5884 = vld [vmem:[#allocation2 + $0xb0] sm:$0xff]
      %v5885 = vld [vmem:[#allocation2 + $0xb8] sm:$0xff]
      %v5886 = vld [vmem:[#allocation2 + $0xc0] sm:$0xff]
      %v5887 = vld [vmem:[#allocation2 + $0xc8] sm:$0xff]
      %v5888 = vld [vmem:[#allocation2 + $0xd0] sm:$0xff]
      %v5889 = vld [vmem:[#allocation2 + $0xd8] sm:$0xff]
      %v5890 = vld [vmem:[#allocation2 + $0xe0] sm:$0xff]
      %v5891 = vld [vmem:[#allocation2 + $0xe8] sm:$0xff]
      %v5892 = vld [vmem:[#allocation2 + $0xf0] sm:$0xff]
      %v5893 = vld [vmem:[#allocation2 + $0xf8] sm:$0xff]
      %v5894 = vld [vmem:[#allocation2 + $0x100] sm:$0xff]
      %v5895 = vld [vmem:[#allocation2 + $0x108] sm:$0xff]
      %v5896 = vld [vmem:[#allocation2 + $0x110] sm:$0xff]
      %v5897 = vld [vmem:[#allocation2 + $0x118] sm:$0xff]
      %v5898 = vld [vmem:[#allocation2 + $0x120] sm:$0xff]
      %v5899 = vld [vmem:[#allocation2 + $0x128] sm:$0xff]
      %v5900 = vld [vmem:[#allocation2 + $0x130] sm:$0xff]
      %v5901 = vld [vmem:[#allocation2 + $0x138] sm:$0xff]
      %v5902 = vld [vmem:[#allocation2 + $0x140] sm:$0xff]
      %v5903 = vld [vmem:[#allocation2 + $0x148] sm:$0xff]
      %v5904 = vld [vmem:[#allocation2 + $0x150] sm:$0xff]
      %v5905 = vld [vmem:[#allocation2 + $0x158] sm:$0xf]
      %v5906 = vpack.c.bf16 %v5866, %v5865
      %v5907 = vpack.c.bf16 %v5868, %v5867
      %v5908 = vpack.c.bf16 %v5870, %v5869
      %v5909 = vpack.c.bf16 %v5872, %v5871
      %v5910 = vpack.c.bf16 %v5874, %v5873
      %v5911 = vpack.c.bf16 %v5876, %v5875
      %v5912 = vpack.c.bf16 %v5878, %v5877
      %v5913 = vpack.c.bf16 %v5880, %v5879
      %v5914 = vpack.c.bf16 %v5882, %v5881
      %v5915 = vpack.c.bf16 %v5884, %v5883
      %v5916 = vpack.c.bf16 %v5886, %v5885
      %v5917 = vpack.c.bf16 %v5888, %v5887
      %v5918 = vpack.c.bf16 %v5890, %v5889
      %v5919 = vpack.c.bf16 %v5892, %v5891
      %v5920 = vpack.c.bf16 %v5894, %v5893
      %v5921 = vpack.c.bf16 %v5896, %v5895
      %v5922 = vpack.c.bf16 %v5898, %v5897
      %v5923 = vpack.c.bf16 %v5900, %v5899
      %v5924 = vpack.c.bf16 %v5902, %v5901
      %v5925 = vpack.c.bf16 %v5904, %v5903
      %v5926 = vpack.c.bf16 %v5905, %v5905
      %s5927 = scalar_lea.vmem %s4, 256
      %v5928 = vld [vmem:[%s5927] sm:$0xf]
      %v5929 = vld [vmem:[%s5927 + $0x4] sm:$0xf]
      %v5930 = vld [vmem:[%s5927 + $0x8] sm:$0xf]
      %v5931 = vld [vmem:[%s5927 + $0xc] sm:$0xf]
      %v5932 = vld [vmem:[%s5927 + $0x10] sm:$0xf]
      %v5933 = vld [vmem:[%s5927 + $0x14] sm:$0xf]
      %v5934 = vld [vmem:[%s5927 + $0x18] sm:$0xf]
      %v5935 = vld [vmem:[%s5927 + $0x1c] sm:$0xf]
      %v5936 = vld [vmem:[%s5927 + $0x20] sm:$0xf]
      %v5937 = vld [vmem:[%s5927 + $0x24] sm:$0xf]
      %v5938 = vld [vmem:[%s5927 + $0x28] sm:$0xf]
      %v5939 = vld [vmem:[%s5927 + $0x2c] sm:$0xf]
      %v5940 = vld [vmem:[%s5927 + $0x30] sm:$0xf]
      %v5941 = vld [vmem:[%s5927 + $0x34] sm:$0xf]
      %v5942 = vld [vmem:[%s5927 + $0x38] sm:$0xf]
      %v5943 = vld [vmem:[%s5927 + $0x3c] sm:$0xf]
      %v5960 = vunpack.c.l.b16 %v5928
      %v5961 = vunpack.c.l.b16 %v5929
      %v5962 = vunpack.c.l.b16 %v5930
      %v5963 = vunpack.c.l.b16 %v5931
      %v5964 = vunpack.c.l.b16 %v5932
      %v5965 = vunpack.c.l.b16 %v5933
      %v5966 = vunpack.c.l.b16 %v5934
      %v5967 = vunpack.c.l.b16 %v5935
      %v5968 = vunpack.c.l.b16 %v5936
      %v5969 = vunpack.c.l.b16 %v5937
      %v5970 = vunpack.c.l.b16 %v5938
      %v5971 = vunpack.c.l.b16 %v5939
      %v5972 = vunpack.c.l.b16 %v5940
      %v5973 = vunpack.c.l.b16 %v5941
      %v5974 = vunpack.c.l.b16 %v5942
      %v5975 = vunpack.c.l.b16 %v5943
      %v5976 = vpack.c.b16 %v5961, %v5960
      %v5977 = vpack.c.b16 %v5963, %v5962
      %v5978 = vpack.c.b16 %v5965, %v5964
      %v5979 = vpack.c.b16 %v5967, %v5966
      %v5980 = vpack.c.b16 %v5969, %v5968
      %v5981 = vpack.c.b16 %v5971, %v5970
      %v5982 = vpack.c.b16 %v5973, %v5972
      %v5983 = vpack.c.b16 %v5975, %v5974
      %5992 = vmatprep.subr.bf16.mxu0 0
      %5993 = vmatpush1.bf16.msra.mxu0 %v5983
      %5994 = vmatprep.subr.bf16.mxu0 0
      %5995 = vmatpush1.bf16.msra.mxu0 %v5982
      %5996 = vmatprep.subr.bf16.mxu0 0
      %5997 = vmatpush1.bf16.msra.mxu0 %v5981
      %5998 = vmatprep.subr.bf16.mxu0 0
      %5999 = vmatpush1.bf16.msra.mxu0 %v5980
      %6000 = vmatprep.subr.bf16.mxu0 0
      %6001 = vmatpush1.bf16.msra.mxu0 %v5979
      %6002 = vmatprep.subr.bf16.mxu0 0
      %6003 = vmatpush1.bf16.msra.mxu0 %v5978
      %6004 = vmatprep.subr.bf16.mxu0 0
      %6005 = vmatpush1.bf16.msra.mxu0 %v5977
      %6006 = vmatprep.subr.bf16.mxu0 0
      %6007 = vmatpush1.bf16.msra.mxu0 %v5976
      %6008 = vmatprep.subr.bf16.mxu0 0
      %6009 = vmatpush2.bf16.msra.mxu0 0
      %6010 = vmatprep.subr.bf16.mxu0 0
      %6011 = vmatpush2.bf16.msra.mxu0 0
      %6012 = vmatprep.subr.bf16.mxu0 0
      %6013 = vmatpush2.bf16.msra.mxu0 0
      %6014 = vmatprep.subr.bf16.mxu0 0
      %6015 = vmatpush2.bf16.msra.mxu0 0
      %6016 = vmatprep.subr.bf16.mxu0 0
      %6017 = vmatpush2.bf16.msra.mxu0 0
      %6018 = vmatprep.subr.bf16.mxu0 0
      %6019 = vmatpush2.bf16.msra.mxu0 0
      %6020 = vmatprep.subr.bf16.mxu0 0
      %6021 = vmatpush2.bf16.msra.mxu0 0
      %6022 = vmatprep.subr.bf16.mxu0 0
      %6023 = vmatpush2.bf16.msra.mxu0 0
      %6024 = vmatprep.mubr.bf16.mxu0 0
      %6025 = vmatmul.mubr.bf16.gmra.mxu0 %v5906
      %v6026 = vpop.f32.mrf.mxu0
      %v6027 = vadd.f32 0.0, %v6026
      %v6028 = vpop.f32.mrf.mxu0
      %v6029 = vpop.f32.mrf.mxu0
      %v6030 = vadd.f32 0.0, %v6029
      %v6031 = vpop.f32.mrf.mxu0
      %6032 = vmatprep.mubr.bf16.mxu0 0
      %6033 = vmatmul.mubr.bf16.gmra.mxu0 %v5907
      %v6034 = vpop.f32.mrf.mxu0
      %v6035 = vadd.f32 0.0, %v6034
      %v6036 = vpop.f32.mrf.mxu0
      %v6037 = vpop.f32.mrf.mxu0
      %v6038 = vadd.f32 0.0, %v6037
      %v6039 = vpop.f32.mrf.mxu0
      %6040 = vmatprep.mubr.bf16.mxu0 0
      %6041 = vmatmul.mubr.bf16.gmra.mxu0 %v5908
      %v6042 = vpop.f32.mrf.mxu0
      %v6043 = vadd.f32 0.0, %v6042
      %v6044 = vpop.f32.mrf.mxu0
      %v6045 = vpop.f32.mrf.mxu0
      %v6046 = vadd.f32 0.0, %v6045
      %v6047 = vpop.f32.mrf.mxu0
      %6048 = vmatprep.mubr.bf16.mxu0 0
      %6049 = vmatmul.mubr.bf16.gmra.mxu0 %v5909
      %v6050 = vpop.f32.mrf.mxu0
      %v6051 = vadd.f32 0.0, %v6050
      %v6052 = vpop.f32.mrf.mxu0
      %v6053 = vpop.f32.mrf.mxu0
      %v6054 = vadd.f32 0.0, %v6053
      %v6055 = vpop.f32.mrf.mxu0
      %6056 = vmatprep.mubr.bf16.mxu0 0
      %6057 = vmatmul.mubr.bf16.gmra.mxu0 %v5910
      %v6058 = vpop.f32.mrf.mxu0
      %v6059 = vadd.f32 0.0, %v6058
      %v6060 = vpop.f32.mrf.mxu0
      %v6061 = vpop.f32.mrf.mxu0
      %v6062 = vadd.f32 0.0, %v6061
      %v6063 = vpop.f32.mrf.mxu0
      %6064 = vmatprep.mubr.bf16.mxu0 0
      %6065 = vmatmul.mubr.bf16.gmra.mxu0 %v5911
      %v6066 = vpop.f32.mrf.mxu0
      %v6067 = vadd.f32 0.0, %v6066
      %v6068 = vpop.f32.mrf.mxu0
      %v6069 = vpop.f32.mrf.mxu0
      %v6070 = vadd.f32 0.0, %v6069
      %v6071 = vpop.f32.mrf.mxu0
      %6072 = vmatprep.mubr.bf16.mxu0 0
      %6073 = vmatmul.mubr.bf16.gmra.mxu0 %v5912
      %v6074 = vpop.f32.mrf.mxu0
      %v6075 = vadd.f32 0.0, %v6074
      %v6076 = vpop.f32.mrf.mxu0
      %v6077 = vpop.f32.mrf.mxu0
      %v6078 = vadd.f32 0.0, %v6077
      %v6079 = vpop.f32.mrf.mxu0
      %6080 = vmatprep.mubr.bf16.mxu0 0
      %6081 = vmatmul.mubr.bf16.gmra.mxu0 %v5913
      %v6082 = vpop.f32.mrf.mxu0
      %v6083 = vadd.f32 0.0, %v6082
      %v6084 = vpop.f32.mrf.mxu0
      %v6085 = vpop.f32.mrf.mxu0
      %v6086 = vadd.f32 0.0, %v6085
      %v6087 = vpop.f32.mrf.mxu0
      %6088 = vmatprep.mubr.bf16.mxu0 0
      %6089 = vmatmul.mubr.bf16.gmra.mxu0 %v5914
      %v6090 = vpop.f32.mrf.mxu0
      %v6091 = vadd.f32 0.0, %v6090
      %v6092 = vpop.f32.mrf.mxu0
      %v6093 = vpop.f32.mrf.mxu0
      %v6094 = vadd.f32 0.0, %v6093
      %v6095 = vpop.f32.mrf.mxu0
      %6096 = vmatprep.mubr.bf16.mxu0 0
      %6097 = vmatmul.mubr.bf16.gmra.mxu0 %v5915
      %v6098 = vpop.f32.mrf.mxu0
      %v6099 = vadd.f32 0.0, %v6098
      %v6100 = vpop.f32.mrf.mxu0
      %v6101 = vpop.f32.mrf.mxu0
      %v6102 = vadd.f32 0.0, %v6101
      %v6103 = vpop.f32.mrf.mxu0
      %6104 = vmatprep.mubr.bf16.mxu0 0
      %6105 = vmatmul.mubr.bf16.gmra.mxu0 %v5916
      %v6106 = vpop.f32.mrf.mxu0
      %v6107 = vadd.f32 0.0, %v6106
      %v6108 = vpop.f32.mrf.mxu0
      %v6109 = vpop.f32.mrf.mxu0
      %v6110 = vadd.f32 0.0, %v6109
      %v6111 = vpop.f32.mrf.mxu0
      %6112 = vmatprep.mubr.bf16.mxu0 0
      %6113 = vmatmul.mubr.bf16.gmra.mxu0 %v5917
      %v6114 = vpop.f32.mrf.mxu0
      %v6115 = vadd.f32 0.0, %v6114
      %v6116 = vpop.f32.mrf.mxu0
      %v6117 = vpop.f32.mrf.mxu0
      %v6118 = vadd.f32 0.0, %v6117
      %v6119 = vpop.f32.mrf.mxu0
      %6120 = vmatprep.mubr.bf16.mxu0 0
      %6121 = vmatmul.mubr.bf16.gmra.mxu0 %v5918
      %v6122 = vpop.f32.mrf.mxu0
      %v6123 = vadd.f32 0.0, %v6122
      %v6124 = vpop.f32.mrf.mxu0
      %v6125 = vpop.f32.mrf.mxu0
      %v6126 = vadd.f32 0.0, %v6125
      %v6127 = vpop.f32.mrf.mxu0
      %6128 = vmatprep.mubr.bf16.mxu0 0
      %6129 = vmatmul.mubr.bf16.gmra.mxu0 %v5919
      %v6130 = vpop.f32.mrf.mxu0
      %v6131 = vadd.f32 0.0, %v6130
      %v6132 = vpop.f32.mrf.mxu0
      %v6133 = vpop.f32.mrf.mxu0
      %v6134 = vadd.f32 0.0, %v6133
      %v6135 = vpop.f32.mrf.mxu0
      %6136 = vmatprep.mubr.bf16.mxu0 0
      %6137 = vmatmul.mubr.bf16.gmra.mxu0 %v5920
      %v6138 = vpop.f32.mrf.mxu0
      %v6139 = vadd.f32 0.0, %v6138
      %v6140 = vpop.f32.mrf.mxu0
      %v6141 = vpop.f32.mrf.mxu0
      %v6142 = vadd.f32 0.0, %v6141
      %v6143 = vpop.f32.mrf.mxu0
      %6144 = vmatprep.mubr.bf16.mxu0 0
      %6145 = vmatmul.mubr.bf16.gmra.mxu0 %v5921
      %v6146 = vpop.f32.mrf.mxu0
      %v6147 = vadd.f32 0.0, %v6146
      %v6148 = vpop.f32.mrf.mxu0
      %v6149 = vpop.f32.mrf.mxu0
      %v6150 = vadd.f32 0.0, %v6149
      %v6151 = vpop.f32.mrf.mxu0
      %6152 = vmatprep.mubr.bf16.mxu0 0
      %6153 = vmatmul.mubr.bf16.gmra.mxu0 %v5922
      %v6154 = vpop.f32.mrf.mxu0
      %v6155 = vadd.f32 0.0, %v6154
      %v6156 = vpop.f32.mrf.mxu0
      %v6157 = vpop.f32.mrf.mxu0
      %v6158 = vadd.f32 0.0, %v6157
      %v6159 = vpop.f32.mrf.mxu0
      %6160 = vmatprep.mubr.bf16.mxu0 0
      %6161 = vmatmul.mubr.bf16.gmra.mxu0 %v5923
      %v6162 = vpop.f32.mrf.mxu0
      %v6163 = vadd.f32 0.0, %v6162
      %v6164 = vpop.f32.mrf.mxu0
      %v6165 = vpop.f32.mrf.mxu0
      %v6166 = vadd.f32 0.0, %v6165
      %v6167 = vpop.f32.mrf.mxu0
      %6168 = vmatprep.mubr.bf16.mxu0 0
      %6169 = vmatmul.mubr.bf16.gmra.mxu0 %v5924
      %v6170 = vpop.f32.mrf.mxu0
      %v6171 = vadd.f32 0.0, %v6170
      %v6172 = vpop.f32.mrf.mxu0
      %v6173 = vpop.f32.mrf.mxu0
      %v6174 = vadd.f32 0.0, %v6173
      %v6175 = vpop.f32.mrf.mxu0
      %6176 = vmatprep.mubr.bf16.mxu0 0
      %6177 = vmatmul.mubr.bf16.gmra.mxu0 %v5925
      %v6178 = vpop.f32.mrf.mxu0
      %v6179 = vadd.f32 0.0, %v6178
      %v6180 = vpop.f32.mrf.mxu0
      %v6181 = vpop.f32.mrf.mxu0
      %v6182 = vadd.f32 0.0, %v6181
      %v6183 = vpop.f32.mrf.mxu0
      %6184 = vmatprep.mubr.bf16.mxu0 0
      %6185 = vmatmul.mubr.bf16.gmra.mxu0 %v5926
      %v6186 = vpop.f32.mrf.mxu0
      %v6187 = vadd.f32 0.0, %v6186
      %v6188 = vpop.f32.mrf.mxu0
      %v6189 = vpop.f32.mrf.mxu0
      %v6190 = vpop.f32.mrf.mxu0
      %6191 = vdwg.mxu0
      %v6192 = vadd.f32 %v5824, %v6027
      %v6193 = vadd.f32 %v5825, %v6030
      %v6194 = vadd.f32 %v5826, %v6035
      %v6195 = vadd.f32 %v5827, %v6038
      %v6196 = vadd.f32 %v5828, %v6043
      %v6197 = vadd.f32 %v5829, %v6046
      %v6198 = vadd.f32 %v5830, %v6051
      %v6199 = vadd.f32 %v5831, %v6054
      %v6200 = vadd.f32 %v5832, %v6059
      %v6201 = vadd.f32 %v5833, %v6062
      %v6202 = vadd.f32 %v5834, %v6067
      %v6203 = vadd.f32 %v5835, %v6070
      %v6204 = vadd.f32 %v5836, %v6075
      %v6205 = vadd.f32 %v5837, %v6078
      %v6206 = vadd.f32 %v5838, %v6083
      %v6207 = vadd.f32 %v5839, %v6086
      %v6208 = vadd.f32 %v5840, %v6091
      %v6209 = vadd.f32 %v5841, %v6094
      %v6210 = vadd.f32 %v5842, %v6099
      %v6211 = vadd.f32 %v5843, %v6102
      %v6212 = vadd.f32 %v5844, %v6107
      %v6213 = vadd.f32 %v5845, %v6110
      %v6214 = vadd.f32 %v5846, %v6115
      %v6215 = vadd.f32 %v5847, %v6118
      %v6216 = vadd.f32 %v5848, %v6123
      %v6217 = vadd.f32 %v5849, %v6126
      %v6218 = vadd.f32 %v5850, %v6131
      %v6219 = vadd.f32 %v5851, %v6134
      %v6220 = vadd.f32 %v5852, %v6139
      %v6221 = vadd.f32 %v5853, %v6142
      %v6222 = vadd.f32 %v5854, %v6147
      %v6223 = vadd.f32 %v5855, %v6150
      %v6224 = vadd.f32 %v5856, %v6155
      %v6225 = vadd.f32 %v5857, %v6158
      %v6226 = vadd.f32 %v5858, %v6163
      %v6227 = vadd.f32 %v5859, %v6166
      %v6228 = vadd.f32 %v5860, %v6171
      %v6229 = vadd.f32 %v5861, %v6174
      %v6230 = vadd.f32 %v5862, %v6179
      %v6231 = vadd.f32 %v5863, %v6182
      %v6232 = vadd.f32 %v5864, %v6187
      %v6233 = vld [vmem:[#allocation2 + $0x19] sm:$0xff]
      %v6234 = vld [vmem:[#allocation2 + $0x21] sm:$0xff]
      %v6235 = vld [vmem:[#allocation2 + $0x29] sm:$0xff]
      %v6236 = vld [vmem:[#allocation2 + $0x31] sm:$0xff]
      %v6237 = vld [vmem:[#allocation2 + $0x39] sm:$0xff]
      %v6238 = vld [vmem:[#allocation2 + $0x41] sm:$0xff]
      %v6239 = vld [vmem:[#allocation2 + $0x49] sm:$0xff]
      %v6240 = vld [vmem:[#allocation2 + $0x51] sm:$0xff]
      %v6241 = vld [vmem:[#allocation2 + $0x59] sm:$0xff]
      %v6242 = vld [vmem:[#allocation2 + $0x61] sm:$0xff]
      %v6243 = vld [vmem:[#allocation2 + $0x69] sm:$0xff]
      %v6244 = vld [vmem:[#allocation2 + $0x71] sm:$0xff]
      %v6245 = vld [vmem:[#allocation2 + $0x79] sm:$0xff]
      %v6246 = vld [vmem:[#allocation2 + $0x81] sm:$0xff]
      %v6247 = vld [vmem:[#allocation2 + $0x89] sm:$0xff]
      %v6248 = vld [vmem:[#allocation2 + $0x91] sm:$0xff]
      %v6249 = vld [vmem:[#allocation2 + $0x99] sm:$0xff]
      %v6250 = vld [vmem:[#allocation2 + $0xa1] sm:$0xff]
      %v6251 = vld [vmem:[#allocation2 + $0xa9] sm:$0xff]
      %v6252 = vld [vmem:[#allocation2 + $0xb1] sm:$0xff]
      %v6253 = vld [vmem:[#allocation2 + $0xb9] sm:$0xff]
      %v6254 = vld [vmem:[#allocation2 + $0xc1] sm:$0xff]
      %v6255 = vld [vmem:[#allocation2 + $0xc9] sm:$0xff]
      %v6256 = vld [vmem:[#allocation2 + $0xd1] sm:$0xff]
      %v6257 = vld [vmem:[#allocation2 + $0xd9] sm:$0xff]
      %v6258 = vld [vmem:[#allocation2 + $0xe1] sm:$0xff]
      %v6259 = vld [vmem:[#allocation2 + $0xe9] sm:$0xff]
      %v6260 = vld [vmem:[#allocation2 + $0xf1] sm:$0xff]
      %v6261 = vld [vmem:[#allocation2 + $0xf9] sm:$0xff]
      %v6262 = vld [vmem:[#allocation2 + $0x101] sm:$0xff]
      %v6263 = vld [vmem:[#allocation2 + $0x109] sm:$0xff]
      %v6264 = vld [vmem:[#allocation2 + $0x111] sm:$0xff]
      %v6265 = vld [vmem:[#allocation2 + $0x119] sm:$0xff]
      %v6266 = vld [vmem:[#allocation2 + $0x121] sm:$0xff]
      %v6267 = vld [vmem:[#allocation2 + $0x129] sm:$0xff]
      %v6268 = vld [vmem:[#allocation2 + $0x131] sm:$0xff]
      %v6269 = vld [vmem:[#allocation2 + $0x139] sm:$0xff]
      %v6270 = vld [vmem:[#allocation2 + $0x141] sm:$0xff]
      %v6271 = vld [vmem:[#allocation2 + $0x149] sm:$0xff]
      %v6272 = vld [vmem:[#allocation2 + $0x151] sm:$0xff]
      %v6273 = vld [vmem:[#allocation2 + $0x159] sm:$0xf]
      %v6274 = vpack.c.bf16 %v6234, %v6233
      %v6275 = vpack.c.bf16 %v6236, %v6235
      %v6276 = vpack.c.bf16 %v6238, %v6237
      %v6277 = vpack.c.bf16 %v6240, %v6239
      %v6278 = vpack.c.bf16 %v6242, %v6241
      %v6279 = vpack.c.bf16 %v6244, %v6243
      %v6280 = vpack.c.bf16 %v6246, %v6245
      %v6281 = vpack.c.bf16 %v6248, %v6247
      %v6282 = vpack.c.bf16 %v6250, %v6249
      %v6283 = vpack.c.bf16 %v6252, %v6251
      %v6284 = vpack.c.bf16 %v6254, %v6253
      %v6285 = vpack.c.bf16 %v6256, %v6255
      %v6286 = vpack.c.bf16 %v6258, %v6257
      %v6287 = vpack.c.bf16 %v6260, %v6259
      %v6288 = vpack.c.bf16 %v6262, %v6261
      %v6289 = vpack.c.bf16 %v6264, %v6263
      %v6290 = vpack.c.bf16 %v6266, %v6265
      %v6291 = vpack.c.bf16 %v6268, %v6267
      %v6292 = vpack.c.bf16 %v6270, %v6269
      %v6293 = vpack.c.bf16 %v6272, %v6271
      %v6294 = vpack.c.bf16 %v6273, %v6273
      %s6295 = scalar_lea.vmem %s4, 320
      %v6296 = vld [vmem:[%s6295] sm:$0xf]
      %v6297 = vld [vmem:[%s6295 + $0x4] sm:$0xf]
      %v6298 = vld [vmem:[%s6295 + $0x8] sm:$0xf]
      %v6299 = vld [vmem:[%s6295 + $0xc] sm:$0xf]
      %v6300 = vld [vmem:[%s6295 + $0x10] sm:$0xf]
      %v6301 = vld [vmem:[%s6295 + $0x14] sm:$0xf]
      %v6302 = vld [vmem:[%s6295 + $0x18] sm:$0xf]
      %v6303 = vld [vmem:[%s6295 + $0x1c] sm:$0xf]
      %v6304 = vld [vmem:[%s6295 + $0x20] sm:$0xf]
      %v6305 = vld [vmem:[%s6295 + $0x24] sm:$0xf]
      %v6306 = vld [vmem:[%s6295 + $0x28] sm:$0xf]
      %v6307 = vld [vmem:[%s6295 + $0x2c] sm:$0xf]
      %v6308 = vld [vmem:[%s6295 + $0x30] sm:$0xf]
      %v6309 = vld [vmem:[%s6295 + $0x34] sm:$0xf]
      %v6310 = vld [vmem:[%s6295 + $0x38] sm:$0xf]
      %v6311 = vld [vmem:[%s6295 + $0x3c] sm:$0xf]
      %v6328 = vunpack.c.l.b16 %v6296
      %v6329 = vunpack.c.l.b16 %v6297
      %v6330 = vunpack.c.l.b16 %v6298
      %v6331 = vunpack.c.l.b16 %v6299
      %v6332 = vunpack.c.l.b16 %v6300
      %v6333 = vunpack.c.l.b16 %v6301
      %v6334 = vunpack.c.l.b16 %v6302
      %v6335 = vunpack.c.l.b16 %v6303
      %v6336 = vunpack.c.l.b16 %v6304
      %v6337 = vunpack.c.l.b16 %v6305
      %v6338 = vunpack.c.l.b16 %v6306
      %v6339 = vunpack.c.l.b16 %v6307
      %v6340 = vunpack.c.l.b16 %v6308
      %v6341 = vunpack.c.l.b16 %v6309
      %v6342 = vunpack.c.l.b16 %v6310
      %v6343 = vunpack.c.l.b16 %v6311
      %v6344 = vpack.c.b16 %v6329, %v6328
      %v6345 = vpack.c.b16 %v6331, %v6330
      %v6346 = vpack.c.b16 %v6333, %v6332
      %v6347 = vpack.c.b16 %v6335, %v6334
      %v6348 = vpack.c.b16 %v6337, %v6336
      %v6349 = vpack.c.b16 %v6339, %v6338
      %v6350 = vpack.c.b16 %v6341, %v6340
      %v6351 = vpack.c.b16 %v6343, %v6342
      %6360 = vmatprep.subr.bf16.mxu0 0
      %6361 = vmatpush1.bf16.msra.mxu0 %v6351
      %6362 = vmatprep.subr.bf16.mxu0 0
      %6363 = vmatpush1.bf16.msra.mxu0 %v6350
      %6364 = vmatprep.subr.bf16.mxu0 0
      %6365 = vmatpush1.bf16.msra.mxu0 %v6349
      %6366 = vmatprep.subr.bf16.mxu0 0
      %6367 = vmatpush1.bf16.msra.mxu0 %v6348
      %6368 = vmatprep.subr.bf16.mxu0 0
      %6369 = vmatpush1.bf16.msra.mxu0 %v6347
      %6370 = vmatprep.subr.bf16.mxu0 0
      %6371 = vmatpush1.bf16.msra.mxu0 %v6346
      %6372 = vmatprep.subr.bf16.mxu0 0
      %6373 = vmatpush1.bf16.msra.mxu0 %v6345
      %6374 = vmatprep.subr.bf16.mxu0 0
      %6375 = vmatpush1.bf16.msra.mxu0 %v6344
      %6376 = vmatprep.subr.bf16.mxu0 0
      %6377 = vmatpush2.bf16.msra.mxu0 0
      %6378 = vmatprep.subr.bf16.mxu0 0
      %6379 = vmatpush2.bf16.msra.mxu0 0
      %6380 = vmatprep.subr.bf16.mxu0 0
      %6381 = vmatpush2.bf16.msra.mxu0 0
      %6382 = vmatprep.subr.bf16.mxu0 0
      %6383 = vmatpush2.bf16.msra.mxu0 0
      %6384 = vmatprep.subr.bf16.mxu0 0
      %6385 = vmatpush2.bf16.msra.mxu0 0
      %6386 = vmatprep.subr.bf16.mxu0 0
      %6387 = vmatpush2.bf16.msra.mxu0 0
      %6388 = vmatprep.subr.bf16.mxu0 0
      %6389 = vmatpush2.bf16.msra.mxu0 0
      %6390 = vmatprep.subr.bf16.mxu0 0
      %6391 = vmatpush2.bf16.msra.mxu0 0
      %6392 = vmatprep.mubr.bf16.mxu0 0
      %6393 = vmatmul.mubr.bf16.gmra.mxu0 %v6274
      %v6394 = vpop.f32.mrf.mxu0
      %v6395 = vadd.f32 0.0, %v6394
      %v6396 = vpop.f32.mrf.mxu0
      %v6397 = vpop.f32.mrf.mxu0
      %v6398 = vadd.f32 0.0, %v6397
      %v6399 = vpop.f32.mrf.mxu0
      %6400 = vmatprep.mubr.bf16.mxu0 0
      %6401 = vmatmul.mubr.bf16.gmra.mxu0 %v6275
      %v6402 = vpop.f32.mrf.mxu0
      %v6403 = vadd.f32 0.0, %v6402
      %v6404 = vpop.f32.mrf.mxu0
      %v6405 = vpop.f32.mrf.mxu0
      %v6406 = vadd.f32 0.0, %v6405
      %v6407 = vpop.f32.mrf.mxu0
      %6408 = vmatprep.mubr.bf16.mxu0 0
      %6409 = vmatmul.mubr.bf16.gmra.mxu0 %v6276
      %v6410 = vpop.f32.mrf.mxu0
      %v6411 = vadd.f32 0.0, %v6410
      %v6412 = vpop.f32.mrf.mxu0
      %v6413 = vpop.f32.mrf.mxu0
      %v6414 = vadd.f32 0.0, %v6413
      %v6415 = vpop.f32.mrf.mxu0
      %6416 = vmatprep.mubr.bf16.mxu0 0
      %6417 = vmatmul.mubr.bf16.gmra.mxu0 %v6277
      %v6418 = vpop.f32.mrf.mxu0
      %v6419 = vadd.f32 0.0, %v6418
      %v6420 = vpop.f32.mrf.mxu0
      %v6421 = vpop.f32.mrf.mxu0
      %v6422 = vadd.f32 0.0, %v6421
      %v6423 = vpop.f32.mrf.mxu0
      %6424 = vmatprep.mubr.bf16.mxu0 0
      %6425 = vmatmul.mubr.bf16.gmra.mxu0 %v6278
      %v6426 = vpop.f32.mrf.mxu0
      %v6427 = vadd.f32 0.0, %v6426
      %v6428 = vpop.f32.mrf.mxu0
      %v6429 = vpop.f32.mrf.mxu0
      %v6430 = vadd.f32 0.0, %v6429
      %v6431 = vpop.f32.mrf.mxu0
      %6432 = vmatprep.mubr.bf16.mxu0 0
      %6433 = vmatmul.mubr.bf16.gmra.mxu0 %v6279
      %v6434 = vpop.f32.mrf.mxu0
      %v6435 = vadd.f32 0.0, %v6434
      %v6436 = vpop.f32.mrf.mxu0
      %v6437 = vpop.f32.mrf.mxu0
      %v6438 = vadd.f32 0.0, %v6437
      %v6439 = vpop.f32.mrf.mxu0
      %6440 = vmatprep.mubr.bf16.mxu0 0
      %6441 = vmatmul.mubr.bf16.gmra.mxu0 %v6280
      %v6442 = vpop.f32.mrf.mxu0
      %v6443 = vadd.f32 0.0, %v6442
      %v6444 = vpop.f32.mrf.mxu0
      %v6445 = vpop.f32.mrf.mxu0
      %v6446 = vadd.f32 0.0, %v6445
      %v6447 = vpop.f32.mrf.mxu0
      %6448 = vmatprep.mubr.bf16.mxu0 0
      %6449 = vmatmul.mubr.bf16.gmra.mxu0 %v6281
      %v6450 = vpop.f32.mrf.mxu0
      %v6451 = vadd.f32 0.0, %v6450
      %v6452 = vpop.f32.mrf.mxu0
      %v6453 = vpop.f32.mrf.mxu0
      %v6454 = vadd.f32 0.0, %v6453
      %v6455 = vpop.f32.mrf.mxu0
      %6456 = vmatprep.mubr.bf16.mxu0 0
      %6457 = vmatmul.mubr.bf16.gmra.mxu0 %v6282
      %v6458 = vpop.f32.mrf.mxu0
      %v6459 = vadd.f32 0.0, %v6458
      %v6460 = vpop.f32.mrf.mxu0
      %v6461 = vpop.f32.mrf.mxu0
      %v6462 = vadd.f32 0.0, %v6461
      %v6463 = vpop.f32.mrf.mxu0
      %6464 = vmatprep.mubr.bf16.mxu0 0
      %6465 = vmatmul.mubr.bf16.gmra.mxu0 %v6283
      %v6466 = vpop.f32.mrf.mxu0
      %v6467 = vadd.f32 0.0, %v6466
      %v6468 = vpop.f32.mrf.mxu0
      %v6469 = vpop.f32.mrf.mxu0
      %v6470 = vadd.f32 0.0, %v6469
      %v6471 = vpop.f32.mrf.mxu0
      %6472 = vmatprep.mubr.bf16.mxu0 0
      %6473 = vmatmul.mubr.bf16.gmra.mxu0 %v6284
      %v6474 = vpop.f32.mrf.mxu0
      %v6475 = vadd.f32 0.0, %v6474
      %v6476 = vpop.f32.mrf.mxu0
      %v6477 = vpop.f32.mrf.mxu0
      %v6478 = vadd.f32 0.0, %v6477
      %v6479 = vpop.f32.mrf.mxu0
      %6480 = vmatprep.mubr.bf16.mxu0 0
      %6481 = vmatmul.mubr.bf16.gmra.mxu0 %v6285
      %v6482 = vpop.f32.mrf.mxu0
      %v6483 = vadd.f32 0.0, %v6482
      %v6484 = vpop.f32.mrf.mxu0
      %v6485 = vpop.f32.mrf.mxu0
      %v6486 = vadd.f32 0.0, %v6485
      %v6487 = vpop.f32.mrf.mxu0
      %6488 = vmatprep.mubr.bf16.mxu0 0
      %6489 = vmatmul.mubr.bf16.gmra.mxu0 %v6286
      %v6490 = vpop.f32.mrf.mxu0
      %v6491 = vadd.f32 0.0, %v6490
      %v6492 = vpop.f32.mrf.mxu0
      %v6493 = vpop.f32.mrf.mxu0
      %v6494 = vadd.f32 0.0, %v6493
      %v6495 = vpop.f32.mrf.mxu0
      %6496 = vmatprep.mubr.bf16.mxu0 0
      %6497 = vmatmul.mubr.bf16.gmra.mxu0 %v6287
      %v6498 = vpop.f32.mrf.mxu0
      %v6499 = vadd.f32 0.0, %v6498
      %v6500 = vpop.f32.mrf.mxu0
      %v6501 = vpop.f32.mrf.mxu0
      %v6502 = vadd.f32 0.0, %v6501
      %v6503 = vpop.f32.mrf.mxu0
      %6504 = vmatprep.mubr.bf16.mxu0 0
      %6505 = vmatmul.mubr.bf16.gmra.mxu0 %v6288
      %v6506 = vpop.f32.mrf.mxu0
      %v6507 = vadd.f32 0.0, %v6506
      %v6508 = vpop.f32.mrf.mxu0
      %v6509 = vpop.f32.mrf.mxu0
      %v6510 = vadd.f32 0.0, %v6509
      %v6511 = vpop.f32.mrf.mxu0
      %6512 = vmatprep.mubr.bf16.mxu0 0
      %6513 = vmatmul.mubr.bf16.gmra.mxu0 %v6289
      %v6514 = vpop.f32.mrf.mxu0
      %v6515 = vadd.f32 0.0, %v6514
      %v6516 = vpop.f32.mrf.mxu0
      %v6517 = vpop.f32.mrf.mxu0
      %v6518 = vadd.f32 0.0, %v6517
      %v6519 = vpop.f32.mrf.mxu0
      %6520 = vmatprep.mubr.bf16.mxu0 0
      %6521 = vmatmul.mubr.bf16.gmra.mxu0 %v6290
      %v6522 = vpop.f32.mrf.mxu0
      %v6523 = vadd.f32 0.0, %v6522
      %v6524 = vpop.f32.mrf.mxu0
      %v6525 = vpop.f32.mrf.mxu0
      %v6526 = vadd.f32 0.0, %v6525
      %v6527 = vpop.f32.mrf.mxu0
      %6528 = vmatprep.mubr.bf16.mxu0 0
      %6529 = vmatmul.mubr.bf16.gmra.mxu0 %v6291
      %v6530 = vpop.f32.mrf.mxu0
      %v6531 = vadd.f32 0.0, %v6530
      %v6532 = vpop.f32.mrf.mxu0
      %v6533 = vpop.f32.mrf.mxu0
      %v6534 = vadd.f32 0.0, %v6533
      %v6535 = vpop.f32.mrf.mxu0
      %6536 = vmatprep.mubr.bf16.mxu0 0
      %6537 = vmatmul.mubr.bf16.gmra.mxu0 %v6292
      %v6538 = vpop.f32.mrf.mxu0
      %v6539 = vadd.f32 0.0, %v6538
      %v6540 = vpop.f32.mrf.mxu0
      %v6541 = vpop.f32.mrf.mxu0
      %v6542 = vadd.f32 0.0, %v6541
      %v6543 = vpop.f32.mrf.mxu0
      %6544 = vmatprep.mubr.bf16.mxu0 0
      %6545 = vmatmul.mubr.bf16.gmra.mxu0 %v6293
      %v6546 = vpop.f32.mrf.mxu0
      %v6547 = vadd.f32 0.0, %v6546
      %v6548 = vpop.f32.mrf.mxu0
      %v6549 = vpop.f32.mrf.mxu0
      %v6550 = vadd.f32 0.0, %v6549
      %v6551 = vpop.f32.mrf.mxu0
      %6552 = vmatprep.mubr.bf16.mxu0 0
      %6553 = vmatmul.mubr.bf16.gmra.mxu0 %v6294
      %v6554 = vpop.f32.mrf.mxu0
      %v6555 = vadd.f32 0.0, %v6554
      %v6556 = vpop.f32.mrf.mxu0
      %v6557 = vpop.f32.mrf.mxu0
      %v6558 = vpop.f32.mrf.mxu0
      %6559 = vdwg.mxu0
      %v6560 = vadd.f32 %v6192, %v6395
      %v6561 = vadd.f32 %v6193, %v6398
      %v6562 = vadd.f32 %v6194, %v6403
      %v6563 = vadd.f32 %v6195, %v6406
      %v6564 = vadd.f32 %v6196, %v6411
      %v6565 = vadd.f32 %v6197, %v6414
      %v6566 = vadd.f32 %v6198, %v6419
      %v6567 = vadd.f32 %v6199, %v6422
      %v6568 = vadd.f32 %v6200, %v6427
      %v6569 = vadd.f32 %v6201, %v6430
      %v6570 = vadd.f32 %v6202, %v6435
      %v6571 = vadd.f32 %v6203, %v6438
      %v6572 = vadd.f32 %v6204, %v6443
      %v6573 = vadd.f32 %v6205, %v6446
      %v6574 = vadd.f32 %v6206, %v6451
      %v6575 = vadd.f32 %v6207, %v6454
      %v6576 = vadd.f32 %v6208, %v6459
      %v6577 = vadd.f32 %v6209, %v6462
      %v6578 = vadd.f32 %v6210, %v6467
      %v6579 = vadd.f32 %v6211, %v6470
      %v6580 = vadd.f32 %v6212, %v6475
      %v6581 = vadd.f32 %v6213, %v6478
      %v6582 = vadd.f32 %v6214, %v6483
      %v6583 = vadd.f32 %v6215, %v6486
      %v6584 = vadd.f32 %v6216, %v6491
      %v6585 = vadd.f32 %v6217, %v6494
      %v6586 = vadd.f32 %v6218, %v6499
      %v6587 = vadd.f32 %v6219, %v6502
      %v6588 = vadd.f32 %v6220, %v6507
      %v6589 = vadd.f32 %v6221, %v6510
      %v6590 = vadd.f32 %v6222, %v6515
      %v6591 = vadd.f32 %v6223, %v6518
      %v6592 = vadd.f32 %v6224, %v6523
      %v6593 = vadd.f32 %v6225, %v6526
      %v6594 = vadd.f32 %v6226, %v6531
      %v6595 = vadd.f32 %v6227, %v6534
      %v6596 = vadd.f32 %v6228, %v6539
      %v6597 = vadd.f32 %v6229, %v6542
      %v6598 = vadd.f32 %v6230, %v6547
      %v6599 = vadd.f32 %v6231, %v6550
      %v6600 = vadd.f32 %v6232, %v6555
      %v6601 = vld [vmem:[#allocation2 + $0x29] sm:$0xff]
      %v6602 = vld [vmem:[#allocation2 + $0x31] sm:$0xff]
      %v6603 = vld [vmem:[#allocation2 + $0x39] sm:$0xff]
      %v6604 = vld [vmem:[#allocation2 + $0x41] sm:$0xff]
      %v6605 = vld [vmem:[#allocation2 + $0x49] sm:$0xff]
      %v6606 = vld [vmem:[#allocation2 + $0x51] sm:$0xff]
      %v6607 = vld [vmem:[#allocation2 + $0x59] sm:$0xff]
      %v6608 = vld [vmem:[#allocation2 + $0x61] sm:$0xff]
      %v6609 = vld [vmem:[#allocation2 + $0x69] sm:$0xff]
      %v6610 = vld [vmem:[#allocation2 + $0x71] sm:$0xff]
      %v6611 = vld [vmem:[#allocation2 + $0x79] sm:$0xff]
      %v6612 = vld [vmem:[#allocation2 + $0x81] sm:$0xff]
      %v6613 = vld [vmem:[#allocation2 + $0x89] sm:$0xff]
      %v6614 = vld [vmem:[#allocation2 + $0x91] sm:$0xff]
      %v6615 = vld [vmem:[#allocation2 + $0x99] sm:$0xff]
      %v6616 = vld [vmem:[#allocation2 + $0xa1] sm:$0xff]
      %v6617 = vld [vmem:[#allocation2 + $0xa9] sm:$0xff]
      %v6618 = vld [vmem:[#allocation2 + $0xb1] sm:$0xff]
      %v6619 = vld [vmem:[#allocation2 + $0xb9] sm:$0xff]
      %v6620 = vld [vmem:[#allocation2 + $0xc1] sm:$0xff]
      %v6621 = vld [vmem:[#allocation2 + $0xc9] sm:$0xff]
      %v6622 = vld [vmem:[#allocation2 + $0xd1] sm:$0xff]
      %v6623 = vld [vmem:[#allocation2 + $0xd9] sm:$0xff]
      %v6624 = vld [vmem:[#allocation2 + $0xe1] sm:$0xff]
      %v6625 = vld [vmem:[#allocation2 + $0xe9] sm:$0xff]
      %v6626 = vld [vmem:[#allocation2 + $0xf1] sm:$0xff]
      %v6627 = vld [vmem:[#allocation2 + $0xf9] sm:$0xff]
      %v6628 = vld [vmem:[#allocation2 + $0x101] sm:$0xff]
      %v6629 = vld [vmem:[#allocation2 + $0x109] sm:$0xff]
      %v6630 = vld [vmem:[#allocation2 + $0x111] sm:$0xff]
      %v6631 = vld [vmem:[#allocation2 + $0x119] sm:$0xff]
      %v6632 = vld [vmem:[#allocation2 + $0x121] sm:$0xff]
      %v6633 = vld [vmem:[#allocation2 + $0x129] sm:$0xff]
      %v6634 = vld [vmem:[#allocation2 + $0x131] sm:$0xff]
      %v6635 = vld [vmem:[#allocation2 + $0x139] sm:$0xff]
      %v6636 = vld [vmem:[#allocation2 + $0x141] sm:$0xff]
      %v6637 = vld [vmem:[#allocation2 + $0x149] sm:$0xff]
      %v6638 = vld [vmem:[#allocation2 + $0x151] sm:$0xff]
      %v6639 = vld [vmem:[#allocation2 + $0x159] sm:$0xff]
      %v6640 = vld [vmem:[#allocation2 + $0x161] sm:$0xff]
      %v6641 = vld [vmem:[#allocation2 + $0x169] sm:$0xf]
      %v6642 = vpack.c.bf16 %v6602, %v6601
      %v6643 = vpack.c.bf16 %v6604, %v6603
      %v6644 = vpack.c.bf16 %v6606, %v6605
      %v6645 = vpack.c.bf16 %v6608, %v6607
      %v6646 = vpack.c.bf16 %v6610, %v6609
      %v6647 = vpack.c.bf16 %v6612, %v6611
      %v6648 = vpack.c.bf16 %v6614, %v6613
      %v6649 = vpack.c.bf16 %v6616, %v6615
      %v6650 = vpack.c.bf16 %v6618, %v6617
      %v6651 = vpack.c.bf16 %v6620, %v6619
      %v6652 = vpack.c.bf16 %v6622, %v6621
      %v6653 = vpack.c.bf16 %v6624, %v6623
      %v6654 = vpack.c.bf16 %v6626, %v6625
      %v6655 = vpack.c.bf16 %v6628, %v6627
      %v6656 = vpack.c.bf16 %v6630, %v6629
      %v6657 = vpack.c.bf16 %v6632, %v6631
      %v6658 = vpack.c.bf16 %v6634, %v6633
      %v6659 = vpack.c.bf16 %v6636, %v6635
      %v6660 = vpack.c.bf16 %v6638, %v6637
      %v6661 = vpack.c.bf16 %v6640, %v6639
      %v6662 = vpack.c.bf16 %v6641, %v6641
      %s6663 = scalar_lea.vmem %s4, 384
      %v6664 = vld [vmem:[%s6663] sm:$0xf]
      %v6665 = vld [vmem:[%s6663 + $0x4] sm:$0xf]
      %v6666 = vld [vmem:[%s6663 + $0x8] sm:$0xf]
      %v6667 = vld [vmem:[%s6663 + $0xc] sm:$0xf]
      %v6668 = vld [vmem:[%s6663 + $0x10] sm:$0xf]
      %v6669 = vld [vmem:[%s6663 + $0x14] sm:$0xf]
      %v6670 = vld [vmem:[%s6663 + $0x18] sm:$0xf]
      %v6671 = vld [vmem:[%s6663 + $0x1c] sm:$0xf]
      %v6672 = vld [vmem:[%s6663 + $0x20] sm:$0xf]
      %v6673 = vld [vmem:[%s6663 + $0x24] sm:$0xf]
      %v6674 = vld [vmem:[%s6663 + $0x28] sm:$0xf]
      %v6675 = vld [vmem:[%s6663 + $0x2c] sm:$0xf]
      %v6676 = vld [vmem:[%s6663 + $0x30] sm:$0xf]
      %v6677 = vld [vmem:[%s6663 + $0x34] sm:$0xf]
      %v6678 = vld [vmem:[%s6663 + $0x38] sm:$0xf]
      %v6679 = vld [vmem:[%s6663 + $0x3c] sm:$0xf]
      %v6696 = vunpack.c.l.b16 %v6664
      %v6697 = vunpack.c.l.b16 %v6665
      %v6698 = vunpack.c.l.b16 %v6666
      %v6699 = vunpack.c.l.b16 %v6667
      %v6700 = vunpack.c.l.b16 %v6668
      %v6701 = vunpack.c.l.b16 %v6669
      %v6702 = vunpack.c.l.b16 %v6670
      %v6703 = vunpack.c.l.b16 %v6671
      %v6704 = vunpack.c.l.b16 %v6672
      %v6705 = vunpack.c.l.b16 %v6673
      %v6706 = vunpack.c.l.b16 %v6674
      %v6707 = vunpack.c.l.b16 %v6675
      %v6708 = vunpack.c.l.b16 %v6676
      %v6709 = vunpack.c.l.b16 %v6677
      %v6710 = vunpack.c.l.b16 %v6678
      %v6711 = vunpack.c.l.b16 %v6679
      %v6712 = vpack.c.b16 %v6697, %v6696
      %v6713 = vpack.c.b16 %v6699, %v6698
      %v6714 = vpack.c.b16 %v6701, %v6700
      %v6715 = vpack.c.b16 %v6703, %v6702
      %v6716 = vpack.c.b16 %v6705, %v6704
      %v6717 = vpack.c.b16 %v6707, %v6706
      %v6718 = vpack.c.b16 %v6709, %v6708
      %v6719 = vpack.c.b16 %v6711, %v6710
      %6728 = vmatprep.subr.bf16.mxu0 0
      %6729 = vmatpush1.bf16.msra.mxu0 %v6719
      %6730 = vmatprep.subr.bf16.mxu0 0
      %6731 = vmatpush1.bf16.msra.mxu0 %v6718
      %6732 = vmatprep.subr.bf16.mxu0 0
      %6733 = vmatpush1.bf16.msra.mxu0 %v6717
      %6734 = vmatprep.subr.bf16.mxu0 0
      %6735 = vmatpush1.bf16.msra.mxu0 %v6716
      %6736 = vmatprep.subr.bf16.mxu0 0
      %6737 = vmatpush1.bf16.msra.mxu0 %v6715
      %6738 = vmatprep.subr.bf16.mxu0 0
      %6739 = vmatpush1.bf16.msra.mxu0 %v6714
      %6740 = vmatprep.subr.bf16.mxu0 0
      %6741 = vmatpush1.bf16.msra.mxu0 %v6713
      %6742 = vmatprep.subr.bf16.mxu0 0
      %6743 = vmatpush1.bf16.msra.mxu0 %v6712
      %6744 = vmatprep.subr.bf16.mxu0 0
      %6745 = vmatpush2.bf16.msra.mxu0 0
      %6746 = vmatprep.subr.bf16.mxu0 0
      %6747 = vmatpush2.bf16.msra.mxu0 0
      %6748 = vmatprep.subr.bf16.mxu0 0
      %6749 = vmatpush2.bf16.msra.mxu0 0
      %6750 = vmatprep.subr.bf16.mxu0 0
      %6751 = vmatpush2.bf16.msra.mxu0 0
      %6752 = vmatprep.subr.bf16.mxu0 0
      %6753 = vmatpush2.bf16.msra.mxu0 0
      %6754 = vmatprep.subr.bf16.mxu0 0
      %6755 = vmatpush2.bf16.msra.mxu0 0
      %6756 = vmatprep.subr.bf16.mxu0 0
      %6757 = vmatpush2.bf16.msra.mxu0 0
      %6758 = vmatprep.subr.bf16.mxu0 0
      %6759 = vmatpush2.bf16.msra.mxu0 0
      %6760 = vmatprep.mubr.bf16.mxu0 0
      %6761 = vmatmul.mubr.bf16.gmra.mxu0 %v6642
      %v6762 = vpop.f32.mrf.mxu0
      %v6763 = vadd.f32 0.0, %v6762
      %v6764 = vpop.f32.mrf.mxu0
      %v6765 = vpop.f32.mrf.mxu0
      %v6766 = vadd.f32 0.0, %v6765
      %v6767 = vpop.f32.mrf.mxu0
      %6768 = vmatprep.mubr.bf16.mxu0 0
      %6769 = vmatmul.mubr.bf16.gmra.mxu0 %v6643
      %v6770 = vpop.f32.mrf.mxu0
      %v6771 = vadd.f32 0.0, %v6770
      %v6772 = vpop.f32.mrf.mxu0
      %v6773 = vpop.f32.mrf.mxu0
      %v6774 = vadd.f32 0.0, %v6773
      %v6775 = vpop.f32.mrf.mxu0
      %6776 = vmatprep.mubr.bf16.mxu0 0
      %6777 = vmatmul.mubr.bf16.gmra.mxu0 %v6644
      %v6778 = vpop.f32.mrf.mxu0
      %v6779 = vadd.f32 0.0, %v6778
      %v6780 = vpop.f32.mrf.mxu0
      %v6781 = vpop.f32.mrf.mxu0
      %v6782 = vadd.f32 0.0, %v6781
      %v6783 = vpop.f32.mrf.mxu0
      %6784 = vmatprep.mubr.bf16.mxu0 0
      %6785 = vmatmul.mubr.bf16.gmra.mxu0 %v6645
      %v6786 = vpop.f32.mrf.mxu0
      %v6787 = vadd.f32 0.0, %v6786
      %v6788 = vpop.f32.mrf.mxu0
      %v6789 = vpop.f32.mrf.mxu0
      %v6790 = vadd.f32 0.0, %v6789
      %v6791 = vpop.f32.mrf.mxu0
      %6792 = vmatprep.mubr.bf16.mxu0 0
      %6793 = vmatmul.mubr.bf16.gmra.mxu0 %v6646
      %v6794 = vpop.f32.mrf.mxu0
      %v6795 = vadd.f32 0.0, %v6794
      %v6796 = vpop.f32.mrf.mxu0
      %v6797 = vpop.f32.mrf.mxu0
      %v6798 = vadd.f32 0.0, %v6797
      %v6799 = vpop.f32.mrf.mxu0
      %6800 = vmatprep.mubr.bf16.mxu0 0
      %6801 = vmatmul.mubr.bf16.gmra.mxu0 %v6647
      %v6802 = vpop.f32.mrf.mxu0
      %v6803 = vadd.f32 0.0, %v6802
      %v6804 = vpop.f32.mrf.mxu0
      %v6805 = vpop.f32.mrf.mxu0
      %v6806 = vadd.f32 0.0, %v6805
      %v6807 = vpop.f32.mrf.mxu0
      %6808 = vmatprep.mubr.bf16.mxu0 0
      %6809 = vmatmul.mubr.bf16.gmra.mxu0 %v6648
      %v6810 = vpop.f32.mrf.mxu0
      %v6811 = vadd.f32 0.0, %v6810
      %v6812 = vpop.f32.mrf.mxu0
      %v6813 = vpop.f32.mrf.mxu0
      %v6814 = vadd.f32 0.0, %v6813
      %v6815 = vpop.f32.mrf.mxu0
      %6816 = vmatprep.mubr.bf16.mxu0 0
      %6817 = vmatmul.mubr.bf16.gmra.mxu0 %v6649
      %v6818 = vpop.f32.mrf.mxu0
      %v6819 = vadd.f32 0.0, %v6818
      %v6820 = vpop.f32.mrf.mxu0
      %v6821 = vpop.f32.mrf.mxu0
      %v6822 = vadd.f32 0.0, %v6821
      %v6823 = vpop.f32.mrf.mxu0
      %6824 = vmatprep.mubr.bf16.mxu0 0
      %6825 = vmatmul.mubr.bf16.gmra.mxu0 %v6650
      %v6826 = vpop.f32.mrf.mxu0
      %v6827 = vadd.f32 0.0, %v6826
      %v6828 = vpop.f32.mrf.mxu0
      %v6829 = vpop.f32.mrf.mxu0
      %v6830 = vadd.f32 0.0, %v6829
      %v6831 = vpop.f32.mrf.mxu0
      %6832 = vmatprep.mubr.bf16.mxu0 0
      %6833 = vmatmul.mubr.bf16.gmra.mxu0 %v6651
      %v6834 = vpop.f32.mrf.mxu0
      %v6835 = vadd.f32 0.0, %v6834
      %v6836 = vpop.f32.mrf.mxu0
      %v6837 = vpop.f32.mrf.mxu0
      %v6838 = vadd.f32 0.0, %v6837
      %v6839 = vpop.f32.mrf.mxu0
      %6840 = vmatprep.mubr.bf16.mxu0 0
      %6841 = vmatmul.mubr.bf16.gmra.mxu0 %v6652
      %v6842 = vpop.f32.mrf.mxu0
      %v6843 = vadd.f32 0.0, %v6842
      %v6844 = vpop.f32.mrf.mxu0
      %v6845 = vpop.f32.mrf.mxu0
      %v6846 = vadd.f32 0.0, %v6845
      %v6847 = vpop.f32.mrf.mxu0
      %6848 = vmatprep.mubr.bf16.mxu0 0
      %6849 = vmatmul.mubr.bf16.gmra.mxu0 %v6653
      %v6850 = vpop.f32.mrf.mxu0
      %v6851 = vadd.f32 0.0, %v6850
      %v6852 = vpop.f32.mrf.mxu0
      %v6853 = vpop.f32.mrf.mxu0
      %v6854 = vadd.f32 0.0, %v6853
      %v6855 = vpop.f32.mrf.mxu0
      %6856 = vmatprep.mubr.bf16.mxu0 0
      %6857 = vmatmul.mubr.bf16.gmra.mxu0 %v6654
      %v6858 = vpop.f32.mrf.mxu0
      %v6859 = vadd.f32 0.0, %v6858
      %v6860 = vpop.f32.mrf.mxu0
      %v6861 = vpop.f32.mrf.mxu0
      %v6862 = vadd.f32 0.0, %v6861
      %v6863 = vpop.f32.mrf.mxu0
      %6864 = vmatprep.mubr.bf16.mxu0 0
      %6865 = vmatmul.mubr.bf16.gmra.mxu0 %v6655
      %v6866 = vpop.f32.mrf.mxu0
      %v6867 = vadd.f32 0.0, %v6866
      %v6868 = vpop.f32.mrf.mxu0
      %v6869 = vpop.f32.mrf.mxu0
      %v6870 = vadd.f32 0.0, %v6869
      %v6871 = vpop.f32.mrf.mxu0
      %6872 = vmatprep.mubr.bf16.mxu0 0
      %6873 = vmatmul.mubr.bf16.gmra.mxu0 %v6656
      %v6874 = vpop.f32.mrf.mxu0
      %v6875 = vadd.f32 0.0, %v6874
      %v6876 = vpop.f32.mrf.mxu0
      %v6877 = vpop.f32.mrf.mxu0
      %v6878 = vadd.f32 0.0, %v6877
      %v6879 = vpop.f32.mrf.mxu0
      %6880 = vmatprep.mubr.bf16.mxu0 0
      %6881 = vmatmul.mubr.bf16.gmra.mxu0 %v6657
      %v6882 = vpop.f32.mrf.mxu0
      %v6883 = vadd.f32 0.0, %v6882
      %v6884 = vpop.f32.mrf.mxu0
      %v6885 = vpop.f32.mrf.mxu0
      %v6886 = vadd.f32 0.0, %v6885
      %v6887 = vpop.f32.mrf.mxu0
      %6888 = vmatprep.mubr.bf16.mxu0 0
      %6889 = vmatmul.mubr.bf16.gmra.mxu0 %v6658
      %v6890 = vpop.f32.mrf.mxu0
      %v6891 = vadd.f32 0.0, %v6890
      %v6892 = vpop.f32.mrf.mxu0
      %v6893 = vpop.f32.mrf.mxu0
      %v6894 = vadd.f32 0.0, %v6893
      %v6895 = vpop.f32.mrf.mxu0
      %6896 = vmatprep.mubr.bf16.mxu0 0
      %6897 = vmatmul.mubr.bf16.gmra.mxu0 %v6659
      %v6898 = vpop.f32.mrf.mxu0
      %v6899 = vadd.f32 0.0, %v6898
      %v6900 = vpop.f32.mrf.mxu0
      %v6901 = vpop.f32.mrf.mxu0
      %v6902 = vadd.f32 0.0, %v6901
      %v6903 = vpop.f32.mrf.mxu0
      %6904 = vmatprep.mubr.bf16.mxu0 0
      %6905 = vmatmul.mubr.bf16.gmra.mxu0 %v6660
      %v6906 = vpop.f32.mrf.mxu0
      %v6907 = vadd.f32 0.0, %v6906
      %v6908 = vpop.f32.mrf.mxu0
      %v6909 = vpop.f32.mrf.mxu0
      %v6910 = vadd.f32 0.0, %v6909
      %v6911 = vpop.f32.mrf.mxu0
      %6912 = vmatprep.mubr.bf16.mxu0 0
      %6913 = vmatmul.mubr.bf16.gmra.mxu0 %v6661
      %v6914 = vpop.f32.mrf.mxu0
      %v6915 = vadd.f32 0.0, %v6914
      %v6916 = vpop.f32.mrf.mxu0
      %v6917 = vpop.f32.mrf.mxu0
      %v6918 = vadd.f32 0.0, %v6917
      %v6919 = vpop.f32.mrf.mxu0
      %6920 = vmatprep.mubr.bf16.mxu0 0
      %6921 = vmatmul.mubr.bf16.gmra.mxu0 %v6662
      %v6922 = vpop.f32.mrf.mxu0
      %v6923 = vadd.f32 0.0, %v6922
      %v6924 = vpop.f32.mrf.mxu0
      %v6925 = vpop.f32.mrf.mxu0
      %v6926 = vpop.f32.mrf.mxu0
      %6927 = vdwg.mxu0
      %v6928 = vadd.f32 %v6560, %v6763
      %v6929 = vadd.f32 %v6561, %v6766
      %v6930 = vadd.f32 %v6562, %v6771
      %v6931 = vadd.f32 %v6563, %v6774
      %v6932 = vadd.f32 %v6564, %v6779
      %v6933 = vadd.f32 %v6565, %v6782
      %v6934 = vadd.f32 %v6566, %v6787
      %v6935 = vadd.f32 %v6567, %v6790
      %v6936 = vadd.f32 %v6568, %v6795
      %v6937 = vadd.f32 %v6569, %v6798
      %v6938 = vadd.f32 %v6570, %v6803
      %v6939 = vadd.f32 %v6571, %v6806
      %v6940 = vadd.f32 %v6572, %v6811
      %v6941 = vadd.f32 %v6573, %v6814
      %v6942 = vadd.f32 %v6574, %v6819
      %v6943 = vadd.f32 %v6575, %v6822
      %v6944 = vadd.f32 %v6576, %v6827
      %v6945 = vadd.f32 %v6577, %v6830
      %v6946 = vadd.f32 %v6578, %v6835
      %v6947 = vadd.f32 %v6579, %v6838
      %v6948 = vadd.f32 %v6580, %v6843
      %v6949 = vadd.f32 %v6581, %v6846
      %v6950 = vadd.f32 %v6582, %v6851
      %v6951 = vadd.f32 %v6583, %v6854
      %v6952 = vadd.f32 %v6584, %v6859
      %v6953 = vadd.f32 %v6585, %v6862
      %v6954 = vadd.f32 %v6586, %v6867
      %v6955 = vadd.f32 %v6587, %v6870
      %v6956 = vadd.f32 %v6588, %v6875
      %v6957 = vadd.f32 %v6589, %v6878
      %v6958 = vadd.f32 %v6590, %v6883
      %v6959 = vadd.f32 %v6591, %v6886
      %v6960 = vadd.f32 %v6592, %v6891
      %v6961 = vadd.f32 %v6593, %v6894
      %v6962 = vadd.f32 %v6594, %v6899
      %v6963 = vadd.f32 %v6595, %v6902
      %v6964 = vadd.f32 %v6596, %v6907
      %v6965 = vadd.f32 %v6597, %v6910
      %v6966 = vadd.f32 %v6598, %v6915
      %v6967 = vadd.f32 %v6599, %v6918
      %v6968 = vadd.f32 %v6600, %v6923
      %v6969 = vld [vmem:[#allocation2 + $0x2a] sm:$0xff]
      %v6970 = vld [vmem:[#allocation2 + $0x32] sm:$0xff]
      %v6971 = vld [vmem:[#allocation2 + $0x3a] sm:$0xff]
      %v6972 = vld [vmem:[#allocation2 + $0x42] sm:$0xff]
      %v6973 = vld [vmem:[#allocation2 + $0x4a] sm:$0xff]
      %v6974 = vld [vmem:[#allocation2 + $0x52] sm:$0xff]
      %v6975 = vld [vmem:[#allocation2 + $0x5a] sm:$0xff]
      %v6976 = vld [vmem:[#allocation2 + $0x62] sm:$0xff]
      %v6977 = vld [vmem:[#allocation2 + $0x6a] sm:$0xff]
      %v6978 = vld [vmem:[#allocation2 + $0x72] sm:$0xff]
      %v6979 = vld [vmem:[#allocation2 + $0x7a] sm:$0xff]
      %v6980 = vld [vmem:[#allocation2 + $0x82] sm:$0xff]
      %v6981 = vld [vmem:[#allocation2 + $0x8a] sm:$0xff]
      %v6982 = vld [vmem:[#allocation2 + $0x92] sm:$0xff]
      %v6983 = vld [vmem:[#allocation2 + $0x9a] sm:$0xff]
      %v6984 = vld [vmem:[#allocation2 + $0xa2] sm:$0xff]
      %v6985 = vld [vmem:[#allocation2 + $0xaa] sm:$0xff]
      %v6986 = vld [vmem:[#allocation2 + $0xb2] sm:$0xff]
      %v6987 = vld [vmem:[#allocation2 + $0xba] sm:$0xff]
      %v6988 = vld [vmem:[#allocation2 + $0xc2] sm:$0xff]
      %v6989 = vld [vmem:[#allocation2 + $0xca] sm:$0xff]
      %v6990 = vld [vmem:[#allocation2 + $0xd2] sm:$0xff]
      %v6991 = vld [vmem:[#allocation2 + $0xda] sm:$0xff]
      %v6992 = vld [vmem:[#allocation2 + $0xe2] sm:$0xff]
      %v6993 = vld [vmem:[#allocation2 + $0xea] sm:$0xff]
      %v6994 = vld [vmem:[#allocation2 + $0xf2] sm:$0xff]
      %v6995 = vld [vmem:[#allocation2 + $0xfa] sm:$0xff]
      %v6996 = vld [vmem:[#allocation2 + $0x102] sm:$0xff]
      %v6997 = vld [vmem:[#allocation2 + $0x10a] sm:$0xff]
      %v6998 = vld [vmem:[#allocation2 + $0x112] sm:$0xff]
      %v6999 = vld [vmem:[#allocation2 + $0x11a] sm:$0xff]
      %v7000 = vld [vmem:[#allocation2 + $0x122] sm:$0xff]
      %v7001 = vld [vmem:[#allocation2 + $0x12a] sm:$0xff]
      %v7002 = vld [vmem:[#allocation2 + $0x132] sm:$0xff]
      %v7003 = vld [vmem:[#allocation2 + $0x13a] sm:$0xff]
      %v7004 = vld [vmem:[#allocation2 + $0x142] sm:$0xff]
      %v7005 = vld [vmem:[#allocation2 + $0x14a] sm:$0xff]
      %v7006 = vld [vmem:[#allocation2 + $0x152] sm:$0xff]
      %v7007 = vld [vmem:[#allocation2 + $0x15a] sm:$0xff]
      %v7008 = vld [vmem:[#allocation2 + $0x162] sm:$0xff]
      %v7009 = vld [vmem:[#allocation2 + $0x16a] sm:$0xf]
      %v7010 = vpack.c.bf16 %v6970, %v6969
      %v7011 = vpack.c.bf16 %v6972, %v6971
      %v7012 = vpack.c.bf16 %v6974, %v6973
      %v7013 = vpack.c.bf16 %v6976, %v6975
      %v7014 = vpack.c.bf16 %v6978, %v6977
      %v7015 = vpack.c.bf16 %v6980, %v6979
      %v7016 = vpack.c.bf16 %v6982, %v6981
      %v7017 = vpack.c.bf16 %v6984, %v6983
      %v7018 = vpack.c.bf16 %v6986, %v6985
      %v7019 = vpack.c.bf16 %v6988, %v6987
      %v7020 = vpack.c.bf16 %v6990, %v6989
      %v7021 = vpack.c.bf16 %v6992, %v6991
      %v7022 = vpack.c.bf16 %v6994, %v6993
      %v7023 = vpack.c.bf16 %v6996, %v6995
      %v7024 = vpack.c.bf16 %v6998, %v6997
      %v7025 = vpack.c.bf16 %v7000, %v6999
      %v7026 = vpack.c.bf16 %v7002, %v7001
      %v7027 = vpack.c.bf16 %v7004, %v7003
      %v7028 = vpack.c.bf16 %v7006, %v7005
      %v7029 = vpack.c.bf16 %v7008, %v7007
      %v7030 = vpack.c.bf16 %v7009, %v7009
      %s7031 = scalar_lea.vmem %s4, 448
      %v7032 = vld [vmem:[%s7031] sm:$0xf]
      %v7033 = vld [vmem:[%s7031 + $0x4] sm:$0xf]
      %v7034 = vld [vmem:[%s7031 + $0x8] sm:$0xf]
      %v7035 = vld [vmem:[%s7031 + $0xc] sm:$0xf]
      %v7036 = vld [vmem:[%s7031 + $0x10] sm:$0xf]
      %v7037 = vld [vmem:[%s7031 + $0x14] sm:$0xf]
      %v7038 = vld [vmem:[%s7031 + $0x18] sm:$0xf]
      %v7039 = vld [vmem:[%s7031 + $0x1c] sm:$0xf]
      %v7040 = vld [vmem:[%s7031 + $0x20] sm:$0xf]
      %v7041 = vld [vmem:[%s7031 + $0x24] sm:$0xf]
      %v7042 = vld [vmem:[%s7031 + $0x28] sm:$0xf]
      %v7043 = vld [vmem:[%s7031 + $0x2c] sm:$0xf]
      %v7044 = vld [vmem:[%s7031 + $0x30] sm:$0xf]
      %v7045 = vld [vmem:[%s7031 + $0x34] sm:$0xf]
      %v7046 = vld [vmem:[%s7031 + $0x38] sm:$0xf]
      %v7047 = vld [vmem:[%s7031 + $0x3c] sm:$0xf]
      %v7064 = vunpack.c.l.b16 %v7032
      %v7065 = vunpack.c.l.b16 %v7033
      %v7066 = vunpack.c.l.b16 %v7034
      %v7067 = vunpack.c.l.b16 %v7035
      %v7068 = vunpack.c.l.b16 %v7036
      %v7069 = vunpack.c.l.b16 %v7037
      %v7070 = vunpack.c.l.b16 %v7038
      %v7071 = vunpack.c.l.b16 %v7039
      %v7072 = vunpack.c.l.b16 %v7040
      %v7073 = vunpack.c.l.b16 %v7041
      %v7074 = vunpack.c.l.b16 %v7042
      %v7075 = vunpack.c.l.b16 %v7043
      %v7076 = vunpack.c.l.b16 %v7044
      %v7077 = vunpack.c.l.b16 %v7045
      %v7078 = vunpack.c.l.b16 %v7046
      %v7079 = vunpack.c.l.b16 %v7047
      %v7080 = vpack.c.b16 %v7065, %v7064
      %v7081 = vpack.c.b16 %v7067, %v7066
      %v7082 = vpack.c.b16 %v7069, %v7068
      %v7083 = vpack.c.b16 %v7071, %v7070
      %v7084 = vpack.c.b16 %v7073, %v7072
      %v7085 = vpack.c.b16 %v7075, %v7074
      %v7086 = vpack.c.b16 %v7077, %v7076
      %v7087 = vpack.c.b16 %v7079, %v7078
      %7096 = vmatprep.subr.bf16.mxu0 0
      %7097 = vmatpush1.bf16.msra.mxu0 %v7087
      %7098 = vmatprep.subr.bf16.mxu0 0
      %7099 = vmatpush1.bf16.msra.mxu0 %v7086
      %7100 = vmatprep.subr.bf16.mxu0 0
      %7101 = vmatpush1.bf16.msra.mxu0 %v7085
      %7102 = vmatprep.subr.bf16.mxu0 0
      %7103 = vmatpush1.bf16.msra.mxu0 %v7084
      %7104 = vmatprep.subr.bf16.mxu0 0
      %7105 = vmatpush1.bf16.msra.mxu0 %v7083
      %7106 = vmatprep.subr.bf16.mxu0 0
      %7107 = vmatpush1.bf16.msra.mxu0 %v7082
      %7108 = vmatprep.subr.bf16.mxu0 0
      %7109 = vmatpush1.bf16.msra.mxu0 %v7081
      %7110 = vmatprep.subr.bf16.mxu0 0
      %7111 = vmatpush1.bf16.msra.mxu0 %v7080
      %7112 = vmatprep.subr.bf16.mxu0 0
      %7113 = vmatpush2.bf16.msra.mxu0 0
      %7114 = vmatprep.subr.bf16.mxu0 0
      %7115 = vmatpush2.bf16.msra.mxu0 0
      %7116 = vmatprep.subr.bf16.mxu0 0
      %7117 = vmatpush2.bf16.msra.mxu0 0
      %7118 = vmatprep.subr.bf16.mxu0 0
      %7119 = vmatpush2.bf16.msra.mxu0 0
      %7120 = vmatprep.subr.bf16.mxu0 0
      %7121 = vmatpush2.bf16.msra.mxu0 0
      %7122 = vmatprep.subr.bf16.mxu0 0
      %7123 = vmatpush2.bf16.msra.mxu0 0
      %7124 = vmatprep.subr.bf16.mxu0 0
      %7125 = vmatpush2.bf16.msra.mxu0 0
      %7126 = vmatprep.subr.bf16.mxu0 0
      %7127 = vmatpush2.bf16.msra.mxu0 0
      %7128 = vmatprep.mubr.bf16.mxu0 0
      %7129 = vmatmul.mubr.bf16.gmra.mxu0 %v7010
      %v7130 = vpop.f32.mrf.mxu0
      %v7131 = vadd.f32 0.0, %v7130
      %v7132 = vpop.f32.mrf.mxu0
      %v7133 = vpop.f32.mrf.mxu0
      %v7134 = vadd.f32 0.0, %v7133
      %v7135 = vpop.f32.mrf.mxu0
      %7136 = vmatprep.mubr.bf16.mxu0 0
      %7137 = vmatmul.mubr.bf16.gmra.mxu0 %v7011
      %v7138 = vpop.f32.mrf.mxu0
      %v7139 = vadd.f32 0.0, %v7138
      %v7140 = vpop.f32.mrf.mxu0
      %v7141 = vpop.f32.mrf.mxu0
      %v7142 = vadd.f32 0.0, %v7141
      %v7143 = vpop.f32.mrf.mxu0
      %7144 = vmatprep.mubr.bf16.mxu0 0
      %7145 = vmatmul.mubr.bf16.gmra.mxu0 %v7012
      %v7146 = vpop.f32.mrf.mxu0
      %v7147 = vadd.f32 0.0, %v7146
      %v7148 = vpop.f32.mrf.mxu0
      %v7149 = vpop.f32.mrf.mxu0
      %v7150 = vadd.f32 0.0, %v7149
      %v7151 = vpop.f32.mrf.mxu0
      %7152 = vmatprep.mubr.bf16.mxu0 0
      %7153 = vmatmul.mubr.bf16.gmra.mxu0 %v7013
      %v7154 = vpop.f32.mrf.mxu0
      %v7155 = vadd.f32 0.0, %v7154
      %v7156 = vpop.f32.mrf.mxu0
      %v7157 = vpop.f32.mrf.mxu0
      %v7158 = vadd.f32 0.0, %v7157
      %v7159 = vpop.f32.mrf.mxu0
      %7160 = vmatprep.mubr.bf16.mxu0 0
      %7161 = vmatmul.mubr.bf16.gmra.mxu0 %v7014
      %v7162 = vpop.f32.mrf.mxu0
      %v7163 = vadd.f32 0.0, %v7162
      %v7164 = vpop.f32.mrf.mxu0
      %v7165 = vpop.f32.mrf.mxu0
      %v7166 = vadd.f32 0.0, %v7165
      %v7167 = vpop.f32.mrf.mxu0
      %7168 = vmatprep.mubr.bf16.mxu0 0
      %7169 = vmatmul.mubr.bf16.gmra.mxu0 %v7015
      %v7170 = vpop.f32.mrf.mxu0
      %v7171 = vadd.f32 0.0, %v7170
      %v7172 = vpop.f32.mrf.mxu0
      %v7173 = vpop.f32.mrf.mxu0
      %v7174 = vadd.f32 0.0, %v7173
      %v7175 = vpop.f32.mrf.mxu0
      %7176 = vmatprep.mubr.bf16.mxu0 0
      %7177 = vmatmul.mubr.bf16.gmra.mxu0 %v7016
      %v7178 = vpop.f32.mrf.mxu0
      %v7179 = vadd.f32 0.0, %v7178
      %v7180 = vpop.f32.mrf.mxu0
      %v7181 = vpop.f32.mrf.mxu0
      %v7182 = vadd.f32 0.0, %v7181
      %v7183 = vpop.f32.mrf.mxu0
      %7184 = vmatprep.mubr.bf16.mxu0 0
      %7185 = vmatmul.mubr.bf16.gmra.mxu0 %v7017
      %v7186 = vpop.f32.mrf.mxu0
      %v7187 = vadd.f32 0.0, %v7186
      %v7188 = vpop.f32.mrf.mxu0
      %v7189 = vpop.f32.mrf.mxu0
      %v7190 = vadd.f32 0.0, %v7189
      %v7191 = vpop.f32.mrf.mxu0
      %7192 = vmatprep.mubr.bf16.mxu0 0
      %7193 = vmatmul.mubr.bf16.gmra.mxu0 %v7018
      %v7194 = vpop.f32.mrf.mxu0
      %v7195 = vadd.f32 0.0, %v7194
      %v7196 = vpop.f32.mrf.mxu0
      %v7197 = vpop.f32.mrf.mxu0
      %v7198 = vadd.f32 0.0, %v7197
      %v7199 = vpop.f32.mrf.mxu0
      %7200 = vmatprep.mubr.bf16.mxu0 0
      %7201 = vmatmul.mubr.bf16.gmra.mxu0 %v7019
      %v7202 = vpop.f32.mrf.mxu0
      %v7203 = vadd.f32 0.0, %v7202
      %v7204 = vpop.f32.mrf.mxu0
      %v7205 = vpop.f32.mrf.mxu0
      %v7206 = vadd.f32 0.0, %v7205
      %v7207 = vpop.f32.mrf.mxu0
      %7208 = vmatprep.mubr.bf16.mxu0 0
      %7209 = vmatmul.mubr.bf16.gmra.mxu0 %v7020
      %v7210 = vpop.f32.mrf.mxu0
      %v7211 = vadd.f32 0.0, %v7210
      %v7212 = vpop.f32.mrf.mxu0
      %v7213 = vpop.f32.mrf.mxu0
      %v7214 = vadd.f32 0.0, %v7213
      %v7215 = vpop.f32.mrf.mxu0
      %7216 = vmatprep.mubr.bf16.mxu0 0
      %7217 = vmatmul.mubr.bf16.gmra.mxu0 %v7021
      %v7218 = vpop.f32.mrf.mxu0
      %v7219 = vadd.f32 0.0, %v7218
      %v7220 = vpop.f32.mrf.mxu0
      %v7221 = vpop.f32.mrf.mxu0
      %v7222 = vadd.f32 0.0, %v7221
      %v7223 = vpop.f32.mrf.mxu0
      %7224 = vmatprep.mubr.bf16.mxu0 0
      %7225 = vmatmul.mubr.bf16.gmra.mxu0 %v7022
      %v7226 = vpop.f32.mrf.mxu0
      %v7227 = vadd.f32 0.0, %v7226
      %v7228 = vpop.f32.mrf.mxu0
      %v7229 = vpop.f32.mrf.mxu0
      %v7230 = vadd.f32 0.0, %v7229
      %v7231 = vpop.f32.mrf.mxu0
      %7232 = vmatprep.mubr.bf16.mxu0 0
      %7233 = vmatmul.mubr.bf16.gmra.mxu0 %v7023
      %v7234 = vpop.f32.mrf.mxu0
      %v7235 = vadd.f32 0.0, %v7234
      %v7236 = vpop.f32.mrf.mxu0
      %v7237 = vpop.f32.mrf.mxu0
      %v7238 = vadd.f32 0.0, %v7237
      %v7239 = vpop.f32.mrf.mxu0
      %7240 = vmatprep.mubr.bf16.mxu0 0
      %7241 = vmatmul.mubr.bf16.gmra.mxu0 %v7024
      %v7242 = vpop.f32.mrf.mxu0
      %v7243 = vadd.f32 0.0, %v7242
      %v7244 = vpop.f32.mrf.mxu0
      %v7245 = vpop.f32.mrf.mxu0
      %v7246 = vadd.f32 0.0, %v7245
      %v7247 = vpop.f32.mrf.mxu0
      %7248 = vmatprep.mubr.bf16.mxu0 0
      %7249 = vmatmul.mubr.bf16.gmra.mxu0 %v7025
      %v7250 = vpop.f32.mrf.mxu0
      %v7251 = vadd.f32 0.0, %v7250
      %v7252 = vpop.f32.mrf.mxu0
      %v7253 = vpop.f32.mrf.mxu0
      %v7254 = vadd.f32 0.0, %v7253
      %v7255 = vpop.f32.mrf.mxu0
      %7256 = vmatprep.mubr.bf16.mxu0 0
      %7257 = vmatmul.mubr.bf16.gmra.mxu0 %v7026
      %v7258 = vpop.f32.mrf.mxu0
      %v7259 = vadd.f32 0.0, %v7258
      %v7260 = vpop.f32.mrf.mxu0
      %v7261 = vpop.f32.mrf.mxu0
      %v7262 = vadd.f32 0.0, %v7261
      %v7263 = vpop.f32.mrf.mxu0
      %7264 = vmatprep.mubr.bf16.mxu0 0
      %7265 = vmatmul.mubr.bf16.gmra.mxu0 %v7027
      %v7266 = vpop.f32.mrf.mxu0
      %v7267 = vadd.f32 0.0, %v7266
      %v7268 = vpop.f32.mrf.mxu0
      %v7269 = vpop.f32.mrf.mxu0
      %v7270 = vadd.f32 0.0, %v7269
      %v7271 = vpop.f32.mrf.mxu0
      %7272 = vmatprep.mubr.bf16.mxu0 0
      %7273 = vmatmul.mubr.bf16.gmra.mxu0 %v7028
      %v7274 = vpop.f32.mrf.mxu0
      %v7275 = vadd.f32 0.0, %v7274
      %v7276 = vpop.f32.mrf.mxu0
      %v7277 = vpop.f32.mrf.mxu0
      %v7278 = vadd.f32 0.0, %v7277
      %v7279 = vpop.f32.mrf.mxu0
      %7280 = vmatprep.mubr.bf16.mxu0 0
      %7281 = vmatmul.mubr.bf16.gmra.mxu0 %v7029
      %v7282 = vpop.f32.mrf.mxu0
      %v7283 = vadd.f32 0.0, %v7282
      %v7284 = vpop.f32.mrf.mxu0
      %v7285 = vpop.f32.mrf.mxu0
      %v7286 = vadd.f32 0.0, %v7285
      %v7287 = vpop.f32.mrf.mxu0
      %7288 = vmatprep.mubr.bf16.mxu0 0
      %7289 = vmatmul.mubr.bf16.gmra.mxu0 %v7030
      %v7290 = vpop.f32.mrf.mxu0
      %v7291 = vadd.f32 0.0, %v7290
      %v7292 = vpop.f32.mrf.mxu0
      %v7293 = vpop.f32.mrf.mxu0
      %v7294 = vpop.f32.mrf.mxu0
      %7295 = vdwg.mxu0
      %v7296 = vadd.f32 %v6928, %v7131
      %v7297 = vadd.f32 %v6929, %v7134
      %v7298 = vadd.f32 %v6930, %v7139
      %v7299 = vadd.f32 %v6931, %v7142
      %v7300 = vadd.f32 %v6932, %v7147
      %v7301 = vadd.f32 %v6933, %v7150
      %v7302 = vadd.f32 %v6934, %v7155
      %v7303 = vadd.f32 %v6935, %v7158
      %v7304 = vadd.f32 %v6936, %v7163
      %v7305 = vadd.f32 %v6937, %v7166
      %v7306 = vadd.f32 %v6938, %v7171
      %v7307 = vadd.f32 %v6939, %v7174
      %v7308 = vadd.f32 %v6940, %v7179
      %v7309 = vadd.f32 %v6941, %v7182
      %v7310 = vadd.f32 %v6942, %v7187
      %v7311 = vadd.f32 %v6943, %v7190
      %v7312 = vadd.f32 %v6944, %v7195
      %v7313 = vadd.f32 %v6945, %v7198
      %v7314 = vadd.f32 %v6946, %v7203
      %v7315 = vadd.f32 %v6947, %v7206
      %v7316 = vadd.f32 %v6948, %v7211
      %v7317 = vadd.f32 %v6949, %v7214
      %v7318 = vadd.f32 %v6950, %v7219
      %v7319 = vadd.f32 %v6951, %v7222
      %v7320 = vadd.f32 %v6952, %v7227
      %v7321 = vadd.f32 %v6953, %v7230
      %v7322 = vadd.f32 %v6954, %v7235
      %v7323 = vadd.f32 %v6955, %v7238
      %v7324 = vadd.f32 %v6956, %v7243
      %v7325 = vadd.f32 %v6957, %v7246
      %v7326 = vadd.f32 %v6958, %v7251
      %v7327 = vadd.f32 %v6959, %v7254
      %v7328 = vadd.f32 %v6960, %v7259
      %v7329 = vadd.f32 %v6961, %v7262
      %v7330 = vadd.f32 %v6962, %v7267
      %v7331 = vadd.f32 %v6963, %v7270
      %v7332 = vadd.f32 %v6964, %v7275
      %v7333 = vadd.f32 %v6965, %v7278
      %v7334 = vadd.f32 %v6966, %v7283
      %v7335 = vadd.f32 %v6967, %v7286
      %v7336 = vadd.f32 %v6968, %v7291
      %v7337 = vld [vmem:[#allocation2 + $0x2b] sm:$0xff]
      %v7338 = vld [vmem:[#allocation2 + $0x33] sm:$0xff]
      %v7339 = vld [vmem:[#allocation2 + $0x3b] sm:$0xff]
      %v7340 = vld [vmem:[#allocation2 + $0x43] sm:$0xff]
      %v7341 = vld [vmem:[#allocation2 + $0x4b] sm:$0xff]
      %v7342 = vld [vmem:[#allocation2 + $0x53] sm:$0xff]
      %v7343 = vld [vmem:[#allocation2 + $0x5b] sm:$0xff]
      %v7344 = vld [vmem:[#allocation2 + $0x63] sm:$0xff]
      %v7345 = vld [vmem:[#allocation2 + $0x6b] sm:$0xff]
      %v7346 = vld [vmem:[#allocation2 + $0x73] sm:$0xff]
      %v7347 = vld [vmem:[#allocation2 + $0x7b] sm:$0xff]
      %v7348 = vld [vmem:[#allocation2 + $0x83] sm:$0xff]
      %v7349 = vld [vmem:[#allocation2 + $0x8b] sm:$0xff]
      %v7350 = vld [vmem:[#allocation2 + $0x93] sm:$0xff]
      %v7351 = vld [vmem:[#allocation2 + $0x9b] sm:$0xff]
      %v7352 = vld [vmem:[#allocation2 + $0xa3] sm:$0xff]
      %v7353 = vld [vmem:[#allocation2 + $0xab] sm:$0xff]
      %v7354 = vld [vmem:[#allocation2 + $0xb3] sm:$0xff]
      %v7355 = vld [vmem:[#allocation2 + $0xbb] sm:$0xff]
      %v7356 = vld [vmem:[#allocation2 + $0xc3] sm:$0xff]
      %v7357 = vld [vmem:[#allocation2 + $0xcb] sm:$0xff]
      %v7358 = vld [vmem:[#allocation2 + $0xd3] sm:$0xff]
      %v7359 = vld [vmem:[#allocation2 + $0xdb] sm:$0xff]
      %v7360 = vld [vmem:[#allocation2 + $0xe3] sm:$0xff]
      %v7361 = vld [vmem:[#allocation2 + $0xeb] sm:$0xff]
      %v7362 = vld [vmem:[#allocation2 + $0xf3] sm:$0xff]
      %v7363 = vld [vmem:[#allocation2 + $0xfb] sm:$0xff]
      %v7364 = vld [vmem:[#allocation2 + $0x103] sm:$0xff]
      %v7365 = vld [vmem:[#allocation2 + $0x10b] sm:$0xff]
      %v7366 = vld [vmem:[#allocation2 + $0x113] sm:$0xff]
      %v7367 = vld [vmem:[#allocation2 + $0x11b] sm:$0xff]
      %v7368 = vld [vmem:[#allocation2 + $0x123] sm:$0xff]
      %v7369 = vld [vmem:[#allocation2 + $0x12b] sm:$0xff]
      %v7370 = vld [vmem:[#allocation2 + $0x133] sm:$0xff]
      %v7371 = vld [vmem:[#allocation2 + $0x13b] sm:$0xff]
      %v7372 = vld [vmem:[#allocation2 + $0x143] sm:$0xff]
      %v7373 = vld [vmem:[#allocation2 + $0x14b] sm:$0xff]
      %v7374 = vld [vmem:[#allocation2 + $0x153] sm:$0xff]
      %v7375 = vld [vmem:[#allocation2 + $0x15b] sm:$0xff]
      %v7376 = vld [vmem:[#allocation2 + $0x163] sm:$0xff]
      %v7377 = vld [vmem:[#allocation2 + $0x16b] sm:$0xf]
      %v7378 = vpack.c.bf16 %v7338, %v7337
      %v7379 = vpack.c.bf16 %v7340, %v7339
      %v7380 = vpack.c.bf16 %v7342, %v7341
      %v7381 = vpack.c.bf16 %v7344, %v7343
      %v7382 = vpack.c.bf16 %v7346, %v7345
      %v7383 = vpack.c.bf16 %v7348, %v7347
      %v7384 = vpack.c.bf16 %v7350, %v7349
      %v7385 = vpack.c.bf16 %v7352, %v7351
      %v7386 = vpack.c.bf16 %v7354, %v7353
      %v7387 = vpack.c.bf16 %v7356, %v7355
      %v7388 = vpack.c.bf16 %v7358, %v7357
      %v7389 = vpack.c.bf16 %v7360, %v7359
      %v7390 = vpack.c.bf16 %v7362, %v7361
      %v7391 = vpack.c.bf16 %v7364, %v7363
      %v7392 = vpack.c.bf16 %v7366, %v7365
      %v7393 = vpack.c.bf16 %v7368, %v7367
      %v7394 = vpack.c.bf16 %v7370, %v7369
      %v7395 = vpack.c.bf16 %v7372, %v7371
      %v7396 = vpack.c.bf16 %v7374, %v7373
      %v7397 = vpack.c.bf16 %v7376, %v7375
      %v7398 = vpack.c.bf16 %v7377, %v7377
      %s7399 = scalar_lea.vmem %s4, 512
      %v7400 = vld [vmem:[%s7399] sm:$0xf]
      %v7401 = vld [vmem:[%s7399 + $0x4] sm:$0xf]
      %v7402 = vld [vmem:[%s7399 + $0x8] sm:$0xf]
      %v7403 = vld [vmem:[%s7399 + $0xc] sm:$0xf]
      %v7404 = vld [vmem:[%s7399 + $0x10] sm:$0xf]
      %v7405 = vld [vmem:[%s7399 + $0x14] sm:$0xf]
      %v7406 = vld [vmem:[%s7399 + $0x18] sm:$0xf]
      %v7407 = vld [vmem:[%s7399 + $0x1c] sm:$0xf]
      %v7408 = vld [vmem:[%s7399 + $0x20] sm:$0xf]
      %v7409 = vld [vmem:[%s7399 + $0x24] sm:$0xf]
      %v7410 = vld [vmem:[%s7399 + $0x28] sm:$0xf]
      %v7411 = vld [vmem:[%s7399 + $0x2c] sm:$0xf]
      %v7412 = vld [vmem:[%s7399 + $0x30] sm:$0xf]
      %v7413 = vld [vmem:[%s7399 + $0x34] sm:$0xf]
      %v7414 = vld [vmem:[%s7399 + $0x38] sm:$0xf]
      %v7415 = vld [vmem:[%s7399 + $0x3c] sm:$0xf]
      %v7432 = vunpack.c.l.b16 %v7400
      %v7433 = vunpack.c.l.b16 %v7401
      %v7434 = vunpack.c.l.b16 %v7402
      %v7435 = vunpack.c.l.b16 %v7403
      %v7436 = vunpack.c.l.b16 %v7404
      %v7437 = vunpack.c.l.b16 %v7405
      %v7438 = vunpack.c.l.b16 %v7406
      %v7439 = vunpack.c.l.b16 %v7407
      %v7440 = vunpack.c.l.b16 %v7408
      %v7441 = vunpack.c.l.b16 %v7409
      %v7442 = vunpack.c.l.b16 %v7410
      %v7443 = vunpack.c.l.b16 %v7411
      %v7444 = vunpack.c.l.b16 %v7412
      %v7445 = vunpack.c.l.b16 %v7413
      %v7446 = vunpack.c.l.b16 %v7414
      %v7447 = vunpack.c.l.b16 %v7415
      %v7448 = vpack.c.b16 %v7433, %v7432
      %v7449 = vpack.c.b16 %v7435, %v7434
      %v7450 = vpack.c.b16 %v7437, %v7436
      %v7451 = vpack.c.b16 %v7439, %v7438
      %v7452 = vpack.c.b16 %v7441, %v7440
      %v7453 = vpack.c.b16 %v7443, %v7442
      %v7454 = vpack.c.b16 %v7445, %v7444
      %v7455 = vpack.c.b16 %v7447, %v7446
      %7464 = vmatprep.subr.bf16.mxu0 0
      %7465 = vmatpush1.bf16.msra.mxu0 %v7455
      %7466 = vmatprep.subr.bf16.mxu0 0
      %7467 = vmatpush1.bf16.msra.mxu0 %v7454
      %7468 = vmatprep.subr.bf16.mxu0 0
      %7469 = vmatpush1.bf16.msra.mxu0 %v7453
      %7470 = vmatprep.subr.bf16.mxu0 0
      %7471 = vmatpush1.bf16.msra.mxu0 %v7452
      %7472 = vmatprep.subr.bf16.mxu0 0
      %7473 = vmatpush1.bf16.msra.mxu0 %v7451
      %7474 = vmatprep.subr.bf16.mxu0 0
      %7475 = vmatpush1.bf16.msra.mxu0 %v7450
      %7476 = vmatprep.subr.bf16.mxu0 0
      %7477 = vmatpush1.bf16.msra.mxu0 %v7449
      %7478 = vmatprep.subr.bf16.mxu0 0
      %7479 = vmatpush1.bf16.msra.mxu0 %v7448
      %7480 = vmatprep.subr.bf16.mxu0 0
      %7481 = vmatpush2.bf16.msra.mxu0 0
      %7482 = vmatprep.subr.bf16.mxu0 0
      %7483 = vmatpush2.bf16.msra.mxu0 0
      %7484 = vmatprep.subr.bf16.mxu0 0
      %7485 = vmatpush2.bf16.msra.mxu0 0
      %7486 = vmatprep.subr.bf16.mxu0 0
      %7487 = vmatpush2.bf16.msra.mxu0 0
      %7488 = vmatprep.subr.bf16.mxu0 0
      %7489 = vmatpush2.bf16.msra.mxu0 0
      %7490 = vmatprep.subr.bf16.mxu0 0
      %7491 = vmatpush2.bf16.msra.mxu0 0
      %7492 = vmatprep.subr.bf16.mxu0 0
      %7493 = vmatpush2.bf16.msra.mxu0 0
      %7494 = vmatprep.subr.bf16.mxu0 0
      %7495 = vmatpush2.bf16.msra.mxu0 0
      %7496 = vmatprep.mubr.bf16.mxu0 0
      %7497 = vmatmul.mubr.bf16.gmra.mxu0 %v7378
      %v7498 = vpop.f32.mrf.mxu0
      %v7499 = vadd.f32 0.0, %v7498
      %v7500 = vpop.f32.mrf.mxu0
      %v7501 = vpop.f32.mrf.mxu0
      %v7502 = vadd.f32 0.0, %v7501
      %v7503 = vpop.f32.mrf.mxu0
      %7504 = vmatprep.mubr.bf16.mxu0 0
      %7505 = vmatmul.mubr.bf16.gmra.mxu0 %v7379
      %v7506 = vpop.f32.mrf.mxu0
      %v7507 = vadd.f32 0.0, %v7506
      %v7508 = vpop.f32.mrf.mxu0
      %v7509 = vpop.f32.mrf.mxu0
      %v7510 = vadd.f32 0.0, %v7509
      %v7511 = vpop.f32.mrf.mxu0
      %7512 = vmatprep.mubr.bf16.mxu0 0
      %7513 = vmatmul.mubr.bf16.gmra.mxu0 %v7380
      %v7514 = vpop.f32.mrf.mxu0
      %v7515 = vadd.f32 0.0, %v7514
      %v7516 = vpop.f32.mrf.mxu0
      %v7517 = vpop.f32.mrf.mxu0
      %v7518 = vadd.f32 0.0, %v7517
      %v7519 = vpop.f32.mrf.mxu0
      %7520 = vmatprep.mubr.bf16.mxu0 0
      %7521 = vmatmul.mubr.bf16.gmra.mxu0 %v7381
      %v7522 = vpop.f32.mrf.mxu0
      %v7523 = vadd.f32 0.0, %v7522
      %v7524 = vpop.f32.mrf.mxu0
      %v7525 = vpop.f32.mrf.mxu0
      %v7526 = vadd.f32 0.0, %v7525
      %v7527 = vpop.f32.mrf.mxu0
      %7528 = vmatprep.mubr.bf16.mxu0 0
      %7529 = vmatmul.mubr.bf16.gmra.mxu0 %v7382
      %v7530 = vpop.f32.mrf.mxu0
      %v7531 = vadd.f32 0.0, %v7530
      %v7532 = vpop.f32.mrf.mxu0
      %v7533 = vpop.f32.mrf.mxu0
      %v7534 = vadd.f32 0.0, %v7533
      %v7535 = vpop.f32.mrf.mxu0
      %7536 = vmatprep.mubr.bf16.mxu0 0
      %7537 = vmatmul.mubr.bf16.gmra.mxu0 %v7383
      %v7538 = vpop.f32.mrf.mxu0
      %v7539 = vadd.f32 0.0, %v7538
      %v7540 = vpop.f32.mrf.mxu0
      %v7541 = vpop.f32.mrf.mxu0
      %v7542 = vadd.f32 0.0, %v7541
      %v7543 = vpop.f32.mrf.mxu0
      %7544 = vmatprep.mubr.bf16.mxu0 0
      %7545 = vmatmul.mubr.bf16.gmra.mxu0 %v7384
      %v7546 = vpop.f32.mrf.mxu0
      %v7547 = vadd.f32 0.0, %v7546
      %v7548 = vpop.f32.mrf.mxu0
      %v7549 = vpop.f32.mrf.mxu0
      %v7550 = vadd.f32 0.0, %v7549
      %v7551 = vpop.f32.mrf.mxu0
      %7552 = vmatprep.mubr.bf16.mxu0 0
      %7553 = vmatmul.mubr.bf16.gmra.mxu0 %v7385
      %v7554 = vpop.f32.mrf.mxu0
      %v7555 = vadd.f32 0.0, %v7554
      %v7556 = vpop.f32.mrf.mxu0
      %v7557 = vpop.f32.mrf.mxu0
      %v7558 = vadd.f32 0.0, %v7557
      %v7559 = vpop.f32.mrf.mxu0
      %7560 = vmatprep.mubr.bf16.mxu0 0
      %7561 = vmatmul.mubr.bf16.gmra.mxu0 %v7386
      %v7562 = vpop.f32.mrf.mxu0
      %v7563 = vadd.f32 0.0, %v7562
      %v7564 = vpop.f32.mrf.mxu0
      %v7565 = vpop.f32.mrf.mxu0
      %v7566 = vadd.f32 0.0, %v7565
      %v7567 = vpop.f32.mrf.mxu0
      %7568 = vmatprep.mubr.bf16.mxu0 0
      %7569 = vmatmul.mubr.bf16.gmra.mxu0 %v7387
      %v7570 = vpop.f32.mrf.mxu0
      %v7571 = vadd.f32 0.0, %v7570
      %v7572 = vpop.f32.mrf.mxu0
      %v7573 = vpop.f32.mrf.mxu0
      %v7574 = vadd.f32 0.0, %v7573
      %v7575 = vpop.f32.mrf.mxu0
      %7576 = vmatprep.mubr.bf16.mxu0 0
      %7577 = vmatmul.mubr.bf16.gmra.mxu0 %v7388
      %v7578 = vpop.f32.mrf.mxu0
      %v7579 = vadd.f32 0.0, %v7578
      %v7580 = vpop.f32.mrf.mxu0
      %v7581 = vpop.f32.mrf.mxu0
      %v7582 = vadd.f32 0.0, %v7581
      %v7583 = vpop.f32.mrf.mxu0
      %7584 = vmatprep.mubr.bf16.mxu0 0
      %7585 = vmatmul.mubr.bf16.gmra.mxu0 %v7389
      %v7586 = vpop.f32.mrf.mxu0
      %v7587 = vadd.f32 0.0, %v7586
      %v7588 = vpop.f32.mrf.mxu0
      %v7589 = vpop.f32.mrf.mxu0
      %v7590 = vadd.f32 0.0, %v7589
      %v7591 = vpop.f32.mrf.mxu0
      %7592 = vmatprep.mubr.bf16.mxu0 0
      %7593 = vmatmul.mubr.bf16.gmra.mxu0 %v7390
      %v7594 = vpop.f32.mrf.mxu0
      %v7595 = vadd.f32 0.0, %v7594
      %v7596 = vpop.f32.mrf.mxu0
      %v7597 = vpop.f32.mrf.mxu0
      %v7598 = vadd.f32 0.0, %v7597
      %v7599 = vpop.f32.mrf.mxu0
      %7600 = vmatprep.mubr.bf16.mxu0 0
      %7601 = vmatmul.mubr.bf16.gmra.mxu0 %v7391
      %v7602 = vpop.f32.mrf.mxu0
      %v7603 = vadd.f32 0.0, %v7602
      %v7604 = vpop.f32.mrf.mxu0
      %v7605 = vpop.f32.mrf.mxu0
      %v7606 = vadd.f32 0.0, %v7605
      %v7607 = vpop.f32.mrf.mxu0
      %7608 = vmatprep.mubr.bf16.mxu0 0
      %7609 = vmatmul.mubr.bf16.gmra.mxu0 %v7392
      %v7610 = vpop.f32.mrf.mxu0
      %v7611 = vadd.f32 0.0, %v7610
      %v7612 = vpop.f32.mrf.mxu0
      %v7613 = vpop.f32.mrf.mxu0
      %v7614 = vadd.f32 0.0, %v7613
      %v7615 = vpop.f32.mrf.mxu0
      %7616 = vmatprep.mubr.bf16.mxu0 0
      %7617 = vmatmul.mubr.bf16.gmra.mxu0 %v7393
      %v7618 = vpop.f32.mrf.mxu0
      %v7619 = vadd.f32 0.0, %v7618
      %v7620 = vpop.f32.mrf.mxu0
      %v7621 = vpop.f32.mrf.mxu0
      %v7622 = vadd.f32 0.0, %v7621
      %v7623 = vpop.f32.mrf.mxu0
      %7624 = vmatprep.mubr.bf16.mxu0 0
      %7625 = vmatmul.mubr.bf16.gmra.mxu0 %v7394
      %v7626 = vpop.f32.mrf.mxu0
      %v7627 = vadd.f32 0.0, %v7626
      %v7628 = vpop.f32.mrf.mxu0
      %v7629 = vpop.f32.mrf.mxu0
      %v7630 = vadd.f32 0.0, %v7629
      %v7631 = vpop.f32.mrf.mxu0
      %7632 = vmatprep.mubr.bf16.mxu0 0
      %7633 = vmatmul.mubr.bf16.gmra.mxu0 %v7395
      %v7634 = vpop.f32.mrf.mxu0
      %v7635 = vadd.f32 0.0, %v7634
      %v7636 = vpop.f32.mrf.mxu0
      %v7637 = vpop.f32.mrf.mxu0
      %v7638 = vadd.f32 0.0, %v7637
      %v7639 = vpop.f32.mrf.mxu0
      %7640 = vmatprep.mubr.bf16.mxu0 0
      %7641 = vmatmul.mubr.bf16.gmra.mxu0 %v7396
      %v7642 = vpop.f32.mrf.mxu0
      %v7643 = vadd.f32 0.0, %v7642
      %v7644 = vpop.f32.mrf.mxu0
      %v7645 = vpop.f32.mrf.mxu0
      %v7646 = vadd.f32 0.0, %v7645
      %v7647 = vpop.f32.mrf.mxu0
      %7648 = vmatprep.mubr.bf16.mxu0 0
      %7649 = vmatmul.mubr.bf16.gmra.mxu0 %v7397
      %v7650 = vpop.f32.mrf.mxu0
      %v7651 = vadd.f32 0.0, %v7650
      %v7652 = vpop.f32.mrf.mxu0
      %v7653 = vpop.f32.mrf.mxu0
      %v7654 = vadd.f32 0.0, %v7653
      %v7655 = vpop.f32.mrf.mxu0
      %7656 = vmatprep.mubr.bf16.mxu0 0
      %7657 = vmatmul.mubr.bf16.gmra.mxu0 %v7398
      %v7658 = vpop.f32.mrf.mxu0
      %v7659 = vadd.f32 0.0, %v7658
      %v7660 = vpop.f32.mrf.mxu0
      %v7661 = vpop.f32.mrf.mxu0
      %v7662 = vpop.f32.mrf.mxu0
      %7663 = vdwg.mxu0
      %v7664 = vadd.f32 %v7296, %v7499
      %v7665 = vadd.f32 %v7297, %v7502
      %v7666 = vadd.f32 %v7298, %v7507
      %v7667 = vadd.f32 %v7299, %v7510
      %v7668 = vadd.f32 %v7300, %v7515
      %v7669 = vadd.f32 %v7301, %v7518
      %v7670 = vadd.f32 %v7302, %v7523
      %v7671 = vadd.f32 %v7303, %v7526
      %v7672 = vadd.f32 %v7304, %v7531
      %v7673 = vadd.f32 %v7305, %v7534
      %v7674 = vadd.f32 %v7306, %v7539
      %v7675 = vadd.f32 %v7307, %v7542
      %v7676 = vadd.f32 %v7308, %v7547
      %v7677 = vadd.f32 %v7309, %v7550
      %v7678 = vadd.f32 %v7310, %v7555
      %v7679 = vadd.f32 %v7311, %v7558
      %v7680 = vadd.f32 %v7312, %v7563
      %v7681 = vadd.f32 %v7313, %v7566
      %v7682 = vadd.f32 %v7314, %v7571
      %v7683 = vadd.f32 %v7315, %v7574
      %v7684 = vadd.f32 %v7316, %v7579
      %v7685 = vadd.f32 %v7317, %v7582
      %v7686 = vadd.f32 %v7318, %v7587
      %v7687 = vadd.f32 %v7319, %v7590
      %v7688 = vadd.f32 %v7320, %v7595
      %v7689 = vadd.f32 %v7321, %v7598
      %v7690 = vadd.f32 %v7322, %v7603
      %v7691 = vadd.f32 %v7323, %v7606
      %v7692 = vadd.f32 %v7324, %v7611
      %v7693 = vadd.f32 %v7325, %v7614
      %v7694 = vadd.f32 %v7326, %v7619
      %v7695 = vadd.f32 %v7327, %v7622
      %v7696 = vadd.f32 %v7328, %v7627
      %v7697 = vadd.f32 %v7329, %v7630
      %v7698 = vadd.f32 %v7330, %v7635
      %v7699 = vadd.f32 %v7331, %v7638
      %v7700 = vadd.f32 %v7332, %v7643
      %v7701 = vadd.f32 %v7333, %v7646
      %v7702 = vadd.f32 %v7334, %v7651
      %v7703 = vadd.f32 %v7335, %v7654
      %v7704 = vadd.f32 %v7336, %v7659
      %v7705 = vld [vmem:[%s5] sm:$0x1]
      %v7707 = vlaneseq
      %v7708 = vshrl.u32 %v7707, 7
      %v7709 = vsub.s32 0, %v7708
      %v7710 = vrot.slane %v7705, %v7709
      %v7712 = vadd.f32 %v7664, %v7710
      %v7713 = vadd.f32 %v7665, %v7710
      %v7714 = vadd.f32 %v7666, %v7710
      %v7715 = vadd.f32 %v7667, %v7710
      %v7716 = vadd.f32 %v7668, %v7710
      %v7717 = vadd.f32 %v7669, %v7710
      %v7718 = vadd.f32 %v7670, %v7710
      %v7719 = vadd.f32 %v7671, %v7710
      %v7720 = vadd.f32 %v7672, %v7710
      %v7721 = vadd.f32 %v7673, %v7710
      %v7722 = vadd.f32 %v7674, %v7710
      %v7723 = vadd.f32 %v7675, %v7710
      %v7724 = vadd.f32 %v7676, %v7710
      %v7725 = vadd.f32 %v7677, %v7710
      %v7726 = vadd.f32 %v7678, %v7710
      %v7727 = vadd.f32 %v7679, %v7710
      %v7728 = vadd.f32 %v7680, %v7710
      %v7729 = vadd.f32 %v7681, %v7710
      %v7730 = vadd.f32 %v7682, %v7710
      %v7731 = vadd.f32 %v7683, %v7710
      %v7732 = vadd.f32 %v7684, %v7710
      %v7733 = vadd.f32 %v7685, %v7710
      %v7734 = vadd.f32 %v7686, %v7710
      %v7735 = vadd.f32 %v7687, %v7710
      %v7736 = vadd.f32 %v7688, %v7710
      %v7737 = vadd.f32 %v7689, %v7710
      %v7738 = vadd.f32 %v7690, %v7710
      %v7739 = vadd.f32 %v7691, %v7710
      %v7740 = vadd.f32 %v7692, %v7710
      %v7741 = vadd.f32 %v7693, %v7710
      %v7742 = vadd.f32 %v7694, %v7710
      %v7743 = vadd.f32 %v7695, %v7710
      %v7744 = vadd.f32 %v7696, %v7710
      %v7745 = vadd.f32 %v7697, %v7710
      %v7746 = vadd.f32 %v7698, %v7710
      %v7747 = vadd.f32 %v7699, %v7710
      %v7748 = vadd.f32 %v7700, %v7710
      %v7749 = vadd.f32 %v7701, %v7710
      %v7750 = vadd.f32 %v7702, %v7710
      %v7751 = vadd.f32 %v7703, %v7710
      %v7752 = vadd.f32 %v7704, %v7710
      %v7753 = vmax.f32 %v7712, 0.0
      %v7754 = vmax.f32 %v7713, 0.0
      %v7755 = vmax.f32 %v7714, 0.0
      %v7756 = vmax.f32 %v7715, 0.0
      %v7757 = vmax.f32 %v7716, 0.0
      %v7758 = vmax.f32 %v7717, 0.0
      %v7759 = vmax.f32 %v7718, 0.0
      %v7760 = vmax.f32 %v7719, 0.0
      %v7761 = vmax.f32 %v7720, 0.0
      %v7762 = vmax.f32 %v7721, 0.0
      %v7763 = vmax.f32 %v7722, 0.0
      %v7764 = vmax.f32 %v7723, 0.0
      %v7765 = vmax.f32 %v7724, 0.0
      %v7766 = vmax.f32 %v7725, 0.0
      %v7767 = vmax.f32 %v7726, 0.0
      %v7768 = vmax.f32 %v7727, 0.0
      %v7769 = vmax.f32 %v7728, 0.0
      %v7770 = vmax.f32 %v7729, 0.0
      %v7771 = vmax.f32 %v7730, 0.0
      %v7772 = vmax.f32 %v7731, 0.0
      %v7773 = vmax.f32 %v7732, 0.0
      %v7774 = vmax.f32 %v7733, 0.0
      %v7775 = vmax.f32 %v7734, 0.0
      %v7776 = vmax.f32 %v7735, 0.0
      %v7777 = vmax.f32 %v7736, 0.0
      %v7778 = vmax.f32 %v7737, 0.0
      %v7779 = vmax.f32 %v7738, 0.0
      %v7780 = vmax.f32 %v7739, 0.0
      %v7781 = vmax.f32 %v7740, 0.0
      %v7782 = vmax.f32 %v7741, 0.0
      %v7783 = vmax.f32 %v7742, 0.0
      %v7784 = vmax.f32 %v7743, 0.0
      %v7785 = vmax.f32 %v7744, 0.0
      %v7786 = vmax.f32 %v7745, 0.0
      %v7787 = vmax.f32 %v7746, 0.0
      %v7788 = vmax.f32 %v7747, 0.0
      %v7789 = vmax.f32 %v7748, 0.0
      %v7790 = vmax.f32 %v7749, 0.0
      %v7791 = vmax.f32 %v7750, 0.0
      %v7792 = vmax.f32 %v7751, 0.0
      %v7793 = vmax.f32 %v7752, 0.0
      %v7794 = vmul.f32 %v7753, %v4145
      %v7795 = vmul.f32 %v7754, %v4150
      %v7796 = vmul.f32 %v7755, %v4155
      %v7797 = vmul.f32 %v7756, %v4160
      %v7798 = vmul.f32 %v7757, %v4165
      %v7799 = vmul.f32 %v7758, %v4170
      %v7800 = vmul.f32 %v7759, %v4175
      %v7801 = vmul.f32 %v7760, %v4180
      %v7802 = vmul.f32 %v7761, %v4185
      %v7803 = vmul.f32 %v7762, %v4190
      %v7804 = vmul.f32 %v7763, %v4195
      %v7805 = vmul.f32 %v7764, %v4200
      %v7806 = vmul.f32 %v7765, %v4205
      %v7807 = vmul.f32 %v7766, %v4210
      %v7808 = vmul.f32 %v7767, %v4215
      %v7809 = vmul.f32 %v7768, %v4220
      %v7810 = vmul.f32 %v7769, %v4225
      %v7811 = vmul.f32 %v7770, %v4230
      %v7812 = vmul.f32 %v7771, %v4235
      %v7813 = vmul.f32 %v7772, %v4240
      %v7814 = vmul.f32 %v7773, %v4245
      %v7815 = vmul.f32 %v7774, %v4250
      %v7816 = vmul.f32 %v7775, %v4255
      %v7817 = vmul.f32 %v7776, %v4260
      %v7818 = vmul.f32 %v7777, %v4265
      %v7819 = vmul.f32 %v7778, %v4270
      %v7820 = vmul.f32 %v7779, %v4275
      %v7821 = vmul.f32 %v7780, %v4280
      %v7822 = vmul.f32 %v7781, %v4285
      %v7823 = vmul.f32 %v7782, %v4290
      %v7824 = vmul.f32 %v7783, %v4295
      %v7825 = vmul.f32 %v7784, %v4300
      %v7826 = vmul.f32 %v7785, %v4305
      %v7827 = vmul.f32 %v7786, %v4310
      %v7828 = vmul.f32 %v7787, %v4315
      %v7829 = vmul.f32 %v7788, %v4320
      %v7830 = vmul.f32 %v7789, %v4325
      %v7831 = vmul.f32 %v7790, %v4330
      %v7832 = vmul.f32 %v7791, %v4335
      %v7833 = vmul.f32 %v7792, %v4340
      %v7834 = vmul.f32 %v7793, %v4345
      %7835 = vst [vmem:[#allocation3] sm:$0xff] 0.0
      %7836 = vst [vmem:[#allocation3 + $0x8] sm:$0xff] 0.0
      %7837 = vst [vmem:[#allocation3 + $0x10] sm:$0xff] 0.0
      %7838 = vst [vmem:[#allocation3 + $0x18] sm:$0xff] 0.0
      %7839 = vst [vmem:[#allocation3 + $0x20] sm:$0xff] 0.0
      %7840 = vst [vmem:[#allocation3 + $0x28] sm:$0xff] 0.0
      %7841 = vst [vmem:[#allocation3 + $0x30] sm:$0xff] 0.0
      %7842 = vst [vmem:[#allocation3 + $0x38] sm:$0xff] 0.0
      %7843 = vst [vmem:[#allocation3 + $0x40] sm:$0xff] 0.0
      %7844 = vst [vmem:[#allocation3 + $0x48] sm:$0xff] 0.0
      %7845 = vst [vmem:[#allocation3 + $0x50] sm:$0xff] 0.0
      %7846 = vst [vmem:[#allocation3 + $0x58] sm:$0xff] 0.0
      %7847 = vst [vmem:[#allocation3 + $0x60] sm:$0xff] 0.0
      %7848 = vst [vmem:[#allocation3 + $0x68] sm:$0xff] 0.0
      %7849 = vst [vmem:[#allocation3 + $0x70] sm:$0xff] 0.0
      %7850 = vst [vmem:[#allocation3 + $0x78] sm:$0xff] 0.0
      %7851 = vst [vmem:[#allocation3 + $0x80] sm:$0xff] 0.0
      %7852 = vst [vmem:[#allocation3 + $0x88] sm:$0xff] 0.0
      %7853 = vst [vmem:[#allocation3 + $0x90] sm:$0xff] 0.0
      %7854 = vst [vmem:[#allocation3 + $0x98] sm:$0xff] 0.0
      %7855 = vst [vmem:[#allocation3 + $0xa0] sm:$0xff] 0.0
      %7856 = vst [vmem:[#allocation3 + $0xa8] sm:$0xff] 0.0
      %7857 = vst [vmem:[#allocation3 + $0xb0] sm:$0xff] 0.0
      %7858 = vst [vmem:[#allocation3 + $0xb8] sm:$0xff] 0.0
      %7859 = vst [vmem:[#allocation3 + $0xc0] sm:$0xff] 0.0
      %7860 = vst [vmem:[#allocation3 + $0xc8] sm:$0xff] 0.0
      %7861 = vst [vmem:[#allocation3 + $0xd0] sm:$0xff] 0.0
      %7862 = vst [vmem:[#allocation3 + $0xd8] sm:$0xff] 0.0
      %7863 = vst [vmem:[#allocation3 + $0xe0] sm:$0xff] 0.0
      %7864 = vst [vmem:[#allocation3 + $0xe8] sm:$0xff] 0.0
      %7865 = vst [vmem:[#allocation3 + $0xf0] sm:$0xff] 0.0
      %7866 = vst [vmem:[#allocation3 + $0xf8] sm:$0xff] 0.0
      %7867 = vst [vmem:[#allocation3 + $0x100] sm:$0xff] 0.0
      %7868 = vst [vmem:[#allocation3 + $0x108] sm:$0xff] 0.0
      %7869 = vst [vmem:[#allocation3 + $0x110] sm:$0xff] 0.0
      %7870 = vst [vmem:[#allocation3 + $0x118] sm:$0xff] 0.0
      %7871 = vst [vmem:[#allocation3 + $0x120] sm:$0xff] 0.0
      %7872 = vst [vmem:[#allocation3 + $0x128] sm:$0xff] 0.0
      %7873 = vst [vmem:[#allocation3 + $0x130] sm:$0xff] 0.0
      %7874 = vst [vmem:[#allocation3 + $0x138] sm:$0xff] 0.0
      %7875 = vst [vmem:[#allocation3 + $0x140] sm:$0xff] 0.0
      %7876 = vst [vmem:[#allocation3 + $0x148] sm:$0xff] 0.0
      %7877 = vst [vmem:[#allocation3 + $0x150] sm:$0xff] 0.0
      %7878 = vst [vmem:[#allocation3 + $0x158] sm:$0xff] 0.0
      %7879 = vst [vmem:[#allocation3 + $0x160] sm:$0xff] 0.0
      %7880 = vst [vmem:[#allocation3 + $0x168] sm:$0xff] 0.0
      %7881 = vst [vmem:[#allocation3 + $0x170] sm:$0xf] 0.0
      %7882 = vst [vmem:[#allocation3 + $0x18] sm:$0xff] %v7794
      %7883 = vst [vmem:[#allocation3 + $0x20] sm:$0xff] %v7795
      %7884 = vst [vmem:[#allocation3 + $0x28] sm:$0xff] %v7796
      %7885 = vst [vmem:[#allocation3 + $0x30] sm:$0xff] %v7797
      %7886 = vst [vmem:[#allocation3 + $0x38] sm:$0xff] %v7798
      %7887 = vst [vmem:[#allocation3 + $0x40] sm:$0xff] %v7799
      %7888 = vst [vmem:[#allocation3 + $0x48] sm:$0xff] %v7800
      %7889 = vst [vmem:[#allocation3 + $0x50] sm:$0xff] %v7801
      %7890 = vst [vmem:[#allocation3 + $0x58] sm:$0xff] %v7802
      %7891 = vst [vmem:[#allocation3 + $0x60] sm:$0xff] %v7803
      %7892 = vst [vmem:[#allocation3 + $0x68] sm:$0xff] %v7804
      %7893 = vst [vmem:[#allocation3 + $0x70] sm:$0xff] %v7805
      %7894 = vst [vmem:[#allocation3 + $0x78] sm:$0xff] %v7806
      %7895 = vst [vmem:[#allocation3 + $0x80] sm:$0xff] %v7807
      %7896 = vst [vmem:[#allocation3 + $0x88] sm:$0xff] %v7808
      %7897 = vst [vmem:[#allocation3 + $0x90] sm:$0xff] %v7809
      %7898 = vst [vmem:[#allocation3 + $0x98] sm:$0xff] %v7810
      %7899 = vst [vmem:[#allocation3 + $0xa0] sm:$0xff] %v7811
      %7900 = vst [vmem:[#allocation3 + $0xa8] sm:$0xff] %v7812
      %7901 = vst [vmem:[#allocation3 + $0xb0] sm:$0xff] %v7813
      %7902 = vst [vmem:[#allocation3 + $0xb8] sm:$0xff] %v7814
      %7903 = vst [vmem:[#allocation3 + $0xc0] sm:$0xff] %v7815
      %7904 = vst [vmem:[#allocation3 + $0xc8] sm:$0xff] %v7816
      %7905 = vst [vmem:[#allocation3 + $0xd0] sm:$0xff] %v7817
      %7906 = vst [vmem:[#allocation3 + $0xd8] sm:$0xff] %v7818
      %7907 = vst [vmem:[#allocation3 + $0xe0] sm:$0xff] %v7819
      %7908 = vst [vmem:[#allocation3 + $0xe8] sm:$0xff] %v7820
      %7909 = vst [vmem:[#allocation3 + $0xf0] sm:$0xff] %v7821
      %7910 = vst [vmem:[#allocation3 + $0xf8] sm:$0xff] %v7822
      %7911 = vst [vmem:[#allocation3 + $0x100] sm:$0xff] %v7823
      %7912 = vst [vmem:[#allocation3 + $0x108] sm:$0xff] %v7824
      %7913 = vst [vmem:[#allocation3 + $0x110] sm:$0xff] %v7825
      %7914 = vst [vmem:[#allocation3 + $0x118] sm:$0xff] %v7826
      %7915 = vst [vmem:[#allocation3 + $0x120] sm:$0xff] %v7827
      %7916 = vst [vmem:[#allocation3 + $0x128] sm:$0xff] %v7828
      %7917 = vst [vmem:[#allocation3 + $0x130] sm:$0xff] %v7829
      %7918 = vst [vmem:[#allocation3 + $0x138] sm:$0xff] %v7830
      %7919 = vst [vmem:[#allocation3 + $0x140] sm:$0xff] %v7831
      %7920 = vst [vmem:[#allocation3 + $0x148] sm:$0xff] %v7832
      %7921 = vst [vmem:[#allocation3 + $0x150] sm:$0xff] %v7833
      %7922 = vst [vmem:[#allocation3 + $0x158] sm:$0xf] %v7834
      %v7923 = vld [vmem:[#allocation3 + $0x5] sm:$0xff]
      %v7924 = vld [vmem:[#allocation3 + $0xd] sm:$0xff]
      %v7925 = vld [vmem:[#allocation3 + $0x15] sm:$0xff]
      %v7926 = vld [vmem:[#allocation3 + $0x1d] sm:$0xff]
      %v7927 = vld [vmem:[#allocation3 + $0x25] sm:$0xff]
      %v7928 = vld [vmem:[#allocation3 + $0x2d] sm:$0xff]
      %v7929 = vld [vmem:[#allocation3 + $0x35] sm:$0xff]
      %v7930 = vld [vmem:[#allocation3 + $0x3d] sm:$0xff]
      %v7931 = vld [vmem:[#allocation3 + $0x45] sm:$0xff]
      %v7932 = vld [vmem:[#allocation3 + $0x4d] sm:$0xff]
      %v7933 = vld [vmem:[#allocation3 + $0x55] sm:$0xff]
      %v7934 = vld [vmem:[#allocation3 + $0x5d] sm:$0xff]
      %v7935 = vld [vmem:[#allocation3 + $0x65] sm:$0xff]
      %v7936 = vld [vmem:[#allocation3 + $0x6d] sm:$0xff]
      %v7937 = vld [vmem:[#allocation3 + $0x75] sm:$0xff]
      %v7938 = vld [vmem:[#allocation3 + $0x7d] sm:$0xff]
      %v7939 = vld [vmem:[#allocation3 + $0x85] sm:$0xff]
      %v7940 = vld [vmem:[#allocation3 + $0x8d] sm:$0xff]
      %v7941 = vld [vmem:[#allocation3 + $0x95] sm:$0xff]
      %v7942 = vld [vmem:[#allocation3 + $0x9d] sm:$0xff]
      %v7943 = vld [vmem:[#allocation3 + $0xa5] sm:$0xff]
      %v7944 = vld [vmem:[#allocation3 + $0xad] sm:$0xff]
      %v7945 = vld [vmem:[#allocation3 + $0xb5] sm:$0xff]
      %v7946 = vld [vmem:[#allocation3 + $0xbd] sm:$0xff]
      %v7947 = vld [vmem:[#allocation3 + $0xc5] sm:$0xff]
      %v7948 = vld [vmem:[#allocation3 + $0xcd] sm:$0xff]
      %v7949 = vld [vmem:[#allocation3 + $0xd5] sm:$0xff]
      %v7950 = vld [vmem:[#allocation3 + $0xdd] sm:$0xff]
      %v7951 = vld [vmem:[#allocation3 + $0xe5] sm:$0xff]
      %v7952 = vld [vmem:[#allocation3 + $0xed] sm:$0xff]
      %v7953 = vld [vmem:[#allocation3 + $0xf5] sm:$0xff]
      %v7954 = vld [vmem:[#allocation3 + $0xfd] sm:$0xff]
      %v7955 = vld [vmem:[#allocation3 + $0x105] sm:$0xff]
      %v7956 = vld [vmem:[#allocation3 + $0x10d] sm:$0xff]
      %v7957 = vld [vmem:[#allocation3 + $0x115] sm:$0xff]
      %v7958 = vld [vmem:[#allocation3 + $0x11d] sm:$0xff]
      %v7959 = vld [vmem:[#allocation3 + $0x125] sm:$0xff]
      %v7960 = vld [vmem:[#allocation3 + $0x12d] sm:$0xff]
      %v7961 = vld [vmem:[#allocation3 + $0x135] sm:$0xff]
      %v7962 = vld [vmem:[#allocation3 + $0x13d] sm:$0xff]
      %v7963 = vld [vmem:[#allocation3 + $0x145] sm:$0xf]
      %v7964 = vpack.c.bf16 %v7924, %v7923
      %v7965 = vpack.c.bf16 %v7926, %v7925
      %v7966 = vpack.c.bf16 %v7928, %v7927
      %v7967 = vpack.c.bf16 %v7930, %v7929
      %v7968 = vpack.c.bf16 %v7932, %v7931
      %v7969 = vpack.c.bf16 %v7934, %v7933
      %v7970 = vpack.c.bf16 %v7936, %v7935
      %v7971 = vpack.c.bf16 %v7938, %v7937
      %v7972 = vpack.c.bf16 %v7940, %v7939
      %v7973 = vpack.c.bf16 %v7942, %v7941
      %v7974 = vpack.c.bf16 %v7944, %v7943
      %v7975 = vpack.c.bf16 %v7946, %v7945
      %v7976 = vpack.c.bf16 %v7948, %v7947
      %v7977 = vpack.c.bf16 %v7950, %v7949
      %v7978 = vpack.c.bf16 %v7952, %v7951
      %v7979 = vpack.c.bf16 %v7954, %v7953
      %v7980 = vpack.c.bf16 %v7956, %v7955
      %v7981 = vpack.c.bf16 %v7958, %v7957
      %v7982 = vpack.c.bf16 %v7960, %v7959
      %v7983 = vpack.c.bf16 %v7962, %v7961
      %v7984 = vpack.c.bf16 %v7963, %v7963
      %v7985 = vld [vmem:[%s6] sm:$0xf]
      %v7986 = vld [vmem:[%s6 + $0x4] sm:$0xf]
      %v7987 = vld [vmem:[%s6 + $0x8] sm:$0xf]
      %v7988 = vld [vmem:[%s6 + $0xc] sm:$0xf]
      %v7989 = vld [vmem:[%s6 + $0x10] sm:$0xf]
      %v7990 = vld [vmem:[%s6 + $0x14] sm:$0xf]
      %v7991 = vld [vmem:[%s6 + $0x18] sm:$0xf]
      %v7992 = vld [vmem:[%s6 + $0x1c] sm:$0xf]
      %v7993 = vld [vmem:[%s6 + $0x20] sm:$0xf]
      %v7994 = vld [vmem:[%s6 + $0x24] sm:$0xf]
      %v7995 = vld [vmem:[%s6 + $0x28] sm:$0xf]
      %v7996 = vld [vmem:[%s6 + $0x2c] sm:$0xf]
      %v7997 = vld [vmem:[%s6 + $0x30] sm:$0xf]
      %v7998 = vld [vmem:[%s6 + $0x34] sm:$0xf]
      %v7999 = vld [vmem:[%s6 + $0x38] sm:$0xf]
      %v8000 = vld [vmem:[%s6 + $0x3c] sm:$0xf]
      %v8001 = vld [vmem:[#allocation3 + $0x6] sm:$0xff]
      %v8002 = vld [vmem:[#allocation3 + $0xe] sm:$0xff]
      %v8003 = vld [vmem:[#allocation3 + $0x16] sm:$0xff]
      %v8004 = vld [vmem:[#allocation3 + $0x1e] sm:$0xff]
      %v8005 = vld [vmem:[#allocation3 + $0x26] sm:$0xff]
      %v8006 = vld [vmem:[#allocation3 + $0x2e] sm:$0xff]
      %v8007 = vld [vmem:[#allocation3 + $0x36] sm:$0xff]
      %v8008 = vld [vmem:[#allocation3 + $0x3e] sm:$0xff]
      %v8009 = vld [vmem:[#allocation3 + $0x46] sm:$0xff]
      %v8010 = vld [vmem:[#allocation3 + $0x4e] sm:$0xff]
      %v8011 = vld [vmem:[#allocation3 + $0x56] sm:$0xff]
      %v8012 = vld [vmem:[#allocation3 + $0x5e] sm:$0xff]
      %v8013 = vld [vmem:[#allocation3 + $0x66] sm:$0xff]
      %v8014 = vld [vmem:[#allocation3 + $0x6e] sm:$0xff]
      %v8015 = vld [vmem:[#allocation3 + $0x76] sm:$0xff]
      %v8016 = vld [vmem:[#allocation3 + $0x7e] sm:$0xff]
      %v8017 = vld [vmem:[#allocation3 + $0x86] sm:$0xff]
      %v8018 = vld [vmem:[#allocation3 + $0x8e] sm:$0xff]
      %v8019 = vld [vmem:[#allocation3 + $0x96] sm:$0xff]
      %v8020 = vld [vmem:[#allocation3 + $0x9e] sm:$0xff]
      %v8021 = vld [vmem:[#allocation3 + $0xa6] sm:$0xff]
      %v8022 = vld [vmem:[#allocation3 + $0xae] sm:$0xff]
      %v8023 = vld [vmem:[#allocation3 + $0xb6] sm:$0xff]
      %v8024 = vld [vmem:[#allocation3 + $0xbe] sm:$0xff]
      %v8025 = vld [vmem:[#allocation3 + $0xc6] sm:$0xff]
      %v8026 = vld [vmem:[#allocation3 + $0xce] sm:$0xff]
      %v8027 = vld [vmem:[#allocation3 + $0xd6] sm:$0xff]
      %v8028 = vld [vmem:[#allocation3 + $0xde] sm:$0xff]
      %v8029 = vld [vmem:[#allocation3 + $0xe6] sm:$0xff]
      %v8030 = vld [vmem:[#allocation3 + $0xee] sm:$0xff]
      %v8031 = vld [vmem:[#allocation3 + $0xf6] sm:$0xff]
      %v8032 = vld [vmem:[#allocation3 + $0xfe] sm:$0xff]
      %v8033 = vld [vmem:[#allocation3 + $0x106] sm:$0xff]
      %v8034 = vld [vmem:[#allocation3 + $0x10e] sm:$0xff]
      %v8035 = vld [vmem:[#allocation3 + $0x116] sm:$0xff]
      %v8036 = vld [vmem:[#allocation3 + $0x11e] sm:$0xff]
      %v8037 = vld [vmem:[#allocation3 + $0x126] sm:$0xff]
      %v8038 = vld [vmem:[#allocation3 + $0x12e] sm:$0xff]
      %v8039 = vld [vmem:[#allocation3 + $0x136] sm:$0xff]
      %v8040 = vld [vmem:[#allocation3 + $0x13e] sm:$0xff]
      %v8041 = vld [vmem:[#allocation3 + $0x146] sm:$0xf]
      %v8042 = vpack.c.bf16 %v8002, %v8001
      %v8043 = vpack.c.bf16 %v8004, %v8003
      %v8044 = vpack.c.bf16 %v8006, %v8005
      %v8045 = vpack.c.bf16 %v8008, %v8007
      %v8046 = vpack.c.bf16 %v8010, %v8009
      %v8047 = vpack.c.bf16 %v8012, %v8011
      %v8048 = vpack.c.bf16 %v8014, %v8013
      %v8049 = vpack.c.bf16 %v8016, %v8015
      %v8050 = vpack.c.bf16 %v8018, %v8017
      %v8051 = vpack.c.bf16 %v8020, %v8019
      %v8052 = vpack.c.bf16 %v8022, %v8021
      %v8053 = vpack.c.bf16 %v8024, %v8023
      %v8054 = vpack.c.bf16 %v8026, %v8025
      %v8055 = vpack.c.bf16 %v8028, %v8027
      %v8056 = vpack.c.bf16 %v8030, %v8029
      %v8057 = vpack.c.bf16 %v8032, %v8031
      %v8058 = vpack.c.bf16 %v8034, %v8033
      %v8059 = vpack.c.bf16 %v8036, %v8035
      %v8060 = vpack.c.bf16 %v8038, %v8037
      %v8061 = vpack.c.bf16 %v8040, %v8039
      %v8062 = vpack.c.bf16 %v8041, %v8041
      %s8063 = scalar_lea.vmem %s6, 64
      %v8064 = vld [vmem:[%s8063] sm:$0xf]
      %v8065 = vld [vmem:[%s8063 + $0x4] sm:$0xf]
      %v8066 = vld [vmem:[%s8063 + $0x8] sm:$0xf]
      %v8067 = vld [vmem:[%s8063 + $0xc] sm:$0xf]
      %v8068 = vld [vmem:[%s8063 + $0x10] sm:$0xf]
      %v8069 = vld [vmem:[%s8063 + $0x14] sm:$0xf]
      %v8070 = vld [vmem:[%s8063 + $0x18] sm:$0xf]
      %v8071 = vld [vmem:[%s8063 + $0x1c] sm:$0xf]
      %v8072 = vld [vmem:[%s8063 + $0x20] sm:$0xf]
      %v8073 = vld [vmem:[%s8063 + $0x24] sm:$0xf]
      %v8074 = vld [vmem:[%s8063 + $0x28] sm:$0xf]
      %v8075 = vld [vmem:[%s8063 + $0x2c] sm:$0xf]
      %v8076 = vld [vmem:[%s8063 + $0x30] sm:$0xf]
      %v8077 = vld [vmem:[%s8063 + $0x34] sm:$0xf]
      %v8078 = vld [vmem:[%s8063 + $0x38] sm:$0xf]
      %v8079 = vld [vmem:[%s8063 + $0x3c] sm:$0xf]
      %v8096 = vunpack.c.l.b16 %v8064
      %v8097 = vunpack.c.l.b16 %v8065
      %v8098 = vunpack.c.l.b16 %v8066
      %v8099 = vunpack.c.l.b16 %v8067
      %v8100 = vunpack.c.l.b16 %v8068
      %v8101 = vunpack.c.l.b16 %v8069
      %v8102 = vunpack.c.l.b16 %v8070
      %v8103 = vunpack.c.l.b16 %v8071
      %v8104 = vunpack.c.l.b16 %v8072
      %v8105 = vunpack.c.l.b16 %v8073
      %v8106 = vunpack.c.l.b16 %v8074
      %v8107 = vunpack.c.l.b16 %v8075
      %v8108 = vunpack.c.l.b16 %v8076
      %v8109 = vunpack.c.l.b16 %v8077
      %v8110 = vunpack.c.l.b16 %v8078
      %v8111 = vunpack.c.l.b16 %v8079
      %v8112 = vpack.c.b16 %v8097, %v8096
      %v8113 = vpack.c.b16 %v8099, %v8098
      %v8114 = vpack.c.b16 %v8101, %v8100
      %v8115 = vpack.c.b16 %v8103, %v8102
      %v8116 = vpack.c.b16 %v8105, %v8104
      %v8117 = vpack.c.b16 %v8107, %v8106
      %v8118 = vpack.c.b16 %v8109, %v8108
      %v8119 = vpack.c.b16 %v8111, %v8110
      %8128 = vmatprep.subr.bf16.mxu0 0
      %8129 = vmatpush1.bf16.msra.mxu0 %v8119
      %8130 = vmatprep.subr.bf16.mxu0 0
      %8131 = vmatpush1.bf16.msra.mxu0 %v8118
      %8132 = vmatprep.subr.bf16.mxu0 0
      %8133 = vmatpush1.bf16.msra.mxu0 %v8117
      %8134 = vmatprep.subr.bf16.mxu0 0
      %8135 = vmatpush1.bf16.msra.mxu0 %v8116
      %8136 = vmatprep.subr.bf16.mxu0 0
      %8137 = vmatpush1.bf16.msra.mxu0 %v8115
      %8138 = vmatprep.subr.bf16.mxu0 0
      %8139 = vmatpush1.bf16.msra.mxu0 %v8114
      %8140 = vmatprep.subr.bf16.mxu0 0
      %8141 = vmatpush1.bf16.msra.mxu0 %v8113
      %8142 = vmatprep.subr.bf16.mxu0 0
      %8143 = vmatpush1.bf16.msra.mxu0 %v8112
      %8144 = vmatprep.subr.bf16.mxu0 0
      %8145 = vmatpush2.bf16.msra.mxu0 0
      %8146 = vmatprep.subr.bf16.mxu0 0
      %8147 = vmatpush2.bf16.msra.mxu0 0
      %8148 = vmatprep.subr.bf16.mxu0 0
      %8149 = vmatpush2.bf16.msra.mxu0 0
      %8150 = vmatprep.subr.bf16.mxu0 0
      %8151 = vmatpush2.bf16.msra.mxu0 0
      %8152 = vmatprep.subr.bf16.mxu0 0
      %8153 = vmatpush2.bf16.msra.mxu0 0
      %8154 = vmatprep.subr.bf16.mxu0 0
      %8155 = vmatpush2.bf16.msra.mxu0 0
      %8156 = vmatprep.subr.bf16.mxu0 0
      %8157 = vmatpush2.bf16.msra.mxu0 0
      %8158 = vmatprep.subr.bf16.mxu0 0
      %8159 = vmatpush2.bf16.msra.mxu0 0
      %8160 = vmatprep.mubr.bf16.mxu0 0
      %8161 = vmatmul.mubr.bf16.gmra.mxu0 %v8042
      %v8162 = vpop.f32.mrf.mxu0
      %v8163 = vadd.f32 0.0, %v8162
      %v8164 = vpop.f32.mrf.mxu0
      %v8165 = vpop.f32.mrf.mxu0
      %v8166 = vadd.f32 0.0, %v8165
      %v8167 = vpop.f32.mrf.mxu0
      %8168 = vmatprep.mubr.bf16.mxu0 0
      %8169 = vmatmul.mubr.bf16.gmra.mxu0 %v8043
      %v8170 = vpop.f32.mrf.mxu0
      %v8171 = vadd.f32 0.0, %v8170
      %v8172 = vpop.f32.mrf.mxu0
      %v8173 = vpop.f32.mrf.mxu0
      %v8174 = vadd.f32 0.0, %v8173
      %v8175 = vpop.f32.mrf.mxu0
      %8176 = vmatprep.mubr.bf16.mxu0 0
      %8177 = vmatmul.mubr.bf16.gmra.mxu0 %v8044
      %v8178 = vpop.f32.mrf.mxu0
      %v8179 = vadd.f32 0.0, %v8178
      %v8180 = vpop.f32.mrf.mxu0
      %v8181 = vpop.f32.mrf.mxu0
      %v8182 = vadd.f32 0.0, %v8181
      %v8183 = vpop.f32.mrf.mxu0
      %8184 = vmatprep.mubr.bf16.mxu0 0
      %8185 = vmatmul.mubr.bf16.gmra.mxu0 %v8045
      %v8186 = vpop.f32.mrf.mxu0
      %v8187 = vadd.f32 0.0, %v8186
      %v8188 = vpop.f32.mrf.mxu0
      %v8189 = vpop.f32.mrf.mxu0
      %v8190 = vadd.f32 0.0, %v8189
      %v8191 = vpop.f32.mrf.mxu0
      %8192 = vmatprep.mubr.bf16.mxu0 0
      %8193 = vmatmul.mubr.bf16.gmra.mxu0 %v8046
      %v8194 = vpop.f32.mrf.mxu0
      %v8195 = vadd.f32 0.0, %v8194
      %v8196 = vpop.f32.mrf.mxu0
      %v8197 = vpop.f32.mrf.mxu0
      %v8198 = vadd.f32 0.0, %v8197
      %v8199 = vpop.f32.mrf.mxu0
      %8200 = vmatprep.mubr.bf16.mxu0 0
      %8201 = vmatmul.mubr.bf16.gmra.mxu0 %v8047
      %v8202 = vpop.f32.mrf.mxu0
      %v8203 = vadd.f32 0.0, %v8202
      %v8204 = vpop.f32.mrf.mxu0
      %v8205 = vpop.f32.mrf.mxu0
      %v8206 = vadd.f32 0.0, %v8205
      %v8207 = vpop.f32.mrf.mxu0
      %8208 = vmatprep.mubr.bf16.mxu0 0
      %8209 = vmatmul.mubr.bf16.gmra.mxu0 %v8048
      %v8210 = vpop.f32.mrf.mxu0
      %v8211 = vadd.f32 0.0, %v8210
      %v8212 = vpop.f32.mrf.mxu0
      %v8213 = vpop.f32.mrf.mxu0
      %v8214 = vadd.f32 0.0, %v8213
      %v8215 = vpop.f32.mrf.mxu0
      %8216 = vmatprep.mubr.bf16.mxu0 0
      %8217 = vmatmul.mubr.bf16.gmra.mxu0 %v8049
      %v8218 = vpop.f32.mrf.mxu0
      %v8219 = vadd.f32 0.0, %v8218
      %v8220 = vpop.f32.mrf.mxu0
      %v8221 = vpop.f32.mrf.mxu0
      %v8222 = vadd.f32 0.0, %v8221
      %v8223 = vpop.f32.mrf.mxu0
      %8224 = vmatprep.mubr.bf16.mxu0 0
      %8225 = vmatmul.mubr.bf16.gmra.mxu0 %v8050
      %v8226 = vpop.f32.mrf.mxu0
      %v8227 = vadd.f32 0.0, %v8226
      %v8228 = vpop.f32.mrf.mxu0
      %v8229 = vpop.f32.mrf.mxu0
      %v8230 = vadd.f32 0.0, %v8229
      %v8231 = vpop.f32.mrf.mxu0
      %8232 = vmatprep.mubr.bf16.mxu0 0
      %8233 = vmatmul.mubr.bf16.gmra.mxu0 %v8051
      %v8234 = vpop.f32.mrf.mxu0
      %v8235 = vadd.f32 0.0, %v8234
      %v8236 = vpop.f32.mrf.mxu0
      %v8237 = vpop.f32.mrf.mxu0
      %v8238 = vadd.f32 0.0, %v8237
      %v8239 = vpop.f32.mrf.mxu0
      %8240 = vmatprep.mubr.bf16.mxu0 0
      %8241 = vmatmul.mubr.bf16.gmra.mxu0 %v8052
      %v8242 = vpop.f32.mrf.mxu0
      %v8243 = vadd.f32 0.0, %v8242
      %v8244 = vpop.f32.mrf.mxu0
      %v8245 = vpop.f32.mrf.mxu0
      %v8246 = vadd.f32 0.0, %v8245
      %v8247 = vpop.f32.mrf.mxu0
      %8248 = vmatprep.mubr.bf16.mxu0 0
      %8249 = vmatmul.mubr.bf16.gmra.mxu0 %v8053
      %v8250 = vpop.f32.mrf.mxu0
      %v8251 = vadd.f32 0.0, %v8250
      %v8252 = vpop.f32.mrf.mxu0
      %v8253 = vpop.f32.mrf.mxu0
      %v8254 = vadd.f32 0.0, %v8253
      %v8255 = vpop.f32.mrf.mxu0
      %8256 = vmatprep.mubr.bf16.mxu0 0
      %8257 = vmatmul.mubr.bf16.gmra.mxu0 %v8054
      %v8258 = vpop.f32.mrf.mxu0
      %v8259 = vadd.f32 0.0, %v8258
      %v8260 = vpop.f32.mrf.mxu0
      %v8261 = vpop.f32.mrf.mxu0
      %v8262 = vadd.f32 0.0, %v8261
      %v8263 = vpop.f32.mrf.mxu0
      %8264 = vmatprep.mubr.bf16.mxu0 0
      %8265 = vmatmul.mubr.bf16.gmra.mxu0 %v8055
      %v8266 = vpop.f32.mrf.mxu0
      %v8267 = vadd.f32 0.0, %v8266
      %v8268 = vpop.f32.mrf.mxu0
      %v8269 = vpop.f32.mrf.mxu0
      %v8270 = vadd.f32 0.0, %v8269
      %v8271 = vpop.f32.mrf.mxu0
      %8272 = vmatprep.mubr.bf16.mxu0 0
      %8273 = vmatmul.mubr.bf16.gmra.mxu0 %v8056
      %v8274 = vpop.f32.mrf.mxu0
      %v8275 = vadd.f32 0.0, %v8274
      %v8276 = vpop.f32.mrf.mxu0
      %v8277 = vpop.f32.mrf.mxu0
      %v8278 = vadd.f32 0.0, %v8277
      %v8279 = vpop.f32.mrf.mxu0
      %8280 = vmatprep.mubr.bf16.mxu0 0
      %8281 = vmatmul.mubr.bf16.gmra.mxu0 %v8057
      %v8282 = vpop.f32.mrf.mxu0
      %v8283 = vadd.f32 0.0, %v8282
      %v8284 = vpop.f32.mrf.mxu0
      %v8285 = vpop.f32.mrf.mxu0
      %v8286 = vadd.f32 0.0, %v8285
      %v8287 = vpop.f32.mrf.mxu0
      %8288 = vmatprep.mubr.bf16.mxu0 0
      %8289 = vmatmul.mubr.bf16.gmra.mxu0 %v8058
      %v8290 = vpop.f32.mrf.mxu0
      %v8291 = vadd.f32 0.0, %v8290
      %v8292 = vpop.f32.mrf.mxu0
      %v8293 = vpop.f32.mrf.mxu0
      %v8294 = vadd.f32 0.0, %v8293
      %v8295 = vpop.f32.mrf.mxu0
      %8296 = vmatprep.mubr.bf16.mxu0 0
      %8297 = vmatmul.mubr.bf16.gmra.mxu0 %v8059
      %v8298 = vpop.f32.mrf.mxu0
      %v8299 = vadd.f32 0.0, %v8298
      %v8300 = vpop.f32.mrf.mxu0
      %v8301 = vpop.f32.mrf.mxu0
      %v8302 = vadd.f32 0.0, %v8301
      %v8303 = vpop.f32.mrf.mxu0
      %8304 = vmatprep.mubr.bf16.mxu0 0
      %8305 = vmatmul.mubr.bf16.gmra.mxu0 %v8060
      %v8306 = vpop.f32.mrf.mxu0
      %v8307 = vadd.f32 0.0, %v8306
      %v8308 = vpop.f32.mrf.mxu0
      %v8309 = vpop.f32.mrf.mxu0
      %v8310 = vadd.f32 0.0, %v8309
      %v8311 = vpop.f32.mrf.mxu0
      %8312 = vmatprep.mubr.bf16.mxu0 0
      %8313 = vmatmul.mubr.bf16.gmra.mxu0 %v8061
      %v8314 = vpop.f32.mrf.mxu0
      %v8315 = vadd.f32 0.0, %v8314
      %v8316 = vpop.f32.mrf.mxu0
      %v8317 = vpop.f32.mrf.mxu0
      %v8318 = vadd.f32 0.0, %v8317
      %v8319 = vpop.f32.mrf.mxu0
      %8320 = vmatprep.mubr.bf16.mxu0 0
      %8321 = vmatmul.mubr.bf16.gmra.mxu0 %v8062
      %v8322 = vpop.f32.mrf.mxu0
      %v8323 = vadd.f32 0.0, %v8322
      %v8324 = vpop.f32.mrf.mxu0
      %v8325 = vpop.f32.mrf.mxu0
      %v8326 = vpop.f32.mrf.mxu0
      %8327 = vdwg.mxu0
      %v8344 = vunpack.c.l.b16 %v7985
      %v8345 = vunpack.c.l.b16 %v7986
      %v8346 = vunpack.c.l.b16 %v7987
      %v8347 = vunpack.c.l.b16 %v7988
      %v8348 = vunpack.c.l.b16 %v7989
      %v8349 = vunpack.c.l.b16 %v7990
      %v8350 = vunpack.c.l.b16 %v7991
      %v8351 = vunpack.c.l.b16 %v7992
      %v8352 = vunpack.c.l.b16 %v7993
      %v8353 = vunpack.c.l.b16 %v7994
      %v8354 = vunpack.c.l.b16 %v7995
      %v8355 = vunpack.c.l.b16 %v7996
      %v8356 = vunpack.c.l.b16 %v7997
      %v8357 = vunpack.c.l.b16 %v7998
      %v8358 = vunpack.c.l.b16 %v7999
      %v8359 = vunpack.c.l.b16 %v8000
      %v8360 = vpack.c.b16 %v8345, %v8344
      %v8361 = vpack.c.b16 %v8347, %v8346
      %v8362 = vpack.c.b16 %v8349, %v8348
      %v8363 = vpack.c.b16 %v8351, %v8350
      %v8364 = vpack.c.b16 %v8353, %v8352
      %v8365 = vpack.c.b16 %v8355, %v8354
      %v8366 = vpack.c.b16 %v8357, %v8356
      %v8367 = vpack.c.b16 %v8359, %v8358
      %8376 = vmatprep.subr.bf16.mxu0 0
      %8377 = vmatpush1.bf16.msra.mxu0 %v8367
      %8378 = vmatprep.subr.bf16.mxu0 0
      %8379 = vmatpush1.bf16.msra.mxu0 %v8366
      %8380 = vmatprep.subr.bf16.mxu0 0
      %8381 = vmatpush1.bf16.msra.mxu0 %v8365
      %8382 = vmatprep.subr.bf16.mxu0 0
      %8383 = vmatpush1.bf16.msra.mxu0 %v8364
      %8384 = vmatprep.subr.bf16.mxu0 0
      %8385 = vmatpush1.bf16.msra.mxu0 %v8363
      %8386 = vmatprep.subr.bf16.mxu0 0
      %8387 = vmatpush1.bf16.msra.mxu0 %v8362
      %8388 = vmatprep.subr.bf16.mxu0 0
      %8389 = vmatpush1.bf16.msra.mxu0 %v8361
      %8390 = vmatprep.subr.bf16.mxu0 0
      %8391 = vmatpush1.bf16.msra.mxu0 %v8360
      %8392 = vmatprep.subr.bf16.mxu0 0
      %8393 = vmatpush2.bf16.msra.mxu0 0
      %8394 = vmatprep.subr.bf16.mxu0 0
      %8395 = vmatpush2.bf16.msra.mxu0 0
      %8396 = vmatprep.subr.bf16.mxu0 0
      %8397 = vmatpush2.bf16.msra.mxu0 0
      %8398 = vmatprep.subr.bf16.mxu0 0
      %8399 = vmatpush2.bf16.msra.mxu0 0
      %8400 = vmatprep.subr.bf16.mxu0 0
      %8401 = vmatpush2.bf16.msra.mxu0 0
      %8402 = vmatprep.subr.bf16.mxu0 0
      %8403 = vmatpush2.bf16.msra.mxu0 0
      %8404 = vmatprep.subr.bf16.mxu0 0
      %8405 = vmatpush2.bf16.msra.mxu0 0
      %8406 = vmatprep.subr.bf16.mxu0 0
      %8407 = vmatpush2.bf16.msra.mxu0 0
      %8408 = vmatprep.mubr.bf16.mxu0 0
      %8409 = vmatmul.mubr.bf16.gmra.mxu0 %v7964
      %v8410 = vpop.f32.mrf.mxu0
      %v8411 = vadd.f32 %v8163, %v8410
      %v8412 = vpop.f32.mrf.mxu0
      %v8413 = vpop.f32.mrf.mxu0
      %v8414 = vadd.f32 %v8166, %v8413
      %v8415 = vpop.f32.mrf.mxu0
      %8416 = vmatprep.mubr.bf16.mxu0 0
      %8417 = vmatmul.mubr.bf16.gmra.mxu0 %v7965
      %v8418 = vpop.f32.mrf.mxu0
      %v8419 = vadd.f32 %v8171, %v8418
      %v8420 = vpop.f32.mrf.mxu0
      %v8421 = vpop.f32.mrf.mxu0
      %v8422 = vadd.f32 %v8174, %v8421
      %v8423 = vpop.f32.mrf.mxu0
      %8424 = vmatprep.mubr.bf16.mxu0 0
      %8425 = vmatmul.mubr.bf16.gmra.mxu0 %v7966
      %v8426 = vpop.f32.mrf.mxu0
      %v8427 = vadd.f32 %v8179, %v8426
      %v8428 = vpop.f32.mrf.mxu0
      %v8429 = vpop.f32.mrf.mxu0
      %v8430 = vadd.f32 %v8182, %v8429
      %v8431 = vpop.f32.mrf.mxu0
      %8432 = vmatprep.mubr.bf16.mxu0 0
      %8433 = vmatmul.mubr.bf16.gmra.mxu0 %v7967
      %v8434 = vpop.f32.mrf.mxu0
      %v8435 = vadd.f32 %v8187, %v8434
      %v8436 = vpop.f32.mrf.mxu0
      %v8437 = vpop.f32.mrf.mxu0
      %v8438 = vadd.f32 %v8190, %v8437
      %v8439 = vpop.f32.mrf.mxu0
      %8440 = vmatprep.mubr.bf16.mxu0 0
      %8441 = vmatmul.mubr.bf16.gmra.mxu0 %v7968
      %v8442 = vpop.f32.mrf.mxu0
      %v8443 = vadd.f32 %v8195, %v8442
      %v8444 = vpop.f32.mrf.mxu0
      %v8445 = vpop.f32.mrf.mxu0
      %v8446 = vadd.f32 %v8198, %v8445
      %v8447 = vpop.f32.mrf.mxu0
      %8448 = vmatprep.mubr.bf16.mxu0 0
      %8449 = vmatmul.mubr.bf16.gmra.mxu0 %v7969
      %v8450 = vpop.f32.mrf.mxu0
      %v8451 = vadd.f32 %v8203, %v8450
      %v8452 = vpop.f32.mrf.mxu0
      %v8453 = vpop.f32.mrf.mxu0
      %v8454 = vadd.f32 %v8206, %v8453
      %v8455 = vpop.f32.mrf.mxu0
      %8456 = vmatprep.mubr.bf16.mxu0 0
      %8457 = vmatmul.mubr.bf16.gmra.mxu0 %v7970
      %v8458 = vpop.f32.mrf.mxu0
      %v8459 = vadd.f32 %v8211, %v8458
      %v8460 = vpop.f32.mrf.mxu0
      %v8461 = vpop.f32.mrf.mxu0
      %v8462 = vadd.f32 %v8214, %v8461
      %v8463 = vpop.f32.mrf.mxu0
      %8464 = vmatprep.mubr.bf16.mxu0 0
      %8465 = vmatmul.mubr.bf16.gmra.mxu0 %v7971
      %v8466 = vpop.f32.mrf.mxu0
      %v8467 = vadd.f32 %v8219, %v8466
      %v8468 = vpop.f32.mrf.mxu0
      %v8469 = vpop.f32.mrf.mxu0
      %v8470 = vadd.f32 %v8222, %v8469
      %v8471 = vpop.f32.mrf.mxu0
      %8472 = vmatprep.mubr.bf16.mxu0 0
      %8473 = vmatmul.mubr.bf16.gmra.mxu0 %v7972
      %v8474 = vpop.f32.mrf.mxu0
      %v8475 = vadd.f32 %v8227, %v8474
      %v8476 = vpop.f32.mrf.mxu0
      %v8477 = vpop.f32.mrf.mxu0
      %v8478 = vadd.f32 %v8230, %v8477
      %v8479 = vpop.f32.mrf.mxu0
      %8480 = vmatprep.mubr.bf16.mxu0 0
      %8481 = vmatmul.mubr.bf16.gmra.mxu0 %v7973
      %v8482 = vpop.f32.mrf.mxu0
      %v8483 = vadd.f32 %v8235, %v8482
      %v8484 = vpop.f32.mrf.mxu0
      %v8485 = vpop.f32.mrf.mxu0
      %v8486 = vadd.f32 %v8238, %v8485
      %v8487 = vpop.f32.mrf.mxu0
      %8488 = vmatprep.mubr.bf16.mxu0 0
      %8489 = vmatmul.mubr.bf16.gmra.mxu0 %v7974
      %v8490 = vpop.f32.mrf.mxu0
      %v8491 = vadd.f32 %v8243, %v8490
      %v8492 = vpop.f32.mrf.mxu0
      %v8493 = vpop.f32.mrf.mxu0
      %v8494 = vadd.f32 %v8246, %v8493
      %v8495 = vpop.f32.mrf.mxu0
      %8496 = vmatprep.mubr.bf16.mxu0 0
      %8497 = vmatmul.mubr.bf16.gmra.mxu0 %v7975
      %v8498 = vpop.f32.mrf.mxu0
      %v8499 = vadd.f32 %v8251, %v8498
      %v8500 = vpop.f32.mrf.mxu0
      %v8501 = vpop.f32.mrf.mxu0
      %v8502 = vadd.f32 %v8254, %v8501
      %v8503 = vpop.f32.mrf.mxu0
      %8504 = vmatprep.mubr.bf16.mxu0 0
      %8505 = vmatmul.mubr.bf16.gmra.mxu0 %v7976
      %v8506 = vpop.f32.mrf.mxu0
      %v8507 = vadd.f32 %v8259, %v8506
      %v8508 = vpop.f32.mrf.mxu0
      %v8509 = vpop.f32.mrf.mxu0
      %v8510 = vadd.f32 %v8262, %v8509
      %v8511 = vpop.f32.mrf.mxu0
      %8512 = vmatprep.mubr.bf16.mxu0 0
      %8513 = vmatmul.mubr.bf16.gmra.mxu0 %v7977
      %v8514 = vpop.f32.mrf.mxu0
      %v8515 = vadd.f32 %v8267, %v8514
      %v8516 = vpop.f32.mrf.mxu0
      %v8517 = vpop.f32.mrf.mxu0
      %v8518 = vadd.f32 %v8270, %v8517
      %v8519 = vpop.f32.mrf.mxu0
      %8520 = vmatprep.mubr.bf16.mxu0 0
      %8521 = vmatmul.mubr.bf16.gmra.mxu0 %v7978
      %v8522 = vpop.f32.mrf.mxu0
      %v8523 = vadd.f32 %v8275, %v8522
      %v8524 = vpop.f32.mrf.mxu0
      %v8525 = vpop.f32.mrf.mxu0
      %v8526 = vadd.f32 %v8278, %v8525
      %v8527 = vpop.f32.mrf.mxu0
      %8528 = vmatprep.mubr.bf16.mxu0 0
      %8529 = vmatmul.mubr.bf16.gmra.mxu0 %v7979
      %v8530 = vpop.f32.mrf.mxu0
      %v8531 = vadd.f32 %v8283, %v8530
      %v8532 = vpop.f32.mrf.mxu0
      %v8533 = vpop.f32.mrf.mxu0
      %v8534 = vadd.f32 %v8286, %v8533
      %v8535 = vpop.f32.mrf.mxu0
      %8536 = vmatprep.mubr.bf16.mxu0 0
      %8537 = vmatmul.mubr.bf16.gmra.mxu0 %v7980
      %v8538 = vpop.f32.mrf.mxu0
      %v8539 = vadd.f32 %v8291, %v8538
      %v8540 = vpop.f32.mrf.mxu0
      %v8541 = vpop.f32.mrf.mxu0
      %v8542 = vadd.f32 %v8294, %v8541
      %v8543 = vpop.f32.mrf.mxu0
      %8544 = vmatprep.mubr.bf16.mxu0 0
      %8545 = vmatmul.mubr.bf16.gmra.mxu0 %v7981
      %v8546 = vpop.f32.mrf.mxu0
      %v8547 = vadd.f32 %v8299, %v8546
      %v8548 = vpop.f32.mrf.mxu0
      %v8549 = vpop.f32.mrf.mxu0
      %v8550 = vadd.f32 %v8302, %v8549
      %v8551 = vpop.f32.mrf.mxu0
      %8552 = vmatprep.mubr.bf16.mxu0 0
      %8553 = vmatmul.mubr.bf16.gmra.mxu0 %v7982
      %v8554 = vpop.f32.mrf.mxu0
      %v8555 = vadd.f32 %v8307, %v8554
      %v8556 = vpop.f32.mrf.mxu0
      %v8557 = vpop.f32.mrf.mxu0
      %v8558 = vadd.f32 %v8310, %v8557
      %v8559 = vpop.f32.mrf.mxu0
      %8560 = vmatprep.mubr.bf16.mxu0 0
      %8561 = vmatmul.mubr.bf16.gmra.mxu0 %v7983
      %v8562 = vpop.f32.mrf.mxu0
      %v8563 = vadd.f32 %v8315, %v8562
      %v8564 = vpop.f32.mrf.mxu0
      %v8565 = vpop.f32.mrf.mxu0
      %v8566 = vadd.f32 %v8318, %v8565
      %v8567 = vpop.f32.mrf.mxu0
      %8568 = vmatprep.mubr.bf16.mxu0 0
      %8569 = vmatmul.mubr.bf16.gmra.mxu0 %v7984
      %v8570 = vpop.f32.mrf.mxu0
      %v8571 = vadd.f32 %v8323, %v8570
      %v8572 = vpop.f32.mrf.mxu0
      %v8573 = vpop.f32.mrf.mxu0
      %v8574 = vpop.f32.mrf.mxu0
      %8575 = vdwg.mxu0
      %v8576 = vld [vmem:[#allocation3 + $0x7] sm:$0xff]
      %v8577 = vld [vmem:[#allocation3 + $0xf] sm:$0xff]
      %v8578 = vld [vmem:[#allocation3 + $0x17] sm:$0xff]
      %v8579 = vld [vmem:[#allocation3 + $0x1f] sm:$0xff]
      %v8580 = vld [vmem:[#allocation3 + $0x27] sm:$0xff]
      %v8581 = vld [vmem:[#allocation3 + $0x2f] sm:$0xff]
      %v8582 = vld [vmem:[#allocation3 + $0x37] sm:$0xff]
      %v8583 = vld [vmem:[#allocation3 + $0x3f] sm:$0xff]
      %v8584 = vld [vmem:[#allocation3 + $0x47] sm:$0xff]
      %v8585 = vld [vmem:[#allocation3 + $0x4f] sm:$0xff]
      %v8586 = vld [vmem:[#allocation3 + $0x57] sm:$0xff]
      %v8587 = vld [vmem:[#allocation3 + $0x5f] sm:$0xff]
      %v8588 = vld [vmem:[#allocation3 + $0x67] sm:$0xff]
      %v8589 = vld [vmem:[#allocation3 + $0x6f] sm:$0xff]
      %v8590 = vld [vmem:[#allocation3 + $0x77] sm:$0xff]
      %v8591 = vld [vmem:[#allocation3 + $0x7f] sm:$0xff]
      %v8592 = vld [vmem:[#allocation3 + $0x87] sm:$0xff]
      %v8593 = vld [vmem:[#allocation3 + $0x8f] sm:$0xff]
      %v8594 = vld [vmem:[#allocation3 + $0x97] sm:$0xff]
      %v8595 = vld [vmem:[#allocation3 + $0x9f] sm:$0xff]
      %v8596 = vld [vmem:[#allocation3 + $0xa7] sm:$0xff]
      %v8597 = vld [vmem:[#allocation3 + $0xaf] sm:$0xff]
      %v8598 = vld [vmem:[#allocation3 + $0xb7] sm:$0xff]
      %v8599 = vld [vmem:[#allocation3 + $0xbf] sm:$0xff]
      %v8600 = vld [vmem:[#allocation3 + $0xc7] sm:$0xff]
      %v8601 = vld [vmem:[#allocation3 + $0xcf] sm:$0xff]
      %v8602 = vld [vmem:[#allocation3 + $0xd7] sm:$0xff]
      %v8603 = vld [vmem:[#allocation3 + $0xdf] sm:$0xff]
      %v8604 = vld [vmem:[#allocation3 + $0xe7] sm:$0xff]
      %v8605 = vld [vmem:[#allocation3 + $0xef] sm:$0xff]
      %v8606 = vld [vmem:[#allocation3 + $0xf7] sm:$0xff]
      %v8607 = vld [vmem:[#allocation3 + $0xff] sm:$0xff]
      %v8608 = vld [vmem:[#allocation3 + $0x107] sm:$0xff]
      %v8609 = vld [vmem:[#allocation3 + $0x10f] sm:$0xff]
      %v8610 = vld [vmem:[#allocation3 + $0x117] sm:$0xff]
      %v8611 = vld [vmem:[#allocation3 + $0x11f] sm:$0xff]
      %v8612 = vld [vmem:[#allocation3 + $0x127] sm:$0xff]
      %v8613 = vld [vmem:[#allocation3 + $0x12f] sm:$0xff]
      %v8614 = vld [vmem:[#allocation3 + $0x137] sm:$0xff]
      %v8615 = vld [vmem:[#allocation3 + $0x13f] sm:$0xff]
      %v8616 = vld [vmem:[#allocation3 + $0x147] sm:$0xf]
      %v8617 = vpack.c.bf16 %v8577, %v8576
      %v8618 = vpack.c.bf16 %v8579, %v8578
      %v8619 = vpack.c.bf16 %v8581, %v8580
      %v8620 = vpack.c.bf16 %v8583, %v8582
      %v8621 = vpack.c.bf16 %v8585, %v8584
      %v8622 = vpack.c.bf16 %v8587, %v8586
      %v8623 = vpack.c.bf16 %v8589, %v8588
      %v8624 = vpack.c.bf16 %v8591, %v8590
      %v8625 = vpack.c.bf16 %v8593, %v8592
      %v8626 = vpack.c.bf16 %v8595, %v8594
      %v8627 = vpack.c.bf16 %v8597, %v8596
      %v8628 = vpack.c.bf16 %v8599, %v8598
      %v8629 = vpack.c.bf16 %v8601, %v8600
      %v8630 = vpack.c.bf16 %v8603, %v8602
      %v8631 = vpack.c.bf16 %v8605, %v8604
      %v8632 = vpack.c.bf16 %v8607, %v8606
      %v8633 = vpack.c.bf16 %v8609, %v8608
      %v8634 = vpack.c.bf16 %v8611, %v8610
      %v8635 = vpack.c.bf16 %v8613, %v8612
      %v8636 = vpack.c.bf16 %v8615, %v8614
      %v8637 = vpack.c.bf16 %v8616, %v8616
      %s8638 = scalar_lea.vmem %s6, 128
      %v8639 = vld [vmem:[%s8638] sm:$0xf]
      %v8640 = vld [vmem:[%s8638 + $0x4] sm:$0xf]
      %v8641 = vld [vmem:[%s8638 + $0x8] sm:$0xf]
      %v8642 = vld [vmem:[%s8638 + $0xc] sm:$0xf]
      %v8643 = vld [vmem:[%s8638 + $0x10] sm:$0xf]
      %v8644 = vld [vmem:[%s8638 + $0x14] sm:$0xf]
      %v8645 = vld [vmem:[%s8638 + $0x18] sm:$0xf]
      %v8646 = vld [vmem:[%s8638 + $0x1c] sm:$0xf]
      %v8647 = vld [vmem:[%s8638 + $0x20] sm:$0xf]
      %v8648 = vld [vmem:[%s8638 + $0x24] sm:$0xf]
      %v8649 = vld [vmem:[%s8638 + $0x28] sm:$0xf]
      %v8650 = vld [vmem:[%s8638 + $0x2c] sm:$0xf]
      %v8651 = vld [vmem:[%s8638 + $0x30] sm:$0xf]
      %v8652 = vld [vmem:[%s8638 + $0x34] sm:$0xf]
      %v8653 = vld [vmem:[%s8638 + $0x38] sm:$0xf]
      %v8654 = vld [vmem:[%s8638 + $0x3c] sm:$0xf]
      %v8671 = vunpack.c.l.b16 %v8639
      %v8672 = vunpack.c.l.b16 %v8640
      %v8673 = vunpack.c.l.b16 %v8641
      %v8674 = vunpack.c.l.b16 %v8642
      %v8675 = vunpack.c.l.b16 %v8643
      %v8676 = vunpack.c.l.b16 %v8644
      %v8677 = vunpack.c.l.b16 %v8645
      %v8678 = vunpack.c.l.b16 %v8646
      %v8679 = vunpack.c.l.b16 %v8647
      %v8680 = vunpack.c.l.b16 %v8648
      %v8681 = vunpack.c.l.b16 %v8649
      %v8682 = vunpack.c.l.b16 %v8650
      %v8683 = vunpack.c.l.b16 %v8651
      %v8684 = vunpack.c.l.b16 %v8652
      %v8685 = vunpack.c.l.b16 %v8653
      %v8686 = vunpack.c.l.b16 %v8654
      %v8687 = vpack.c.b16 %v8672, %v8671
      %v8688 = vpack.c.b16 %v8674, %v8673
      %v8689 = vpack.c.b16 %v8676, %v8675
      %v8690 = vpack.c.b16 %v8678, %v8677
      %v8691 = vpack.c.b16 %v8680, %v8679
      %v8692 = vpack.c.b16 %v8682, %v8681
      %v8693 = vpack.c.b16 %v8684, %v8683
      %v8694 = vpack.c.b16 %v8686, %v8685
      %8703 = vmatprep.subr.bf16.mxu0 0
      %8704 = vmatpush1.bf16.msra.mxu0 %v8694
      %8705 = vmatprep.subr.bf16.mxu0 0
      %8706 = vmatpush1.bf16.msra.mxu0 %v8693
      %8707 = vmatprep.subr.bf16.mxu0 0
      %8708 = vmatpush1.bf16.msra.mxu0 %v8692
      %8709 = vmatprep.subr.bf16.mxu0 0
      %8710 = vmatpush1.bf16.msra.mxu0 %v8691
      %8711 = vmatprep.subr.bf16.mxu0 0
      %8712 = vmatpush1.bf16.msra.mxu0 %v8690
      %8713 = vmatprep.subr.bf16.mxu0 0
      %8714 = vmatpush1.bf16.msra.mxu0 %v8689
      %8715 = vmatprep.subr.bf16.mxu0 0
      %8716 = vmatpush1.bf16.msra.mxu0 %v8688
      %8717 = vmatprep.subr.bf16.mxu0 0
      %8718 = vmatpush1.bf16.msra.mxu0 %v8687
      %8719 = vmatprep.subr.bf16.mxu0 0
      %8720 = vmatpush2.bf16.msra.mxu0 0
      %8721 = vmatprep.subr.bf16.mxu0 0
      %8722 = vmatpush2.bf16.msra.mxu0 0
      %8723 = vmatprep.subr.bf16.mxu0 0
      %8724 = vmatpush2.bf16.msra.mxu0 0
      %8725 = vmatprep.subr.bf16.mxu0 0
      %8726 = vmatpush2.bf16.msra.mxu0 0
      %8727 = vmatprep.subr.bf16.mxu0 0
      %8728 = vmatpush2.bf16.msra.mxu0 0
      %8729 = vmatprep.subr.bf16.mxu0 0
      %8730 = vmatpush2.bf16.msra.mxu0 0
      %8731 = vmatprep.subr.bf16.mxu0 0
      %8732 = vmatpush2.bf16.msra.mxu0 0
      %8733 = vmatprep.subr.bf16.mxu0 0
      %8734 = vmatpush2.bf16.msra.mxu0 0
      %8735 = vmatprep.mubr.bf16.mxu0 0
      %8736 = vmatmul.mubr.bf16.gmra.mxu0 %v8617
      %v8737 = vpop.f32.mrf.mxu0
      %v8738 = vadd.f32 0.0, %v8737
      %v8739 = vpop.f32.mrf.mxu0
      %v8740 = vpop.f32.mrf.mxu0
      %v8741 = vadd.f32 0.0, %v8740
      %v8742 = vpop.f32.mrf.mxu0
      %8743 = vmatprep.mubr.bf16.mxu0 0
      %8744 = vmatmul.mubr.bf16.gmra.mxu0 %v8618
      %v8745 = vpop.f32.mrf.mxu0
      %v8746 = vadd.f32 0.0, %v8745
      %v8747 = vpop.f32.mrf.mxu0
      %v8748 = vpop.f32.mrf.mxu0
      %v8749 = vadd.f32 0.0, %v8748
      %v8750 = vpop.f32.mrf.mxu0
      %8751 = vmatprep.mubr.bf16.mxu0 0
      %8752 = vmatmul.mubr.bf16.gmra.mxu0 %v8619
      %v8753 = vpop.f32.mrf.mxu0
      %v8754 = vadd.f32 0.0, %v8753
      %v8755 = vpop.f32.mrf.mxu0
      %v8756 = vpop.f32.mrf.mxu0
      %v8757 = vadd.f32 0.0, %v8756
      %v8758 = vpop.f32.mrf.mxu0
      %8759 = vmatprep.mubr.bf16.mxu0 0
      %8760 = vmatmul.mubr.bf16.gmra.mxu0 %v8620
      %v8761 = vpop.f32.mrf.mxu0
      %v8762 = vadd.f32 0.0, %v8761
      %v8763 = vpop.f32.mrf.mxu0
      %v8764 = vpop.f32.mrf.mxu0
      %v8765 = vadd.f32 0.0, %v8764
      %v8766 = vpop.f32.mrf.mxu0
      %8767 = vmatprep.mubr.bf16.mxu0 0
      %8768 = vmatmul.mubr.bf16.gmra.mxu0 %v8621
      %v8769 = vpop.f32.mrf.mxu0
      %v8770 = vadd.f32 0.0, %v8769
      %v8771 = vpop.f32.mrf.mxu0
      %v8772 = vpop.f32.mrf.mxu0
      %v8773 = vadd.f32 0.0, %v8772
      %v8774 = vpop.f32.mrf.mxu0
      %8775 = vmatprep.mubr.bf16.mxu0 0
      %8776 = vmatmul.mubr.bf16.gmra.mxu0 %v8622
      %v8777 = vpop.f32.mrf.mxu0
      %v8778 = vadd.f32 0.0, %v8777
      %v8779 = vpop.f32.mrf.mxu0
      %v8780 = vpop.f32.mrf.mxu0
      %v8781 = vadd.f32 0.0, %v8780
      %v8782 = vpop.f32.mrf.mxu0
      %8783 = vmatprep.mubr.bf16.mxu0 0
      %8784 = vmatmul.mubr.bf16.gmra.mxu0 %v8623
      %v8785 = vpop.f32.mrf.mxu0
      %v8786 = vadd.f32 0.0, %v8785
      %v8787 = vpop.f32.mrf.mxu0
      %v8788 = vpop.f32.mrf.mxu0
      %v8789 = vadd.f32 0.0, %v8788
      %v8790 = vpop.f32.mrf.mxu0
      %8791 = vmatprep.mubr.bf16.mxu0 0
      %8792 = vmatmul.mubr.bf16.gmra.mxu0 %v8624
      %v8793 = vpop.f32.mrf.mxu0
      %v8794 = vadd.f32 0.0, %v8793
      %v8795 = vpop.f32.mrf.mxu0
      %v8796 = vpop.f32.mrf.mxu0
      %v8797 = vadd.f32 0.0, %v8796
      %v8798 = vpop.f32.mrf.mxu0
      %8799 = vmatprep.mubr.bf16.mxu0 0
      %8800 = vmatmul.mubr.bf16.gmra.mxu0 %v8625
      %v8801 = vpop.f32.mrf.mxu0
      %v8802 = vadd.f32 0.0, %v8801
      %v8803 = vpop.f32.mrf.mxu0
      %v8804 = vpop.f32.mrf.mxu0
      %v8805 = vadd.f32 0.0, %v8804
      %v8806 = vpop.f32.mrf.mxu0
      %8807 = vmatprep.mubr.bf16.mxu0 0
      %8808 = vmatmul.mubr.bf16.gmra.mxu0 %v8626
      %v8809 = vpop.f32.mrf.mxu0
      %v8810 = vadd.f32 0.0, %v8809
      %v8811 = vpop.f32.mrf.mxu0
      %v8812 = vpop.f32.mrf.mxu0
      %v8813 = vadd.f32 0.0, %v8812
      %v8814 = vpop.f32.mrf.mxu0
      %8815 = vmatprep.mubr.bf16.mxu0 0
      %8816 = vmatmul.mubr.bf16.gmra.mxu0 %v8627
      %v8817 = vpop.f32.mrf.mxu0
      %v8818 = vadd.f32 0.0, %v8817
      %v8819 = vpop.f32.mrf.mxu0
      %v8820 = vpop.f32.mrf.mxu0
      %v8821 = vadd.f32 0.0, %v8820
      %v8822 = vpop.f32.mrf.mxu0
      %8823 = vmatprep.mubr.bf16.mxu0 0
      %8824 = vmatmul.mubr.bf16.gmra.mxu0 %v8628
      %v8825 = vpop.f32.mrf.mxu0
      %v8826 = vadd.f32 0.0, %v8825
      %v8827 = vpop.f32.mrf.mxu0
      %v8828 = vpop.f32.mrf.mxu0
      %v8829 = vadd.f32 0.0, %v8828
      %v8830 = vpop.f32.mrf.mxu0
      %8831 = vmatprep.mubr.bf16.mxu0 0
      %8832 = vmatmul.mubr.bf16.gmra.mxu0 %v8629
      %v8833 = vpop.f32.mrf.mxu0
      %v8834 = vadd.f32 0.0, %v8833
      %v8835 = vpop.f32.mrf.mxu0
      %v8836 = vpop.f32.mrf.mxu0
      %v8837 = vadd.f32 0.0, %v8836
      %v8838 = vpop.f32.mrf.mxu0
      %8839 = vmatprep.mubr.bf16.mxu0 0
      %8840 = vmatmul.mubr.bf16.gmra.mxu0 %v8630
      %v8841 = vpop.f32.mrf.mxu0
      %v8842 = vadd.f32 0.0, %v8841
      %v8843 = vpop.f32.mrf.mxu0
      %v8844 = vpop.f32.mrf.mxu0
      %v8845 = vadd.f32 0.0, %v8844
      %v8846 = vpop.f32.mrf.mxu0
      %8847 = vmatprep.mubr.bf16.mxu0 0
      %8848 = vmatmul.mubr.bf16.gmra.mxu0 %v8631
      %v8849 = vpop.f32.mrf.mxu0
      %v8850 = vadd.f32 0.0, %v8849
      %v8851 = vpop.f32.mrf.mxu0
      %v8852 = vpop.f32.mrf.mxu0
      %v8853 = vadd.f32 0.0, %v8852
      %v8854 = vpop.f32.mrf.mxu0
      %8855 = vmatprep.mubr.bf16.mxu0 0
      %8856 = vmatmul.mubr.bf16.gmra.mxu0 %v8632
      %v8857 = vpop.f32.mrf.mxu0
      %v8858 = vadd.f32 0.0, %v8857
      %v8859 = vpop.f32.mrf.mxu0
      %v8860 = vpop.f32.mrf.mxu0
      %v8861 = vadd.f32 0.0, %v8860
      %v8862 = vpop.f32.mrf.mxu0
      %8863 = vmatprep.mubr.bf16.mxu0 0
      %8864 = vmatmul.mubr.bf16.gmra.mxu0 %v8633
      %v8865 = vpop.f32.mrf.mxu0
      %v8866 = vadd.f32 0.0, %v8865
      %v8867 = vpop.f32.mrf.mxu0
      %v8868 = vpop.f32.mrf.mxu0
      %v8869 = vadd.f32 0.0, %v8868
      %v8870 = vpop.f32.mrf.mxu0
      %8871 = vmatprep.mubr.bf16.mxu0 0
      %8872 = vmatmul.mubr.bf16.gmra.mxu0 %v8634
      %v8873 = vpop.f32.mrf.mxu0
      %v8874 = vadd.f32 0.0, %v8873
      %v8875 = vpop.f32.mrf.mxu0
      %v8876 = vpop.f32.mrf.mxu0
      %v8877 = vadd.f32 0.0, %v8876
      %v8878 = vpop.f32.mrf.mxu0
      %8879 = vmatprep.mubr.bf16.mxu0 0
      %8880 = vmatmul.mubr.bf16.gmra.mxu0 %v8635
      %v8881 = vpop.f32.mrf.mxu0
      %v8882 = vadd.f32 0.0, %v8881
      %v8883 = vpop.f32.mrf.mxu0
      %v8884 = vpop.f32.mrf.mxu0
      %v8885 = vadd.f32 0.0, %v8884
      %v8886 = vpop.f32.mrf.mxu0
      %8887 = vmatprep.mubr.bf16.mxu0 0
      %8888 = vmatmul.mubr.bf16.gmra.mxu0 %v8636
      %v8889 = vpop.f32.mrf.mxu0
      %v8890 = vadd.f32 0.0, %v8889
      %v8891 = vpop.f32.mrf.mxu0
      %v8892 = vpop.f32.mrf.mxu0
      %v8893 = vadd.f32 0.0, %v8892
      %v8894 = vpop.f32.mrf.mxu0
      %8895 = vmatprep.mubr.bf16.mxu0 0
      %8896 = vmatmul.mubr.bf16.gmra.mxu0 %v8637
      %v8897 = vpop.f32.mrf.mxu0
      %v8898 = vadd.f32 0.0, %v8897
      %v8899 = vpop.f32.mrf.mxu0
      %v8900 = vpop.f32.mrf.mxu0
      %v8901 = vpop.f32.mrf.mxu0
      %8902 = vdwg.mxu0
      %v8903 = vadd.f32 %v8411, %v8738
      %v8904 = vadd.f32 %v8414, %v8741
      %v8905 = vadd.f32 %v8419, %v8746
      %v8906 = vadd.f32 %v8422, %v8749
      %v8907 = vadd.f32 %v8427, %v8754
      %v8908 = vadd.f32 %v8430, %v8757
      %v8909 = vadd.f32 %v8435, %v8762
      %v8910 = vadd.f32 %v8438, %v8765
      %v8911 = vadd.f32 %v8443, %v8770
      %v8912 = vadd.f32 %v8446, %v8773
      %v8913 = vadd.f32 %v8451, %v8778
      %v8914 = vadd.f32 %v8454, %v8781
      %v8915 = vadd.f32 %v8459, %v8786
      %v8916 = vadd.f32 %v8462, %v8789
      %v8917 = vadd.f32 %v8467, %v8794
      %v8918 = vadd.f32 %v8470, %v8797
      %v8919 = vadd.f32 %v8475, %v8802
      %v8920 = vadd.f32 %v8478, %v8805
      %v8921 = vadd.f32 %v8483, %v8810
      %v8922 = vadd.f32 %v8486, %v8813
      %v8923 = vadd.f32 %v8491, %v8818
      %v8924 = vadd.f32 %v8494, %v8821
      %v8925 = vadd.f32 %v8499, %v8826
      %v8926 = vadd.f32 %v8502, %v8829
      %v8927 = vadd.f32 %v8507, %v8834
      %v8928 = vadd.f32 %v8510, %v8837
      %v8929 = vadd.f32 %v8515, %v8842
      %v8930 = vadd.f32 %v8518, %v8845
      %v8931 = vadd.f32 %v8523, %v8850
      %v8932 = vadd.f32 %v8526, %v8853
      %v8933 = vadd.f32 %v8531, %v8858
      %v8934 = vadd.f32 %v8534, %v8861
      %v8935 = vadd.f32 %v8539, %v8866
      %v8936 = vadd.f32 %v8542, %v8869
      %v8937 = vadd.f32 %v8547, %v8874
      %v8938 = vadd.f32 %v8550, %v8877
      %v8939 = vadd.f32 %v8555, %v8882
      %v8940 = vadd.f32 %v8558, %v8885
      %v8941 = vadd.f32 %v8563, %v8890
      %v8942 = vadd.f32 %v8566, %v8893
      %v8943 = vadd.f32 %v8571, %v8898
      %v8944 = vld [vmem:[#allocation3 + $0x17] sm:$0xff]
      %v8945 = vld [vmem:[#allocation3 + $0x1f] sm:$0xff]
      %v8946 = vld [vmem:[#allocation3 + $0x27] sm:$0xff]
      %v8947 = vld [vmem:[#allocation3 + $0x2f] sm:$0xff]
      %v8948 = vld [vmem:[#allocation3 + $0x37] sm:$0xff]
      %v8949 = vld [vmem:[#allocation3 + $0x3f] sm:$0xff]
      %v8950 = vld [vmem:[#allocation3 + $0x47] sm:$0xff]
      %v8951 = vld [vmem:[#allocation3 + $0x4f] sm:$0xff]
      %v8952 = vld [vmem:[#allocation3 + $0x57] sm:$0xff]
      %v8953 = vld [vmem:[#allocation3 + $0x5f] sm:$0xff]
      %v8954 = vld [vmem:[#allocation3 + $0x67] sm:$0xff]
      %v8955 = vld [vmem:[#allocation3 + $0x6f] sm:$0xff]
      %v8956 = vld [vmem:[#allocation3 + $0x77] sm:$0xff]
      %v8957 = vld [vmem:[#allocation3 + $0x7f] sm:$0xff]
      %v8958 = vld [vmem:[#allocation3 + $0x87] sm:$0xff]
      %v8959 = vld [vmem:[#allocation3 + $0x8f] sm:$0xff]
      %v8960 = vld [vmem:[#allocation3 + $0x97] sm:$0xff]
      %v8961 = vld [vmem:[#allocation3 + $0x9f] sm:$0xff]
      %v8962 = vld [vmem:[#allocation3 + $0xa7] sm:$0xff]
      %v8963 = vld [vmem:[#allocation3 + $0xaf] sm:$0xff]
      %v8964 = vld [vmem:[#allocation3 + $0xb7] sm:$0xff]
      %v8965 = vld [vmem:[#allocation3 + $0xbf] sm:$0xff]
      %v8966 = vld [vmem:[#allocation3 + $0xc7] sm:$0xff]
      %v8967 = vld [vmem:[#allocation3 + $0xcf] sm:$0xff]
      %v8968 = vld [vmem:[#allocation3 + $0xd7] sm:$0xff]
      %v8969 = vld [vmem:[#allocation3 + $0xdf] sm:$0xff]
      %v8970 = vld [vmem:[#allocation3 + $0xe7] sm:$0xff]
      %v8971 = vld [vmem:[#allocation3 + $0xef] sm:$0xff]
      %v8972 = vld [vmem:[#allocation3 + $0xf7] sm:$0xff]
      %v8973 = vld [vmem:[#allocation3 + $0xff] sm:$0xff]
      %v8974 = vld [vmem:[#allocation3 + $0x107] sm:$0xff]
      %v8975 = vld [vmem:[#allocation3 + $0x10f] sm:$0xff]
      %v8976 = vld [vmem:[#allocation3 + $0x117] sm:$0xff]
      %v8977 = vld [vmem:[#allocation3 + $0x11f] sm:$0xff]
      %v8978 = vld [vmem:[#allocation3 + $0x127] sm:$0xff]
      %v8979 = vld [vmem:[#allocation3 + $0x12f] sm:$0xff]
      %v8980 = vld [vmem:[#allocation3 + $0x137] sm:$0xff]
      %v8981 = vld [vmem:[#allocation3 + $0x13f] sm:$0xff]
      %v8982 = vld [vmem:[#allocation3 + $0x147] sm:$0xff]
      %v8983 = vld [vmem:[#allocation3 + $0x14f] sm:$0xff]
      %v8984 = vld [vmem:[#allocation3 + $0x157] sm:$0xf]
      %v8985 = vpack.c.bf16 %v8945, %v8944
      %v8986 = vpack.c.bf16 %v8947, %v8946
      %v8987 = vpack.c.bf16 %v8949, %v8948
      %v8988 = vpack.c.bf16 %v8951, %v8950
      %v8989 = vpack.c.bf16 %v8953, %v8952
      %v8990 = vpack.c.bf16 %v8955, %v8954
      %v8991 = vpack.c.bf16 %v8957, %v8956
      %v8992 = vpack.c.bf16 %v8959, %v8958
      %v8993 = vpack.c.bf16 %v8961, %v8960
      %v8994 = vpack.c.bf16 %v8963, %v8962
      %v8995 = vpack.c.bf16 %v8965, %v8964
      %v8996 = vpack.c.bf16 %v8967, %v8966
      %v8997 = vpack.c.bf16 %v8969, %v8968
      %v8998 = vpack.c.bf16 %v8971, %v8970
      %v8999 = vpack.c.bf16 %v8973, %v8972
      %v9000 = vpack.c.bf16 %v8975, %v8974
      %v9001 = vpack.c.bf16 %v8977, %v8976
      %v9002 = vpack.c.bf16 %v8979, %v8978
      %v9003 = vpack.c.bf16 %v8981, %v8980
      %v9004 = vpack.c.bf16 %v8983, %v8982
      %v9005 = vpack.c.bf16 %v8984, %v8984
      %s9006 = scalar_lea.vmem %s6, 192
      %v9007 = vld [vmem:[%s9006] sm:$0xf]
      %v9008 = vld [vmem:[%s9006 + $0x4] sm:$0xf]
      %v9009 = vld [vmem:[%s9006 + $0x8] sm:$0xf]
      %v9010 = vld [vmem:[%s9006 + $0xc] sm:$0xf]
      %v9011 = vld [vmem:[%s9006 + $0x10] sm:$0xf]
      %v9012 = vld [vmem:[%s9006 + $0x14] sm:$0xf]
      %v9013 = vld [vmem:[%s9006 + $0x18] sm:$0xf]
      %v9014 = vld [vmem:[%s9006 + $0x1c] sm:$0xf]
      %v9015 = vld [vmem:[%s9006 + $0x20] sm:$0xf]
      %v9016 = vld [vmem:[%s9006 + $0x24] sm:$0xf]
      %v9017 = vld [vmem:[%s9006 + $0x28] sm:$0xf]
      %v9018 = vld [vmem:[%s9006 + $0x2c] sm:$0xf]
      %v9019 = vld [vmem:[%s9006 + $0x30] sm:$0xf]
      %v9020 = vld [vmem:[%s9006 + $0x34] sm:$0xf]
      %v9021 = vld [vmem:[%s9006 + $0x38] sm:$0xf]
      %v9022 = vld [vmem:[%s9006 + $0x3c] sm:$0xf]
      %v9039 = vunpack.c.l.b16 %v9007
      %v9040 = vunpack.c.l.b16 %v9008
      %v9041 = vunpack.c.l.b16 %v9009
      %v9042 = vunpack.c.l.b16 %v9010
      %v9043 = vunpack.c.l.b16 %v9011
      %v9044 = vunpack.c.l.b16 %v9012
      %v9045 = vunpack.c.l.b16 %v9013
      %v9046 = vunpack.c.l.b16 %v9014
      %v9047 = vunpack.c.l.b16 %v9015
      %v9048 = vunpack.c.l.b16 %v9016
      %v9049 = vunpack.c.l.b16 %v9017
      %v9050 = vunpack.c.l.b16 %v9018
      %v9051 = vunpack.c.l.b16 %v9019
      %v9052 = vunpack.c.l.b16 %v9020
      %v9053 = vunpack.c.l.b16 %v9021
      %v9054 = vunpack.c.l.b16 %v9022
      %v9055 = vpack.c.b16 %v9040, %v9039
      %v9056 = vpack.c.b16 %v9042, %v9041
      %v9057 = vpack.c.b16 %v9044, %v9043
      %v9058 = vpack.c.b16 %v9046, %v9045
      %v9059 = vpack.c.b16 %v9048, %v9047
      %v9060 = vpack.c.b16 %v9050, %v9049
      %v9061 = vpack.c.b16 %v9052, %v9051
      %v9062 = vpack.c.b16 %v9054, %v9053
      %9071 = vmatprep.subr.bf16.mxu0 0
      %9072 = vmatpush1.bf16.msra.mxu0 %v9062
      %9073 = vmatprep.subr.bf16.mxu0 0
      %9074 = vmatpush1.bf16.msra.mxu0 %v9061
      %9075 = vmatprep.subr.bf16.mxu0 0
      %9076 = vmatpush1.bf16.msra.mxu0 %v9060
      %9077 = vmatprep.subr.bf16.mxu0 0
      %9078 = vmatpush1.bf16.msra.mxu0 %v9059
      %9079 = vmatprep.subr.bf16.mxu0 0
      %9080 = vmatpush1.bf16.msra.mxu0 %v9058
      %9081 = vmatprep.subr.bf16.mxu0 0
      %9082 = vmatpush1.bf16.msra.mxu0 %v9057
      %9083 = vmatprep.subr.bf16.mxu0 0
      %9084 = vmatpush1.bf16.msra.mxu0 %v9056
      %9085 = vmatprep.subr.bf16.mxu0 0
      %9086 = vmatpush1.bf16.msra.mxu0 %v9055
      %9087 = vmatprep.subr.bf16.mxu0 0
      %9088 = vmatpush2.bf16.msra.mxu0 0
      %9089 = vmatprep.subr.bf16.mxu0 0
      %9090 = vmatpush2.bf16.msra.mxu0 0
      %9091 = vmatprep.subr.bf16.mxu0 0
      %9092 = vmatpush2.bf16.msra.mxu0 0
      %9093 = vmatprep.subr.bf16.mxu0 0
      %9094 = vmatpush2.bf16.msra.mxu0 0
      %9095 = vmatprep.subr.bf16.mxu0 0
      %9096 = vmatpush2.bf16.msra.mxu0 0
      %9097 = vmatprep.subr.bf16.mxu0 0
      %9098 = vmatpush2.bf16.msra.mxu0 0
      %9099 = vmatprep.subr.bf16.mxu0 0
      %9100 = vmatpush2.bf16.msra.mxu0 0
      %9101 = vmatprep.subr.bf16.mxu0 0
      %9102 = vmatpush2.bf16.msra.mxu0 0
      %9103 = vmatprep.mubr.bf16.mxu0 0
      %9104 = vmatmul.mubr.bf16.gmra.mxu0 %v8985
      %v9105 = vpop.f32.mrf.mxu0
      %v9106 = vadd.f32 0.0, %v9105
      %v9107 = vpop.f32.mrf.mxu0
      %v9108 = vpop.f32.mrf.mxu0
      %v9109 = vadd.f32 0.0, %v9108
      %v9110 = vpop.f32.mrf.mxu0
      %9111 = vmatprep.mubr.bf16.mxu0 0
      %9112 = vmatmul.mubr.bf16.gmra.mxu0 %v8986
      %v9113 = vpop.f32.mrf.mxu0
      %v9114 = vadd.f32 0.0, %v9113
      %v9115 = vpop.f32.mrf.mxu0
      %v9116 = vpop.f32.mrf.mxu0
      %v9117 = vadd.f32 0.0, %v9116
      %v9118 = vpop.f32.mrf.mxu0
      %9119 = vmatprep.mubr.bf16.mxu0 0
      %9120 = vmatmul.mubr.bf16.gmra.mxu0 %v8987
      %v9121 = vpop.f32.mrf.mxu0
      %v9122 = vadd.f32 0.0, %v9121
      %v9123 = vpop.f32.mrf.mxu0
      %v9124 = vpop.f32.mrf.mxu0
      %v9125 = vadd.f32 0.0, %v9124
      %v9126 = vpop.f32.mrf.mxu0
      %9127 = vmatprep.mubr.bf16.mxu0 0
      %9128 = vmatmul.mubr.bf16.gmra.mxu0 %v8988
      %v9129 = vpop.f32.mrf.mxu0
      %v9130 = vadd.f32 0.0, %v9129
      %v9131 = vpop.f32.mrf.mxu0
      %v9132 = vpop.f32.mrf.mxu0
      %v9133 = vadd.f32 0.0, %v9132
      %v9134 = vpop.f32.mrf.mxu0
      %9135 = vmatprep.mubr.bf16.mxu0 0
      %9136 = vmatmul.mubr.bf16.gmra.mxu0 %v8989
      %v9137 = vpop.f32.mrf.mxu0
      %v9138 = vadd.f32 0.0, %v9137
      %v9139 = vpop.f32.mrf.mxu0
      %v9140 = vpop.f32.mrf.mxu0
      %v9141 = vadd.f32 0.0, %v9140
      %v9142 = vpop.f32.mrf.mxu0
      %9143 = vmatprep.mubr.bf16.mxu0 0
      %9144 = vmatmul.mubr.bf16.gmra.mxu0 %v8990
      %v9145 = vpop.f32.mrf.mxu0
      %v9146 = vadd.f32 0.0, %v9145
      %v9147 = vpop.f32.mrf.mxu0
      %v9148 = vpop.f32.mrf.mxu0
      %v9149 = vadd.f32 0.0, %v9148
      %v9150 = vpop.f32.mrf.mxu0
      %9151 = vmatprep.mubr.bf16.mxu0 0
      %9152 = vmatmul.mubr.bf16.gmra.mxu0 %v8991
      %v9153 = vpop.f32.mrf.mxu0
      %v9154 = vadd.f32 0.0, %v9153
      %v9155 = vpop.f32.mrf.mxu0
      %v9156 = vpop.f32.mrf.mxu0
      %v9157 = vadd.f32 0.0, %v9156
      %v9158 = vpop.f32.mrf.mxu0
      %9159 = vmatprep.mubr.bf16.mxu0 0
      %9160 = vmatmul.mubr.bf16.gmra.mxu0 %v8992
      %v9161 = vpop.f32.mrf.mxu0
      %v9162 = vadd.f32 0.0, %v9161
      %v9163 = vpop.f32.mrf.mxu0
      %v9164 = vpop.f32.mrf.mxu0
      %v9165 = vadd.f32 0.0, %v9164
      %v9166 = vpop.f32.mrf.mxu0
      %9167 = vmatprep.mubr.bf16.mxu0 0
      %9168 = vmatmul.mubr.bf16.gmra.mxu0 %v8993
      %v9169 = vpop.f32.mrf.mxu0
      %v9170 = vadd.f32 0.0, %v9169
      %v9171 = vpop.f32.mrf.mxu0
      %v9172 = vpop.f32.mrf.mxu0
      %v9173 = vadd.f32 0.0, %v9172
      %v9174 = vpop.f32.mrf.mxu0
      %9175 = vmatprep.mubr.bf16.mxu0 0
      %9176 = vmatmul.mubr.bf16.gmra.mxu0 %v8994
      %v9177 = vpop.f32.mrf.mxu0
      %v9178 = vadd.f32 0.0, %v9177
      %v9179 = vpop.f32.mrf.mxu0
      %v9180 = vpop.f32.mrf.mxu0
      %v9181 = vadd.f32 0.0, %v9180
      %v9182 = vpop.f32.mrf.mxu0
      %9183 = vmatprep.mubr.bf16.mxu0 0
      %9184 = vmatmul.mubr.bf16.gmra.mxu0 %v8995
      %v9185 = vpop.f32.mrf.mxu0
      %v9186 = vadd.f32 0.0, %v9185
      %v9187 = vpop.f32.mrf.mxu0
      %v9188 = vpop.f32.mrf.mxu0
      %v9189 = vadd.f32 0.0, %v9188
      %v9190 = vpop.f32.mrf.mxu0
      %9191 = vmatprep.mubr.bf16.mxu0 0
      %9192 = vmatmul.mubr.bf16.gmra.mxu0 %v8996
      %v9193 = vpop.f32.mrf.mxu0
      %v9194 = vadd.f32 0.0, %v9193
      %v9195 = vpop.f32.mrf.mxu0
      %v9196 = vpop.f32.mrf.mxu0
      %v9197 = vadd.f32 0.0, %v9196
      %v9198 = vpop.f32.mrf.mxu0
      %9199 = vmatprep.mubr.bf16.mxu0 0
      %9200 = vmatmul.mubr.bf16.gmra.mxu0 %v8997
      %v9201 = vpop.f32.mrf.mxu0
      %v9202 = vadd.f32 0.0, %v9201
      %v9203 = vpop.f32.mrf.mxu0
      %v9204 = vpop.f32.mrf.mxu0
      %v9205 = vadd.f32 0.0, %v9204
      %v9206 = vpop.f32.mrf.mxu0
      %9207 = vmatprep.mubr.bf16.mxu0 0
      %9208 = vmatmul.mubr.bf16.gmra.mxu0 %v8998
      %v9209 = vpop.f32.mrf.mxu0
      %v9210 = vadd.f32 0.0, %v9209
      %v9211 = vpop.f32.mrf.mxu0
      %v9212 = vpop.f32.mrf.mxu0
      %v9213 = vadd.f32 0.0, %v9212
      %v9214 = vpop.f32.mrf.mxu0
      %9215 = vmatprep.mubr.bf16.mxu0 0
      %9216 = vmatmul.mubr.bf16.gmra.mxu0 %v8999
      %v9217 = vpop.f32.mrf.mxu0
      %v9218 = vadd.f32 0.0, %v9217
      %v9219 = vpop.f32.mrf.mxu0
      %v9220 = vpop.f32.mrf.mxu0
      %v9221 = vadd.f32 0.0, %v9220
      %v9222 = vpop.f32.mrf.mxu0
      %9223 = vmatprep.mubr.bf16.mxu0 0
      %9224 = vmatmul.mubr.bf16.gmra.mxu0 %v9000
      %v9225 = vpop.f32.mrf.mxu0
      %v9226 = vadd.f32 0.0, %v9225
      %v9227 = vpop.f32.mrf.mxu0
      %v9228 = vpop.f32.mrf.mxu0
      %v9229 = vadd.f32 0.0, %v9228
      %v9230 = vpop.f32.mrf.mxu0
      %9231 = vmatprep.mubr.bf16.mxu0 0
      %9232 = vmatmul.mubr.bf16.gmra.mxu0 %v9001
      %v9233 = vpop.f32.mrf.mxu0
      %v9234 = vadd.f32 0.0, %v9233
      %v9235 = vpop.f32.mrf.mxu0
      %v9236 = vpop.f32.mrf.mxu0
      %v9237 = vadd.f32 0.0, %v9236
      %v9238 = vpop.f32.mrf.mxu0
      %9239 = vmatprep.mubr.bf16.mxu0 0
      %9240 = vmatmul.mubr.bf16.gmra.mxu0 %v9002
      %v9241 = vpop.f32.mrf.mxu0
      %v9242 = vadd.f32 0.0, %v9241
      %v9243 = vpop.f32.mrf.mxu0
      %v9244 = vpop.f32.mrf.mxu0
      %v9245 = vadd.f32 0.0, %v9244
      %v9246 = vpop.f32.mrf.mxu0
      %9247 = vmatprep.mubr.bf16.mxu0 0
      %9248 = vmatmul.mubr.bf16.gmra.mxu0 %v9003
      %v9249 = vpop.f32.mrf.mxu0
      %v9250 = vadd.f32 0.0, %v9249
      %v9251 = vpop.f32.mrf.mxu0
      %v9252 = vpop.f32.mrf.mxu0
      %v9253 = vadd.f32 0.0, %v9252
      %v9254 = vpop.f32.mrf.mxu0
      %9255 = vmatprep.mubr.bf16.mxu0 0
      %9256 = vmatmul.mubr.bf16.gmra.mxu0 %v9004
      %v9257 = vpop.f32.mrf.mxu0
      %v9258 = vadd.f32 0.0, %v9257
      %v9259 = vpop.f32.mrf.mxu0
      %v9260 = vpop.f32.mrf.mxu0
      %v9261 = vadd.f32 0.0, %v9260
      %v9262 = vpop.f32.mrf.mxu0
      %9263 = vmatprep.mubr.bf16.mxu0 0
      %9264 = vmatmul.mubr.bf16.gmra.mxu0 %v9005
      %v9265 = vpop.f32.mrf.mxu0
      %v9266 = vadd.f32 0.0, %v9265
      %v9267 = vpop.f32.mrf.mxu0
      %v9268 = vpop.f32.mrf.mxu0
      %v9269 = vpop.f32.mrf.mxu0
      %9270 = vdwg.mxu0
      %v9271 = vadd.f32 %v8903, %v9106
      %v9272 = vadd.f32 %v8904, %v9109
      %v9273 = vadd.f32 %v8905, %v9114
      %v9274 = vadd.f32 %v8906, %v9117
      %v9275 = vadd.f32 %v8907, %v9122
      %v9276 = vadd.f32 %v8908, %v9125
      %v9277 = vadd.f32 %v8909, %v9130
      %v9278 = vadd.f32 %v8910, %v9133
      %v9279 = vadd.f32 %v8911, %v9138
      %v9280 = vadd.f32 %v8912, %v9141
      %v9281 = vadd.f32 %v8913, %v9146
      %v9282 = vadd.f32 %v8914, %v9149
      %v9283 = vadd.f32 %v8915, %v9154
      %v9284 = vadd.f32 %v8916, %v9157
      %v9285 = vadd.f32 %v8917, %v9162
      %v9286 = vadd.f32 %v8918, %v9165
      %v9287 = vadd.f32 %v8919, %v9170
      %v9288 = vadd.f32 %v8920, %v9173
      %v9289 = vadd.f32 %v8921, %v9178
      %v9290 = vadd.f32 %v8922, %v9181
      %v9291 = vadd.f32 %v8923, %v9186
      %v9292 = vadd.f32 %v8924, %v9189
      %v9293 = vadd.f32 %v8925, %v9194
      %v9294 = vadd.f32 %v8926, %v9197
      %v9295 = vadd.f32 %v8927, %v9202
      %v9296 = vadd.f32 %v8928, %v9205
      %v9297 = vadd.f32 %v8929, %v9210
      %v9298 = vadd.f32 %v8930, %v9213
      %v9299 = vadd.f32 %v8931, %v9218
      %v9300 = vadd.f32 %v8932, %v9221
      %v9301 = vadd.f32 %v8933, %v9226
      %v9302 = vadd.f32 %v8934, %v9229
      %v9303 = vadd.f32 %v8935, %v9234
      %v9304 = vadd.f32 %v8936, %v9237
      %v9305 = vadd.f32 %v8937, %v9242
      %v9306 = vadd.f32 %v8938, %v9245
      %v9307 = vadd.f32 %v8939, %v9250
      %v9308 = vadd.f32 %v8940, %v9253
      %v9309 = vadd.f32 %v8941, %v9258
      %v9310 = vadd.f32 %v8942, %v9261
      %v9311 = vadd.f32 %v8943, %v9266
      %v9312 = vld [vmem:[#allocation3 + $0x18] sm:$0xff]
      %v9313 = vld [vmem:[#allocation3 + $0x20] sm:$0xff]
      %v9314 = vld [vmem:[#allocation3 + $0x28] sm:$0xff]
      %v9315 = vld [vmem:[#allocation3 + $0x30] sm:$0xff]
      %v9316 = vld [vmem:[#allocation3 + $0x38] sm:$0xff]
      %v9317 = vld [vmem:[#allocation3 + $0x40] sm:$0xff]
      %v9318 = vld [vmem:[#allocation3 + $0x48] sm:$0xff]
      %v9319 = vld [vmem:[#allocation3 + $0x50] sm:$0xff]
      %v9320 = vld [vmem:[#allocation3 + $0x58] sm:$0xff]
      %v9321 = vld [vmem:[#allocation3 + $0x60] sm:$0xff]
      %v9322 = vld [vmem:[#allocation3 + $0x68] sm:$0xff]
      %v9323 = vld [vmem:[#allocation3 + $0x70] sm:$0xff]
      %v9324 = vld [vmem:[#allocation3 + $0x78] sm:$0xff]
      %v9325 = vld [vmem:[#allocation3 + $0x80] sm:$0xff]
      %v9326 = vld [vmem:[#allocation3 + $0x88] sm:$0xff]
      %v9327 = vld [vmem:[#allocation3 + $0x90] sm:$0xff]
      %v9328 = vld [vmem:[#allocation3 + $0x98] sm:$0xff]
      %v9329 = vld [vmem:[#allocation3 + $0xa0] sm:$0xff]
      %v9330 = vld [vmem:[#allocation3 + $0xa8] sm:$0xff]
      %v9331 = vld [vmem:[#allocation3 + $0xb0] sm:$0xff]
      %v9332 = vld [vmem:[#allocation3 + $0xb8] sm:$0xff]
      %v9333 = vld [vmem:[#allocation3 + $0xc0] sm:$0xff]
      %v9334 = vld [vmem:[#allocation3 + $0xc8] sm:$0xff]
      %v9335 = vld [vmem:[#allocation3 + $0xd0] sm:$0xff]
      %v9336 = vld [vmem:[#allocation3 + $0xd8] sm:$0xff]
      %v9337 = vld [vmem:[#allocation3 + $0xe0] sm:$0xff]
      %v9338 = vld [vmem:[#allocation3 + $0xe8] sm:$0xff]
      %v9339 = vld [vmem:[#allocation3 + $0xf0] sm:$0xff]
      %v9340 = vld [vmem:[#allocation3 + $0xf8] sm:$0xff]
      %v9341 = vld [vmem:[#allocation3 + $0x100] sm:$0xff]
      %v9342 = vld [vmem:[#allocation3 + $0x108] sm:$0xff]
      %v9343 = vld [vmem:[#allocation3 + $0x110] sm:$0xff]
      %v9344 = vld [vmem:[#allocation3 + $0x118] sm:$0xff]
      %v9345 = vld [vmem:[#allocation3 + $0x120] sm:$0xff]
      %v9346 = vld [vmem:[#allocation3 + $0x128] sm:$0xff]
      %v9347 = vld [vmem:[#allocation3 + $0x130] sm:$0xff]
      %v9348 = vld [vmem:[#allocation3 + $0x138] sm:$0xff]
      %v9349 = vld [vmem:[#allocation3 + $0x140] sm:$0xff]
      %v9350 = vld [vmem:[#allocation3 + $0x148] sm:$0xff]
      %v9351 = vld [vmem:[#allocation3 + $0x150] sm:$0xff]
      %v9352 = vld [vmem:[#allocation3 + $0x158] sm:$0xf]
      %v9353 = vpack.c.bf16 %v9313, %v9312
      %v9354 = vpack.c.bf16 %v9315, %v9314
      %v9355 = vpack.c.bf16 %v9317, %v9316
      %v9356 = vpack.c.bf16 %v9319, %v9318
      %v9357 = vpack.c.bf16 %v9321, %v9320
      %v9358 = vpack.c.bf16 %v9323, %v9322
      %v9359 = vpack.c.bf16 %v9325, %v9324
      %v9360 = vpack.c.bf16 %v9327, %v9326
      %v9361 = vpack.c.bf16 %v9329, %v9328
      %v9362 = vpack.c.bf16 %v9331, %v9330
      %v9363 = vpack.c.bf16 %v9333, %v9332
      %v9364 = vpack.c.bf16 %v9335, %v9334
      %v9365 = vpack.c.bf16 %v9337, %v9336
      %v9366 = vpack.c.bf16 %v9339, %v9338
      %v9367 = vpack.c.bf16 %v9341, %v9340
      %v9368 = vpack.c.bf16 %v9343, %v9342
      %v9369 = vpack.c.bf16 %v9345, %v9344
      %v9370 = vpack.c.bf16 %v9347, %v9346
      %v9371 = vpack.c.bf16 %v9349, %v9348
      %v9372 = vpack.c.bf16 %v9351, %v9350
      %v9373 = vpack.c.bf16 %v9352, %v9352
      %s9374 = scalar_lea.vmem %s6, 256
      %v9375 = vld [vmem:[%s9374] sm:$0xf]
      %v9376 = vld [vmem:[%s9374 + $0x4] sm:$0xf]
      %v9377 = vld [vmem:[%s9374 + $0x8] sm:$0xf]
      %v9378 = vld [vmem:[%s9374 + $0xc] sm:$0xf]
      %v9379 = vld [vmem:[%s9374 + $0x10] sm:$0xf]
      %v9380 = vld [vmem:[%s9374 + $0x14] sm:$0xf]
      %v9381 = vld [vmem:[%s9374 + $0x18] sm:$0xf]
      %v9382 = vld [vmem:[%s9374 + $0x1c] sm:$0xf]
      %v9383 = vld [vmem:[%s9374 + $0x20] sm:$0xf]
      %v9384 = vld [vmem:[%s9374 + $0x24] sm:$0xf]
      %v9385 = vld [vmem:[%s9374 + $0x28] sm:$0xf]
      %v9386 = vld [vmem:[%s9374 + $0x2c] sm:$0xf]
      %v9387 = vld [vmem:[%s9374 + $0x30] sm:$0xf]
      %v9388 = vld [vmem:[%s9374 + $0x34] sm:$0xf]
      %v9389 = vld [vmem:[%s9374 + $0x38] sm:$0xf]
      %v9390 = vld [vmem:[%s9374 + $0x3c] sm:$0xf]
      %v9407 = vunpack.c.l.b16 %v9375
      %v9408 = vunpack.c.l.b16 %v9376
      %v9409 = vunpack.c.l.b16 %v9377
      %v9410 = vunpack.c.l.b16 %v9378
      %v9411 = vunpack.c.l.b16 %v9379
      %v9412 = vunpack.c.l.b16 %v9380
      %v9413 = vunpack.c.l.b16 %v9381
      %v9414 = vunpack.c.l.b16 %v9382
      %v9415 = vunpack.c.l.b16 %v9383
      %v9416 = vunpack.c.l.b16 %v9384
      %v9417 = vunpack.c.l.b16 %v9385
      %v9418 = vunpack.c.l.b16 %v9386
      %v9419 = vunpack.c.l.b16 %v9387
      %v9420 = vunpack.c.l.b16 %v9388
      %v9421 = vunpack.c.l.b16 %v9389
      %v9422 = vunpack.c.l.b16 %v9390
      %v9423 = vpack.c.b16 %v9408, %v9407
      %v9424 = vpack.c.b16 %v9410, %v9409
      %v9425 = vpack.c.b16 %v9412, %v9411
      %v9426 = vpack.c.b16 %v9414, %v9413
      %v9427 = vpack.c.b16 %v9416, %v9415
      %v9428 = vpack.c.b16 %v9418, %v9417
      %v9429 = vpack.c.b16 %v9420, %v9419
      %v9430 = vpack.c.b16 %v9422, %v9421
      %9439 = vmatprep.subr.bf16.mxu0 0
      %9440 = vmatpush1.bf16.msra.mxu0 %v9430
      %9441 = vmatprep.subr.bf16.mxu0 0
      %9442 = vmatpush1.bf16.msra.mxu0 %v9429
      %9443 = vmatprep.subr.bf16.mxu0 0
      %9444 = vmatpush1.bf16.msra.mxu0 %v9428
      %9445 = vmatprep.subr.bf16.mxu0 0
      %9446 = vmatpush1.bf16.msra.mxu0 %v9427
      %9447 = vmatprep.subr.bf16.mxu0 0
      %9448 = vmatpush1.bf16.msra.mxu0 %v9426
      %9449 = vmatprep.subr.bf16.mxu0 0
      %9450 = vmatpush1.bf16.msra.mxu0 %v9425
      %9451 = vmatprep.subr.bf16.mxu0 0
      %9452 = vmatpush1.bf16.msra.mxu0 %v9424
      %9453 = vmatprep.subr.bf16.mxu0 0
      %9454 = vmatpush1.bf16.msra.mxu0 %v9423
      %9455 = vmatprep.subr.bf16.mxu0 0
      %9456 = vmatpush2.bf16.msra.mxu0 0
      %9457 = vmatprep.subr.bf16.mxu0 0
      %9458 = vmatpush2.bf16.msra.mxu0 0
      %9459 = vmatprep.subr.bf16.mxu0 0
      %9460 = vmatpush2.bf16.msra.mxu0 0
      %9461 = vmatprep.subr.bf16.mxu0 0
      %9462 = vmatpush2.bf16.msra.mxu0 0
      %9463 = vmatprep.subr.bf16.mxu0 0
      %9464 = vmatpush2.bf16.msra.mxu0 0
      %9465 = vmatprep.subr.bf16.mxu0 0
      %9466 = vmatpush2.bf16.msra.mxu0 0
      %9467 = vmatprep.subr.bf16.mxu0 0
      %9468 = vmatpush2.bf16.msra.mxu0 0
      %9469 = vmatprep.subr.bf16.mxu0 0
      %9470 = vmatpush2.bf16.msra.mxu0 0
      %9471 = vmatprep.mubr.bf16.mxu0 0
      %9472 = vmatmul.mubr.bf16.gmra.mxu0 %v9353
      %v9473 = vpop.f32.mrf.mxu0
      %v9474 = vadd.f32 0.0, %v9473
      %v9475 = vpop.f32.mrf.mxu0
      %v9476 = vpop.f32.mrf.mxu0
      %v9477 = vadd.f32 0.0, %v9476
      %v9478 = vpop.f32.mrf.mxu0
      %9479 = vmatprep.mubr.bf16.mxu0 0
      %9480 = vmatmul.mubr.bf16.gmra.mxu0 %v9354
      %v9481 = vpop.f32.mrf.mxu0
      %v9482 = vadd.f32 0.0, %v9481
      %v9483 = vpop.f32.mrf.mxu0
      %v9484 = vpop.f32.mrf.mxu0
      %v9485 = vadd.f32 0.0, %v9484
      %v9486 = vpop.f32.mrf.mxu0
      %9487 = vmatprep.mubr.bf16.mxu0 0
      %9488 = vmatmul.mubr.bf16.gmra.mxu0 %v9355
      %v9489 = vpop.f32.mrf.mxu0
      %v9490 = vadd.f32 0.0, %v9489
      %v9491 = vpop.f32.mrf.mxu0
      %v9492 = vpop.f32.mrf.mxu0
      %v9493 = vadd.f32 0.0, %v9492
      %v9494 = vpop.f32.mrf.mxu0
      %9495 = vmatprep.mubr.bf16.mxu0 0
      %9496 = vmatmul.mubr.bf16.gmra.mxu0 %v9356
      %v9497 = vpop.f32.mrf.mxu0
      %v9498 = vadd.f32 0.0, %v9497
      %v9499 = vpop.f32.mrf.mxu0
      %v9500 = vpop.f32.mrf.mxu0
      %v9501 = vadd.f32 0.0, %v9500
      %v9502 = vpop.f32.mrf.mxu0
      %9503 = vmatprep.mubr.bf16.mxu0 0
      %9504 = vmatmul.mubr.bf16.gmra.mxu0 %v9357
      %v9505 = vpop.f32.mrf.mxu0
      %v9506 = vadd.f32 0.0, %v9505
      %v9507 = vpop.f32.mrf.mxu0
      %v9508 = vpop.f32.mrf.mxu0
      %v9509 = vadd.f32 0.0, %v9508
      %v9510 = vpop.f32.mrf.mxu0
      %9511 = vmatprep.mubr.bf16.mxu0 0
      %9512 = vmatmul.mubr.bf16.gmra.mxu0 %v9358
      %v9513 = vpop.f32.mrf.mxu0
      %v9514 = vadd.f32 0.0, %v9513
      %v9515 = vpop.f32.mrf.mxu0
      %v9516 = vpop.f32.mrf.mxu0
      %v9517 = vadd.f32 0.0, %v9516
      %v9518 = vpop.f32.mrf.mxu0
      %9519 = vmatprep.mubr.bf16.mxu0 0
      %9520 = vmatmul.mubr.bf16.gmra.mxu0 %v9359
      %v9521 = vpop.f32.mrf.mxu0
      %v9522 = vadd.f32 0.0, %v9521
      %v9523 = vpop.f32.mrf.mxu0
      %v9524 = vpop.f32.mrf.mxu0
      %v9525 = vadd.f32 0.0, %v9524
      %v9526 = vpop.f32.mrf.mxu0
      %9527 = vmatprep.mubr.bf16.mxu0 0
      %9528 = vmatmul.mubr.bf16.gmra.mxu0 %v9360
      %v9529 = vpop.f32.mrf.mxu0
      %v9530 = vadd.f32 0.0, %v9529
      %v9531 = vpop.f32.mrf.mxu0
      %v9532 = vpop.f32.mrf.mxu0
      %v9533 = vadd.f32 0.0, %v9532
      %v9534 = vpop.f32.mrf.mxu0
      %9535 = vmatprep.mubr.bf16.mxu0 0
      %9536 = vmatmul.mubr.bf16.gmra.mxu0 %v9361
      %v9537 = vpop.f32.mrf.mxu0
      %v9538 = vadd.f32 0.0, %v9537
      %v9539 = vpop.f32.mrf.mxu0
      %v9540 = vpop.f32.mrf.mxu0
      %v9541 = vadd.f32 0.0, %v9540
      %v9542 = vpop.f32.mrf.mxu0
      %9543 = vmatprep.mubr.bf16.mxu0 0
      %9544 = vmatmul.mubr.bf16.gmra.mxu0 %v9362
      %v9545 = vpop.f32.mrf.mxu0
      %v9546 = vadd.f32 0.0, %v9545
      %v9547 = vpop.f32.mrf.mxu0
      %v9548 = vpop.f32.mrf.mxu0
      %v9549 = vadd.f32 0.0, %v9548
      %v9550 = vpop.f32.mrf.mxu0
      %9551 = vmatprep.mubr.bf16.mxu0 0
      %9552 = vmatmul.mubr.bf16.gmra.mxu0 %v9363
      %v9553 = vpop.f32.mrf.mxu0
      %v9554 = vadd.f32 0.0, %v9553
      %v9555 = vpop.f32.mrf.mxu0
      %v9556 = vpop.f32.mrf.mxu0
      %v9557 = vadd.f32 0.0, %v9556
      %v9558 = vpop.f32.mrf.mxu0
      %9559 = vmatprep.mubr.bf16.mxu0 0
      %9560 = vmatmul.mubr.bf16.gmra.mxu0 %v9364
      %v9561 = vpop.f32.mrf.mxu0
      %v9562 = vadd.f32 0.0, %v9561
      %v9563 = vpop.f32.mrf.mxu0
      %v9564 = vpop.f32.mrf.mxu0
      %v9565 = vadd.f32 0.0, %v9564
      %v9566 = vpop.f32.mrf.mxu0
      %9567 = vmatprep.mubr.bf16.mxu0 0
      %9568 = vmatmul.mubr.bf16.gmra.mxu0 %v9365
      %v9569 = vpop.f32.mrf.mxu0
      %v9570 = vadd.f32 0.0, %v9569
      %v9571 = vpop.f32.mrf.mxu0
      %v9572 = vpop.f32.mrf.mxu0
      %v9573 = vadd.f32 0.0, %v9572
      %v9574 = vpop.f32.mrf.mxu0
      %9575 = vmatprep.mubr.bf16.mxu0 0
      %9576 = vmatmul.mubr.bf16.gmra.mxu0 %v9366
      %v9577 = vpop.f32.mrf.mxu0
      %v9578 = vadd.f32 0.0, %v9577
      %v9579 = vpop.f32.mrf.mxu0
      %v9580 = vpop.f32.mrf.mxu0
      %v9581 = vadd.f32 0.0, %v9580
      %v9582 = vpop.f32.mrf.mxu0
      %9583 = vmatprep.mubr.bf16.mxu0 0
      %9584 = vmatmul.mubr.bf16.gmra.mxu0 %v9367
      %v9585 = vpop.f32.mrf.mxu0
      %v9586 = vadd.f32 0.0, %v9585
      %v9587 = vpop.f32.mrf.mxu0
      %v9588 = vpop.f32.mrf.mxu0
      %v9589 = vadd.f32 0.0, %v9588
      %v9590 = vpop.f32.mrf.mxu0
      %9591 = vmatprep.mubr.bf16.mxu0 0
      %9592 = vmatmul.mubr.bf16.gmra.mxu0 %v9368
      %v9593 = vpop.f32.mrf.mxu0
      %v9594 = vadd.f32 0.0, %v9593
      %v9595 = vpop.f32.mrf.mxu0
      %v9596 = vpop.f32.mrf.mxu0
      %v9597 = vadd.f32 0.0, %v9596
      %v9598 = vpop.f32.mrf.mxu0
      %9599 = vmatprep.mubr.bf16.mxu0 0
      %9600 = vmatmul.mubr.bf16.gmra.mxu0 %v9369
      %v9601 = vpop.f32.mrf.mxu0
      %v9602 = vadd.f32 0.0, %v9601
      %v9603 = vpop.f32.mrf.mxu0
      %v9604 = vpop.f32.mrf.mxu0
      %v9605 = vadd.f32 0.0, %v9604
      %v9606 = vpop.f32.mrf.mxu0
      %9607 = vmatprep.mubr.bf16.mxu0 0
      %9608 = vmatmul.mubr.bf16.gmra.mxu0 %v9370
      %v9609 = vpop.f32.mrf.mxu0
      %v9610 = vadd.f32 0.0, %v9609
      %v9611 = vpop.f32.mrf.mxu0
      %v9612 = vpop.f32.mrf.mxu0
      %v9613 = vadd.f32 0.0, %v9612
      %v9614 = vpop.f32.mrf.mxu0
      %9615 = vmatprep.mubr.bf16.mxu0 0
      %9616 = vmatmul.mubr.bf16.gmra.mxu0 %v9371
      %v9617 = vpop.f32.mrf.mxu0
      %v9618 = vadd.f32 0.0, %v9617
      %v9619 = vpop.f32.mrf.mxu0
      %v9620 = vpop.f32.mrf.mxu0
      %v9621 = vadd.f32 0.0, %v9620
      %v9622 = vpop.f32.mrf.mxu0
      %9623 = vmatprep.mubr.bf16.mxu0 0
      %9624 = vmatmul.mubr.bf16.gmra.mxu0 %v9372
      %v9625 = vpop.f32.mrf.mxu0
      %v9626 = vadd.f32 0.0, %v9625
      %v9627 = vpop.f32.mrf.mxu0
      %v9628 = vpop.f32.mrf.mxu0
      %v9629 = vadd.f32 0.0, %v9628
      %v9630 = vpop.f32.mrf.mxu0
      %9631 = vmatprep.mubr.bf16.mxu0 0
      %9632 = vmatmul.mubr.bf16.gmra.mxu0 %v9373
      %v9633 = vpop.f32.mrf.mxu0
      %v9634 = vadd.f32 0.0, %v9633
      %v9635 = vpop.f32.mrf.mxu0
      %v9636 = vpop.f32.mrf.mxu0
      %v9637 = vpop.f32.mrf.mxu0
      %9638 = vdwg.mxu0
      %v9639 = vadd.f32 %v9271, %v9474
      %v9640 = vadd.f32 %v9272, %v9477
      %v9641 = vadd.f32 %v9273, %v9482
      %v9642 = vadd.f32 %v9274, %v9485
      %v9643 = vadd.f32 %v9275, %v9490
      %v9644 = vadd.f32 %v9276, %v9493
      %v9645 = vadd.f32 %v9277, %v9498
      %v9646 = vadd.f32 %v9278, %v9501
      %v9647 = vadd.f32 %v9279, %v9506
      %v9648 = vadd.f32 %v9280, %v9509
      %v9649 = vadd.f32 %v9281, %v9514
      %v9650 = vadd.f32 %v9282, %v9517
      %v9651 = vadd.f32 %v9283, %v9522
      %v9652 = vadd.f32 %v9284, %v9525
      %v9653 = vadd.f32 %v9285, %v9530
      %v9654 = vadd.f32 %v9286, %v9533
      %v9655 = vadd.f32 %v9287, %v9538
      %v9656 = vadd.f32 %v9288, %v9541
      %v9657 = vadd.f32 %v9289, %v9546
      %v9658 = vadd.f32 %v9290, %v9549
      %v9659 = vadd.f32 %v9291, %v9554
      %v9660 = vadd.f32 %v9292, %v9557
      %v9661 = vadd.f32 %v9293, %v9562
      %v9662 = vadd.f32 %v9294, %v9565
      %v9663 = vadd.f32 %v9295, %v9570
      %v9664 = vadd.f32 %v9296, %v9573
      %v9665 = vadd.f32 %v9297, %v9578
      %v9666 = vadd.f32 %v9298, %v9581
      %v9667 = vadd.f32 %v9299, %v9586
      %v9668 = vadd.f32 %v9300, %v9589
      %v9669 = vadd.f32 %v9301, %v9594
      %v9670 = vadd.f32 %v9302, %v9597
      %v9671 = vadd.f32 %v9303, %v9602
      %v9672 = vadd.f32 %v9304, %v9605
      %v9673 = vadd.f32 %v9305, %v9610
      %v9674 = vadd.f32 %v9306, %v9613
      %v9675 = vadd.f32 %v9307, %v9618
      %v9676 = vadd.f32 %v9308, %v9621
      %v9677 = vadd.f32 %v9309, %v9626
      %v9678 = vadd.f32 %v9310, %v9629
      %v9679 = vadd.f32 %v9311, %v9634
      %v9680 = vld [vmem:[#allocation3 + $0x19] sm:$0xff]
      %v9681 = vld [vmem:[#allocation3 + $0x21] sm:$0xff]
      %v9682 = vld [vmem:[#allocation3 + $0x29] sm:$0xff]
      %v9683 = vld [vmem:[#allocation3 + $0x31] sm:$0xff]
      %v9684 = vld [vmem:[#allocation3 + $0x39] sm:$0xff]
      %v9685 = vld [vmem:[#allocation3 + $0x41] sm:$0xff]
      %v9686 = vld [vmem:[#allocation3 + $0x49] sm:$0xff]
      %v9687 = vld [vmem:[#allocation3 + $0x51] sm:$0xff]
      %v9688 = vld [vmem:[#allocation3 + $0x59] sm:$0xff]
      %v9689 = vld [vmem:[#allocation3 + $0x61] sm:$0xff]
      %v9690 = vld [vmem:[#allocation3 + $0x69] sm:$0xff]
      %v9691 = vld [vmem:[#allocation3 + $0x71] sm:$0xff]
      %v9692 = vld [vmem:[#allocation3 + $0x79] sm:$0xff]
      %v9693 = vld [vmem:[#allocation3 + $0x81] sm:$0xff]
      %v9694 = vld [vmem:[#allocation3 + $0x89] sm:$0xff]
      %v9695 = vld [vmem:[#allocation3 + $0x91] sm:$0xff]
      %v9696 = vld [vmem:[#allocation3 + $0x99] sm:$0xff]
      %v9697 = vld [vmem:[#allocation3 + $0xa1] sm:$0xff]
      %v9698 = vld [vmem:[#allocation3 + $0xa9] sm:$0xff]
      %v9699 = vld [vmem:[#allocation3 + $0xb1] sm:$0xff]
      %v9700 = vld [vmem:[#allocation3 + $0xb9] sm:$0xff]
      %v9701 = vld [vmem:[#allocation3 + $0xc1] sm:$0xff]
      %v9702 = vld [vmem:[#allocation3 + $0xc9] sm:$0xff]
      %v9703 = vld [vmem:[#allocation3 + $0xd1] sm:$0xff]
      %v9704 = vld [vmem:[#allocation3 + $0xd9] sm:$0xff]
      %v9705 = vld [vmem:[#allocation3 + $0xe1] sm:$0xff]
      %v9706 = vld [vmem:[#allocation3 + $0xe9] sm:$0xff]
      %v9707 = vld [vmem:[#allocation3 + $0xf1] sm:$0xff]
      %v9708 = vld [vmem:[#allocation3 + $0xf9] sm:$0xff]
      %v9709 = vld [vmem:[#allocation3 + $0x101] sm:$0xff]
      %v9710 = vld [vmem:[#allocation3 + $0x109] sm:$0xff]
      %v9711 = vld [vmem:[#allocation3 + $0x111] sm:$0xff]
      %v9712 = vld [vmem:[#allocation3 + $0x119] sm:$0xff]
      %v9713 = vld [vmem:[#allocation3 + $0x121] sm:$0xff]
      %v9714 = vld [vmem:[#allocation3 + $0x129] sm:$0xff]
      %v9715 = vld [vmem:[#allocation3 + $0x131] sm:$0xff]
      %v9716 = vld [vmem:[#allocation3 + $0x139] sm:$0xff]
      %v9717 = vld [vmem:[#allocation3 + $0x141] sm:$0xff]
      %v9718 = vld [vmem:[#allocation3 + $0x149] sm:$0xff]
      %v9719 = vld [vmem:[#allocation3 + $0x151] sm:$0xff]
      %v9720 = vld [vmem:[#allocation3 + $0x159] sm:$0xf]
      %v9721 = vpack.c.bf16 %v9681, %v9680
      %v9722 = vpack.c.bf16 %v9683, %v9682
      %v9723 = vpack.c.bf16 %v9685, %v9684
      %v9724 = vpack.c.bf16 %v9687, %v9686
      %v9725 = vpack.c.bf16 %v9689, %v9688
      %v9726 = vpack.c.bf16 %v9691, %v9690
      %v9727 = vpack.c.bf16 %v9693, %v9692
      %v9728 = vpack.c.bf16 %v9695, %v9694
      %v9729 = vpack.c.bf16 %v9697, %v9696
      %v9730 = vpack.c.bf16 %v9699, %v9698
      %v9731 = vpack.c.bf16 %v9701, %v9700
      %v9732 = vpack.c.bf16 %v9703, %v9702
      %v9733 = vpack.c.bf16 %v9705, %v9704
      %v9734 = vpack.c.bf16 %v9707, %v9706
      %v9735 = vpack.c.bf16 %v9709, %v9708
      %v9736 = vpack.c.bf16 %v9711, %v9710
      %v9737 = vpack.c.bf16 %v9713, %v9712
      %v9738 = vpack.c.bf16 %v9715, %v9714
      %v9739 = vpack.c.bf16 %v9717, %v9716
      %v9740 = vpack.c.bf16 %v9719, %v9718
      %v9741 = vpack.c.bf16 %v9720, %v9720
      %s9742 = scalar_lea.vmem %s6, 320
      %v9743 = vld [vmem:[%s9742] sm:$0xf]
      %v9744 = vld [vmem:[%s9742 + $0x4] sm:$0xf]
      %v9745 = vld [vmem:[%s9742 + $0x8] sm:$0xf]
      %v9746 = vld [vmem:[%s9742 + $0xc] sm:$0xf]
      %v9747 = vld [vmem:[%s9742 + $0x10] sm:$0xf]
      %v9748 = vld [vmem:[%s9742 + $0x14] sm:$0xf]
      %v9749 = vld [vmem:[%s9742 + $0x18] sm:$0xf]
      %v9750 = vld [vmem:[%s9742 + $0x1c] sm:$0xf]
      %v9751 = vld [vmem:[%s9742 + $0x20] sm:$0xf]
      %v9752 = vld [vmem:[%s9742 + $0x24] sm:$0xf]
      %v9753 = vld [vmem:[%s9742 + $0x28] sm:$0xf]
      %v9754 = vld [vmem:[%s9742 + $0x2c] sm:$0xf]
      %v9755 = vld [vmem:[%s9742 + $0x30] sm:$0xf]
      %v9756 = vld [vmem:[%s9742 + $0x34] sm:$0xf]
      %v9757 = vld [vmem:[%s9742 + $0x38] sm:$0xf]
      %v9758 = vld [vmem:[%s9742 + $0x3c] sm:$0xf]
      %v9775 = vunpack.c.l.b16 %v9743
      %v9776 = vunpack.c.l.b16 %v9744
      %v9777 = vunpack.c.l.b16 %v9745
      %v9778 = vunpack.c.l.b16 %v9746
      %v9779 = vunpack.c.l.b16 %v9747
      %v9780 = vunpack.c.l.b16 %v9748
      %v9781 = vunpack.c.l.b16 %v9749
      %v9782 = vunpack.c.l.b16 %v9750
      %v9783 = vunpack.c.l.b16 %v9751
      %v9784 = vunpack.c.l.b16 %v9752
      %v9785 = vunpack.c.l.b16 %v9753
      %v9786 = vunpack.c.l.b16 %v9754
      %v9787 = vunpack.c.l.b16 %v9755
      %v9788 = vunpack.c.l.b16 %v9756
      %v9789 = vunpack.c.l.b16 %v9757
      %v9790 = vunpack.c.l.b16 %v9758
      %v9791 = vpack.c.b16 %v9776, %v9775
      %v9792 = vpack.c.b16 %v9778, %v9777
      %v9793 = vpack.c.b16 %v9780, %v9779
      %v9794 = vpack.c.b16 %v9782, %v9781
      %v9795 = vpack.c.b16 %v9784, %v9783
      %v9796 = vpack.c.b16 %v9786, %v9785
      %v9797 = vpack.c.b16 %v9788, %v9787
      %v9798 = vpack.c.b16 %v9790, %v9789
      %9807 = vmatprep.subr.bf16.mxu0 0
      %9808 = vmatpush1.bf16.msra.mxu0 %v9798
      %9809 = vmatprep.subr.bf16.mxu0 0
      %9810 = vmatpush1.bf16.msra.mxu0 %v9797
      %9811 = vmatprep.subr.bf16.mxu0 0
      %9812 = vmatpush1.bf16.msra.mxu0 %v9796
      %9813 = vmatprep.subr.bf16.mxu0 0
      %9814 = vmatpush1.bf16.msra.mxu0 %v9795
      %9815 = vmatprep.subr.bf16.mxu0 0
      %9816 = vmatpush1.bf16.msra.mxu0 %v9794
      %9817 = vmatprep.subr.bf16.mxu0 0
      %9818 = vmatpush1.bf16.msra.mxu0 %v9793
      %9819 = vmatprep.subr.bf16.mxu0 0
      %9820 = vmatpush1.bf16.msra.mxu0 %v9792
      %9821 = vmatprep.subr.bf16.mxu0 0
      %9822 = vmatpush1.bf16.msra.mxu0 %v9791
      %9823 = vmatprep.subr.bf16.mxu0 0
      %9824 = vmatpush2.bf16.msra.mxu0 0
      %9825 = vmatprep.subr.bf16.mxu0 0
      %9826 = vmatpush2.bf16.msra.mxu0 0
      %9827 = vmatprep.subr.bf16.mxu0 0
      %9828 = vmatpush2.bf16.msra.mxu0 0
      %9829 = vmatprep.subr.bf16.mxu0 0
      %9830 = vmatpush2.bf16.msra.mxu0 0
      %9831 = vmatprep.subr.bf16.mxu0 0
      %9832 = vmatpush2.bf16.msra.mxu0 0
      %9833 = vmatprep.subr.bf16.mxu0 0
      %9834 = vmatpush2.bf16.msra.mxu0 0
      %9835 = vmatprep.subr.bf16.mxu0 0
      %9836 = vmatpush2.bf16.msra.mxu0 0
      %9837 = vmatprep.subr.bf16.mxu0 0
      %9838 = vmatpush2.bf16.msra.mxu0 0
      %9839 = vmatprep.mubr.bf16.mxu0 0
      %9840 = vmatmul.mubr.bf16.gmra.mxu0 %v9721
      %v9841 = vpop.f32.mrf.mxu0
      %v9842 = vadd.f32 0.0, %v9841
      %v9843 = vpop.f32.mrf.mxu0
      %v9844 = vpop.f32.mrf.mxu0
      %v9845 = vadd.f32 0.0, %v9844
      %v9846 = vpop.f32.mrf.mxu0
      %9847 = vmatprep.mubr.bf16.mxu0 0
      %9848 = vmatmul.mubr.bf16.gmra.mxu0 %v9722
      %v9849 = vpop.f32.mrf.mxu0
      %v9850 = vadd.f32 0.0, %v9849
      %v9851 = vpop.f32.mrf.mxu0
      %v9852 = vpop.f32.mrf.mxu0
      %v9853 = vadd.f32 0.0, %v9852
      %v9854 = vpop.f32.mrf.mxu0
      %9855 = vmatprep.mubr.bf16.mxu0 0
      %9856 = vmatmul.mubr.bf16.gmra.mxu0 %v9723
      %v9857 = vpop.f32.mrf.mxu0
      %v9858 = vadd.f32 0.0, %v9857
      %v9859 = vpop.f32.mrf.mxu0
      %v9860 = vpop.f32.mrf.mxu0
      %v9861 = vadd.f32 0.0, %v9860
      %v9862 = vpop.f32.mrf.mxu0
      %9863 = vmatprep.mubr.bf16.mxu0 0
      %9864 = vmatmul.mubr.bf16.gmra.mxu0 %v9724
      %v9865 = vpop.f32.mrf.mxu0
      %v9866 = vadd.f32 0.0, %v9865
      %v9867 = vpop.f32.mrf.mxu0
      %v9868 = vpop.f32.mrf.mxu0
      %v9869 = vadd.f32 0.0, %v9868
      %v9870 = vpop.f32.mrf.mxu0
      %9871 = vmatprep.mubr.bf16.mxu0 0
      %9872 = vmatmul.mubr.bf16.gmra.mxu0 %v9725
      %v9873 = vpop.f32.mrf.mxu0
      %v9874 = vadd.f32 0.0, %v9873
      %v9875 = vpop.f32.mrf.mxu0
      %v9876 = vpop.f32.mrf.mxu0
      %v9877 = vadd.f32 0.0, %v9876
      %v9878 = vpop.f32.mrf.mxu0
      %9879 = vmatprep.mubr.bf16.mxu0 0
      %9880 = vmatmul.mubr.bf16.gmra.mxu0 %v9726
      %v9881 = vpop.f32.mrf.mxu0
      %v9882 = vadd.f32 0.0, %v9881
      %v9883 = vpop.f32.mrf.mxu0
      %v9884 = vpop.f32.mrf.mxu0
      %v9885 = vadd.f32 0.0, %v9884
      %v9886 = vpop.f32.mrf.mxu0
      %9887 = vmatprep.mubr.bf16.mxu0 0
      %9888 = vmatmul.mubr.bf16.gmra.mxu0 %v9727
      %v9889 = vpop.f32.mrf.mxu0
      %v9890 = vadd.f32 0.0, %v9889
      %v9891 = vpop.f32.mrf.mxu0
      %v9892 = vpop.f32.mrf.mxu0
      %v9893 = vadd.f32 0.0, %v9892
      %v9894 = vpop.f32.mrf.mxu0
      %9895 = vmatprep.mubr.bf16.mxu0 0
      %9896 = vmatmul.mubr.bf16.gmra.mxu0 %v9728
      %v9897 = vpop.f32.mrf.mxu0
      %v9898 = vadd.f32 0.0, %v9897
      %v9899 = vpop.f32.mrf.mxu0
      %v9900 = vpop.f32.mrf.mxu0
      %v9901 = vadd.f32 0.0, %v9900
      %v9902 = vpop.f32.mrf.mxu0
      %9903 = vmatprep.mubr.bf16.mxu0 0
      %9904 = vmatmul.mubr.bf16.gmra.mxu0 %v9729
      %v9905 = vpop.f32.mrf.mxu0
      %v9906 = vadd.f32 0.0, %v9905
      %v9907 = vpop.f32.mrf.mxu0
      %v9908 = vpop.f32.mrf.mxu0
      %v9909 = vadd.f32 0.0, %v9908
      %v9910 = vpop.f32.mrf.mxu0
      %9911 = vmatprep.mubr.bf16.mxu0 0
      %9912 = vmatmul.mubr.bf16.gmra.mxu0 %v9730
      %v9913 = vpop.f32.mrf.mxu0
      %v9914 = vadd.f32 0.0, %v9913
      %v9915 = vpop.f32.mrf.mxu0
      %v9916 = vpop.f32.mrf.mxu0
      %v9917 = vadd.f32 0.0, %v9916
      %v9918 = vpop.f32.mrf.mxu0
      %9919 = vmatprep.mubr.bf16.mxu0 0
      %9920 = vmatmul.mubr.bf16.gmra.mxu0 %v9731
      %v9921 = vpop.f32.mrf.mxu0
      %v9922 = vadd.f32 0.0, %v9921
      %v9923 = vpop.f32.mrf.mxu0
      %v9924 = vpop.f32.mrf.mxu0
      %v9925 = vadd.f32 0.0, %v9924
      %v9926 = vpop.f32.mrf.mxu0
      %9927 = vmatprep.mubr.bf16.mxu0 0
      %9928 = vmatmul.mubr.bf16.gmra.mxu0 %v9732
      %v9929 = vpop.f32.mrf.mxu0
      %v9930 = vadd.f32 0.0, %v9929
      %v9931 = vpop.f32.mrf.mxu0
      %v9932 = vpop.f32.mrf.mxu0
      %v9933 = vadd.f32 0.0, %v9932
      %v9934 = vpop.f32.mrf.mxu0
      %9935 = vmatprep.mubr.bf16.mxu0 0
      %9936 = vmatmul.mubr.bf16.gmra.mxu0 %v9733
      %v9937 = vpop.f32.mrf.mxu0
      %v9938 = vadd.f32 0.0, %v9937
      %v9939 = vpop.f32.mrf.mxu0
      %v9940 = vpop.f32.mrf.mxu0
      %v9941 = vadd.f32 0.0, %v9940
      %v9942 = vpop.f32.mrf.mxu0
      %9943 = vmatprep.mubr.bf16.mxu0 0
      %9944 = vmatmul.mubr.bf16.gmra.mxu0 %v9734
      %v9945 = vpop.f32.mrf.mxu0
      %v9946 = vadd.f32 0.0, %v9945
      %v9947 = vpop.f32.mrf.mxu0
      %v9948 = vpop.f32.mrf.mxu0
      %v9949 = vadd.f32 0.0, %v9948
      %v9950 = vpop.f32.mrf.mxu0
      %9951 = vmatprep.mubr.bf16.mxu0 0
      %9952 = vmatmul.mubr.bf16.gmra.mxu0 %v9735
      %v9953 = vpop.f32.mrf.mxu0
      %v9954 = vadd.f32 0.0, %v9953
      %v9955 = vpop.f32.mrf.mxu0
      %v9956 = vpop.f32.mrf.mxu0
      %v9957 = vadd.f32 0.0, %v9956
      %v9958 = vpop.f32.mrf.mxu0
      %9959 = vmatprep.mubr.bf16.mxu0 0
      %9960 = vmatmul.mubr.bf16.gmra.mxu0 %v9736
      %v9961 = vpop.f32.mrf.mxu0
      %v9962 = vadd.f32 0.0, %v9961
      %v9963 = vpop.f32.mrf.mxu0
      %v9964 = vpop.f32.mrf.mxu0
      %v9965 = vadd.f32 0.0, %v9964
      %v9966 = vpop.f32.mrf.mxu0
      %9967 = vmatprep.mubr.bf16.mxu0 0
      %9968 = vmatmul.mubr.bf16.gmra.mxu0 %v9737
      %v9969 = vpop.f32.mrf.mxu0
      %v9970 = vadd.f32 0.0, %v9969
      %v9971 = vpop.f32.mrf.mxu0
      %v9972 = vpop.f32.mrf.mxu0
      %v9973 = vadd.f32 0.0, %v9972
      %v9974 = vpop.f32.mrf.mxu0
      %9975 = vmatprep.mubr.bf16.mxu0 0
      %9976 = vmatmul.mubr.bf16.gmra.mxu0 %v9738
      %v9977 = vpop.f32.mrf.mxu0
      %v9978 = vadd.f32 0.0, %v9977
      %v9979 = vpop.f32.mrf.mxu0
      %v9980 = vpop.f32.mrf.mxu0
      %v9981 = vadd.f32 0.0, %v9980
      %v9982 = vpop.f32.mrf.mxu0
      %9983 = vmatprep.mubr.bf16.mxu0 0
      %9984 = vmatmul.mubr.bf16.gmra.mxu0 %v9739
      %v9985 = vpop.f32.mrf.mxu0
      %v9986 = vadd.f32 0.0, %v9985
      %v9987 = vpop.f32.mrf.mxu0
      %v9988 = vpop.f32.mrf.mxu0
      %v9989 = vadd.f32 0.0, %v9988
      %v9990 = vpop.f32.mrf.mxu0
      %9991 = vmatprep.mubr.bf16.mxu0 0
      %9992 = vmatmul.mubr.bf16.gmra.mxu0 %v9740
      %v9993 = vpop.f32.mrf.mxu0
      %v9994 = vadd.f32 0.0, %v9993
      %v9995 = vpop.f32.mrf.mxu0
      %v9996 = vpop.f32.mrf.mxu0
      %v9997 = vadd.f32 0.0, %v9996
      %v9998 = vpop.f32.mrf.mxu0
      %9999 = vmatprep.mubr.bf16.mxu0 0
      %10000 = vmatmul.mubr.bf16.gmra.mxu0 %v9741
      %v10001 = vpop.f32.mrf.mxu0
      %v10002 = vadd.f32 0.0, %v10001
      %v10003 = vpop.f32.mrf.mxu0
      %v10004 = vpop.f32.mrf.mxu0
      %v10005 = vpop.f32.mrf.mxu0
      %10006 = vdwg.mxu0
      %v10007 = vadd.f32 %v9639, %v9842
      %v10008 = vadd.f32 %v9640, %v9845
      %v10009 = vadd.f32 %v9641, %v9850
      %v10010 = vadd.f32 %v9642, %v9853
      %v10011 = vadd.f32 %v9643, %v9858
      %v10012 = vadd.f32 %v9644, %v9861
      %v10013 = vadd.f32 %v9645, %v9866
      %v10014 = vadd.f32 %v9646, %v9869
      %v10015 = vadd.f32 %v9647, %v9874
      %v10016 = vadd.f32 %v9648, %v9877
      %v10017 = vadd.f32 %v9649, %v9882
      %v10018 = vadd.f32 %v9650, %v9885
      %v10019 = vadd.f32 %v9651, %v9890
      %v10020 = vadd.f32 %v9652, %v9893
      %v10021 = vadd.f32 %v9653, %v9898
      %v10022 = vadd.f32 %v9654, %v9901
      %v10023 = vadd.f32 %v9655, %v9906
      %v10024 = vadd.f32 %v9656, %v9909
      %v10025 = vadd.f32 %v9657, %v9914
      %v10026 = vadd.f32 %v9658, %v9917
      %v10027 = vadd.f32 %v9659, %v9922
      %v10028 = vadd.f32 %v9660, %v9925
      %v10029 = vadd.f32 %v9661, %v9930
      %v10030 = vadd.f32 %v9662, %v9933
      %v10031 = vadd.f32 %v9663, %v9938
      %v10032 = vadd.f32 %v9664, %v9941
      %v10033 = vadd.f32 %v9665, %v9946
      %v10034 = vadd.f32 %v9666, %v9949
      %v10035 = vadd.f32 %v9667, %v9954
      %v10036 = vadd.f32 %v9668, %v9957
      %v10037 = vadd.f32 %v9669, %v9962
      %v10038 = vadd.f32 %v9670, %v9965
      %v10039 = vadd.f32 %v9671, %v9970
      %v10040 = vadd.f32 %v9672, %v9973
      %v10041 = vadd.f32 %v9673, %v9978
      %v10042 = vadd.f32 %v9674, %v9981
      %v10043 = vadd.f32 %v9675, %v9986
      %v10044 = vadd.f32 %v9676, %v9989
      %v10045 = vadd.f32 %v9677, %v9994
      %v10046 = vadd.f32 %v9678, %v9997
      %v10047 = vadd.f32 %v9679, %v10002
      %v10048 = vld [vmem:[#allocation3 + $0x29] sm:$0xff]
      %v10049 = vld [vmem:[#allocation3 + $0x31] sm:$0xff]
      %v10050 = vld [vmem:[#allocation3 + $0x39] sm:$0xff]
      %v10051 = vld [vmem:[#allocation3 + $0x41] sm:$0xff]
      %v10052 = vld [vmem:[#allocation3 + $0x49] sm:$0xff]
      %v10053 = vld [vmem:[#allocation3 + $0x51] sm:$0xff]
      %v10054 = vld [vmem:[#allocation3 + $0x59] sm:$0xff]
      %v10055 = vld [vmem:[#allocation3 + $0x61] sm:$0xff]
      %v10056 = vld [vmem:[#allocation3 + $0x69] sm:$0xff]
      %v10057 = vld [vmem:[#allocation3 + $0x71] sm:$0xff]
      %v10058 = vld [vmem:[#allocation3 + $0x79] sm:$0xff]
      %v10059 = vld [vmem:[#allocation3 + $0x81] sm:$0xff]
      %v10060 = vld [vmem:[#allocation3 + $0x89] sm:$0xff]
      %v10061 = vld [vmem:[#allocation3 + $0x91] sm:$0xff]
      %v10062 = vld [vmem:[#allocation3 + $0x99] sm:$0xff]
      %v10063 = vld [vmem:[#allocation3 + $0xa1] sm:$0xff]
      %v10064 = vld [vmem:[#allocation3 + $0xa9] sm:$0xff]
      %v10065 = vld [vmem:[#allocation3 + $0xb1] sm:$0xff]
      %v10066 = vld [vmem:[#allocation3 + $0xb9] sm:$0xff]
      %v10067 = vld [vmem:[#allocation3 + $0xc1] sm:$0xff]
      %v10068 = vld [vmem:[#allocation3 + $0xc9] sm:$0xff]
      %v10069 = vld [vmem:[#allocation3 + $0xd1] sm:$0xff]
      %v10070 = vld [vmem:[#allocation3 + $0xd9] sm:$0xff]
      %v10071 = vld [vmem:[#allocation3 + $0xe1] sm:$0xff]
      %v10072 = vld [vmem:[#allocation3 + $0xe9] sm:$0xff]
      %v10073 = vld [vmem:[#allocation3 + $0xf1] sm:$0xff]
      %v10074 = vld [vmem:[#allocation3 + $0xf9] sm:$0xff]
      %v10075 = vld [vmem:[#allocation3 + $0x101] sm:$0xff]
      %v10076 = vld [vmem:[#allocation3 + $0x109] sm:$0xff]
      %v10077 = vld [vmem:[#allocation3 + $0x111] sm:$0xff]
      %v10078 = vld [vmem:[#allocation3 + $0x119] sm:$0xff]
      %v10079 = vld [vmem:[#allocation3 + $0x121] sm:$0xff]
      %v10080 = vld [vmem:[#allocation3 + $0x129] sm:$0xff]
      %v10081 = vld [vmem:[#allocation3 + $0x131] sm:$0xff]
      %v10082 = vld [vmem:[#allocation3 + $0x139] sm:$0xff]
      %v10083 = vld [vmem:[#allocation3 + $0x141] sm:$0xff]
      %v10084 = vld [vmem:[#allocation3 + $0x149] sm:$0xff]
      %v10085 = vld [vmem:[#allocation3 + $0x151] sm:$0xff]
      %v10086 = vld [vmem:[#allocation3 + $0x159] sm:$0xff]
      %v10087 = vld [vmem:[#allocation3 + $0x161] sm:$0xff]
      %v10088 = vld [vmem:[#allocation3 + $0x169] sm:$0xf]
      %v10089 = vpack.c.bf16 %v10049, %v10048
      %v10090 = vpack.c.bf16 %v10051, %v10050
      %v10091 = vpack.c.bf16 %v10053, %v10052
      %v10092 = vpack.c.bf16 %v10055, %v10054
      %v10093 = vpack.c.bf16 %v10057, %v10056
      %v10094 = vpack.c.bf16 %v10059, %v10058
      %v10095 = vpack.c.bf16 %v10061, %v10060
      %v10096 = vpack.c.bf16 %v10063, %v10062
      %v10097 = vpack.c.bf16 %v10065, %v10064
      %v10098 = vpack.c.bf16 %v10067, %v10066
      %v10099 = vpack.c.bf16 %v10069, %v10068
      %v10100 = vpack.c.bf16 %v10071, %v10070
      %v10101 = vpack.c.bf16 %v10073, %v10072
      %v10102 = vpack.c.bf16 %v10075, %v10074
      %v10103 = vpack.c.bf16 %v10077, %v10076
      %v10104 = vpack.c.bf16 %v10079, %v10078
      %v10105 = vpack.c.bf16 %v10081, %v10080
      %v10106 = vpack.c.bf16 %v10083, %v10082
      %v10107 = vpack.c.bf16 %v10085, %v10084
      %v10108 = vpack.c.bf16 %v10087, %v10086
      %v10109 = vpack.c.bf16 %v10088, %v10088
      %s10110 = scalar_lea.vmem %s6, 384
      %v10111 = vld [vmem:[%s10110] sm:$0xf]
      %v10112 = vld [vmem:[%s10110 + $0x4] sm:$0xf]
      %v10113 = vld [vmem:[%s10110 + $0x8] sm:$0xf]
      %v10114 = vld [vmem:[%s10110 + $0xc] sm:$0xf]
      %v10115 = vld [vmem:[%s10110 + $0x10] sm:$0xf]
      %v10116 = vld [vmem:[%s10110 + $0x14] sm:$0xf]
      %v10117 = vld [vmem:[%s10110 + $0x18] sm:$0xf]
      %v10118 = vld [vmem:[%s10110 + $0x1c] sm:$0xf]
      %v10119 = vld [vmem:[%s10110 + $0x20] sm:$0xf]
      %v10120 = vld [vmem:[%s10110 + $0x24] sm:$0xf]
      %v10121 = vld [vmem:[%s10110 + $0x28] sm:$0xf]
      %v10122 = vld [vmem:[%s10110 + $0x2c] sm:$0xf]
      %v10123 = vld [vmem:[%s10110 + $0x30] sm:$0xf]
      %v10124 = vld [vmem:[%s10110 + $0x34] sm:$0xf]
      %v10125 = vld [vmem:[%s10110 + $0x38] sm:$0xf]
      %v10126 = vld [vmem:[%s10110 + $0x3c] sm:$0xf]
      %v10143 = vunpack.c.l.b16 %v10111
      %v10144 = vunpack.c.l.b16 %v10112
      %v10145 = vunpack.c.l.b16 %v10113
      %v10146 = vunpack.c.l.b16 %v10114
      %v10147 = vunpack.c.l.b16 %v10115
      %v10148 = vunpack.c.l.b16 %v10116
      %v10149 = vunpack.c.l.b16 %v10117
      %v10150 = vunpack.c.l.b16 %v10118
      %v10151 = vunpack.c.l.b16 %v10119
      %v10152 = vunpack.c.l.b16 %v10120
      %v10153 = vunpack.c.l.b16 %v10121
      %v10154 = vunpack.c.l.b16 %v10122
      %v10155 = vunpack.c.l.b16 %v10123
      %v10156 = vunpack.c.l.b16 %v10124
      %v10157 = vunpack.c.l.b16 %v10125
      %v10158 = vunpack.c.l.b16 %v10126
      %v10159 = vpack.c.b16 %v10144, %v10143
      %v10160 = vpack.c.b16 %v10146, %v10145
      %v10161 = vpack.c.b16 %v10148, %v10147
      %v10162 = vpack.c.b16 %v10150, %v10149
      %v10163 = vpack.c.b16 %v10152, %v10151
      %v10164 = vpack.c.b16 %v10154, %v10153
      %v10165 = vpack.c.b16 %v10156, %v10155
      %v10166 = vpack.c.b16 %v10158, %v10157
      %10175 = vmatprep.subr.bf16.mxu0 0
      %10176 = vmatpush1.bf16.msra.mxu0 %v10166
      %10177 = vmatprep.subr.bf16.mxu0 0
      %10178 = vmatpush1.bf16.msra.mxu0 %v10165
      %10179 = vmatprep.subr.bf16.mxu0 0
      %10180 = vmatpush1.bf16.msra.mxu0 %v10164
      %10181 = vmatprep.subr.bf16.mxu0 0
      %10182 = vmatpush1.bf16.msra.mxu0 %v10163
      %10183 = vmatprep.subr.bf16.mxu0 0
      %10184 = vmatpush1.bf16.msra.mxu0 %v10162
      %10185 = vmatprep.subr.bf16.mxu0 0
      %10186 = vmatpush1.bf16.msra.mxu0 %v10161
      %10187 = vmatprep.subr.bf16.mxu0 0
      %10188 = vmatpush1.bf16.msra.mxu0 %v10160
      %10189 = vmatprep.subr.bf16.mxu0 0
      %10190 = vmatpush1.bf16.msra.mxu0 %v10159
      %10191 = vmatprep.subr.bf16.mxu0 0
      %10192 = vmatpush2.bf16.msra.mxu0 0
      %10193 = vmatprep.subr.bf16.mxu0 0
      %10194 = vmatpush2.bf16.msra.mxu0 0
      %10195 = vmatprep.subr.bf16.mxu0 0
      %10196 = vmatpush2.bf16.msra.mxu0 0
      %10197 = vmatprep.subr.bf16.mxu0 0
      %10198 = vmatpush2.bf16.msra.mxu0 0
      %10199 = vmatprep.subr.bf16.mxu0 0
      %10200 = vmatpush2.bf16.msra.mxu0 0
      %10201 = vmatprep.subr.bf16.mxu0 0
      %10202 = vmatpush2.bf16.msra.mxu0 0
      %10203 = vmatprep.subr.bf16.mxu0 0
      %10204 = vmatpush2.bf16.msra.mxu0 0
      %10205 = vmatprep.subr.bf16.mxu0 0
      %10206 = vmatpush2.bf16.msra.mxu0 0
      %10207 = vmatprep.mubr.bf16.mxu0 0
      %10208 = vmatmul.mubr.bf16.gmra.mxu0 %v10089
      %v10209 = vpop.f32.mrf.mxu0
      %v10210 = vadd.f32 0.0, %v10209
      %v10211 = vpop.f32.mrf.mxu0
      %v10212 = vpop.f32.mrf.mxu0
      %v10213 = vadd.f32 0.0, %v10212
      %v10214 = vpop.f32.mrf.mxu0
      %10215 = vmatprep.mubr.bf16.mxu0 0
      %10216 = vmatmul.mubr.bf16.gmra.mxu0 %v10090
      %v10217 = vpop.f32.mrf.mxu0
      %v10218 = vadd.f32 0.0, %v10217
      %v10219 = vpop.f32.mrf.mxu0
      %v10220 = vpop.f32.mrf.mxu0
      %v10221 = vadd.f32 0.0, %v10220
      %v10222 = vpop.f32.mrf.mxu0
      %10223 = vmatprep.mubr.bf16.mxu0 0
      %10224 = vmatmul.mubr.bf16.gmra.mxu0 %v10091
      %v10225 = vpop.f32.mrf.mxu0
      %v10226 = vadd.f32 0.0, %v10225
      %v10227 = vpop.f32.mrf.mxu0
      %v10228 = vpop.f32.mrf.mxu0
      %v10229 = vadd.f32 0.0, %v10228
      %v10230 = vpop.f32.mrf.mxu0
      %10231 = vmatprep.mubr.bf16.mxu0 0
      %10232 = vmatmul.mubr.bf16.gmra.mxu0 %v10092
      %v10233 = vpop.f32.mrf.mxu0
      %v10234 = vadd.f32 0.0, %v10233
      %v10235 = vpop.f32.mrf.mxu0
      %v10236 = vpop.f32.mrf.mxu0
      %v10237 = vadd.f32 0.0, %v10236
      %v10238 = vpop.f32.mrf.mxu0
      %10239 = vmatprep.mubr.bf16.mxu0 0
      %10240 = vmatmul.mubr.bf16.gmra.mxu0 %v10093
      %v10241 = vpop.f32.mrf.mxu0
      %v10242 = vadd.f32 0.0, %v10241
      %v10243 = vpop.f32.mrf.mxu0
      %v10244 = vpop.f32.mrf.mxu0
      %v10245 = vadd.f32 0.0, %v10244
      %v10246 = vpop.f32.mrf.mxu0
      %10247 = vmatprep.mubr.bf16.mxu0 0
      %10248 = vmatmul.mubr.bf16.gmra.mxu0 %v10094
      %v10249 = vpop.f32.mrf.mxu0
      %v10250 = vadd.f32 0.0, %v10249
      %v10251 = vpop.f32.mrf.mxu0
      %v10252 = vpop.f32.mrf.mxu0
      %v10253 = vadd.f32 0.0, %v10252
      %v10254 = vpop.f32.mrf.mxu0
      %10255 = vmatprep.mubr.bf16.mxu0 0
      %10256 = vmatmul.mubr.bf16.gmra.mxu0 %v10095
      %v10257 = vpop.f32.mrf.mxu0
      %v10258 = vadd.f32 0.0, %v10257
      %v10259 = vpop.f32.mrf.mxu0
      %v10260 = vpop.f32.mrf.mxu0
      %v10261 = vadd.f32 0.0, %v10260
      %v10262 = vpop.f32.mrf.mxu0
      %10263 = vmatprep.mubr.bf16.mxu0 0
      %10264 = vmatmul.mubr.bf16.gmra.mxu0 %v10096
      %v10265 = vpop.f32.mrf.mxu0
      %v10266 = vadd.f32 0.0, %v10265
      %v10267 = vpop.f32.mrf.mxu0
      %v10268 = vpop.f32.mrf.mxu0
      %v10269 = vadd.f32 0.0, %v10268
      %v10270 = vpop.f32.mrf.mxu0
      %10271 = vmatprep.mubr.bf16.mxu0 0
      %10272 = vmatmul.mubr.bf16.gmra.mxu0 %v10097
      %v10273 = vpop.f32.mrf.mxu0
      %v10274 = vadd.f32 0.0, %v10273
      %v10275 = vpop.f32.mrf.mxu0
      %v10276 = vpop.f32.mrf.mxu0
      %v10277 = vadd.f32 0.0, %v10276
      %v10278 = vpop.f32.mrf.mxu0
      %10279 = vmatprep.mubr.bf16.mxu0 0
      %10280 = vmatmul.mubr.bf16.gmra.mxu0 %v10098
      %v10281 = vpop.f32.mrf.mxu0
      %v10282 = vadd.f32 0.0, %v10281
      %v10283 = vpop.f32.mrf.mxu0
      %v10284 = vpop.f32.mrf.mxu0
      %v10285 = vadd.f32 0.0, %v10284
      %v10286 = vpop.f32.mrf.mxu0
      %10287 = vmatprep.mubr.bf16.mxu0 0
      %10288 = vmatmul.mubr.bf16.gmra.mxu0 %v10099
      %v10289 = vpop.f32.mrf.mxu0
      %v10290 = vadd.f32 0.0, %v10289
      %v10291 = vpop.f32.mrf.mxu0
      %v10292 = vpop.f32.mrf.mxu0
      %v10293 = vadd.f32 0.0, %v10292
      %v10294 = vpop.f32.mrf.mxu0
      %10295 = vmatprep.mubr.bf16.mxu0 0
      %10296 = vmatmul.mubr.bf16.gmra.mxu0 %v10100
      %v10297 = vpop.f32.mrf.mxu0
      %v10298 = vadd.f32 0.0, %v10297
      %v10299 = vpop.f32.mrf.mxu0
      %v10300 = vpop.f32.mrf.mxu0
      %v10301 = vadd.f32 0.0, %v10300
      %v10302 = vpop.f32.mrf.mxu0
      %10303 = vmatprep.mubr.bf16.mxu0 0
      %10304 = vmatmul.mubr.bf16.gmra.mxu0 %v10101
      %v10305 = vpop.f32.mrf.mxu0
      %v10306 = vadd.f32 0.0, %v10305
      %v10307 = vpop.f32.mrf.mxu0
      %v10308 = vpop.f32.mrf.mxu0
      %v10309 = vadd.f32 0.0, %v10308
      %v10310 = vpop.f32.mrf.mxu0
      %10311 = vmatprep.mubr.bf16.mxu0 0
      %10312 = vmatmul.mubr.bf16.gmra.mxu0 %v10102
      %v10313 = vpop.f32.mrf.mxu0
      %v10314 = vadd.f32 0.0, %v10313
      %v10315 = vpop.f32.mrf.mxu0
      %v10316 = vpop.f32.mrf.mxu0
      %v10317 = vadd.f32 0.0, %v10316
      %v10318 = vpop.f32.mrf.mxu0
      %10319 = vmatprep.mubr.bf16.mxu0 0
      %10320 = vmatmul.mubr.bf16.gmra.mxu0 %v10103
      %v10321 = vpop.f32.mrf.mxu0
      %v10322 = vadd.f32 0.0, %v10321
      %v10323 = vpop.f32.mrf.mxu0
      %v10324 = vpop.f32.mrf.mxu0
      %v10325 = vadd.f32 0.0, %v10324
      %v10326 = vpop.f32.mrf.mxu0
      %10327 = vmatprep.mubr.bf16.mxu0 0
      %10328 = vmatmul.mubr.bf16.gmra.mxu0 %v10104
      %v10329 = vpop.f32.mrf.mxu0
      %v10330 = vadd.f32 0.0, %v10329
      %v10331 = vpop.f32.mrf.mxu0
      %v10332 = vpop.f32.mrf.mxu0
      %v10333 = vadd.f32 0.0, %v10332
      %v10334 = vpop.f32.mrf.mxu0
      %10335 = vmatprep.mubr.bf16.mxu0 0
      %10336 = vmatmul.mubr.bf16.gmra.mxu0 %v10105
      %v10337 = vpop.f32.mrf.mxu0
      %v10338 = vadd.f32 0.0, %v10337
      %v10339 = vpop.f32.mrf.mxu0
      %v10340 = vpop.f32.mrf.mxu0
      %v10341 = vadd.f32 0.0, %v10340
      %v10342 = vpop.f32.mrf.mxu0
      %10343 = vmatprep.mubr.bf16.mxu0 0
      %10344 = vmatmul.mubr.bf16.gmra.mxu0 %v10106
      %v10345 = vpop.f32.mrf.mxu0
      %v10346 = vadd.f32 0.0, %v10345
      %v10347 = vpop.f32.mrf.mxu0
      %v10348 = vpop.f32.mrf.mxu0
      %v10349 = vadd.f32 0.0, %v10348
      %v10350 = vpop.f32.mrf.mxu0
      %10351 = vmatprep.mubr.bf16.mxu0 0
      %10352 = vmatmul.mubr.bf16.gmra.mxu0 %v10107
      %v10353 = vpop.f32.mrf.mxu0
      %v10354 = vadd.f32 0.0, %v10353
      %v10355 = vpop.f32.mrf.mxu0
      %v10356 = vpop.f32.mrf.mxu0
      %v10357 = vadd.f32 0.0, %v10356
      %v10358 = vpop.f32.mrf.mxu0
      %10359 = vmatprep.mubr.bf16.mxu0 0
      %10360 = vmatmul.mubr.bf16.gmra.mxu0 %v10108
      %v10361 = vpop.f32.mrf.mxu0
      %v10362 = vadd.f32 0.0, %v10361
      %v10363 = vpop.f32.mrf.mxu0
      %v10364 = vpop.f32.mrf.mxu0
      %v10365 = vadd.f32 0.0, %v10364
      %v10366 = vpop.f32.mrf.mxu0
      %10367 = vmatprep.mubr.bf16.mxu0 0
      %10368 = vmatmul.mubr.bf16.gmra.mxu0 %v10109
      %v10369 = vpop.f32.mrf.mxu0
      %v10370 = vadd.f32 0.0, %v10369
      %v10371 = vpop.f32.mrf.mxu0
      %v10372 = vpop.f32.mrf.mxu0
      %v10373 = vpop.f32.mrf.mxu0
      %10374 = vdwg.mxu0
      %v10375 = vadd.f32 %v10007, %v10210
      %v10376 = vadd.f32 %v10008, %v10213
      %v10377 = vadd.f32 %v10009, %v10218
      %v10378 = vadd.f32 %v10010, %v10221
      %v10379 = vadd.f32 %v10011, %v10226
      %v10380 = vadd.f32 %v10012, %v10229
      %v10381 = vadd.f32 %v10013, %v10234
      %v10382 = vadd.f32 %v10014, %v10237
      %v10383 = vadd.f32 %v10015, %v10242
      %v10384 = vadd.f32 %v10016, %v10245
      %v10385 = vadd.f32 %v10017, %v10250
      %v10386 = vadd.f32 %v10018, %v10253
      %v10387 = vadd.f32 %v10019, %v10258
      %v10388 = vadd.f32 %v10020, %v10261
      %v10389 = vadd.f32 %v10021, %v10266
      %v10390 = vadd.f32 %v10022, %v10269
      %v10391 = vadd.f32 %v10023, %v10274
      %v10392 = vadd.f32 %v10024, %v10277
      %v10393 = vadd.f32 %v10025, %v10282
      %v10394 = vadd.f32 %v10026, %v10285
      %v10395 = vadd.f32 %v10027, %v10290
      %v10396 = vadd.f32 %v10028, %v10293
      %v10397 = vadd.f32 %v10029, %v10298
      %v10398 = vadd.f32 %v10030, %v10301
      %v10399 = vadd.f32 %v10031, %v10306
      %v10400 = vadd.f32 %v10032, %v10309
      %v10401 = vadd.f32 %v10033, %v10314
      %v10402 = vadd.f32 %v10034, %v10317
      %v10403 = vadd.f32 %v10035, %v10322
      %v10404 = vadd.f32 %v10036, %v10325
      %v10405 = vadd.f32 %v10037, %v10330
      %v10406 = vadd.f32 %v10038, %v10333
      %v10407 = vadd.f32 %v10039, %v10338
      %v10408 = vadd.f32 %v10040, %v10341
      %v10409 = vadd.f32 %v10041, %v10346
      %v10410 = vadd.f32 %v10042, %v10349
      %v10411 = vadd.f32 %v10043, %v10354
      %v10412 = vadd.f32 %v10044, %v10357
      %v10413 = vadd.f32 %v10045, %v10362
      %v10414 = vadd.f32 %v10046, %v10365
      %v10415 = vadd.f32 %v10047, %v10370
      %v10416 = vld [vmem:[#allocation3 + $0x2a] sm:$0xff]
      %v10417 = vld [vmem:[#allocation3 + $0x32] sm:$0xff]
      %v10418 = vld [vmem:[#allocation3 + $0x3a] sm:$0xff]
      %v10419 = vld [vmem:[#allocation3 + $0x42] sm:$0xff]
      %v10420 = vld [vmem:[#allocation3 + $0x4a] sm:$0xff]
      %v10421 = vld [vmem:[#allocation3 + $0x52] sm:$0xff]
      %v10422 = vld [vmem:[#allocation3 + $0x5a] sm:$0xff]
      %v10423 = vld [vmem:[#allocation3 + $0x62] sm:$0xff]
      %v10424 = vld [vmem:[#allocation3 + $0x6a] sm:$0xff]
      %v10425 = vld [vmem:[#allocation3 + $0x72] sm:$0xff]
      %v10426 = vld [vmem:[#allocation3 + $0x7a] sm:$0xff]
      %v10427 = vld [vmem:[#allocation3 + $0x82] sm:$0xff]
      %v10428 = vld [vmem:[#allocation3 + $0x8a] sm:$0xff]
      %v10429 = vld [vmem:[#allocation3 + $0x92] sm:$0xff]
      %v10430 = vld [vmem:[#allocation3 + $0x9a] sm:$0xff]
      %v10431 = vld [vmem:[#allocation3 + $0xa2] sm:$0xff]
      %v10432 = vld [vmem:[#allocation3 + $0xaa] sm:$0xff]
      %v10433 = vld [vmem:[#allocation3 + $0xb2] sm:$0xff]
      %v10434 = vld [vmem:[#allocation3 + $0xba] sm:$0xff]
      %v10435 = vld [vmem:[#allocation3 + $0xc2] sm:$0xff]
      %v10436 = vld [vmem:[#allocation3 + $0xca] sm:$0xff]
      %v10437 = vld [vmem:[#allocation3 + $0xd2] sm:$0xff]
      %v10438 = vld [vmem:[#allocation3 + $0xda] sm:$0xff]
      %v10439 = vld [vmem:[#allocation3 + $0xe2] sm:$0xff]
      %v10440 = vld [vmem:[#allocation3 + $0xea] sm:$0xff]
      %v10441 = vld [vmem:[#allocation3 + $0xf2] sm:$0xff]
      %v10442 = vld [vmem:[#allocation3 + $0xfa] sm:$0xff]
      %v10443 = vld [vmem:[#allocation3 + $0x102] sm:$0xff]
      %v10444 = vld [vmem:[#allocation3 + $0x10a] sm:$0xff]
      %v10445 = vld [vmem:[#allocation3 + $0x112] sm:$0xff]
      %v10446 = vld [vmem:[#allocation3 + $0x11a] sm:$0xff]
      %v10447 = vld [vmem:[#allocation3 + $0x122] sm:$0xff]
      %v10448 = vld [vmem:[#allocation3 + $0x12a] sm:$0xff]
      %v10449 = vld [vmem:[#allocation3 + $0x132] sm:$0xff]
      %v10450 = vld [vmem:[#allocation3 + $0x13a] sm:$0xff]
      %v10451 = vld [vmem:[#allocation3 + $0x142] sm:$0xff]
      %v10452 = vld [vmem:[#allocation3 + $0x14a] sm:$0xff]
      %v10453 = vld [vmem:[#allocation3 + $0x152] sm:$0xff]
      %v10454 = vld [vmem:[#allocation3 + $0x15a] sm:$0xff]
      %v10455 = vld [vmem:[#allocation3 + $0x162] sm:$0xff]
      %v10456 = vld [vmem:[#allocation3 + $0x16a] sm:$0xf]
      %v10457 = vpack.c.bf16 %v10417, %v10416
      %v10458 = vpack.c.bf16 %v10419, %v10418
      %v10459 = vpack.c.bf16 %v10421, %v10420
      %v10460 = vpack.c.bf16 %v10423, %v10422
      %v10461 = vpack.c.bf16 %v10425, %v10424
      %v10462 = vpack.c.bf16 %v10427, %v10426
      %v10463 = vpack.c.bf16 %v10429, %v10428
      %v10464 = vpack.c.bf16 %v10431, %v10430
      %v10465 = vpack.c.bf16 %v10433, %v10432
      %v10466 = vpack.c.bf16 %v10435, %v10434
      %v10467 = vpack.c.bf16 %v10437, %v10436
      %v10468 = vpack.c.bf16 %v10439, %v10438
      %v10469 = vpack.c.bf16 %v10441, %v10440
      %v10470 = vpack.c.bf16 %v10443, %v10442
      %v10471 = vpack.c.bf16 %v10445, %v10444
      %v10472 = vpack.c.bf16 %v10447, %v10446
      %v10473 = vpack.c.bf16 %v10449, %v10448
      %v10474 = vpack.c.bf16 %v10451, %v10450
      %v10475 = vpack.c.bf16 %v10453, %v10452
      %v10476 = vpack.c.bf16 %v10455, %v10454
      %v10477 = vpack.c.bf16 %v10456, %v10456
      %s10478 = scalar_lea.vmem %s6, 448
      %v10479 = vld [vmem:[%s10478] sm:$0xf]
      %v10480 = vld [vmem:[%s10478 + $0x4] sm:$0xf]
      %v10481 = vld [vmem:[%s10478 + $0x8] sm:$0xf]
      %v10482 = vld [vmem:[%s10478 + $0xc] sm:$0xf]
      %v10483 = vld [vmem:[%s10478 + $0x10] sm:$0xf]
      %v10484 = vld [vmem:[%s10478 + $0x14] sm:$0xf]
      %v10485 = vld [vmem:[%s10478 + $0x18] sm:$0xf]
      %v10486 = vld [vmem:[%s10478 + $0x1c] sm:$0xf]
      %v10487 = vld [vmem:[%s10478 + $0x20] sm:$0xf]
      %v10488 = vld [vmem:[%s10478 + $0x24] sm:$0xf]
      %v10489 = vld [vmem:[%s10478 + $0x28] sm:$0xf]
      %v10490 = vld [vmem:[%s10478 + $0x2c] sm:$0xf]
      %v10491 = vld [vmem:[%s10478 + $0x30] sm:$0xf]
      %v10492 = vld [vmem:[%s10478 + $0x34] sm:$0xf]
      %v10493 = vld [vmem:[%s10478 + $0x38] sm:$0xf]
      %v10494 = vld [vmem:[%s10478 + $0x3c] sm:$0xf]
      %v10511 = vunpack.c.l.b16 %v10479
      %v10512 = vunpack.c.l.b16 %v10480
      %v10513 = vunpack.c.l.b16 %v10481
      %v10514 = vunpack.c.l.b16 %v10482
      %v10515 = vunpack.c.l.b16 %v10483
      %v10516 = vunpack.c.l.b16 %v10484
      %v10517 = vunpack.c.l.b16 %v10485
      %v10518 = vunpack.c.l.b16 %v10486
      %v10519 = vunpack.c.l.b16 %v10487
      %v10520 = vunpack.c.l.b16 %v10488
      %v10521 = vunpack.c.l.b16 %v10489
      %v10522 = vunpack.c.l.b16 %v10490
      %v10523 = vunpack.c.l.b16 %v10491
      %v10524 = vunpack.c.l.b16 %v10492
      %v10525 = vunpack.c.l.b16 %v10493
      %v10526 = vunpack.c.l.b16 %v10494
      %v10527 = vpack.c.b16 %v10512, %v10511
      %v10528 = vpack.c.b16 %v10514, %v10513
      %v10529 = vpack.c.b16 %v10516, %v10515
      %v10530 = vpack.c.b16 %v10518, %v10517
      %v10531 = vpack.c.b16 %v10520, %v10519
      %v10532 = vpack.c.b16 %v10522, %v10521
      %v10533 = vpack.c.b16 %v10524, %v10523
      %v10534 = vpack.c.b16 %v10526, %v10525
      %10543 = vmatprep.subr.bf16.mxu0 0
      %10544 = vmatpush1.bf16.msra.mxu0 %v10534
      %10545 = vmatprep.subr.bf16.mxu0 0
      %10546 = vmatpush1.bf16.msra.mxu0 %v10533
      %10547 = vmatprep.subr.bf16.mxu0 0
      %10548 = vmatpush1.bf16.msra.mxu0 %v10532
      %10549 = vmatprep.subr.bf16.mxu0 0
      %10550 = vmatpush1.bf16.msra.mxu0 %v10531
      %10551 = vmatprep.subr.bf16.mxu0 0
      %10552 = vmatpush1.bf16.msra.mxu0 %v10530
      %10553 = vmatprep.subr.bf16.mxu0 0
      %10554 = vmatpush1.bf16.msra.mxu0 %v10529
      %10555 = vmatprep.subr.bf16.mxu0 0
      %10556 = vmatpush1.bf16.msra.mxu0 %v10528
      %10557 = vmatprep.subr.bf16.mxu0 0
      %10558 = vmatpush1.bf16.msra.mxu0 %v10527
      %10559 = vmatprep.subr.bf16.mxu0 0
      %10560 = vmatpush2.bf16.msra.mxu0 0
      %10561 = vmatprep.subr.bf16.mxu0 0
      %10562 = vmatpush2.bf16.msra.mxu0 0
      %10563 = vmatprep.subr.bf16.mxu0 0
      %10564 = vmatpush2.bf16.msra.mxu0 0
      %10565 = vmatprep.subr.bf16.mxu0 0
      %10566 = vmatpush2.bf16.msra.mxu0 0
      %10567 = vmatprep.subr.bf16.mxu0 0
      %10568 = vmatpush2.bf16.msra.mxu0 0
      %10569 = vmatprep.subr.bf16.mxu0 0
      %10570 = vmatpush2.bf16.msra.mxu0 0
      %10571 = vmatprep.subr.bf16.mxu0 0
      %10572 = vmatpush2.bf16.msra.mxu0 0
      %10573 = vmatprep.subr.bf16.mxu0 0
      %10574 = vmatpush2.bf16.msra.mxu0 0
      %10575 = vmatprep.mubr.bf16.mxu0 0
      %10576 = vmatmul.mubr.bf16.gmra.mxu0 %v10457
      %v10577 = vpop.f32.mrf.mxu0
      %v10578 = vadd.f32 0.0, %v10577
      %v10579 = vpop.f32.mrf.mxu0
      %v10580 = vpop.f32.mrf.mxu0
      %v10581 = vadd.f32 0.0, %v10580
      %v10582 = vpop.f32.mrf.mxu0
      %10583 = vmatprep.mubr.bf16.mxu0 0
      %10584 = vmatmul.mubr.bf16.gmra.mxu0 %v10458
      %v10585 = vpop.f32.mrf.mxu0
      %v10586 = vadd.f32 0.0, %v10585
      %v10587 = vpop.f32.mrf.mxu0
      %v10588 = vpop.f32.mrf.mxu0
      %v10589 = vadd.f32 0.0, %v10588
      %v10590 = vpop.f32.mrf.mxu0
      %10591 = vmatprep.mubr.bf16.mxu0 0
      %10592 = vmatmul.mubr.bf16.gmra.mxu0 %v10459
      %v10593 = vpop.f32.mrf.mxu0
      %v10594 = vadd.f32 0.0, %v10593
      %v10595 = vpop.f32.mrf.mxu0
      %v10596 = vpop.f32.mrf.mxu0
      %v10597 = vadd.f32 0.0, %v10596
      %v10598 = vpop.f32.mrf.mxu0
      %10599 = vmatprep.mubr.bf16.mxu0 0
      %10600 = vmatmul.mubr.bf16.gmra.mxu0 %v10460
      %v10601 = vpop.f32.mrf.mxu0
      %v10602 = vadd.f32 0.0, %v10601
      %v10603 = vpop.f32.mrf.mxu0
      %v10604 = vpop.f32.mrf.mxu0
      %v10605 = vadd.f32 0.0, %v10604
      %v10606 = vpop.f32.mrf.mxu0
      %10607 = vmatprep.mubr.bf16.mxu0 0
      %10608 = vmatmul.mubr.bf16.gmra.mxu0 %v10461
      %v10609 = vpop.f32.mrf.mxu0
      %v10610 = vadd.f32 0.0, %v10609
      %v10611 = vpop.f32.mrf.mxu0
      %v10612 = vpop.f32.mrf.mxu0
      %v10613 = vadd.f32 0.0, %v10612
      %v10614 = vpop.f32.mrf.mxu0
      %10615 = vmatprep.mubr.bf16.mxu0 0
      %10616 = vmatmul.mubr.bf16.gmra.mxu0 %v10462
      %v10617 = vpop.f32.mrf.mxu0
      %v10618 = vadd.f32 0.0, %v10617
      %v10619 = vpop.f32.mrf.mxu0
      %v10620 = vpop.f32.mrf.mxu0
      %v10621 = vadd.f32 0.0, %v10620
      %v10622 = vpop.f32.mrf.mxu0
      %10623 = vmatprep.mubr.bf16.mxu0 0
      %10624 = vmatmul.mubr.bf16.gmra.mxu0 %v10463
      %v10625 = vpop.f32.mrf.mxu0
      %v10626 = vadd.f32 0.0, %v10625
      %v10627 = vpop.f32.mrf.mxu0
      %v10628 = vpop.f32.mrf.mxu0
      %v10629 = vadd.f32 0.0, %v10628
      %v10630 = vpop.f32.mrf.mxu0
      %10631 = vmatprep.mubr.bf16.mxu0 0
      %10632 = vmatmul.mubr.bf16.gmra.mxu0 %v10464
      %v10633 = vpop.f32.mrf.mxu0
      %v10634 = vadd.f32 0.0, %v10633
      %v10635 = vpop.f32.mrf.mxu0
      %v10636 = vpop.f32.mrf.mxu0
      %v10637 = vadd.f32 0.0, %v10636
      %v10638 = vpop.f32.mrf.mxu0
      %10639 = vmatprep.mubr.bf16.mxu0 0
      %10640 = vmatmul.mubr.bf16.gmra.mxu0 %v10465
      %v10641 = vpop.f32.mrf.mxu0
      %v10642 = vadd.f32 0.0, %v10641
      %v10643 = vpop.f32.mrf.mxu0
      %v10644 = vpop.f32.mrf.mxu0
      %v10645 = vadd.f32 0.0, %v10644
      %v10646 = vpop.f32.mrf.mxu0
      %10647 = vmatprep.mubr.bf16.mxu0 0
      %10648 = vmatmul.mubr.bf16.gmra.mxu0 %v10466
      %v10649 = vpop.f32.mrf.mxu0
      %v10650 = vadd.f32 0.0, %v10649
      %v10651 = vpop.f32.mrf.mxu0
      %v10652 = vpop.f32.mrf.mxu0
      %v10653 = vadd.f32 0.0, %v10652
      %v10654 = vpop.f32.mrf.mxu0
      %10655 = vmatprep.mubr.bf16.mxu0 0
      %10656 = vmatmul.mubr.bf16.gmra.mxu0 %v10467
      %v10657 = vpop.f32.mrf.mxu0
      %v10658 = vadd.f32 0.0, %v10657
      %v10659 = vpop.f32.mrf.mxu0
      %v10660 = vpop.f32.mrf.mxu0
      %v10661 = vadd.f32 0.0, %v10660
      %v10662 = vpop.f32.mrf.mxu0
      %10663 = vmatprep.mubr.bf16.mxu0 0
      %10664 = vmatmul.mubr.bf16.gmra.mxu0 %v10468
      %v10665 = vpop.f32.mrf.mxu0
      %v10666 = vadd.f32 0.0, %v10665
      %v10667 = vpop.f32.mrf.mxu0
      %v10668 = vpop.f32.mrf.mxu0
      %v10669 = vadd.f32 0.0, %v10668
      %v10670 = vpop.f32.mrf.mxu0
      %10671 = vmatprep.mubr.bf16.mxu0 0
      %10672 = vmatmul.mubr.bf16.gmra.mxu0 %v10469
      %v10673 = vpop.f32.mrf.mxu0
      %v10674 = vadd.f32 0.0, %v10673
      %v10675 = vpop.f32.mrf.mxu0
      %v10676 = vpop.f32.mrf.mxu0
      %v10677 = vadd.f32 0.0, %v10676
      %v10678 = vpop.f32.mrf.mxu0
      %10679 = vmatprep.mubr.bf16.mxu0 0
      %10680 = vmatmul.mubr.bf16.gmra.mxu0 %v10470
      %v10681 = vpop.f32.mrf.mxu0
      %v10682 = vadd.f32 0.0, %v10681
      %v10683 = vpop.f32.mrf.mxu0
      %v10684 = vpop.f32.mrf.mxu0
      %v10685 = vadd.f32 0.0, %v10684
      %v10686 = vpop.f32.mrf.mxu0
      %10687 = vmatprep.mubr.bf16.mxu0 0
      %10688 = vmatmul.mubr.bf16.gmra.mxu0 %v10471
      %v10689 = vpop.f32.mrf.mxu0
      %v10690 = vadd.f32 0.0, %v10689
      %v10691 = vpop.f32.mrf.mxu0
      %v10692 = vpop.f32.mrf.mxu0
      %v10693 = vadd.f32 0.0, %v10692
      %v10694 = vpop.f32.mrf.mxu0
      %10695 = vmatprep.mubr.bf16.mxu0 0
      %10696 = vmatmul.mubr.bf16.gmra.mxu0 %v10472
      %v10697 = vpop.f32.mrf.mxu0
      %v10698 = vadd.f32 0.0, %v10697
      %v10699 = vpop.f32.mrf.mxu0
      %v10700 = vpop.f32.mrf.mxu0
      %v10701 = vadd.f32 0.0, %v10700
      %v10702 = vpop.f32.mrf.mxu0
      %10703 = vmatprep.mubr.bf16.mxu0 0
      %10704 = vmatmul.mubr.bf16.gmra.mxu0 %v10473
      %v10705 = vpop.f32.mrf.mxu0
      %v10706 = vadd.f32 0.0, %v10705
      %v10707 = vpop.f32.mrf.mxu0
      %v10708 = vpop.f32.mrf.mxu0
      %v10709 = vadd.f32 0.0, %v10708
      %v10710 = vpop.f32.mrf.mxu0
      %10711 = vmatprep.mubr.bf16.mxu0 0
      %10712 = vmatmul.mubr.bf16.gmra.mxu0 %v10474
      %v10713 = vpop.f32.mrf.mxu0
      %v10714 = vadd.f32 0.0, %v10713
      %v10715 = vpop.f32.mrf.mxu0
      %v10716 = vpop.f32.mrf.mxu0
      %v10717 = vadd.f32 0.0, %v10716
      %v10718 = vpop.f32.mrf.mxu0
      %10719 = vmatprep.mubr.bf16.mxu0 0
      %10720 = vmatmul.mubr.bf16.gmra.mxu0 %v10475
      %v10721 = vpop.f32.mrf.mxu0
      %v10722 = vadd.f32 0.0, %v10721
      %v10723 = vpop.f32.mrf.mxu0
      %v10724 = vpop.f32.mrf.mxu0
      %v10725 = vadd.f32 0.0, %v10724
      %v10726 = vpop.f32.mrf.mxu0
      %10727 = vmatprep.mubr.bf16.mxu0 0
      %10728 = vmatmul.mubr.bf16.gmra.mxu0 %v10476
      %v10729 = vpop.f32.mrf.mxu0
      %v10730 = vadd.f32 0.0, %v10729
      %v10731 = vpop.f32.mrf.mxu0
      %v10732 = vpop.f32.mrf.mxu0
      %v10733 = vadd.f32 0.0, %v10732
      %v10734 = vpop.f32.mrf.mxu0
      %10735 = vmatprep.mubr.bf16.mxu0 0
      %10736 = vmatmul.mubr.bf16.gmra.mxu0 %v10477
      %v10737 = vpop.f32.mrf.mxu0
      %v10738 = vadd.f32 0.0, %v10737
      %v10739 = vpop.f32.mrf.mxu0
      %v10740 = vpop.f32.mrf.mxu0
      %v10741 = vpop.f32.mrf.mxu0
      %10742 = vdwg.mxu0
      %v10743 = vadd.f32 %v10375, %v10578
      %v10744 = vadd.f32 %v10376, %v10581
      %v10745 = vadd.f32 %v10377, %v10586
      %v10746 = vadd.f32 %v10378, %v10589
      %v10747 = vadd.f32 %v10379, %v10594
      %v10748 = vadd.f32 %v10380, %v10597
      %v10749 = vadd.f32 %v10381, %v10602
      %v10750 = vadd.f32 %v10382, %v10605
      %v10751 = vadd.f32 %v10383, %v10610
      %v10752 = vadd.f32 %v10384, %v10613
      %v10753 = vadd.f32 %v10385, %v10618
      %v10754 = vadd.f32 %v10386, %v10621
      %v10755 = vadd.f32 %v10387, %v10626
      %v10756 = vadd.f32 %v10388, %v10629
      %v10757 = vadd.f32 %v10389, %v10634
      %v10758 = vadd.f32 %v10390, %v10637
      %v10759 = vadd.f32 %v10391, %v10642
      %v10760 = vadd.f32 %v10392, %v10645
      %v10761 = vadd.f32 %v10393, %v10650
      %v10762 = vadd.f32 %v10394, %v10653
      %v10763 = vadd.f32 %v10395, %v10658
      %v10764 = vadd.f32 %v10396, %v10661
      %v10765 = vadd.f32 %v10397, %v10666
      %v10766 = vadd.f32 %v10398, %v10669
      %v10767 = vadd.f32 %v10399, %v10674
      %v10768 = vadd.f32 %v10400, %v10677
      %v10769 = vadd.f32 %v10401, %v10682
      %v10770 = vadd.f32 %v10402, %v10685
      %v10771 = vadd.f32 %v10403, %v10690
      %v10772 = vadd.f32 %v10404, %v10693
      %v10773 = vadd.f32 %v10405, %v10698
      %v10774 = vadd.f32 %v10406, %v10701
      %v10775 = vadd.f32 %v10407, %v10706
      %v10776 = vadd.f32 %v10408, %v10709
      %v10777 = vadd.f32 %v10409, %v10714
      %v10778 = vadd.f32 %v10410, %v10717
      %v10779 = vadd.f32 %v10411, %v10722
      %v10780 = vadd.f32 %v10412, %v10725
      %v10781 = vadd.f32 %v10413, %v10730
      %v10782 = vadd.f32 %v10414, %v10733
      %v10783 = vadd.f32 %v10415, %v10738
      %v10784 = vld [vmem:[#allocation3 + $0x2b] sm:$0xff]
      %v10785 = vld [vmem:[#allocation3 + $0x33] sm:$0xff]
      %v10786 = vld [vmem:[#allocation3 + $0x3b] sm:$0xff]
      %v10787 = vld [vmem:[#allocation3 + $0x43] sm:$0xff]
      %v10788 = vld [vmem:[#allocation3 + $0x4b] sm:$0xff]
      %v10789 = vld [vmem:[#allocation3 + $0x53] sm:$0xff]
      %v10790 = vld [vmem:[#allocation3 + $0x5b] sm:$0xff]
      %v10791 = vld [vmem:[#allocation3 + $0x63] sm:$0xff]
      %v10792 = vld [vmem:[#allocation3 + $0x6b] sm:$0xff]
      %v10793 = vld [vmem:[#allocation3 + $0x73] sm:$0xff]
      %v10794 = vld [vmem:[#allocation3 + $0x7b] sm:$0xff]
      %v10795 = vld [vmem:[#allocation3 + $0x83] sm:$0xff]
      %v10796 = vld [vmem:[#allocation3 + $0x8b] sm:$0xff]
      %v10797 = vld [vmem:[#allocation3 + $0x93] sm:$0xff]
      %v10798 = vld [vmem:[#allocation3 + $0x9b] sm:$0xff]
      %v10799 = vld [vmem:[#allocation3 + $0xa3] sm:$0xff]
      %v10800 = vld [vmem:[#allocation3 + $0xab] sm:$0xff]
      %v10801 = vld [vmem:[#allocation3 + $0xb3] sm:$0xff]
      %v10802 = vld [vmem:[#allocation3 + $0xbb] sm:$0xff]
      %v10803 = vld [vmem:[#allocation3 + $0xc3] sm:$0xff]
      %v10804 = vld [vmem:[#allocation3 + $0xcb] sm:$0xff]
      %v10805 = vld [vmem:[#allocation3 + $0xd3] sm:$0xff]
      %v10806 = vld [vmem:[#allocation3 + $0xdb] sm:$0xff]
      %v10807 = vld [vmem:[#allocation3 + $0xe3] sm:$0xff]
      %v10808 = vld [vmem:[#allocation3 + $0xeb] sm:$0xff]
      %v10809 = vld [vmem:[#allocation3 + $0xf3] sm:$0xff]
      %v10810 = vld [vmem:[#allocation3 + $0xfb] sm:$0xff]
      %v10811 = vld [vmem:[#allocation3 + $0x103] sm:$0xff]
      %v10812 = vld [vmem:[#allocation3 + $0x10b] sm:$0xff]
      %v10813 = vld [vmem:[#allocation3 + $0x113] sm:$0xff]
      %v10814 = vld [vmem:[#allocation3 + $0x11b] sm:$0xff]
      %v10815 = vld [vmem:[#allocation3 + $0x123] sm:$0xff]
      %v10816 = vld [vmem:[#allocation3 + $0x12b] sm:$0xff]
      %v10817 = vld [vmem:[#allocation3 + $0x133] sm:$0xff]
      %v10818 = vld [vmem:[#allocation3 + $0x13b] sm:$0xff]
      %v10819 = vld [vmem:[#allocation3 + $0x143] sm:$0xff]
      %v10820 = vld [vmem:[#allocation3 + $0x14b] sm:$0xff]
      %v10821 = vld [vmem:[#allocation3 + $0x153] sm:$0xff]
      %v10822 = vld [vmem:[#allocation3 + $0x15b] sm:$0xff]
      %v10823 = vld [vmem:[#allocation3 + $0x163] sm:$0xff]
      %v10824 = vld [vmem:[#allocation3 + $0x16b] sm:$0xf]
      %v10825 = vpack.c.bf16 %v10785, %v10784
      %v10826 = vpack.c.bf16 %v10787, %v10786
      %v10827 = vpack.c.bf16 %v10789, %v10788
      %v10828 = vpack.c.bf16 %v10791, %v10790
      %v10829 = vpack.c.bf16 %v10793, %v10792
      %v10830 = vpack.c.bf16 %v10795, %v10794
      %v10831 = vpack.c.bf16 %v10797, %v10796
      %v10832 = vpack.c.bf16 %v10799, %v10798
      %v10833 = vpack.c.bf16 %v10801, %v10800
      %v10834 = vpack.c.bf16 %v10803, %v10802
      %v10835 = vpack.c.bf16 %v10805, %v10804
      %v10836 = vpack.c.bf16 %v10807, %v10806
      %v10837 = vpack.c.bf16 %v10809, %v10808
      %v10838 = vpack.c.bf16 %v10811, %v10810
      %v10839 = vpack.c.bf16 %v10813, %v10812
      %v10840 = vpack.c.bf16 %v10815, %v10814
      %v10841 = vpack.c.bf16 %v10817, %v10816
      %v10842 = vpack.c.bf16 %v10819, %v10818
      %v10843 = vpack.c.bf16 %v10821, %v10820
      %v10844 = vpack.c.bf16 %v10823, %v10822
      %v10845 = vpack.c.bf16 %v10824, %v10824
      %s10846 = scalar_lea.vmem %s6, 512
      %v10847 = vld [vmem:[%s10846] sm:$0xf]
      %v10848 = vld [vmem:[%s10846 + $0x4] sm:$0xf]
      %v10849 = vld [vmem:[%s10846 + $0x8] sm:$0xf]
      %v10850 = vld [vmem:[%s10846 + $0xc] sm:$0xf]
      %v10851 = vld [vmem:[%s10846 + $0x10] sm:$0xf]
      %v10852 = vld [vmem:[%s10846 + $0x14] sm:$0xf]
      %v10853 = vld [vmem:[%s10846 + $0x18] sm:$0xf]
      %v10854 = vld [vmem:[%s10846 + $0x1c] sm:$0xf]
      %v10855 = vld [vmem:[%s10846 + $0x20] sm:$0xf]
      %v10856 = vld [vmem:[%s10846 + $0x24] sm:$0xf]
      %v10857 = vld [vmem:[%s10846 + $0x28] sm:$0xf]
      %v10858 = vld [vmem:[%s10846 + $0x2c] sm:$0xf]
      %v10859 = vld [vmem:[%s10846 + $0x30] sm:$0xf]
      %v10860 = vld [vmem:[%s10846 + $0x34] sm:$0xf]
      %v10861 = vld [vmem:[%s10846 + $0x38] sm:$0xf]
      %v10862 = vld [vmem:[%s10846 + $0x3c] sm:$0xf]
      %v10879 = vunpack.c.l.b16 %v10847
      %v10880 = vunpack.c.l.b16 %v10848
      %v10881 = vunpack.c.l.b16 %v10849
      %v10882 = vunpack.c.l.b16 %v10850
      %v10883 = vunpack.c.l.b16 %v10851
      %v10884 = vunpack.c.l.b16 %v10852
      %v10885 = vunpack.c.l.b16 %v10853
      %v10886 = vunpack.c.l.b16 %v10854
      %v10887 = vunpack.c.l.b16 %v10855
      %v10888 = vunpack.c.l.b16 %v10856
      %v10889 = vunpack.c.l.b16 %v10857
      %v10890 = vunpack.c.l.b16 %v10858
      %v10891 = vunpack.c.l.b16 %v10859
      %v10892 = vunpack.c.l.b16 %v10860
      %v10893 = vunpack.c.l.b16 %v10861
      %v10894 = vunpack.c.l.b16 %v10862
      %v10895 = vpack.c.b16 %v10880, %v10879
      %v10896 = vpack.c.b16 %v10882, %v10881
      %v10897 = vpack.c.b16 %v10884, %v10883
      %v10898 = vpack.c.b16 %v10886, %v10885
      %v10899 = vpack.c.b16 %v10888, %v10887
      %v10900 = vpack.c.b16 %v10890, %v10889
      %v10901 = vpack.c.b16 %v10892, %v10891
      %v10902 = vpack.c.b16 %v10894, %v10893
      %10911 = vmatprep.subr.bf16.mxu0 0
      %10912 = vmatpush1.bf16.msra.mxu0 %v10902
      %10913 = vmatprep.subr.bf16.mxu0 0
      %10914 = vmatpush1.bf16.msra.mxu0 %v10901
      %10915 = vmatprep.subr.bf16.mxu0 0
      %10916 = vmatpush1.bf16.msra.mxu0 %v10900
      %10917 = vmatprep.subr.bf16.mxu0 0
      %10918 = vmatpush1.bf16.msra.mxu0 %v10899
      %10919 = vmatprep.subr.bf16.mxu0 0
      %10920 = vmatpush1.bf16.msra.mxu0 %v10898
      %10921 = vmatprep.subr.bf16.mxu0 0
      %10922 = vmatpush1.bf16.msra.mxu0 %v10897
      %10923 = vmatprep.subr.bf16.mxu0 0
      %10924 = vmatpush1.bf16.msra.mxu0 %v10896
      %10925 = vmatprep.subr.bf16.mxu0 0
      %10926 = vmatpush1.bf16.msra.mxu0 %v10895
      %10927 = vmatprep.subr.bf16.mxu0 0
      %10928 = vmatpush2.bf16.msra.mxu0 0
      %10929 = vmatprep.subr.bf16.mxu0 0
      %10930 = vmatpush2.bf16.msra.mxu0 0
      %10931 = vmatprep.subr.bf16.mxu0 0
      %10932 = vmatpush2.bf16.msra.mxu0 0
      %10933 = vmatprep.subr.bf16.mxu0 0
      %10934 = vmatpush2.bf16.msra.mxu0 0
      %10935 = vmatprep.subr.bf16.mxu0 0
      %10936 = vmatpush2.bf16.msra.mxu0 0
      %10937 = vmatprep.subr.bf16.mxu0 0
      %10938 = vmatpush2.bf16.msra.mxu0 0
      %10939 = vmatprep.subr.bf16.mxu0 0
      %10940 = vmatpush2.bf16.msra.mxu0 0
      %10941 = vmatprep.subr.bf16.mxu0 0
      %10942 = vmatpush2.bf16.msra.mxu0 0
      %10943 = vmatprep.mubr.bf16.mxu0 0
      %10944 = vmatmul.mubr.bf16.gmra.mxu0 %v10825
      %v10945 = vpop.f32.mrf.mxu0
      %v10946 = vadd.f32 0.0, %v10945
      %v10947 = vpop.f32.mrf.mxu0
      %v10948 = vpop.f32.mrf.mxu0
      %v10949 = vadd.f32 0.0, %v10948
      %v10950 = vpop.f32.mrf.mxu0
      %10951 = vmatprep.mubr.bf16.mxu0 0
      %10952 = vmatmul.mubr.bf16.gmra.mxu0 %v10826
      %v10953 = vpop.f32.mrf.mxu0
      %v10954 = vadd.f32 0.0, %v10953
      %v10955 = vpop.f32.mrf.mxu0
      %v10956 = vpop.f32.mrf.mxu0
      %v10957 = vadd.f32 0.0, %v10956
      %v10958 = vpop.f32.mrf.mxu0
      %10959 = vmatprep.mubr.bf16.mxu0 0
      %10960 = vmatmul.mubr.bf16.gmra.mxu0 %v10827
      %v10961 = vpop.f32.mrf.mxu0
      %v10962 = vadd.f32 0.0, %v10961
      %v10963 = vpop.f32.mrf.mxu0
      %v10964 = vpop.f32.mrf.mxu0
      %v10965 = vadd.f32 0.0, %v10964
      %v10966 = vpop.f32.mrf.mxu0
      %10967 = vmatprep.mubr.bf16.mxu0 0
      %10968 = vmatmul.mubr.bf16.gmra.mxu0 %v10828
      %v10969 = vpop.f32.mrf.mxu0
      %v10970 = vadd.f32 0.0, %v10969
      %v10971 = vpop.f32.mrf.mxu0
      %v10972 = vpop.f32.mrf.mxu0
      %v10973 = vadd.f32 0.0, %v10972
      %v10974 = vpop.f32.mrf.mxu0
      %10975 = vmatprep.mubr.bf16.mxu0 0
      %10976 = vmatmul.mubr.bf16.gmra.mxu0 %v10829
      %v10977 = vpop.f32.mrf.mxu0
      %v10978 = vadd.f32 0.0, %v10977
      %v10979 = vpop.f32.mrf.mxu0
      %v10980 = vpop.f32.mrf.mxu0
      %v10981 = vadd.f32 0.0, %v10980
      %v10982 = vpop.f32.mrf.mxu0
      %10983 = vmatprep.mubr.bf16.mxu0 0
      %10984 = vmatmul.mubr.bf16.gmra.mxu0 %v10830
      %v10985 = vpop.f32.mrf.mxu0
      %v10986 = vadd.f32 0.0, %v10985
      %v10987 = vpop.f32.mrf.mxu0
      %v10988 = vpop.f32.mrf.mxu0
      %v10989 = vadd.f32 0.0, %v10988
      %v10990 = vpop.f32.mrf.mxu0
      %10991 = vmatprep.mubr.bf16.mxu0 0
      %10992 = vmatmul.mubr.bf16.gmra.mxu0 %v10831
      %v10993 = vpop.f32.mrf.mxu0
      %v10994 = vadd.f32 0.0, %v10993
      %v10995 = vpop.f32.mrf.mxu0
      %v10996 = vpop.f32.mrf.mxu0
      %v10997 = vadd.f32 0.0, %v10996
      %v10998 = vpop.f32.mrf.mxu0
      %10999 = vmatprep.mubr.bf16.mxu0 0
      %11000 = vmatmul.mubr.bf16.gmra.mxu0 %v10832
      %v11001 = vpop.f32.mrf.mxu0
      %v11002 = vadd.f32 0.0, %v11001
      %v11003 = vpop.f32.mrf.mxu0
      %v11004 = vpop.f32.mrf.mxu0
      %v11005 = vadd.f32 0.0, %v11004
      %v11006 = vpop.f32.mrf.mxu0
      %11007 = vmatprep.mubr.bf16.mxu0 0
      %11008 = vmatmul.mubr.bf16.gmra.mxu0 %v10833
      %v11009 = vpop.f32.mrf.mxu0
      %v11010 = vadd.f32 0.0, %v11009
      %v11011 = vpop.f32.mrf.mxu0
      %v11012 = vpop.f32.mrf.mxu0
      %v11013 = vadd.f32 0.0, %v11012
      %v11014 = vpop.f32.mrf.mxu0
      %11015 = vmatprep.mubr.bf16.mxu0 0
      %11016 = vmatmul.mubr.bf16.gmra.mxu0 %v10834
      %v11017 = vpop.f32.mrf.mxu0
      %v11018 = vadd.f32 0.0, %v11017
      %v11019 = vpop.f32.mrf.mxu0
      %v11020 = vpop.f32.mrf.mxu0
      %v11021 = vadd.f32 0.0, %v11020
      %v11022 = vpop.f32.mrf.mxu0
      %11023 = vmatprep.mubr.bf16.mxu0 0
      %11024 = vmatmul.mubr.bf16.gmra.mxu0 %v10835
      %v11025 = vpop.f32.mrf.mxu0
      %v11026 = vadd.f32 0.0, %v11025
      %v11027 = vpop.f32.mrf.mxu0
      %v11028 = vpop.f32.mrf.mxu0
      %v11029 = vadd.f32 0.0, %v11028
      %v11030 = vpop.f32.mrf.mxu0
      %11031 = vmatprep.mubr.bf16.mxu0 0
      %11032 = vmatmul.mubr.bf16.gmra.mxu0 %v10836
      %v11033 = vpop.f32.mrf.mxu0
      %v11034 = vadd.f32 0.0, %v11033
      %v11035 = vpop.f32.mrf.mxu0
      %v11036 = vpop.f32.mrf.mxu0
      %v11037 = vadd.f32 0.0, %v11036
      %v11038 = vpop.f32.mrf.mxu0
      %11039 = vmatprep.mubr.bf16.mxu0 0
      %11040 = vmatmul.mubr.bf16.gmra.mxu0 %v10837
      %v11041 = vpop.f32.mrf.mxu0
      %v11042 = vadd.f32 0.0, %v11041
      %v11043 = vpop.f32.mrf.mxu0
      %v11044 = vpop.f32.mrf.mxu0
      %v11045 = vadd.f32 0.0, %v11044
      %v11046 = vpop.f32.mrf.mxu0
      %11047 = vmatprep.mubr.bf16.mxu0 0
      %11048 = vmatmul.mubr.bf16.gmra.mxu0 %v10838
      %v11049 = vpop.f32.mrf.mxu0
      %v11050 = vadd.f32 0.0, %v11049
      %v11051 = vpop.f32.mrf.mxu0
      %v11052 = vpop.f32.mrf.mxu0
      %v11053 = vadd.f32 0.0, %v11052
      %v11054 = vpop.f32.mrf.mxu0
      %11055 = vmatprep.mubr.bf16.mxu0 0
      %11056 = vmatmul.mubr.bf16.gmra.mxu0 %v10839
      %v11057 = vpop.f32.mrf.mxu0
      %v11058 = vadd.f32 0.0, %v11057
      %v11059 = vpop.f32.mrf.mxu0
      %v11060 = vpop.f32.mrf.mxu0
      %v11061 = vadd.f32 0.0, %v11060
      %v11062 = vpop.f32.mrf.mxu0
      %11063 = vmatprep.mubr.bf16.mxu0 0
      %11064 = vmatmul.mubr.bf16.gmra.mxu0 %v10840
      %v11065 = vpop.f32.mrf.mxu0
      %v11066 = vadd.f32 0.0, %v11065
      %v11067 = vpop.f32.mrf.mxu0
      %v11068 = vpop.f32.mrf.mxu0
      %v11069 = vadd.f32 0.0, %v11068
      %v11070 = vpop.f32.mrf.mxu0
      %11071 = vmatprep.mubr.bf16.mxu0 0
      %11072 = vmatmul.mubr.bf16.gmra.mxu0 %v10841
      %v11073 = vpop.f32.mrf.mxu0
      %v11074 = vadd.f32 0.0, %v11073
      %v11075 = vpop.f32.mrf.mxu0
      %v11076 = vpop.f32.mrf.mxu0
      %v11077 = vadd.f32 0.0, %v11076
      %v11078 = vpop.f32.mrf.mxu0
      %11079 = vmatprep.mubr.bf16.mxu0 0
      %11080 = vmatmul.mubr.bf16.gmra.mxu0 %v10842
      %v11081 = vpop.f32.mrf.mxu0
      %v11082 = vadd.f32 0.0, %v11081
      %v11083 = vpop.f32.mrf.mxu0
      %v11084 = vpop.f32.mrf.mxu0
      %v11085 = vadd.f32 0.0, %v11084
      %v11086 = vpop.f32.mrf.mxu0
      %11087 = vmatprep.mubr.bf16.mxu0 0
      %11088 = vmatmul.mubr.bf16.gmra.mxu0 %v10843
      %v11089 = vpop.f32.mrf.mxu0
      %v11090 = vadd.f32 0.0, %v11089
      %v11091 = vpop.f32.mrf.mxu0
      %v11092 = vpop.f32.mrf.mxu0
      %v11093 = vadd.f32 0.0, %v11092
      %v11094 = vpop.f32.mrf.mxu0
      %11095 = vmatprep.mubr.bf16.mxu0 0
      %11096 = vmatmul.mubr.bf16.gmra.mxu0 %v10844
      %v11097 = vpop.f32.mrf.mxu0
      %v11098 = vadd.f32 0.0, %v11097
      %v11099 = vpop.f32.mrf.mxu0
      %v11100 = vpop.f32.mrf.mxu0
      %v11101 = vadd.f32 0.0, %v11100
      %v11102 = vpop.f32.mrf.mxu0
      %11103 = vmatprep.mubr.bf16.mxu0 0
      %11104 = vmatmul.mubr.bf16.gmra.mxu0 %v10845
      %v11105 = vpop.f32.mrf.mxu0
      %v11106 = vadd.f32 0.0, %v11105
      %v11107 = vpop.f32.mrf.mxu0
      %v11108 = vpop.f32.mrf.mxu0
      %v11109 = vpop.f32.mrf.mxu0
      %11110 = vdwg.mxu0
      %v11111 = vadd.f32 %v10743, %v10946
      %v11112 = vadd.f32 %v10744, %v10949
      %v11113 = vadd.f32 %v10745, %v10954
      %v11114 = vadd.f32 %v10746, %v10957
      %v11115 = vadd.f32 %v10747, %v10962
      %v11116 = vadd.f32 %v10748, %v10965
      %v11117 = vadd.f32 %v10749, %v10970
      %v11118 = vadd.f32 %v10750, %v10973
      %v11119 = vadd.f32 %v10751, %v10978
      %v11120 = vadd.f32 %v10752, %v10981
      %v11121 = vadd.f32 %v10753, %v10986
      %v11122 = vadd.f32 %v10754, %v10989
      %v11123 = vadd.f32 %v10755, %v10994
      %v11124 = vadd.f32 %v10756, %v10997
      %v11125 = vadd.f32 %v10757, %v11002
      %v11126 = vadd.f32 %v10758, %v11005
      %v11127 = vadd.f32 %v10759, %v11010
      %v11128 = vadd.f32 %v10760, %v11013
      %v11129 = vadd.f32 %v10761, %v11018
      %v11130 = vadd.f32 %v10762, %v11021
      %v11131 = vadd.f32 %v10763, %v11026
      %v11132 = vadd.f32 %v10764, %v11029
      %v11133 = vadd.f32 %v10765, %v11034
      %v11134 = vadd.f32 %v10766, %v11037
      %v11135 = vadd.f32 %v10767, %v11042
      %v11136 = vadd.f32 %v10768, %v11045
      %v11137 = vadd.f32 %v10769, %v11050
      %v11138 = vadd.f32 %v10770, %v11053
      %v11139 = vadd.f32 %v10771, %v11058
      %v11140 = vadd.f32 %v10772, %v11061
      %v11141 = vadd.f32 %v10773, %v11066
      %v11142 = vadd.f32 %v10774, %v11069
      %v11143 = vadd.f32 %v10775, %v11074
      %v11144 = vadd.f32 %v10776, %v11077
      %v11145 = vadd.f32 %v10777, %v11082
      %v11146 = vadd.f32 %v10778, %v11085
      %v11147 = vadd.f32 %v10779, %v11090
      %v11148 = vadd.f32 %v10780, %v11093
      %v11149 = vadd.f32 %v10781, %v11098
      %v11150 = vadd.f32 %v10782, %v11101
      %v11151 = vadd.f32 %v10783, %v11106
      %v11152 = vld [vmem:[%s7] sm:$0x1]
      %v11154 = vlaneseq
      %v11155 = vshrl.u32 %v11154, 7
      %v11156 = vsub.s32 0, %v11155
      %v11157 = vrot.slane %v11152, %v11156
      %v11159 = vadd.f32 %v11111, %v11157
      %v11160 = vadd.f32 %v11112, %v11157
      %v11161 = vadd.f32 %v11113, %v11157
      %v11162 = vadd.f32 %v11114, %v11157
      %v11163 = vadd.f32 %v11115, %v11157
      %v11164 = vadd.f32 %v11116, %v11157
      %v11165 = vadd.f32 %v11117, %v11157
      %v11166 = vadd.f32 %v11118, %v11157
      %v11167 = vadd.f32 %v11119, %v11157
      %v11168 = vadd.f32 %v11120, %v11157
      %v11169 = vadd.f32 %v11121, %v11157
      %v11170 = vadd.f32 %v11122, %v11157
      %v11171 = vadd.f32 %v11123, %v11157
      %v11172 = vadd.f32 %v11124, %v11157
      %v11173 = vadd.f32 %v11125, %v11157
      %v11174 = vadd.f32 %v11126, %v11157
      %v11175 = vadd.f32 %v11127, %v11157
      %v11176 = vadd.f32 %v11128, %v11157
      %v11177 = vadd.f32 %v11129, %v11157
      %v11178 = vadd.f32 %v11130, %v11157
      %v11179 = vadd.f32 %v11131, %v11157
      %v11180 = vadd.f32 %v11132, %v11157
      %v11181 = vadd.f32 %v11133, %v11157
      %v11182 = vadd.f32 %v11134, %v11157
      %v11183 = vadd.f32 %v11135, %v11157
      %v11184 = vadd.f32 %v11136, %v11157
      %v11185 = vadd.f32 %v11137, %v11157
      %v11186 = vadd.f32 %v11138, %v11157
      %v11187 = vadd.f32 %v11139, %v11157
      %v11188 = vadd.f32 %v11140, %v11157
      %v11189 = vadd.f32 %v11141, %v11157
      %v11190 = vadd.f32 %v11142, %v11157
      %v11191 = vadd.f32 %v11143, %v11157
      %v11192 = vadd.f32 %v11144, %v11157
      %v11193 = vadd.f32 %v11145, %v11157
      %v11194 = vadd.f32 %v11146, %v11157
      %v11195 = vadd.f32 %v11147, %v11157
      %v11196 = vadd.f32 %v11148, %v11157
      %v11197 = vadd.f32 %v11149, %v11157
      %v11198 = vadd.f32 %v11150, %v11157
      %v11199 = vadd.f32 %v11151, %v11157
      %v11200 = vadd.f32 %v11159, %v4347
      %v11201 = vadd.f32 %v11160, %v4348
      %v11202 = vadd.f32 %v11161, %v4349
      %v11203 = vadd.f32 %v11162, %v4350
      %v11204 = vadd.f32 %v11163, %v4351
      %v11205 = vadd.f32 %v11164, %v4352
      %v11206 = vadd.f32 %v11165, %v4353
      %v11207 = vadd.f32 %v11166, %v4354
      %v11208 = vadd.f32 %v11167, %v4355
      %v11209 = vadd.f32 %v11168, %v4356
      %v11210 = vadd.f32 %v11169, %v4357
      %v11211 = vadd.f32 %v11170, %v4358
      %v11212 = vadd.f32 %v11171, %v4359
      %v11213 = vadd.f32 %v11172, %v4360
      %v11214 = vadd.f32 %v11173, %v4361
      %v11215 = vadd.f32 %v11174, %v4362
      %v11216 = vadd.f32 %v11175, %v4363
      %v11217 = vadd.f32 %v11176, %v4364
      %v11218 = vadd.f32 %v11177, %v4365
      %v11219 = vadd.f32 %v11178, %v4366
      %v11220 = vadd.f32 %v11179, %v4367
      %v11221 = vadd.f32 %v11180, %v4368
      %v11222 = vadd.f32 %v11181, %v4369
      %v11223 = vadd.f32 %v11182, %v4370
      %v11224 = vadd.f32 %v11183, %v4371
      %v11225 = vadd.f32 %v11184, %v4372
      %v11226 = vadd.f32 %v11185, %v4373
      %v11227 = vadd.f32 %v11186, %v4374
      %v11228 = vadd.f32 %v11187, %v4375
      %v11229 = vadd.f32 %v11188, %v4376
      %v11230 = vadd.f32 %v11189, %v4377
      %v11231 = vadd.f32 %v11190, %v4378
      %v11232 = vadd.f32 %v11191, %v4379
      %v11233 = vadd.f32 %v11192, %v4380
      %v11234 = vadd.f32 %v11193, %v4381
      %v11235 = vadd.f32 %v11194, %v4382
      %v11236 = vadd.f32 %v11195, %v4383
      %v11237 = vadd.f32 %v11196, %v4384
      %v11238 = vadd.f32 %v11197, %v4385
      %v11239 = vadd.f32 %v11198, %v4386
      %v11240 = vadd.f32 %v11199, %v4387
      %v11241 = vmax.f32 %v11200, 0.0
      %v11242 = vmax.f32 %v11201, 0.0
      %v11243 = vmax.f32 %v11202, 0.0
      %v11244 = vmax.f32 %v11203, 0.0
      %v11245 = vmax.f32 %v11204, 0.0
      %v11246 = vmax.f32 %v11205, 0.0
      %v11247 = vmax.f32 %v11206, 0.0
      %v11248 = vmax.f32 %v11207, 0.0
      %v11249 = vmax.f32 %v11208, 0.0
      %v11250 = vmax.f32 %v11209, 0.0
      %v11251 = vmax.f32 %v11210, 0.0
      %v11252 = vmax.f32 %v11211, 0.0
      %v11253 = vmax.f32 %v11212, 0.0
      %v11254 = vmax.f32 %v11213, 0.0
      %v11255 = vmax.f32 %v11214, 0.0
      %v11256 = vmax.f32 %v11215, 0.0
      %v11257 = vmax.f32 %v11216, 0.0
      %v11258 = vmax.f32 %v11217, 0.0
      %v11259 = vmax.f32 %v11218, 0.0
      %v11260 = vmax.f32 %v11219, 0.0
      %v11261 = vmax.f32 %v11220, 0.0
      %v11262 = vmax.f32 %v11221, 0.0
      %v11263 = vmax.f32 %v11222, 0.0
      %v11264 = vmax.f32 %v11223, 0.0
      %v11265 = vmax.f32 %v11224, 0.0
      %v11266 = vmax.f32 %v11225, 0.0
      %v11267 = vmax.f32 %v11226, 0.0
      %v11268 = vmax.f32 %v11227, 0.0
      %v11269 = vmax.f32 %v11228, 0.0
      %v11270 = vmax.f32 %v11229, 0.0
      %v11271 = vmax.f32 %v11230, 0.0
      %v11272 = vmax.f32 %v11231, 0.0
      %v11273 = vmax.f32 %v11232, 0.0
      %v11274 = vmax.f32 %v11233, 0.0
      %v11275 = vmax.f32 %v11234, 0.0
      %v11276 = vmax.f32 %v11235, 0.0
      %v11277 = vmax.f32 %v11236, 0.0
      %v11278 = vmax.f32 %v11237, 0.0
      %v11279 = vmax.f32 %v11238, 0.0
      %v11280 = vmax.f32 %v11239, 0.0
      %v11281 = vmax.f32 %v11240, 0.0
      %v11282 = vmul.f32 %v11241, %v4145
      %v11283 = vmul.f32 %v11242, %v4150
      %v11284 = vmul.f32 %v11243, %v4155
      %v11285 = vmul.f32 %v11244, %v4160
      %v11286 = vmul.f32 %v11245, %v4165
      %v11287 = vmul.f32 %v11246, %v4170
      %v11288 = vmul.f32 %v11247, %v4175
      %v11289 = vmul.f32 %v11248, %v4180
      %v11290 = vmul.f32 %v11249, %v4185
      %v11291 = vmul.f32 %v11250, %v4190
      %v11292 = vmul.f32 %v11251, %v4195
      %v11293 = vmul.f32 %v11252, %v4200
      %v11294 = vmul.f32 %v11253, %v4205
      %v11295 = vmul.f32 %v11254, %v4210
      %v11296 = vmul.f32 %v11255, %v4215
      %v11297 = vmul.f32 %v11256, %v4220
      %v11298 = vmul.f32 %v11257, %v4225
      %v11299 = vmul.f32 %v11258, %v4230
      %v11300 = vmul.f32 %v11259, %v4235
      %v11301 = vmul.f32 %v11260, %v4240
      %v11302 = vmul.f32 %v11261, %v4245
      %v11303 = vmul.f32 %v11262, %v4250
      %v11304 = vmul.f32 %v11263, %v4255
      %v11305 = vmul.f32 %v11264, %v4260
      %v11306 = vmul.f32 %v11265, %v4265
      %v11307 = vmul.f32 %v11266, %v4270
      %v11308 = vmul.f32 %v11267, %v4275
      %v11309 = vmul.f32 %v11268, %v4280
      %v11310 = vmul.f32 %v11269, %v4285
      %v11311 = vmul.f32 %v11270, %v4290
      %v11312 = vmul.f32 %v11271, %v4295
      %v11313 = vmul.f32 %v11272, %v4300
      %v11314 = vmul.f32 %v11273, %v4305
      %v11315 = vmul.f32 %v11274, %v4310
      %v11316 = vmul.f32 %v11275, %v4315
      %v11317 = vmul.f32 %v11276, %v4320
      %v11318 = vmul.f32 %v11277, %v4325
      %v11319 = vmul.f32 %v11278, %v4330
      %v11320 = vmul.f32 %v11279, %v4335
      %v11321 = vmul.f32 %v11280, %v4340
      %v11322 = vmul.f32 %v11281, %v4345
      %v11323 = vadd.f32 %v11282, %v11283
      %v11324 = vadd.f32 %v11323, %v11284
      %v11325 = vadd.f32 %v11324, %v11285
      %v11326 = vadd.f32 %v11325, %v11286
      %v11327 = vadd.f32 %v11326, %v11287
      %v11328 = vadd.f32 %v11327, %v11288
      %v11329 = vadd.f32 %v11328, %v11289
      %v11330 = vadd.f32 %v11329, %v11290
      %v11331 = vadd.f32 %v11330, %v11291
      %v11332 = vadd.f32 %v11331, %v11292
      %v11333 = vadd.f32 %v11332, %v11293
      %v11334 = vadd.f32 %v11333, %v11294
      %v11335 = vadd.f32 %v11334, %v11295
      %v11336 = vadd.f32 %v11335, %v11296
      %v11337 = vadd.f32 %v11336, %v11297
      %v11338 = vadd.f32 %v11337, %v11298
      %v11339 = vadd.f32 %v11338, %v11299
      %v11340 = vadd.f32 %v11339, %v11300
      %v11341 = vadd.f32 %v11340, %v11301
      %v11342 = vadd.f32 %v11341, %v11302
      %v11343 = vadd.f32 %v11342, %v11303
      %v11344 = vadd.f32 %v11343, %v11304
      %v11345 = vadd.f32 %v11344, %v11305
      %v11346 = vadd.f32 %v11345, %v11306
      %v11347 = vadd.f32 %v11346, %v11307
      %v11348 = vadd.f32 %v11347, %v11308
      %v11349 = vadd.f32 %v11348, %v11309
      %v11350 = vadd.f32 %v11349, %v11310
      %v11351 = vadd.f32 %v11350, %v11311
      %v11352 = vadd.f32 %v11351, %v11312
      %v11353 = vadd.f32 %v11352, %v11313
      %v11354 = vadd.f32 %v11353, %v11314
      %v11355 = vadd.f32 %v11354, %v11315
      %v11356 = vadd.f32 %v11355, %v11316
      %v11357 = vadd.f32 %v11356, %v11317
      %v11358 = vadd.f32 %v11357, %v11318
      %v11359 = vadd.f32 %v11358, %v11319
      %v11360 = vadd.f32 %v11359, %v11320
      %v11361 = vadd.f32 %v11360, %v11321
      %vm11362 = vcmask 1043456
      %v11363 = vsel %vm11362, %v11322, 0.0
      %v11364 = vadd.f32 %v11361, %v11363
      %v11365 = vrot.slane %v11364, 4
      %v11366 = vadd.f32 %v11364, %v11365
      %v11367 = vrot.slane %v11366, 2
      %v11368 = vadd.f32 %v11366, %v11367
      %v11369 = vrot.slane %v11368, 1
      %v11370 = vadd.f32 %v11368, %v11369
      %v11371 = vmul.f32 %v11370, 0.00390625
      %11372 = vst [vmem:[%s391] sm:$0xff] %v11371
      %v11373 = vld [vmem:[%s8] sm:$0xff]
      %v11374 = vld [vmem:[%s8 + $0x8] sm:$0xff]
      %v11375 = vld [vmem:[%s8 + $0x10] sm:$0xff]
      %v11376 = vld [vmem:[%s8 + $0x18] sm:$0xff]
      %v11377 = vld [vmem:[%s8 + $0x20] sm:$0xff]
      %v11378 = vld [vmem:[%s8 + $0x28] sm:$0xff]
      %v11379 = vld [vmem:[%s8 + $0x30] sm:$0xff]
      %v11380 = vld [vmem:[%s8 + $0x38] sm:$0xff]
      %v11381 = vld [vmem:[%s8 + $0x40] sm:$0xff]
      %v11382 = vld [vmem:[%s8 + $0x48] sm:$0xff]
      %v11383 = vld [vmem:[%s8 + $0x50] sm:$0xff]
      %v11384 = vld [vmem:[%s8 + $0x58] sm:$0xff]
      %v11385 = vld [vmem:[%s8 + $0x60] sm:$0xff]
      %v11386 = vld [vmem:[%s8 + $0x68] sm:$0xff]
      %v11387 = vld [vmem:[%s8 + $0x70] sm:$0xff]
      %v11388 = vld [vmem:[%s8 + $0x78] sm:$0xff]
      %v11389 = vld [vmem:[%s9] sm:$0x1]
      %11390 = vmatprep.subr.mxu0 0.0
      %11391 = vmatpush1.msra.mxu0 %v11388
      %11392 = vmatprep.subr.mxu0 0.0
      %11393 = vmatpush1.msra.mxu0 %v11387
      %11394 = vmatprep.subr.mxu0 0.0
      %11395 = vmatpush1.msra.mxu0 %v11386
      %11396 = vmatprep.subr.mxu0 0.0
      %11397 = vmatpush1.msra.mxu0 %v11385
      %11398 = vmatprep.subr.mxu0 0.0
      %11399 = vmatpush1.msra.mxu0 %v11384
      %11400 = vmatprep.subr.mxu0 0.0
      %11401 = vmatpush1.msra.mxu0 %v11383
      %11402 = vmatprep.subr.mxu0 0.0
      %11403 = vmatpush1.msra.mxu0 %v11382
      %11404 = vmatprep.subr.mxu0 0.0
      %11405 = vmatpush1.msra.mxu0 %v11381
      %11406 = vmatprep.subr.mxu0 0.0
      %11407 = vmatpush1.msra.mxu0 %v11380
      %11408 = vmatprep.subr.mxu0 0.0
      %11409 = vmatpush1.msra.mxu0 %v11379
      %11410 = vmatprep.subr.mxu0 0.0
      %11411 = vmatpush1.msra.mxu0 %v11378
      %11412 = vmatprep.subr.mxu0 0.0
      %11413 = vmatpush1.msra.mxu0 %v11377
      %11414 = vmatprep.subr.mxu0 0.0
      %11415 = vmatpush1.msra.mxu0 %v11376
      %11416 = vmatprep.subr.mxu0 0.0
      %11417 = vmatpush1.msra.mxu0 %v11375
      %11418 = vmatprep.subr.mxu0 0.0
      %11419 = vmatpush1.msra.mxu0 %v11374
      %11420 = vmatprep.subr.mxu0 0.0
      %11421 = vmatpush1.msra.mxu0 %v11373
      %11422 = vmatprep.subr.mxu0 0.0
      %11423 = vmatpush2.msra.mxu0 0.0
      %11424 = vmatprep.subr.mxu0 0.0
      %11425 = vmatpush2.msra.mxu0 0.0
      %11426 = vmatprep.subr.mxu0 0.0
      %11427 = vmatpush2.msra.mxu0 0.0
      %11428 = vmatprep.subr.mxu0 0.0
      %11429 = vmatpush2.msra.mxu0 0.0
      %11430 = vmatprep.subr.mxu0 0.0
      %11431 = vmatpush2.msra.mxu0 0.0
      %11432 = vmatprep.subr.mxu0 0.0
      %11433 = vmatpush2.msra.mxu0 0.0
      %11434 = vmatprep.subr.mxu0 0.0
      %11435 = vmatpush2.msra.mxu0 0.0
      %11436 = vmatprep.subr.mxu0 0.0
      %11437 = vmatpush2.msra.mxu0 0.0
      %11438 = vmatprep.subr.mxu0 0.0
      %11439 = vmatpush2.msra.mxu0 0.0
      %11440 = vmatprep.subr.mxu0 0.0
      %11441 = vmatpush2.msra.mxu0 0.0
      %11442 = vmatprep.subr.mxu0 0.0
      %11443 = vmatpush2.msra.mxu0 0.0
      %11444 = vmatprep.subr.mxu0 0.0
      %11445 = vmatpush2.msra.mxu0 0.0
      %11446 = vmatprep.subr.mxu0 0.0
      %11447 = vmatpush2.msra.mxu0 0.0
      %11448 = vmatprep.subr.mxu0 0.0
      %11449 = vmatpush2.msra.mxu0 0.0
      %11450 = vmatprep.subr.mxu0 0.0
      %11451 = vmatpush2.msra.mxu0 0.0
      %11452 = vmatprep.subr.mxu0 0.0
      %11453 = vmatpush2.msra.mxu0 0.0
      %11454 = vmatprep.mubr.f32.mxu0 0.0
      %11455 = vmatmul.mubr.f32.gmra.mxu0 %v11371
      %v11456 = vpop.f32.mrf.mxu0
      %v11457 = vadd.f32 %v11389, %v11456
      %v11458 = vpop.f32.mrf.mxu0
      %11459 = vdwg.mxu0
      %v11460 = vlaneseq
      %v11461 = vshrl.u32 %v11460, 7
      %v11462 = vsub.s32 0, %v11461
      %v11463 = vrot.slane %v11457, %v11462
      %11464 = vst [vmem:[%s395] sm:$0xff] %v11463
      %p11465 = scmp.lt.s32.totalorder %s23, 1
      %s11466 = scalar_select %p11465, %s23, 1
      %s11467 = smul.addr %s11466, 8
      %s11468 = scalar_lea.vmem %s10, %s11467
      %p11469 = scmp.lt.s32.totalorder %s23, 1
      %s11470 = scalar_select %p11469, %s23, 1
      %s11471 = smul.addr %s11470, 8
      %s11472 = scalar_lea.vmem %s11, %s11471
      // Predicated region
      $region61: #{simclr_forward.1} parent=59 // pred_check
        %p11473 = pneg %p256
      $region62: #{simclr_forward.1} parent=59 // pred_check_branch
        %11475 = sbr.rel (%p11473) target = $region64
      $region63: #{simclr_forward.1} parent=59 // pred_region
        _
      $region64: #{simclr_forward.1} parent=59 // pred_fallthru
        _
      // Predicated region
      $region65: #{simclr_forward.1} parent=59 // pred_check
        %p11476 = pneg %p282
      $region66: #{simclr_forward.1} parent=59 // pred_check_branch
        %11478 = sbr.rel (%p11476) target = $region68
      $region67: #{simclr_forward.1} parent=59 // pred_region
        _
      $region68: #{simclr_forward.1} parent=59 // pred_fallthru
        _
    $region60: #{simclr_forward.1} parent=5 // pred_fallthru
      _
    %p11479 = scmp.le.s32.totalorder 2, %s18
    // Predicated region
    $region69: #{simclr_forward.1} parent=5 // pred_check
      %p11480 = pneg %p11479
    $region70: #{simclr_forward.1} parent=5 // pred_check_branch
      %11482 = sbr.rel (%p11480) target = $region72
    $region71: #{simclr_forward.1} parent=5 // pred_region
      %s11483 = ssub.s32 %s18, 2
      // Predicated region
      $region73: #{simclr_forward.1} parent=71 // pred_check
        %p11484 = pneg %p262
      $region74: #{simclr_forward.1} parent=71 // pred_check_branch
        %11486 = sbr.rel (%p11484) target = $region76
      $region75: #{simclr_forward.1} parent=71 // pred_region
        %p11487 = scmp.lt.s32.totalorder %s24, 1
        %s11488 = scalar_select %p11487, %s24, 1
        %s11489 = smul.addr %s11488, 8
        %s11490 = scalar_lea.vmem %s10, %s11489
      $region76: #{simclr_forward.1} parent=71 // pred_fallthru
        _
      // Predicated region
      $region77: #{simclr_forward.1} parent=71 // pred_check
        %p11491 = pneg %p288
      $region78: #{simclr_forward.1} parent=71 // pred_check_branch
        %11493 = sbr.rel (%p11491) target = $region80
      $region79: #{simclr_forward.1} parent=71 // pred_region
        %p11494 = scmp.lt.s32.totalorder %s24, 1
        %s11495 = scalar_select %p11494, %s24, 1
        %s11496 = smul.addr %s11495, 8
        %s11497 = scalar_lea.vmem %s11, %s11496
      $region80: #{simclr_forward.1} parent=71 // pred_fallthru
        _
    $region72: #{simclr_forward.1} parent=5 // pred_fallthru
      _
  $region6: #{simclr_forward.1} parent=0 // loop_footer
    %s22 = sadd.s32 1, %s18
  $region7: #{simclr_forward.1} parent=0 // loop_footer_branch
    %17 = sbr.rel target = $region3
  $region8: #{simclr_forward.1} parent=0 // loop_exit
    _

</llo_original>
